<compile_context>
chip_gen: v6e
topology: v6e:2x2x1
jax: 0.10.0
libtpu: 0.0.40
codegen_flags: <defaults>
</compile_context>

<pallas_src>
import numpy as np
import jax
import jax.numpy as jnp
from jax.experimental import pallas as pl
from jax.experimental.pallas import tpu as pltpu

DROPOUT_RATE = 0.4          # unused at inference (dropout == identity)
FILTERS = 32
KERNEL_SIZE = 3
MAX_DILATION = 3
NUM_LAYERS = 6

# (C_in, C_out, H == W of that conv's input) for conv1..conv4
_CONV_DIMS = ((2, 4, 4), (4, 6, 8), (6, 8, 16), (8, KERNEL_SIZE * KERNEL_SIZE, 32))
_PAD = 128                  # lane-aligned left margin of the padded VMEM scratch buffers


# ------------------------------ in-kernel helpers ------------------------------

def _stage_padded(pad_ref, x_flat):
    """Write a (C, H*W) feature map into a zero-padded VMEM scratch buffer."""
    hw = x_flat.shape[1]
    pad_ref[...] = jnp.zeros(pad_ref.shape, jnp.float32)
    pad_ref[:, _PAD:_PAD + hw] = x_flat


def _conv3x3_from_padded(pad_ref, wt_ref, bias_bc, H, W, act, scale=1.0):
    """3x3 'same' conv of the feature map staged in `pad_ref`, in (C, H*W) layout.

    out = act(sum_k W_k @ shift_k(x) + b) * scale; each of the 9 spatial taps is a
    static slice read of the padded scratch plus a boundary mask, followed by one
    (O, C) @ (C, H*W) MXU matmul accumulated in f32.
    """
    hw = H * W
    logw = W.bit_length() - 1                 # W is a power of two (4 / 8 / 16 / 32)
    lane = jax.lax.broadcasted_iota(jnp.int32, (1, hw), 1)
    hh = lane >> logw                         # row index h of each lane
    ww = lane & (W - 1)                       # col index w of each lane

    acc = bias_bc                             # (O, H*W) pre-broadcast bias
    for kh in range(3):
        for kw in range(3):
            dh, dw = kh - 1, kw - 1
            d = dh * W + dw
            tap = pad_ref[:, _PAD + d:_PAD + d + hw]                 # (C, H*W)
            if dh != 0 or dw != 0:
                valid = ((hh + dh >= 0) & (hh + dh < H) &
                         (ww + dw >= 0) & (ww + dw < W))
                tap = jnp.where(valid, tap, 0.0)
            acc = acc + jnp.dot(wt_ref[kh * 3 + kw], tap,
                                preferred_element_type=jnp.float32)
    if act == "relu":
        acc = jnp.maximum(acc, 0.0)
    elif act == "tanh":
        acc = jnp.tanh(acc)
    if scale != 1.0:
        acc = acc * scale
    return acc


def _hypernet_kernel(x_ref, w1_ref, b1_ref,
                     wt1_ref, bb1_ref, wt2_ref, bb2_ref,
                     wt3_ref, bb3_ref, wt4_ref, bb4_ref,
                     up1_ref, up2_ref, up3_ref,
                     o_ref,
                     pad1_ref, pad2_ref, pad3_ref, pad4_ref):
    x = x_ref[...]                                                         # (1, 9)

    # fc1 + tanh, produced directly in the (C=2, H*W=16) flat layout and staged
    # into conv1's padded scratch (== view(1, 2, 4, 4) of the 32-wide fc output).
    pad1_ref[...] = jnp.zeros(pad1_ref.shape, jnp.float32)
    for c in range(2):
        row = jnp.dot(x, w1_ref[c], preferred_element_type=jnp.float32)    # (1, 16)
        pad1_ref[c:c + 1, _PAD:_PAD + 16] = jnp.tanh(row + b1_ref[c:c + 1, :])

    # conv1 + relu (dropout == identity at inference), bilinear x2 upsample
    h = _conv3x3_from_padded(pad1_ref, wt1_ref, bb1_ref[...], 4, 4, "relu")    # (4, 16)
    h = jnp.dot(h, up1_ref[...], preferred_element_type=jnp.float32)           # (4, 64)

    _stage_padded(pad2_ref, h)
    h = _conv3x3_from_padded(pad2_ref, wt2_ref, bb2_ref[...], 8, 8, "relu")    # (6, 64)
    h = jnp.dot(h, up2_ref[...], preferred_element_type=jnp.float32)           # (6, 256)

    _stage_padded(pad3_ref, h)
    h = _conv3x3_from_padded(pad3_ref, wt3_ref, bb3_ref[...], 16, 16, "relu")  # (8, 256)
    h = jnp.dot(h, up3_ref[...], preferred_element_type=jnp.float32)           # (8, 1024)

    # conv4 + tanh, with the trailing * 0.8 fused (permute(0,1,2,3) is identity)
    _stage_padded(pad4_ref, h)
    h = _conv3x3_from_padded(pad4_ref, wt4_ref, bb4_ref[...], 32, 32, "tanh",
                             scale=0.8)                                        # (9, 1024)
    o_ref[...] = h


# ------------------------------ host-side packing ------------------------------

def _bilinear_matrix_align_corners(n_in, n_out):
    # PyTorch F.upsample_bilinear == interpolate(mode="bilinear", align_corners=True)
    src = np.arange(n_out, dtype=np.float64) * (n_in - 1) / max(n_out - 1, 1)
    lo = np.clip(np.floor(src).astype(np.int64), 0, n_in - 1)
    hi = np.minimum(lo + 1, n_in - 1)
    frac = src - lo
    A = np.zeros((n_out, n_in), dtype=np.float64)
    A[np.arange(n_out), lo] += 1.0 - frac
    A[np.arange(n_out), hi] += frac
    return A


def _upsample_x2_matrix_T(n):
    """(n*n, 4*n*n) constant U^T so that x_flat @ U^T is a bilinear x2 upsample."""
    Ah = _bilinear_matrix_align_corners(n, 2 * n)            # (2n, n)
    U = np.kron(Ah, Ah)                                      # (4*n*n, n*n), row-major (h, w)
    return jnp.asarray(U.T, dtype=jnp.float32)


def hypernet_forward(params, x):
    """Forward pass of HyperNet: x (1, 9) -> (32, 32, 3, 3) conv-kernel tensor."""
    c0, hw0 = 2, (FILTERS // 8) * (FILTERS // 8)             # (2, 16)
    in_dim = NUM_LAYERS + MAX_DILATION                       # 9

    # Pack operands (tiny, weight-only reshapes; each is loaded into VMEM once).
    w1 = params["fc1_w"].reshape(c0, hw0, in_dim).transpose(0, 2, 1)     # (2, 9, 16)
    b1 = params["fc1_b"].reshape(c0, hw0)                                # (2, 16)
    operands = [x, w1, b1]
    for li, (cin, cout, hin) in enumerate(_CONV_DIMS):
        w = params[f"conv{li + 1}_w"]                                    # (O, C, 3, 3)
        b = params[f"conv{li + 1}_b"]                                    # (O,)
        operands.append(w.transpose(2, 3, 0, 1).reshape(9, cout, cin))   # per-tap (9, O, C)
        operands.append(jnp.broadcast_to(b.reshape(cout, 1), (cout, hin * hin)))
    for (_, _, hin) in _CONV_DIMS[1:]:
        operands.append(_upsample_x2_matrix_T(hin // 2))     # 4->8, 8->16, 16->32

    out_flat = pl.pallas_call(
        _hypernet_kernel,
        out_shape=jax.ShapeDtypeStruct(
            (KERNEL_SIZE * KERNEL_SIZE, FILTERS * FILTERS), jnp.float32),
        scratch_shapes=[
            pltpu.VMEM((cin, hin * hin + 2 * _PAD), jnp.float32)
            for (cin, _, hin) in _CONV_DIMS
        ],
    )(*operands)
    # contiguous (1, 9, 32, 32) -> view(32, 32, 3, 3); permute(0,1,2,3) is identity
    return out_flat.reshape(FILTERS, FILTERS, KERNEL_SIZE, KERNEL_SIZE)


# ------------------------------ reference / init -------------------------------

def hypernet_reference(params, x):
    """Pure-JAX/XLA reference (no Pallas) used for in-script numerical validation."""
    h = jnp.tanh(x @ params["fc1_w"].T + params["fc1_b"])                # (1, 32)
    h = h.reshape(1, 2, FILTERS // 8, FILTERS // 8)

    def conv(h, w, b):
        y = jax.lax.conv_general_dilated(
            h, w, window_strides=(1, 1), padding=((1, 1), (1, 1)),
            dimension_numbers=("NCHW", "OIHW", "NCHW"))
        return y + b.reshape(1, -1, 1, 1)

    def up(h):
        H, W = h.shape[2], h.shape[3]
        Ah = jnp.asarray(_bilinear_matrix_align_corners(H, 2 * H), jnp.float32)
        Aw = jnp.asarray(_bilinear_matrix_align_corners(W, 2 * W), jnp.float32)
        return jnp.einsum("ph,nchw,qw->ncpq", Ah, h, Aw)

    h = jax.nn.relu(conv(h, params["conv1_w"], params["conv1_b"]))
    h = up(h)
    h = jax.nn.relu(conv(h, params["conv2_w"], params["conv2_b"]))
    h = up(h)
    h = jax.nn.relu(conv(h, params["conv3_w"], params["conv3_b"]))
    h = up(h)
    h = jnp.tanh(conv(h, params["conv4_w"], params["conv4_b"])) * 0.8
    return h.reshape(FILTERS, FILTERS, KERNEL_SIZE, KERNEL_SIZE)


def init_params(key):
    """Deterministic init with PyTorch-default-style uniform(-1/sqrt(fan_in), +)."""
    keys = jax.random.split(key, 10)

    def u(k, shape, fan_in):
        bound = 1.0 / np.sqrt(fan_in)
        return jax.random.uniform(k, shape, jnp.float32, -bound, bound)

    in_dim = NUM_LAYERS + MAX_DILATION                       # 9
    out_dim = FILTERS * FILTERS // 32                        # 32
    params = {
        "fc1_w": u(keys[0], (out_dim, in_dim), in_dim),      # (32, 9)
        "fc1_b": u(keys[1], (out_dim,), in_dim),             # (32,)
    }
    for li, (cin, cout, _) in enumerate(_CONV_DIMS):
        fan = cin * 9
        params[f"conv{li + 1}_w"] = u(keys[2 + 2 * li], (cout, cin, 3, 3), fan)
        params[f"conv{li + 1}_b"] = u(keys[3 + 2 * li], (cout,), fan)
    return params


if __name__ == "__main__":
    key = jax.random.PRNGKey(0)
    pkey, xkey = jax.random.split(key)
    params = init_params(pkey)
    x = jax.random.normal(xkey, (1, NUM_LAYERS + MAX_DILATION), jnp.float32)

    out = jax.jit(hypernet_forward)(params, x)
    out = jax.block_until_ready(out)

    assert out.shape == (FILTERS, FILTERS, KERNEL_SIZE, KERNEL_SIZE)
    assert out.dtype == jnp.float32
    assert bool(jnp.all(jnp.isfinite(out)))

    ref = jax.block_until_ready(jax.jit(hypernet_reference)(params, x))
    max_err = float(jnp.max(jnp.abs(out - ref)))
    assert max_err < 2e-3, f"mismatch vs XLA reference: max abs err = {max_err}"

    print("KERNEL_OK")
</pallas_src>

<mosaic_0001>
module attributes {stable_mosaic.version = 11 : i64} {
  func.func @_hypernet_kernel(%arg0: memref<1x9xf32, #tpu.memory_space<vmem>>, %arg1: memref<2x9x16xf32, #tpu.memory_space<vmem>>, %arg2: memref<2x16xf32, #tpu.memory_space<vmem>>, %arg3: memref<9x4x2xf32, #tpu.memory_space<vmem>>, %arg4: memref<4x16xf32, #tpu.memory_space<vmem>>, %arg5: memref<9x6x4xf32, #tpu.memory_space<vmem>>, %arg6: memref<6x64xf32, #tpu.memory_space<vmem>>, %arg7: memref<9x8x6xf32, #tpu.memory_space<vmem>>, %arg8: memref<8x256xf32, #tpu.memory_space<vmem>>, %arg9: memref<9x9x8xf32, #tpu.memory_space<vmem>>, %arg10: memref<9x1024xf32, #tpu.memory_space<vmem>>, %arg11: memref<16x64xf32, #tpu.memory_space<vmem>>, %arg12: memref<64x256xf32, #tpu.memory_space<vmem>>, %arg13: memref<256x1024xf32, #tpu.memory_space<vmem>>, %arg14: memref<9x1024xf32, #tpu.memory_space<vmem>>, %arg15: memref<2x272xf32, #tpu.memory_space<vmem>>, %arg16: memref<4x320xf32, #tpu.memory_space<vmem>>, %arg17: memref<6x512xf32, #tpu.memory_space<vmem>>, %arg18: memref<8x1280xf32, #tpu.memory_space<vmem>>) attributes {dimension_semantics = [], scalar_prefetch = 0 : i64, scratch_operands = 4 : i64, tpu.core_type = #tpu.core_type<tc>} {
    %c0 = arith.constant 0 : index
    %c0_0 = arith.constant 0 : index
    %0 = vector.load %arg0[%c0, %c0_0] : memref<1x9xf32, #tpu.memory_space<vmem>>, vector<1x9xf32>
    %cst = arith.constant 0.000000e+00 : f32
    %1 = vector.broadcast %cst : f32 to vector<2x272xf32>
    %c0_1 = arith.constant 0 : index
    %c0_2 = arith.constant 0 : index
    %2 = vector.load %arg15[%c0_1, %c0_2] : memref<2x272xf32, #tpu.memory_space<vmem>>, vector<2x272xf32>
    tpu.vector_store %arg15[%c0_1, %c0_2], %1 {strides = array<i32>} : memref<2x272xf32, #tpu.memory_space<vmem>>, vector<2x272xf32>,
    %c0_3 = arith.constant 0 : index
    %c0_4 = arith.constant 0 : index
    %c0_5 = arith.constant 0 : index
    %3 = vector.load %arg1[%c0_3, %c0_4, %c0_5] : memref<2x9x16xf32, #tpu.memory_space<vmem>>, vector<1x9x16xf32>
    %4 = vector.shape_cast %3 : vector<1x9x16xf32> to vector<9x16xf32>
    %cst_6 = arith.constant dense<0.000000e+00> : vector<1x16xf32>
    %5 = tpu.matmul %0, %4, %cst_6 {dimension_numbers = #tpu.dot_dimension_numbers<[1], [0], [0], [1], [0, 0, 1, 1], [], []>} : vector<1x9xf32>, vector<9x16xf32>, vector<1x16xf32> -> vector<1x16xf32>
    %c0_7 = arith.constant 0 : index
    %c0_8 = arith.constant 0 : index
    %6 = vector.load %arg2[%c0_7, %c0_8] : memref<2x16xf32, #tpu.memory_space<vmem>>, vector<1x16xf32>
    %7 = arith.addf %5, %6 : vector<1x16xf32>
    %8 = math.tanh %7 : vector<1x16xf32>
    %c0_9 = arith.constant 0 : index
    %c128 = arith.constant 128 : index
    %9 = vector.load %arg15[%c0_9, %c128] : memref<2x272xf32, #tpu.memory_space<vmem>>, vector<1x16xf32>
    tpu.vector_store %arg15[%c0_9, %c128], %8 {strides = array<i32>} : memref<2x272xf32, #tpu.memory_space<vmem>>, vector<1x16xf32>,
    %c1 = arith.constant 1 : index
    %c0_10 = arith.constant 0 : index
    %c0_11 = arith.constant 0 : index
    %10 = vector.load %arg1[%c1, %c0_10, %c0_11] : memref<2x9x16xf32, #tpu.memory_space<vmem>>, vector<1x9x16xf32>
    %11 = vector.shape_cast %10 : vector<1x9x16xf32> to vector<9x16xf32>
    %cst_12 = arith.constant dense<0.000000e+00> : vector<1x16xf32>
    %12 = tpu.matmul %0, %11, %cst_12 {dimension_numbers = #tpu.dot_dimension_numbers<[1], [0], [0], [1], [0, 0, 1, 1], [], []>} : vector<1x9xf32>, vector<9x16xf32>, vector<1x16xf32> -> vector<1x16xf32>
    %c1_13 = arith.constant 1 : index
    %c0_14 = arith.constant 0 : index
    %13 = vector.load %arg2[%c1_13, %c0_14] : memref<2x16xf32, #tpu.memory_space<vmem>>, vector<1x16xf32>
    %14 = arith.addf %12, %13 : vector<1x16xf32>
    %15 = math.tanh %14 : vector<1x16xf32>
    %c1_15 = arith.constant 1 : index
    %c128_16 = arith.constant 128 : index
    %16 = vector.load %arg15[%c1_15, %c128_16] : memref<2x272xf32, #tpu.memory_space<vmem>>, vector<1x16xf32>
    tpu.vector_store %arg15[%c1_15, %c128_16], %15 {strides = array<i32>} : memref<2x272xf32, #tpu.memory_space<vmem>>, vector<1x16xf32>,
    %c0_17 = arith.constant 0 : index
    %c0_18 = arith.constant 0 : index
    %17 = vector.load %arg4[%c0_17, %c0_18] : memref<4x16xf32, #tpu.memory_space<vmem>>, vector<4x16xf32>
    %18 = tpu.iota {dimensions = array<i32: 1>} : vector<1x16xi32>
    %c2_i32 = arith.constant 2 : i32
    %19 = vector.broadcast %c2_i32 : i32 to vector<1x16xi32>
    %20 = arith.shrsi %18, %19 : vector<1x16xi32>
    %c3_i32 = arith.constant 3 : i32
    %21 = vector.broadcast %c3_i32 : i32 to vector<1x16xi32>
    %22 = arith.andi %18, %21 : vector<1x16xi32>
    %c0_19 = arith.constant 0 : index
    %c123 = arith.constant 123 : index
    %23 = vector.load %arg15[%c0_19, %c123] : memref<2x272xf32, #tpu.memory_space<vmem>>, vector<2x16xf32>
    %c-1_i32 = arith.constant -1 : i32
    %24 = vector.broadcast %c-1_i32 : i32 to vector<1x16xi32>
    %25 = arith.addi %20, %24 : vector<1x16xi32>
    %c0_i32 = arith.constant 0 : i32
    %26 = vector.broadcast %c0_i32 : i32 to vector<1x16xi32>
    %27 = arith.cmpi sge, %25, %26 : vector<1x16xi32>
    %c-1_i32_20 = arith.constant -1 : i32
    %28 = vector.broadcast %c-1_i32_20 : i32 to vector<1x16xi32>
    %29 = arith.addi %20, %28 : vector<1x16xi32>
    %c4_i32 = arith.constant 4 : i32
    %30 = vector.broadcast %c4_i32 : i32 to vector<1x16xi32>
    %31 = arith.cmpi slt, %29, %30 : vector<1x16xi32>
    %32 = arith.andi %27, %31 : vector<1x16xi1>
    %c-1_i32_21 = arith.constant -1 : i32
    %33 = vector.broadcast %c-1_i32_21 : i32 to vector<1x16xi32>
    %34 = arith.addi %22, %33 : vector<1x16xi32>
    %c0_i32_22 = arith.constant 0 : i32
    %35 = vector.broadcast %c0_i32_22 : i32 to vector<1x16xi32>
    %36 = arith.cmpi sge, %34, %35 : vector<1x16xi32>
    %37 = arith.andi %32, %36 : vector<1x16xi1>
    %c-1_i32_23 = arith.constant -1 : i32
    %38 = vector.broadcast %c-1_i32_23 : i32 to vector<1x16xi32>
    %39 = arith.addi %22, %38 : vector<1x16xi32>
    %c4_i32_24 = arith.constant 4 : i32
    %40 = vector.broadcast %c4_i32_24 : i32 to vector<1x16xi32>
    %41 = arith.cmpi slt, %39, %40 : vector<1x16xi32>
    %42 = arith.andi %37, %41 : vector<1x16xi1>
    %cst_25 = arith.constant 0.000000e+00 : f32
    %43 = vector.shape_cast %42 : vector<1x16xi1> to vector<1x16xi1>
    %44 = vector.broadcast %43 : vector<1x16xi1> to vector<2x16xi1>
    %45 = vector.broadcast %cst_25 : f32 to vector<2x16xf32>
    %46 = arith.select %44, %23, %45 : vector<2x16xi1>, vector<2x16xf32>
    %c0_26 = arith.constant 0 : index
    %c0_27 = arith.constant 0 : index
    %c0_28 = arith.constant 0 : index
    %47 = vector.load %arg3[%c0_26, %c0_27, %c0_28] : memref<9x4x2xf32, #tpu.memory_space<vmem>>, vector<1x4x2xf32>
    %48 = vector.shape_cast %47 : vector<1x4x2xf32> to vector<4x2xf32>
    %cst_29 = arith.constant dense<0.000000e+00> : vector<4x16xf32>
    %49 = tpu.matmul %48, %46, %cst_29 {dimension_numbers = #tpu.dot_dimension_numbers<[1], [0], [0], [1], [0, 0, 1, 1], [], []>} : vector<4x2xf32>, vector<2x16xf32>, vector<4x16xf32> -> vector<4x16xf32>
    %50 = arith.addf %17, %49 : vector<4x16xf32>
    %c0_30 = arith.constant 0 : index
    %c124 = arith.constant 124 : index
    %51 = vector.load %arg15[%c0_30, %c124] : memref<2x272xf32, #tpu.memory_space<vmem>>, vector<2x16xf32>
    %c-1_i32_31 = arith.constant -1 : i32
    %52 = vector.broadcast %c-1_i32_31 : i32 to vector<1x16xi32>
    %53 = arith.addi %20, %52 : vector<1x16xi32>
    %c0_i32_32 = arith.constant 0 : i32
    %54 = vector.broadcast %c0_i32_32 : i32 to vector<1x16xi32>
    %55 = arith.cmpi sge, %53, %54 : vector<1x16xi32>
    %c-1_i32_33 = arith.constant -1 : i32
    %56 = vector.broadcast %c-1_i32_33 : i32 to vector<1x16xi32>
    %57 = arith.addi %20, %56 : vector<1x16xi32>
    %c4_i32_34 = arith.constant 4 : i32
    %58 = vector.broadcast %c4_i32_34 : i32 to vector<1x16xi32>
    %59 = arith.cmpi slt, %57, %58 : vector<1x16xi32>
    %60 = arith.andi %55, %59 : vector<1x16xi1>
    %c0_i32_35 = arith.constant 0 : i32
    %61 = vector.broadcast %c0_i32_35 : i32 to vector<1x16xi32>
    %62 = arith.addi %22, %61 : vector<1x16xi32>
    %c0_i32_36 = arith.constant 0 : i32
    %63 = vector.broadcast %c0_i32_36 : i32 to vector<1x16xi32>
    %64 = arith.cmpi sge, %62, %63 : vector<1x16xi32>
    %65 = arith.andi %60, %64 : vector<1x16xi1>
    %c0_i32_37 = arith.constant 0 : i32
    %66 = vector.broadcast %c0_i32_37 : i32 to vector<1x16xi32>
    %67 = arith.addi %22, %66 : vector<1x16xi32>
    %c4_i32_38 = arith.constant 4 : i32
    %68 = vector.broadcast %c4_i32_38 : i32 to vector<1x16xi32>
    %69 = arith.cmpi slt, %67, %68 : vector<1x16xi32>
    %70 = arith.andi %65, %69 : vector<1x16xi1>
    %cst_39 = arith.constant 0.000000e+00 : f32
    %71 = vector.shape_cast %70 : vector<1x16xi1> to vector<1x16xi1>
    %72 = vector.broadcast %71 : vector<1x16xi1> to vector<2x16xi1>
    %73 = vector.broadcast %cst_39 : f32 to vector<2x16xf32>
    %74 = arith.select %72, %51, %73 : vector<2x16xi1>, vector<2x16xf32>
    %c1_40 = arith.constant 1 : index
    %c0_41 = arith.constant 0 : index
    %c0_42 = arith.constant 0 : index
    %75 = vector.load %arg3[%c1_40, %c0_41, %c0_42] : memref<9x4x2xf32, #tpu.memory_space<vmem>>, vector<1x4x2xf32>
    %76 = vector.shape_cast %75 : vector<1x4x2xf32> to vector<4x2xf32>
    %cst_43 = arith.constant dense<0.000000e+00> : vector<4x16xf32>
    %77 = tpu.matmul %76, %74, %cst_43 {dimension_numbers = #tpu.dot_dimension_numbers<[1], [0], [0], [1], [0, 0, 1, 1], [], []>} : vector<4x2xf32>, vector<2x16xf32>, vector<4x16xf32> -> vector<4x16xf32>
    %78 = arith.addf %50, %77 : vector<4x16xf32>
    %c0_44 = arith.constant 0 : index
    %c125 = arith.constant 125 : index
    %79 = vector.load %arg15[%c0_44, %c125] : memref<2x272xf32, #tpu.memory_space<vmem>>, vector<2x16xf32>
    %c-1_i32_45 = arith.constant -1 : i32
    %80 = vector.broadcast %c-1_i32_45 : i32 to vector<1x16xi32>
    %81 = arith.addi %20, %80 : vector<1x16xi32>
    %c0_i32_46 = arith.constant 0 : i32
    %82 = vector.broadcast %c0_i32_46 : i32 to vector<1x16xi32>
    %83 = arith.cmpi sge, %81, %82 : vector<1x16xi32>
    %c-1_i32_47 = arith.constant -1 : i32
    %84 = vector.broadcast %c-1_i32_47 : i32 to vector<1x16xi32>
    %85 = arith.addi %20, %84 : vector<1x16xi32>
    %c4_i32_48 = arith.constant 4 : i32
    %86 = vector.broadcast %c4_i32_48 : i32 to vector<1x16xi32>
    %87 = arith.cmpi slt, %85, %86 : vector<1x16xi32>
    %88 = arith.andi %83, %87 : vector<1x16xi1>
    %c1_i32 = arith.constant 1 : i32
    %89 = vector.broadcast %c1_i32 : i32 to vector<1x16xi32>
    %90 = arith.addi %22, %89 : vector<1x16xi32>
    %c0_i32_49 = arith.constant 0 : i32
    %91 = vector.broadcast %c0_i32_49 : i32 to vector<1x16xi32>
    %92 = arith.cmpi sge, %90, %91 : vector<1x16xi32>
    %93 = arith.andi %88, %92 : vector<1x16xi1>
    %c1_i32_50 = arith.constant 1 : i32
    %94 = vector.broadcast %c1_i32_50 : i32 to vector<1x16xi32>
    %95 = arith.addi %22, %94 : vector<1x16xi32>
    %c4_i32_51 = arith.constant 4 : i32
    %96 = vector.broadcast %c4_i32_51 : i32 to vector<1x16xi32>
    %97 = arith.cmpi slt, %95, %96 : vector<1x16xi32>
    %98 = arith.andi %93, %97 : vector<1x16xi1>
    %cst_52 = arith.constant 0.000000e+00 : f32
    %99 = vector.shape_cast %98 : vector<1x16xi1> to vector<1x16xi1>
    %100 = vector.broadcast %99 : vector<1x16xi1> to vector<2x16xi1>
    %101 = vector.broadcast %cst_52 : f32 to vector<2x16xf32>
    %102 = arith.select %100, %79, %101 : vector<2x16xi1>, vector<2x16xf32>
    %c2 = arith.constant 2 : index
    %c0_53 = arith.constant 0 : index
    %c0_54 = arith.constant 0 : index
    %103 = vector.load %arg3[%c2, %c0_53, %c0_54] : memref<9x4x2xf32, #tpu.memory_space<vmem>>, vector<1x4x2xf32>
    %104 = vector.shape_cast %103 : vector<1x4x2xf32> to vector<4x2xf32>
    %cst_55 = arith.constant dense<0.000000e+00> : vector<4x16xf32>
    %105 = tpu.matmul %104, %102, %cst_55 {dimension_numbers = #tpu.dot_dimension_numbers<[1], [0], [0], [1], [0, 0, 1, 1], [], []>} : vector<4x2xf32>, vector<2x16xf32>, vector<4x16xf32> -> vector<4x16xf32>
    %106 = arith.addf %78, %105 : vector<4x16xf32>
    %c0_56 = arith.constant 0 : index
    %c127 = arith.constant 127 : index
    %107 = vector.load %arg15[%c0_56, %c127] : memref<2x272xf32, #tpu.memory_space<vmem>>, vector<2x16xf32>
    %c0_i32_57 = arith.constant 0 : i32
    %108 = vector.broadcast %c0_i32_57 : i32 to vector<1x16xi32>
    %109 = arith.addi %20, %108 : vector<1x16xi32>
    %c0_i32_58 = arith.constant 0 : i32
    %110 = vector.broadcast %c0_i32_58 : i32 to vector<1x16xi32>
    %111 = arith.cmpi sge, %109, %110 : vector<1x16xi32>
    %c0_i32_59 = arith.constant 0 : i32
    %112 = vector.broadcast %c0_i32_59 : i32 to vector<1x16xi32>
    %113 = arith.addi %20, %112 : vector<1x16xi32>
    %c4_i32_60 = arith.constant 4 : i32
    %114 = vector.broadcast %c4_i32_60 : i32 to vector<1x16xi32>
    %115 = arith.cmpi slt, %113, %114 : vector<1x16xi32>
    %116 = arith.andi %111, %115 : vector<1x16xi1>
    %c-1_i32_61 = arith.constant -1 : i32
    %117 = vector.broadcast %c-1_i32_61 : i32 to vector<1x16xi32>
    %118 = arith.addi %22, %117 : vector<1x16xi32>
    %c0_i32_62 = arith.constant 0 : i32
    %119 = vector.broadcast %c0_i32_62 : i32 to vector<1x16xi32>
    %120 = arith.cmpi sge, %118, %119 : vector<1x16xi32>
    %121 = arith.andi %116, %120 : vector<1x16xi1>
    %c-1_i32_63 = arith.constant -1 : i32
    %122 = vector.broadcast %c-1_i32_63 : i32 to vector<1x16xi32>
    %123 = arith.addi %22, %122 : vector<1x16xi32>
    %c4_i32_64 = arith.constant 4 : i32
    %124 = vector.broadcast %c4_i32_64 : i32 to vector<1x16xi32>
    %125 = arith.cmpi slt, %123, %124 : vector<1x16xi32>
    %126 = arith.andi %121, %125 : vector<1x16xi1>
    %cst_65 = arith.constant 0.000000e+00 : f32
    %127 = vector.shape_cast %126 : vector<1x16xi1> to vector<1x16xi1>
    %128 = vector.broadcast %127 : vector<1x16xi1> to vector<2x16xi1>
    %129 = vector.broadcast %cst_65 : f32 to vector<2x16xf32>
    %130 = arith.select %128, %107, %129 : vector<2x16xi1>, vector<2x16xf32>
    %c3 = arith.constant 3 : index
    %c0_66 = arith.constant 0 : index
    %c0_67 = arith.constant 0 : index
    %131 = vector.load %arg3[%c3, %c0_66, %c0_67] : memref<9x4x2xf32, #tpu.memory_space<vmem>>, vector<1x4x2xf32>
    %132 = vector.shape_cast %131 : vector<1x4x2xf32> to vector<4x2xf32>
    %cst_68 = arith.constant dense<0.000000e+00> : vector<4x16xf32>
    %133 = tpu.matmul %132, %130, %cst_68 {dimension_numbers = #tpu.dot_dimension_numbers<[1], [0], [0], [1], [0, 0, 1, 1], [], []>} : vector<4x2xf32>, vector<2x16xf32>, vector<4x16xf32> -> vector<4x16xf32>
    %134 = arith.addf %106, %133 : vector<4x16xf32>
    %c0_69 = arith.constant 0 : index
    %c128_70 = arith.constant 128 : index
    %135 = vector.load %arg15[%c0_69, %c128_70] : memref<2x272xf32, #tpu.memory_space<vmem>>, vector<2x16xf32>
    %c4 = arith.constant 4 : index
    %c0_71 = arith.constant 0 : index
    %c0_72 = arith.constant 0 : index
    %136 = vector.load %arg3[%c4, %c0_71, %c0_72] : memref<9x4x2xf32, #tpu.memory_space<vmem>>, vector<1x4x2xf32>
    %137 = vector.shape_cast %136 : vector<1x4x2xf32> to vector<4x2xf32>
    %cst_73 = arith.constant dense<0.000000e+00> : vector<4x16xf32>
    %138 = tpu.matmul %137, %135, %cst_73 {dimension_numbers = #tpu.dot_dimension_numbers<[1], [0], [0], [1], [0, 0, 1, 1], [], []>} : vector<4x2xf32>, vector<2x16xf32>, vector<4x16xf32> -> vector<4x16xf32>
    %139 = arith.addf %134, %138 : vector<4x16xf32>
    %c0_74 = arith.constant 0 : index
    %c129 = arith.constant 129 : index
    %140 = vector.load %arg15[%c0_74, %c129] : memref<2x272xf32, #tpu.memory_space<vmem>>, vector<2x16xf32>
    %c0_i32_75 = arith.constant 0 : i32
    %141 = vector.broadcast %c0_i32_75 : i32 to vector<1x16xi32>
    %142 = arith.addi %20, %141 : vector<1x16xi32>
    %c0_i32_76 = arith.constant 0 : i32
    %143 = vector.broadcast %c0_i32_76 : i32 to vector<1x16xi32>
    %144 = arith.cmpi sge, %142, %143 : vector<1x16xi32>
    %c0_i32_77 = arith.constant 0 : i32
    %145 = vector.broadcast %c0_i32_77 : i32 to vector<1x16xi32>
    %146 = arith.addi %20, %145 : vector<1x16xi32>
    %c4_i32_78 = arith.constant 4 : i32
    %147 = vector.broadcast %c4_i32_78 : i32 to vector<1x16xi32>
    %148 = arith.cmpi slt, %146, %147 : vector<1x16xi32>
    %149 = arith.andi %144, %148 : vector<1x16xi1>
    %c1_i32_79 = arith.constant 1 : i32
    %150 = vector.broadcast %c1_i32_79 : i32 to vector<1x16xi32>
    %151 = arith.addi %22, %150 : vector<1x16xi32>
    %c0_i32_80 = arith.constant 0 : i32
    %152 = vector.broadcast %c0_i32_80 : i32 to vector<1x16xi32>
    %153 = arith.cmpi sge, %151, %152 : vector<1x16xi32>
    %154 = arith.andi %149, %153 : vector<1x16xi1>
    %c1_i32_81 = arith.constant 1 : i32
    %155 = vector.broadcast %c1_i32_81 : i32 to vector<1x16xi32>
    %156 = arith.addi %22, %155 : vector<1x16xi32>
    %c4_i32_82 = arith.constant 4 : i32
    %157 = vector.broadcast %c4_i32_82 : i32 to vector<1x16xi32>
    %158 = arith.cmpi slt, %156, %157 : vector<1x16xi32>
    %159 = arith.andi %154, %158 : vector<1x16xi1>
    %cst_83 = arith.constant 0.000000e+00 : f32
    %160 = vector.shape_cast %159 : vector<1x16xi1> to vector<1x16xi1>
    %161 = vector.broadcast %160 : vector<1x16xi1> to vector<2x16xi1>
    %162 = vector.broadcast %cst_83 : f32 to vector<2x16xf32>
    %163 = arith.select %161, %140, %162 : vector<2x16xi1>, vector<2x16xf32>
    %c5 = arith.constant 5 : index
    %c0_84 = arith.constant 0 : index
    %c0_85 = arith.constant 0 : index
    %164 = vector.load %arg3[%c5, %c0_84, %c0_85] : memref<9x4x2xf32, #tpu.memory_space<vmem>>, vector<1x4x2xf32>
    %165 = vector.shape_cast %164 : vector<1x4x2xf32> to vector<4x2xf32>
    %cst_86 = arith.constant dense<0.000000e+00> : vector<4x16xf32>
    %166 = tpu.matmul %165, %163, %cst_86 {dimension_numbers = #tpu.dot_dimension_numbers<[1], [0], [0], [1], [0, 0, 1, 1], [], []>} : vector<4x2xf32>, vector<2x16xf32>, vector<4x16xf32> -> vector<4x16xf32>
    %167 = arith.addf %139, %166 : vector<4x16xf32>
    %c0_87 = arith.constant 0 : index
    %c131 = arith.constant 131 : index
    %168 = vector.load %arg15[%c0_87, %c131] : memref<2x272xf32, #tpu.memory_space<vmem>>, vector<2x16xf32>
    %c1_i32_88 = arith.constant 1 : i32
    %169 = vector.broadcast %c1_i32_88 : i32 to vector<1x16xi32>
    %170 = arith.addi %20, %169 : vector<1x16xi32>
    %c0_i32_89 = arith.constant 0 : i32
    %171 = vector.broadcast %c0_i32_89 : i32 to vector<1x16xi32>
    %172 = arith.cmpi sge, %170, %171 : vector<1x16xi32>
    %c1_i32_90 = arith.constant 1 : i32
    %173 = vector.broadcast %c1_i32_90 : i32 to vector<1x16xi32>
    %174 = arith.addi %20, %173 : vector<1x16xi32>
    %c4_i32_91 = arith.constant 4 : i32
    %175 = vector.broadcast %c4_i32_91 : i32 to vector<1x16xi32>
    %176 = arith.cmpi slt, %174, %175 : vector<1x16xi32>
    %177 = arith.andi %172, %176 : vector<1x16xi1>
    %c-1_i32_92 = arith.constant -1 : i32
    %178 = vector.broadcast %c-1_i32_92 : i32 to vector<1x16xi32>
    %179 = arith.addi %22, %178 : vector<1x16xi32>
    %c0_i32_93 = arith.constant 0 : i32
    %180 = vector.broadcast %c0_i32_93 : i32 to vector<1x16xi32>
    %181 = arith.cmpi sge, %179, %180 : vector<1x16xi32>
    %182 = arith.andi %177, %181 : vector<1x16xi1>
    %c-1_i32_94 = arith.constant -1 : i32
    %183 = vector.broadcast %c-1_i32_94 : i32 to vector<1x16xi32>
    %184 = arith.addi %22, %183 : vector<1x16xi32>
    %c4_i32_95 = arith.constant 4 : i32
    %185 = vector.broadcast %c4_i32_95 : i32 to vector<1x16xi32>
    %186 = arith.cmpi slt, %184, %185 : vector<1x16xi32>
    %187 = arith.andi %182, %186 : vector<1x16xi1>
    %cst_96 = arith.constant 0.000000e+00 : f32
    %188 = vector.shape_cast %187 : vector<1x16xi1> to vector<1x16xi1>
    %189 = vector.broadcast %188 : vector<1x16xi1> to vector<2x16xi1>
    %190 = vector.broadcast %cst_96 : f32 to vector<2x16xf32>
    %191 = arith.select %189, %168, %190 : vector<2x16xi1>, vector<2x16xf32>
    %c6 = arith.constant 6 : index
    %c0_97 = arith.constant 0 : index
    %c0_98 = arith.constant 0 : index
    %192 = vector.load %arg3[%c6, %c0_97, %c0_98] : memref<9x4x2xf32, #tpu.memory_space<vmem>>, vector<1x4x2xf32>
    %193 = vector.shape_cast %192 : vector<1x4x2xf32> to vector<4x2xf32>
    %cst_99 = arith.constant dense<0.000000e+00> : vector<4x16xf32>
    %194 = tpu.matmul %193, %191, %cst_99 {dimension_numbers = #tpu.dot_dimension_numbers<[1], [0], [0], [1], [0, 0, 1, 1], [], []>} : vector<4x2xf32>, vector<2x16xf32>, vector<4x16xf32> -> vector<4x16xf32>
    %195 = arith.addf %167, %194 : vector<4x16xf32>
    %c0_100 = arith.constant 0 : index
    %c132 = arith.constant 132 : index
    %196 = vector.load %arg15[%c0_100, %c132] : memref<2x272xf32, #tpu.memory_space<vmem>>, vector<2x16xf32>
    %c1_i32_101 = arith.constant 1 : i32
    %197 = vector.broadcast %c1_i32_101 : i32 to vector<1x16xi32>
    %198 = arith.addi %20, %197 : vector<1x16xi32>
    %c0_i32_102 = arith.constant 0 : i32
    %199 = vector.broadcast %c0_i32_102 : i32 to vector<1x16xi32>
    %200 = arith.cmpi sge, %198, %199 : vector<1x16xi32>
    %c1_i32_103 = arith.constant 1 : i32
    %201 = vector.broadcast %c1_i32_103 : i32 to vector<1x16xi32>
    %202 = arith.addi %20, %201 : vector<1x16xi32>
    %c4_i32_104 = arith.constant 4 : i32
    %203 = vector.broadcast %c4_i32_104 : i32 to vector<1x16xi32>
    %204 = arith.cmpi slt, %202, %203 : vector<1x16xi32>
    %205 = arith.andi %200, %204 : vector<1x16xi1>
    %c0_i32_105 = arith.constant 0 : i32
    %206 = vector.broadcast %c0_i32_105 : i32 to vector<1x16xi32>
    %207 = arith.addi %22, %206 : vector<1x16xi32>
    %c0_i32_106 = arith.constant 0 : i32
    %208 = vector.broadcast %c0_i32_106 : i32 to vector<1x16xi32>
    %209 = arith.cmpi sge, %207, %208 : vector<1x16xi32>
    %210 = arith.andi %205, %209 : vector<1x16xi1>
    %c0_i32_107 = arith.constant 0 : i32
    %211 = vector.broadcast %c0_i32_107 : i32 to vector<1x16xi32>
    %212 = arith.addi %22, %211 : vector<1x16xi32>
    %c4_i32_108 = arith.constant 4 : i32
    %213 = vector.broadcast %c4_i32_108 : i32 to vector<1x16xi32>
    %214 = arith.cmpi slt, %212, %213 : vector<1x16xi32>
    %215 = arith.andi %210, %214 : vector<1x16xi1>
    %cst_109 = arith.constant 0.000000e+00 : f32
    %216 = vector.shape_cast %215 : vector<1x16xi1> to vector<1x16xi1>
    %217 = vector.broadcast %216 : vector<1x16xi1> to vector<2x16xi1>
    %218 = vector.broadcast %cst_109 : f32 to vector<2x16xf32>
    %219 = arith.select %217, %196, %218 : vector<2x16xi1>, vector<2x16xf32>
    %c7 = arith.constant 7 : index
    %c0_110 = arith.constant 0 : index
    %c0_111 = arith.constant 0 : index
    %220 = vector.load %arg3[%c7, %c0_110, %c0_111] : memref<9x4x2xf32, #tpu.memory_space<vmem>>, vector<1x4x2xf32>
    %221 = vector.shape_cast %220 : vector<1x4x2xf32> to vector<4x2xf32>
    %cst_112 = arith.constant dense<0.000000e+00> : vector<4x16xf32>
    %222 = tpu.matmul %221, %219, %cst_112 {dimension_numbers = #tpu.dot_dimension_numbers<[1], [0], [0], [1], [0, 0, 1, 1], [], []>} : vector<4x2xf32>, vector<2x16xf32>, vector<4x16xf32> -> vector<4x16xf32>
    %223 = arith.addf %195, %222 : vector<4x16xf32>
    %c0_113 = arith.constant 0 : index
    %c133 = arith.constant 133 : index
    %224 = vector.load %arg15[%c0_113, %c133] : memref<2x272xf32, #tpu.memory_space<vmem>>, vector<2x16xf32>
    %c1_i32_114 = arith.constant 1 : i32
    %225 = vector.broadcast %c1_i32_114 : i32 to vector<1x16xi32>
    %226 = arith.addi %20, %225 : vector<1x16xi32>
    %c0_i32_115 = arith.constant 0 : i32
    %227 = vector.broadcast %c0_i32_115 : i32 to vector<1x16xi32>
    %228 = arith.cmpi sge, %226, %227 : vector<1x16xi32>
    %c1_i32_116 = arith.constant 1 : i32
    %229 = vector.broadcast %c1_i32_116 : i32 to vector<1x16xi32>
    %230 = arith.addi %20, %229 : vector<1x16xi32>
    %c4_i32_117 = arith.constant 4 : i32
    %231 = vector.broadcast %c4_i32_117 : i32 to vector<1x16xi32>
    %232 = arith.cmpi slt, %230, %231 : vector<1x16xi32>
    %233 = arith.andi %228, %232 : vector<1x16xi1>
    %c1_i32_118 = arith.constant 1 : i32
    %234 = vector.broadcast %c1_i32_118 : i32 to vector<1x16xi32>
    %235 = arith.addi %22, %234 : vector<1x16xi32>
    %c0_i32_119 = arith.constant 0 : i32
    %236 = vector.broadcast %c0_i32_119 : i32 to vector<1x16xi32>
    %237 = arith.cmpi sge, %235, %236 : vector<1x16xi32>
    %238 = arith.andi %233, %237 : vector<1x16xi1>
    %c1_i32_120 = arith.constant 1 : i32
    %239 = vector.broadcast %c1_i32_120 : i32 to vector<1x16xi32>
    %240 = arith.addi %22, %239 : vector<1x16xi32>
    %c4_i32_121 = arith.constant 4 : i32
    %241 = vector.broadcast %c4_i32_121 : i32 to vector<1x16xi32>
    %242 = arith.cmpi slt, %240, %241 : vector<1x16xi32>
    %243 = arith.andi %238, %242 : vector<1x16xi1>
    %cst_122 = arith.constant 0.000000e+00 : f32
    %244 = vector.shape_cast %243 : vector<1x16xi1> to vector<1x16xi1>
    %245 = vector.broadcast %244 : vector<1x16xi1> to vector<2x16xi1>
    %246 = vector.broadcast %cst_122 : f32 to vector<2x16xf32>
    %247 = arith.select %245, %224, %246 : vector<2x16xi1>, vector<2x16xf32>
    %c8 = arith.constant 8 : index
    %c0_123 = arith.constant 0 : index
    %c0_124 = arith.constant 0 : index
    %248 = vector.load %arg3[%c8, %c0_123, %c0_124] : memref<9x4x2xf32, #tpu.memory_space<vmem>>, vector<1x4x2xf32>
    %249 = vector.shape_cast %248 : vector<1x4x2xf32> to vector<4x2xf32>
    %cst_125 = arith.constant dense<0.000000e+00> : vector<4x16xf32>
    %250 = tpu.matmul %249, %247, %cst_125 {dimension_numbers = #tpu.dot_dimension_numbers<[1], [0], [0], [1], [0, 0, 1, 1], [], []>} : vector<4x2xf32>, vector<2x16xf32>, vector<4x16xf32> -> vector<4x16xf32>
    %251 = arith.addf %223, %250 : vector<4x16xf32>
    %cst_126 = arith.constant 0.000000e+00 : f32
    %252 = vector.broadcast %cst_126 : f32 to vector<4x16xf32>
    %253 = arith.maximumf %251, %252 : vector<4x16xf32>
    %c0_127 = arith.constant 0 : index
    %c0_128 = arith.constant 0 : index
    %254 = vector.load %arg11[%c0_127, %c0_128] : memref<16x64xf32, #tpu.memory_space<vmem>>, vector<16x64xf32>
    %cst_129 = arith.constant dense<0.000000e+00> : vector<4x64xf32>
    %255 = tpu.matmul %253, %254, %cst_129 {dimension_numbers = #tpu.dot_dimension_numbers<[1], [0], [0], [1], [0, 0, 1, 1], [], []>} : vector<4x16xf32>, vector<16x64xf32>, vector<4x64xf32> -> vector<4x64xf32>
    %cst_130 = arith.constant 0.000000e+00 : f32
    %256 = vector.broadcast %cst_130 : f32 to vector<4x320xf32>
    %c0_131 = arith.constant 0 : index
    %c0_132 = arith.constant 0 : index
    %257 = vector.load %arg16[%c0_131, %c0_132] : memref<4x320xf32, #tpu.memory_space<vmem>>, vector<4x320xf32>
    tpu.vector_store %arg16[%c0_131, %c0_132], %256 {strides = array<i32>} : memref<4x320xf32, #tpu.memory_space<vmem>>, vector<4x320xf32>,
    %c0_133 = arith.constant 0 : index
    %c128_134 = arith.constant 128 : index
    %258 = vector.load %arg16[%c0_133, %c128_134] : memref<4x320xf32, #tpu.memory_space<vmem>>, vector<4x64xf32>
    tpu.vector_store %arg16[%c0_133, %c128_134], %255 {strides = array<i32>} : memref<4x320xf32, #tpu.memory_space<vmem>>, vector<4x64xf32>,
    %c0_135 = arith.constant 0 : index
    %c0_136 = arith.constant 0 : index
    %259 = vector.load %arg6[%c0_135, %c0_136] : memref<6x64xf32, #tpu.memory_space<vmem>>, vector<6x64xf32>
    %260 = tpu.iota {dimensions = array<i32: 1>} : vector<1x64xi32>
    %c3_i32_137 = arith.constant 3 : i32
    %261 = vector.broadcast %c3_i32_137 : i32 to vector<1x64xi32>
    %262 = arith.shrsi %260, %261 : vector<1x64xi32>
    %c7_i32 = arith.constant 7 : i32
    %263 = vector.broadcast %c7_i32 : i32 to vector<1x64xi32>
    %264 = arith.andi %260, %263 : vector<1x64xi32>
    %c0_138 = arith.constant 0 : index
    %c119 = arith.constant 119 : index
    %265 = vector.load %arg16[%c0_138, %c119] : memref<4x320xf32, #tpu.memory_space<vmem>>, vector<4x64xf32>
    %c-1_i32_139 = arith.constant -1 : i32
    %266 = vector.broadcast %c-1_i32_139 : i32 to vector<1x64xi32>
    %267 = arith.addi %262, %266 : vector<1x64xi32>
    %c0_i32_140 = arith.constant 0 : i32
    %268 = vector.broadcast %c0_i32_140 : i32 to vector<1x64xi32>
    %269 = arith.cmpi sge, %267, %268 : vector<1x64xi32>
    %c-1_i32_141 = arith.constant -1 : i32
    %270 = vector.broadcast %c-1_i32_141 : i32 to vector<1x64xi32>
    %271 = arith.addi %262, %270 : vector<1x64xi32>
    %c8_i32 = arith.constant 8 : i32
    %272 = vector.broadcast %c8_i32 : i32 to vector<1x64xi32>
    %273 = arith.cmpi slt, %271, %272 : vector<1x64xi32>
    %274 = arith.andi %269, %273 : vector<1x64xi1>
    %c-1_i32_142 = arith.constant -1 : i32
    %275 = vector.broadcast %c-1_i32_142 : i32 to vector<1x64xi32>
    %276 = arith.addi %264, %275 : vector<1x64xi32>
    %c0_i32_143 = arith.constant 0 : i32
    %277 = vector.broadcast %c0_i32_143 : i32 to vector<1x64xi32>
    %278 = arith.cmpi sge, %276, %277 : vector<1x64xi32>
    %279 = arith.andi %274, %278 : vector<1x64xi1>
    %c-1_i32_144 = arith.constant -1 : i32
    %280 = vector.broadcast %c-1_i32_144 : i32 to vector<1x64xi32>
    %281 = arith.addi %264, %280 : vector<1x64xi32>
    %c8_i32_145 = arith.constant 8 : i32
    %282 = vector.broadcast %c8_i32_145 : i32 to vector<1x64xi32>
    %283 = arith.cmpi slt, %281, %282 : vector<1x64xi32>
    %284 = arith.andi %279, %283 : vector<1x64xi1>
    %cst_146 = arith.constant 0.000000e+00 : f32
    %285 = vector.shape_cast %284 : vector<1x64xi1> to vector<1x64xi1>
    %286 = vector.broadcast %285 : vector<1x64xi1> to vector<4x64xi1>
    %287 = vector.broadcast %cst_146 : f32 to vector<4x64xf32>
    %288 = arith.select %286, %265, %287 : vector<4x64xi1>, vector<4x64xf32>
    %c0_147 = arith.constant 0 : index
    %c0_148 = arith.constant 0 : index
    %c0_149 = arith.constant 0 : index
    %289 = vector.load %arg5[%c0_147, %c0_148, %c0_149] : memref<9x6x4xf32, #tpu.memory_space<vmem>>, vector<1x6x4xf32>
    %290 = vector.shape_cast %289 : vector<1x6x4xf32> to vector<6x4xf32>
    %cst_150 = arith.constant dense<0.000000e+00> : vector<6x64xf32>
    %291 = tpu.matmul %290, %288, %cst_150 {dimension_numbers = #tpu.dot_dimension_numbers<[1], [0], [0], [1], [0, 0, 1, 1], [], []>} : vector<6x4xf32>, vector<4x64xf32>, vector<6x64xf32> -> vector<6x64xf32>
    %292 = arith.addf %259, %291 : vector<6x64xf32>
    %c0_151 = arith.constant 0 : index
    %c120 = arith.constant 120 : index
    %293 = vector.load %arg16[%c0_151, %c120] : memref<4x320xf32, #tpu.memory_space<vmem>>, vector<4x64xf32>
    %c-1_i32_152 = arith.constant -1 : i32
    %294 = vector.broadcast %c-1_i32_152 : i32 to vector<1x64xi32>
    %295 = arith.addi %262, %294 : vector<1x64xi32>
    %c0_i32_153 = arith.constant 0 : i32
    %296 = vector.broadcast %c0_i32_153 : i32 to vector<1x64xi32>
    %297 = arith.cmpi sge, %295, %296 : vector<1x64xi32>
    %c-1_i32_154 = arith.constant -1 : i32
    %298 = vector.broadcast %c-1_i32_154 : i32 to vector<1x64xi32>
    %299 = arith.addi %262, %298 : vector<1x64xi32>
    %c8_i32_155 = arith.constant 8 : i32
    %300 = vector.broadcast %c8_i32_155 : i32 to vector<1x64xi32>
    %301 = arith.cmpi slt, %299, %300 : vector<1x64xi32>
    %302 = arith.andi %297, %301 : vector<1x64xi1>
    %c0_i32_156 = arith.constant 0 : i32
    %303 = vector.broadcast %c0_i32_156 : i32 to vector<1x64xi32>
    %304 = arith.addi %264, %303 : vector<1x64xi32>
    %c0_i32_157 = arith.constant 0 : i32
    %305 = vector.broadcast %c0_i32_157 : i32 to vector<1x64xi32>
    %306 = arith.cmpi sge, %304, %305 : vector<1x64xi32>
    %307 = arith.andi %302, %306 : vector<1x64xi1>
    %c0_i32_158 = arith.constant 0 : i32
    %308 = vector.broadcast %c0_i32_158 : i32 to vector<1x64xi32>
    %309 = arith.addi %264, %308 : vector<1x64xi32>
    %c8_i32_159 = arith.constant 8 : i32
    %310 = vector.broadcast %c8_i32_159 : i32 to vector<1x64xi32>
    %311 = arith.cmpi slt, %309, %310 : vector<1x64xi32>
    %312 = arith.andi %307, %311 : vector<1x64xi1>
    %cst_160 = arith.constant 0.000000e+00 : f32
    %313 = vector.shape_cast %312 : vector<1x64xi1> to vector<1x64xi1>
    %314 = vector.broadcast %313 : vector<1x64xi1> to vector<4x64xi1>
    %315 = vector.broadcast %cst_160 : f32 to vector<4x64xf32>
    %316 = arith.select %314, %293, %315 : vector<4x64xi1>, vector<4x64xf32>
    %c1_161 = arith.constant 1 : index
    %c0_162 = arith.constant 0 : index
    %c0_163 = arith.constant 0 : index
    %317 = vector.load %arg5[%c1_161, %c0_162, %c0_163] : memref<9x6x4xf32, #tpu.memory_space<vmem>>, vector<1x6x4xf32>
    %318 = vector.shape_cast %317 : vector<1x6x4xf32> to vector<6x4xf32>
    %cst_164 = arith.constant dense<0.000000e+00> : vector<6x64xf32>
    %319 = tpu.matmul %318, %316, %cst_164 {dimension_numbers = #tpu.dot_dimension_numbers<[1], [0], [0], [1], [0, 0, 1, 1], [], []>} : vector<6x4xf32>, vector<4x64xf32>, vector<6x64xf32> -> vector<6x64xf32>
    %320 = arith.addf %292, %319 : vector<6x64xf32>
    %c0_165 = arith.constant 0 : index
    %c121 = arith.constant 121 : index
    %321 = vector.load %arg16[%c0_165, %c121] : memref<4x320xf32, #tpu.memory_space<vmem>>, vector<4x64xf32>
    %c-1_i32_166 = arith.constant -1 : i32
    %322 = vector.broadcast %c-1_i32_166 : i32 to vector<1x64xi32>
    %323 = arith.addi %262, %322 : vector<1x64xi32>
    %c0_i32_167 = arith.constant 0 : i32
    %324 = vector.broadcast %c0_i32_167 : i32 to vector<1x64xi32>
    %325 = arith.cmpi sge, %323, %324 : vector<1x64xi32>
    %c-1_i32_168 = arith.constant -1 : i32
    %326 = vector.broadcast %c-1_i32_168 : i32 to vector<1x64xi32>
    %327 = arith.addi %262, %326 : vector<1x64xi32>
    %c8_i32_169 = arith.constant 8 : i32
    %328 = vector.broadcast %c8_i32_169 : i32 to vector<1x64xi32>
    %329 = arith.cmpi slt, %327, %328 : vector<1x64xi32>
    %330 = arith.andi %325, %329 : vector<1x64xi1>
    %c1_i32_170 = arith.constant 1 : i32
    %331 = vector.broadcast %c1_i32_170 : i32 to vector<1x64xi32>
    %332 = arith.addi %264, %331 : vector<1x64xi32>
    %c0_i32_171 = arith.constant 0 : i32
    %333 = vector.broadcast %c0_i32_171 : i32 to vector<1x64xi32>
    %334 = arith.cmpi sge, %332, %333 : vector<1x64xi32>
    %335 = arith.andi %330, %334 : vector<1x64xi1>
    %c1_i32_172 = arith.constant 1 : i32
    %336 = vector.broadcast %c1_i32_172 : i32 to vector<1x64xi32>
    %337 = arith.addi %264, %336 : vector<1x64xi32>
    %c8_i32_173 = arith.constant 8 : i32
    %338 = vector.broadcast %c8_i32_173 : i32 to vector<1x64xi32>
    %339 = arith.cmpi slt, %337, %338 : vector<1x64xi32>
    %340 = arith.andi %335, %339 : vector<1x64xi1>
    %cst_174 = arith.constant 0.000000e+00 : f32
    %341 = vector.shape_cast %340 : vector<1x64xi1> to vector<1x64xi1>
    %342 = vector.broadcast %341 : vector<1x64xi1> to vector<4x64xi1>
    %343 = vector.broadcast %cst_174 : f32 to vector<4x64xf32>
    %344 = arith.select %342, %321, %343 : vector<4x64xi1>, vector<4x64xf32>
    %c2_175 = arith.constant 2 : index
    %c0_176 = arith.constant 0 : index
    %c0_177 = arith.constant 0 : index
    %345 = vector.load %arg5[%c2_175, %c0_176, %c0_177] : memref<9x6x4xf32, #tpu.memory_space<vmem>>, vector<1x6x4xf32>
    %346 = vector.shape_cast %345 : vector<1x6x4xf32> to vector<6x4xf32>
    %cst_178 = arith.constant dense<0.000000e+00> : vector<6x64xf32>
    %347 = tpu.matmul %346, %344, %cst_178 {dimension_numbers = #tpu.dot_dimension_numbers<[1], [0], [0], [1], [0, 0, 1, 1], [], []>} : vector<6x4xf32>, vector<4x64xf32>, vector<6x64xf32> -> vector<6x64xf32>
    %348 = arith.addf %320, %347 : vector<6x64xf32>
    %c0_179 = arith.constant 0 : index
    %c127_180 = arith.constant 127 : index
    %349 = vector.load %arg16[%c0_179, %c127_180] : memref<4x320xf32, #tpu.memory_space<vmem>>, vector<4x64xf32>
    %c0_i32_181 = arith.constant 0 : i32
    %350 = vector.broadcast %c0_i32_181 : i32 to vector<1x64xi32>
    %351 = arith.addi %262, %350 : vector<1x64xi32>
    %c0_i32_182 = arith.constant 0 : i32
    %352 = vector.broadcast %c0_i32_182 : i32 to vector<1x64xi32>
    %353 = arith.cmpi sge, %351, %352 : vector<1x64xi32>
    %c0_i32_183 = arith.constant 0 : i32
    %354 = vector.broadcast %c0_i32_183 : i32 to vector<1x64xi32>
    %355 = arith.addi %262, %354 : vector<1x64xi32>
    %c8_i32_184 = arith.constant 8 : i32
    %356 = vector.broadcast %c8_i32_184 : i32 to vector<1x64xi32>
    %357 = arith.cmpi slt, %355, %356 : vector<1x64xi32>
    %358 = arith.andi %353, %357 : vector<1x64xi1>
    %c-1_i32_185 = arith.constant -1 : i32
    %359 = vector.broadcast %c-1_i32_185 : i32 to vector<1x64xi32>
    %360 = arith.addi %264, %359 : vector<1x64xi32>
    %c0_i32_186 = arith.constant 0 : i32
    %361 = vector.broadcast %c0_i32_186 : i32 to vector<1x64xi32>
    %362 = arith.cmpi sge, %360, %361 : vector<1x64xi32>
    %363 = arith.andi %358, %362 : vector<1x64xi1>
    %c-1_i32_187 = arith.constant -1 : i32
    %364 = vector.broadcast %c-1_i32_187 : i32 to vector<1x64xi32>
    %365 = arith.addi %264, %364 : vector<1x64xi32>
    %c8_i32_188 = arith.constant 8 : i32
    %366 = vector.broadcast %c8_i32_188 : i32 to vector<1x64xi32>
    %367 = arith.cmpi slt, %365, %366 : vector<1x64xi32>
    %368 = arith.andi %363, %367 : vector<1x64xi1>
    %cst_189 = arith.constant 0.000000e+00 : f32
    %369 = vector.shape_cast %368 : vector<1x64xi1> to vector<1x64xi1>
    %370 = vector.broadcast %369 : vector<1x64xi1> to vector<4x64xi1>
    %371 = vector.broadcast %cst_189 : f32 to vector<4x64xf32>
    %372 = arith.select %370, %349, %371 : vector<4x64xi1>, vector<4x64xf32>
    %c3_190 = arith.constant 3 : index
    %c0_191 = arith.constant 0 : index
    %c0_192 = arith.constant 0 : index
    %373 = vector.load %arg5[%c3_190, %c0_191, %c0_192] : memref<9x6x4xf32, #tpu.memory_space<vmem>>, vector<1x6x4xf32>
    %374 = vector.shape_cast %373 : vector<1x6x4xf32> to vector<6x4xf32>
    %cst_193 = arith.constant dense<0.000000e+00> : vector<6x64xf32>
    %375 = tpu.matmul %374, %372, %cst_193 {dimension_numbers = #tpu.dot_dimension_numbers<[1], [0], [0], [1], [0, 0, 1, 1], [], []>} : vector<6x4xf32>, vector<4x64xf32>, vector<6x64xf32> -> vector<6x64xf32>
    %376 = arith.addf %348, %375 : vector<6x64xf32>
    %c0_194 = arith.constant 0 : index
    %c128_195 = arith.constant 128 : index
    %377 = vector.load %arg16[%c0_194, %c128_195] : memref<4x320xf32, #tpu.memory_space<vmem>>, vector<4x64xf32>
    %c4_196 = arith.constant 4 : index
    %c0_197 = arith.constant 0 : index
    %c0_198 = arith.constant 0 : index
    %378 = vector.load %arg5[%c4_196, %c0_197, %c0_198] : memref<9x6x4xf32, #tpu.memory_space<vmem>>, vector<1x6x4xf32>
    %379 = vector.shape_cast %378 : vector<1x6x4xf32> to vector<6x4xf32>
    %cst_199 = arith.constant dense<0.000000e+00> : vector<6x64xf32>
    %380 = tpu.matmul %379, %377, %cst_199 {dimension_numbers = #tpu.dot_dimension_numbers<[1], [0], [0], [1], [0, 0, 1, 1], [], []>} : vector<6x4xf32>, vector<4x64xf32>, vector<6x64xf32> -> vector<6x64xf32>
    %381 = arith.addf %376, %380 : vector<6x64xf32>
    %c0_200 = arith.constant 0 : index
    %c129_201 = arith.constant 129 : index
    %382 = vector.load %arg16[%c0_200, %c129_201] : memref<4x320xf32, #tpu.memory_space<vmem>>, vector<4x64xf32>
    %c0_i32_202 = arith.constant 0 : i32
    %383 = vector.broadcast %c0_i32_202 : i32 to vector<1x64xi32>
    %384 = arith.addi %262, %383 : vector<1x64xi32>
    %c0_i32_203 = arith.constant 0 : i32
    %385 = vector.broadcast %c0_i32_203 : i32 to vector<1x64xi32>
    %386 = arith.cmpi sge, %384, %385 : vector<1x64xi32>
    %c0_i32_204 = arith.constant 0 : i32
    %387 = vector.broadcast %c0_i32_204 : i32 to vector<1x64xi32>
    %388 = arith.addi %262, %387 : vector<1x64xi32>
    %c8_i32_205 = arith.constant 8 : i32
    %389 = vector.broadcast %c8_i32_205 : i32 to vector<1x64xi32>
    %390 = arith.cmpi slt, %388, %389 : vector<1x64xi32>
    %391 = arith.andi %386, %390 : vector<1x64xi1>
    %c1_i32_206 = arith.constant 1 : i32
    %392 = vector.broadcast %c1_i32_206 : i32 to vector<1x64xi32>
    %393 = arith.addi %264, %392 : vector<1x64xi32>
    %c0_i32_207 = arith.constant 0 : i32
    %394 = vector.broadcast %c0_i32_207 : i32 to vector<1x64xi32>
    %395 = arith.cmpi sge, %393, %394 : vector<1x64xi32>
    %396 = arith.andi %391, %395 : vector<1x64xi1>
    %c1_i32_208 = arith.constant 1 : i32
    %397 = vector.broadcast %c1_i32_208 : i32 to vector<1x64xi32>
    %398 = arith.addi %264, %397 : vector<1x64xi32>
    %c8_i32_209 = arith.constant 8 : i32
    %399 = vector.broadcast %c8_i32_209 : i32 to vector<1x64xi32>
    %400 = arith.cmpi slt, %398, %399 : vector<1x64xi32>
    %401 = arith.andi %396, %400 : vector<1x64xi1>
    %cst_210 = arith.constant 0.000000e+00 : f32
    %402 = vector.shape_cast %401 : vector<1x64xi1> to vector<1x64xi1>
    %403 = vector.broadcast %402 : vector<1x64xi1> to vector<4x64xi1>
    %404 = vector.broadcast %cst_210 : f32 to vector<4x64xf32>
    %405 = arith.select %403, %382, %404 : vector<4x64xi1>, vector<4x64xf32>
    %c5_211 = arith.constant 5 : index
    %c0_212 = arith.constant 0 : index
    %c0_213 = arith.constant 0 : index
    %406 = vector.load %arg5[%c5_211, %c0_212, %c0_213] : memref<9x6x4xf32, #tpu.memory_space<vmem>>, vector<1x6x4xf32>
    %407 = vector.shape_cast %406 : vector<1x6x4xf32> to vector<6x4xf32>
    %cst_214 = arith.constant dense<0.000000e+00> : vector<6x64xf32>
    %408 = tpu.matmul %407, %405, %cst_214 {dimension_numbers = #tpu.dot_dimension_numbers<[1], [0], [0], [1], [0, 0, 1, 1], [], []>} : vector<6x4xf32>, vector<4x64xf32>, vector<6x64xf32> -> vector<6x64xf32>
    %409 = arith.addf %381, %408 : vector<6x64xf32>
    %c0_215 = arith.constant 0 : index
    %c135 = arith.constant 135 : index
    %410 = vector.load %arg16[%c0_215, %c135] : memref<4x320xf32, #tpu.memory_space<vmem>>, vector<4x64xf32>
    %c1_i32_216 = arith.constant 1 : i32
    %411 = vector.broadcast %c1_i32_216 : i32 to vector<1x64xi32>
    %412 = arith.addi %262, %411 : vector<1x64xi32>
    %c0_i32_217 = arith.constant 0 : i32
    %413 = vector.broadcast %c0_i32_217 : i32 to vector<1x64xi32>
    %414 = arith.cmpi sge, %412, %413 : vector<1x64xi32>
    %c1_i32_218 = arith.constant 1 : i32
    %415 = vector.broadcast %c1_i32_218 : i32 to vector<1x64xi32>
    %416 = arith.addi %262, %415 : vector<1x64xi32>
    %c8_i32_219 = arith.constant 8 : i32
    %417 = vector.broadcast %c8_i32_219 : i32 to vector<1x64xi32>
    %418 = arith.cmpi slt, %416, %417 : vector<1x64xi32>
    %419 = arith.andi %414, %418 : vector<1x64xi1>
    %c-1_i32_220 = arith.constant -1 : i32
    %420 = vector.broadcast %c-1_i32_220 : i32 to vector<1x64xi32>
    %421 = arith.addi %264, %420 : vector<1x64xi32>
    %c0_i32_221 = arith.constant 0 : i32
    %422 = vector.broadcast %c0_i32_221 : i32 to vector<1x64xi32>
    %423 = arith.cmpi sge, %421, %422 : vector<1x64xi32>
    %424 = arith.andi %419, %423 : vector<1x64xi1>
    %c-1_i32_222 = arith.constant -1 : i32
    %425 = vector.broadcast %c-1_i32_222 : i32 to vector<1x64xi32>
    %426 = arith.addi %264, %425 : vector<1x64xi32>
    %c8_i32_223 = arith.constant 8 : i32
    %427 = vector.broadcast %c8_i32_223 : i32 to vector<1x64xi32>
    %428 = arith.cmpi slt, %426, %427 : vector<1x64xi32>
    %429 = arith.andi %424, %428 : vector<1x64xi1>
    %cst_224 = arith.constant 0.000000e+00 : f32
    %430 = vector.shape_cast %429 : vector<1x64xi1> to vector<1x64xi1>
    %431 = vector.broadcast %430 : vector<1x64xi1> to vector<4x64xi1>
    %432 = vector.broadcast %cst_224 : f32 to vector<4x64xf32>
    %433 = arith.select %431, %410, %432 : vector<4x64xi1>, vector<4x64xf32>
    %c6_225 = arith.constant 6 : index
    %c0_226 = arith.constant 0 : index
    %c0_227 = arith.constant 0 : index
    %434 = vector.load %arg5[%c6_225, %c0_226, %c0_227] : memref<9x6x4xf32, #tpu.memory_space<vmem>>, vector<1x6x4xf32>
    %435 = vector.shape_cast %434 : vector<1x6x4xf32> to vector<6x4xf32>
    %cst_228 = arith.constant dense<0.000000e+00> : vector<6x64xf32>
    %436 = tpu.matmul %435, %433, %cst_228 {dimension_numbers = #tpu.dot_dimension_numbers<[1], [0], [0], [1], [0, 0, 1, 1], [], []>} : vector<6x4xf32>, vector<4x64xf32>, vector<6x64xf32> -> vector<6x64xf32>
    %437 = arith.addf %409, %436 : vector<6x64xf32>
    %c0_229 = arith.constant 0 : index
    %c136 = arith.constant 136 : index
    %438 = vector.load %arg16[%c0_229, %c136] : memref<4x320xf32, #tpu.memory_space<vmem>>, vector<4x64xf32>
    %c1_i32_230 = arith.constant 1 : i32
    %439 = vector.broadcast %c1_i32_230 : i32 to vector<1x64xi32>
    %440 = arith.addi %262, %439 : vector<1x64xi32>
    %c0_i32_231 = arith.constant 0 : i32
    %441 = vector.broadcast %c0_i32_231 : i32 to vector<1x64xi32>
    %442 = arith.cmpi sge, %440, %441 : vector<1x64xi32>
    %c1_i32_232 = arith.constant 1 : i32
    %443 = vector.broadcast %c1_i32_232 : i32 to vector<1x64xi32>
    %444 = arith.addi %262, %443 : vector<1x64xi32>
    %c8_i32_233 = arith.constant 8 : i32
    %445 = vector.broadcast %c8_i32_233 : i32 to vector<1x64xi32>
    %446 = arith.cmpi slt, %444, %445 : vector<1x64xi32>
    %447 = arith.andi %442, %446 : vector<1x64xi1>
    %c0_i32_234 = arith.constant 0 : i32
    %448 = vector.broadcast %c0_i32_234 : i32 to vector<1x64xi32>
    %449 = arith.addi %264, %448 : vector<1x64xi32>
    %c0_i32_235 = arith.constant 0 : i32
    %450 = vector.broadcast %c0_i32_235 : i32 to vector<1x64xi32>
    %451 = arith.cmpi sge, %449, %450 : vector<1x64xi32>
    %452 = arith.andi %447, %451 : vector<1x64xi1>
    %c0_i32_236 = arith.constant 0 : i32
    %453 = vector.broadcast %c0_i32_236 : i32 to vector<1x64xi32>
    %454 = arith.addi %264, %453 : vector<1x64xi32>
    %c8_i32_237 = arith.constant 8 : i32
    %455 = vector.broadcast %c8_i32_237 : i32 to vector<1x64xi32>
    %456 = arith.cmpi slt, %454, %455 : vector<1x64xi32>
    %457 = arith.andi %452, %456 : vector<1x64xi1>
    %cst_238 = arith.constant 0.000000e+00 : f32
    %458 = vector.shape_cast %457 : vector<1x64xi1> to vector<1x64xi1>
    %459 = vector.broadcast %458 : vector<1x64xi1> to vector<4x64xi1>
    %460 = vector.broadcast %cst_238 : f32 to vector<4x64xf32>
    %461 = arith.select %459, %438, %460 : vector<4x64xi1>, vector<4x64xf32>
    %c7_239 = arith.constant 7 : index
    %c0_240 = arith.constant 0 : index
    %c0_241 = arith.constant 0 : index
    %462 = vector.load %arg5[%c7_239, %c0_240, %c0_241] : memref<9x6x4xf32, #tpu.memory_space<vmem>>, vector<1x6x4xf32>
    %463 = vector.shape_cast %462 : vector<1x6x4xf32> to vector<6x4xf32>
    %cst_242 = arith.constant dense<0.000000e+00> : vector<6x64xf32>
    %464 = tpu.matmul %463, %461, %cst_242 {dimension_numbers = #tpu.dot_dimension_numbers<[1], [0], [0], [1], [0, 0, 1, 1], [], []>} : vector<6x4xf32>, vector<4x64xf32>, vector<6x64xf32> -> vector<6x64xf32>
    %465 = arith.addf %437, %464 : vector<6x64xf32>
    %c0_243 = arith.constant 0 : index
    %c137 = arith.constant 137 : index
    %466 = vector.load %arg16[%c0_243, %c137] : memref<4x320xf32, #tpu.memory_space<vmem>>, vector<4x64xf32>
    %c1_i32_244 = arith.constant 1 : i32
    %467 = vector.broadcast %c1_i32_244 : i32 to vector<1x64xi32>
    %468 = arith.addi %262, %467 : vector<1x64xi32>
    %c0_i32_245 = arith.constant 0 : i32
    %469 = vector.broadcast %c0_i32_245 : i32 to vector<1x64xi32>
    %470 = arith.cmpi sge, %468, %469 : vector<1x64xi32>
    %c1_i32_246 = arith.constant 1 : i32
    %471 = vector.broadcast %c1_i32_246 : i32 to vector<1x64xi32>
    %472 = arith.addi %262, %471 : vector<1x64xi32>
    %c8_i32_247 = arith.constant 8 : i32
    %473 = vector.broadcast %c8_i32_247 : i32 to vector<1x64xi32>
    %474 = arith.cmpi slt, %472, %473 : vector<1x64xi32>
    %475 = arith.andi %470, %474 : vector<1x64xi1>
    %c1_i32_248 = arith.constant 1 : i32
    %476 = vector.broadcast %c1_i32_248 : i32 to vector<1x64xi32>
    %477 = arith.addi %264, %476 : vector<1x64xi32>
    %c0_i32_249 = arith.constant 0 : i32
    %478 = vector.broadcast %c0_i32_249 : i32 to vector<1x64xi32>
    %479 = arith.cmpi sge, %477, %478 : vector<1x64xi32>
    %480 = arith.andi %475, %479 : vector<1x64xi1>
    %c1_i32_250 = arith.constant 1 : i32
    %481 = vector.broadcast %c1_i32_250 : i32 to vector<1x64xi32>
    %482 = arith.addi %264, %481 : vector<1x64xi32>
    %c8_i32_251 = arith.constant 8 : i32
    %483 = vector.broadcast %c8_i32_251 : i32 to vector<1x64xi32>
    %484 = arith.cmpi slt, %482, %483 : vector<1x64xi32>
    %485 = arith.andi %480, %484 : vector<1x64xi1>
    %cst_252 = arith.constant 0.000000e+00 : f32
    %486 = vector.shape_cast %485 : vector<1x64xi1> to vector<1x64xi1>
    %487 = vector.broadcast %486 : vector<1x64xi1> to vector<4x64xi1>
    %488 = vector.broadcast %cst_252 : f32 to vector<4x64xf32>
    %489 = arith.select %487, %466, %488 : vector<4x64xi1>, vector<4x64xf32>
    %c8_253 = arith.constant 8 : index
    %c0_254 = arith.constant 0 : index
    %c0_255 = arith.constant 0 : index
    %490 = vector.load %arg5[%c8_253, %c0_254, %c0_255] : memref<9x6x4xf32, #tpu.memory_space<vmem>>, vector<1x6x4xf32>
    %491 = vector.shape_cast %490 : vector<1x6x4xf32> to vector<6x4xf32>
    %cst_256 = arith.constant dense<0.000000e+00> : vector<6x64xf32>
    %492 = tpu.matmul %491, %489, %cst_256 {dimension_numbers = #tpu.dot_dimension_numbers<[1], [0], [0], [1], [0, 0, 1, 1], [], []>} : vector<6x4xf32>, vector<4x64xf32>, vector<6x64xf32> -> vector<6x64xf32>
    %493 = arith.addf %465, %492 : vector<6x64xf32>
    %cst_257 = arith.constant 0.000000e+00 : f32
    %494 = vector.broadcast %cst_257 : f32 to vector<6x64xf32>
    %495 = arith.maximumf %493, %494 : vector<6x64xf32>
    %c0_258 = arith.constant 0 : index
    %c0_259 = arith.constant 0 : index
    %496 = vector.load %arg12[%c0_258, %c0_259] : memref<64x256xf32, #tpu.memory_space<vmem>>, vector<64x256xf32>
    %cst_260 = arith.constant dense<0.000000e+00> : vector<6x256xf32>
    %497 = tpu.matmul %495, %496, %cst_260 {dimension_numbers = #tpu.dot_dimension_numbers<[1], [0], [0], [1], [0, 0, 1, 1], [], []>} : vector<6x64xf32>, vector<64x256xf32>, vector<6x256xf32> -> vector<6x256xf32>
    %cst_261 = arith.constant 0.000000e+00 : f32
    %498 = vector.broadcast %cst_261 : f32 to vector<6x512xf32>
    %c0_262 = arith.constant 0 : index
    %c0_263 = arith.constant 0 : index
    %499 = vector.load %arg17[%c0_262, %c0_263] : memref<6x512xf32, #tpu.memory_space<vmem>>, vector<6x512xf32>
    tpu.vector_store %arg17[%c0_262, %c0_263], %498 {strides = array<i32>} : memref<6x512xf32, #tpu.memory_space<vmem>>, vector<6x512xf32>,
    %c0_264 = arith.constant 0 : index
    %c128_265 = arith.constant 128 : index
    %500 = vector.load %arg17[%c0_264, %c128_265] : memref<6x512xf32, #tpu.memory_space<vmem>>, vector<6x256xf32>
    tpu.vector_store %arg17[%c0_264, %c128_265], %497 {strides = array<i32>} : memref<6x512xf32, #tpu.memory_space<vmem>>, vector<6x256xf32>,
    %c0_266 = arith.constant 0 : index
    %c0_267 = arith.constant 0 : index
    %501 = vector.load %arg8[%c0_266, %c0_267] : memref<8x256xf32, #tpu.memory_space<vmem>>, vector<8x256xf32>
    %502 = tpu.iota {dimensions = array<i32: 1>} : vector<1x256xi32>
    %c4_i32_268 = arith.constant 4 : i32
    %503 = vector.broadcast %c4_i32_268 : i32 to vector<1x256xi32>
    %504 = arith.shrsi %502, %503 : vector<1x256xi32>
    %c15_i32 = arith.constant 15 : i32
    %505 = vector.broadcast %c15_i32 : i32 to vector<1x256xi32>
    %506 = arith.andi %502, %505 : vector<1x256xi32>
    %c0_269 = arith.constant 0 : index
    %c111 = arith.constant 111 : index
    %507 = vector.load %arg17[%c0_269, %c111] : memref<6x512xf32, #tpu.memory_space<vmem>>, vector<6x256xf32>
    %c-1_i32_270 = arith.constant -1 : i32
    %508 = vector.broadcast %c-1_i32_270 : i32 to vector<1x256xi32>
    %509 = arith.addi %504, %508 : vector<1x256xi32>
    %c0_i32_271 = arith.constant 0 : i32
    %510 = vector.broadcast %c0_i32_271 : i32 to vector<1x256xi32>
    %511 = arith.cmpi sge, %509, %510 : vector<1x256xi32>
    %c-1_i32_272 = arith.constant -1 : i32
    %512 = vector.broadcast %c-1_i32_272 : i32 to vector<1x256xi32>
    %513 = arith.addi %504, %512 : vector<1x256xi32>
    %c16_i32 = arith.constant 16 : i32
    %514 = vector.broadcast %c16_i32 : i32 to vector<1x256xi32>
    %515 = arith.cmpi slt, %513, %514 : vector<1x256xi32>
    %516 = arith.andi %511, %515 : vector<1x256xi1>
    %c-1_i32_273 = arith.constant -1 : i32
    %517 = vector.broadcast %c-1_i32_273 : i32 to vector<1x256xi32>
    %518 = arith.addi %506, %517 : vector<1x256xi32>
    %c0_i32_274 = arith.constant 0 : i32
    %519 = vector.broadcast %c0_i32_274 : i32 to vector<1x256xi32>
    %520 = arith.cmpi sge, %518, %519 : vector<1x256xi32>
    %521 = arith.andi %516, %520 : vector<1x256xi1>
    %c-1_i32_275 = arith.constant -1 : i32
    %522 = vector.broadcast %c-1_i32_275 : i32 to vector<1x256xi32>
    %523 = arith.addi %506, %522 : vector<1x256xi32>
    %c16_i32_276 = arith.constant 16 : i32
    %524 = vector.broadcast %c16_i32_276 : i32 to vector<1x256xi32>
    %525 = arith.cmpi slt, %523, %524 : vector<1x256xi32>
    %526 = arith.andi %521, %525 : vector<1x256xi1>
    %cst_277 = arith.constant 0.000000e+00 : f32
    %527 = vector.shape_cast %526 : vector<1x256xi1> to vector<1x256xi1>
    %528 = vector.broadcast %527 : vector<1x256xi1> to vector<6x256xi1>
    %529 = vector.broadcast %cst_277 : f32 to vector<6x256xf32>
    %530 = arith.select %528, %507, %529 : vector<6x256xi1>, vector<6x256xf32>
    %c0_278 = arith.constant 0 : index
    %c0_279 = arith.constant 0 : index
    %c0_280 = arith.constant 0 : index
    %531 = vector.load %arg7[%c0_278, %c0_279, %c0_280] : memref<9x8x6xf32, #tpu.memory_space<vmem>>, vector<1x8x6xf32>
    %532 = vector.shape_cast %531 : vector<1x8x6xf32> to vector<8x6xf32>
    %cst_281 = arith.constant dense<0.000000e+00> : vector<8x256xf32>
    %533 = tpu.matmul %532, %530, %cst_281 {dimension_numbers = #tpu.dot_dimension_numbers<[1], [0], [0], [1], [0, 0, 1, 1], [], []>} : vector<8x6xf32>, vector<6x256xf32>, vector<8x256xf32> -> vector<8x256xf32>
    %534 = arith.addf %501, %533 : vector<8x256xf32>
    %c0_282 = arith.constant 0 : index
    %c112 = arith.constant 112 : index
    %535 = vector.load %arg17[%c0_282, %c112] : memref<6x512xf32, #tpu.memory_space<vmem>>, vector<6x256xf32>
    %c-1_i32_283 = arith.constant -1 : i32
    %536 = vector.broadcast %c-1_i32_283 : i32 to vector<1x256xi32>
    %537 = arith.addi %504, %536 : vector<1x256xi32>
    %c0_i32_284 = arith.constant 0 : i32
    %538 = vector.broadcast %c0_i32_284 : i32 to vector<1x256xi32>
    %539 = arith.cmpi sge, %537, %538 : vector<1x256xi32>
    %c-1_i32_285 = arith.constant -1 : i32
    %540 = vector.broadcast %c-1_i32_285 : i32 to vector<1x256xi32>
    %541 = arith.addi %504, %540 : vector<1x256xi32>
    %c16_i32_286 = arith.constant 16 : i32
    %542 = vector.broadcast %c16_i32_286 : i32 to vector<1x256xi32>
    %543 = arith.cmpi slt, %541, %542 : vector<1x256xi32>
    %544 = arith.andi %539, %543 : vector<1x256xi1>
    %c0_i32_287 = arith.constant 0 : i32
    %545 = vector.broadcast %c0_i32_287 : i32 to vector<1x256xi32>
    %546 = arith.addi %506, %545 : vector<1x256xi32>
    %c0_i32_288 = arith.constant 0 : i32
    %547 = vector.broadcast %c0_i32_288 : i32 to vector<1x256xi32>
    %548 = arith.cmpi sge, %546, %547 : vector<1x256xi32>
    %549 = arith.andi %544, %548 : vector<1x256xi1>
    %c0_i32_289 = arith.constant 0 : i32
    %550 = vector.broadcast %c0_i32_289 : i32 to vector<1x256xi32>
    %551 = arith.addi %506, %550 : vector<1x256xi32>
    %c16_i32_290 = arith.constant 16 : i32
    %552 = vector.broadcast %c16_i32_290 : i32 to vector<1x256xi32>
    %553 = arith.cmpi slt, %551, %552 : vector<1x256xi32>
    %554 = arith.andi %549, %553 : vector<1x256xi1>
    %cst_291 = arith.constant 0.000000e+00 : f32
    %555 = vector.shape_cast %554 : vector<1x256xi1> to vector<1x256xi1>
    %556 = vector.broadcast %555 : vector<1x256xi1> to vector<6x256xi1>
    %557 = vector.broadcast %cst_291 : f32 to vector<6x256xf32>
    %558 = arith.select %556, %535, %557 : vector<6x256xi1>, vector<6x256xf32>
    %c1_292 = arith.constant 1 : index
    %c0_293 = arith.constant 0 : index
    %c0_294 = arith.constant 0 : index
    %559 = vector.load %arg7[%c1_292, %c0_293, %c0_294] : memref<9x8x6xf32, #tpu.memory_space<vmem>>, vector<1x8x6xf32>
    %560 = vector.shape_cast %559 : vector<1x8x6xf32> to vector<8x6xf32>
    %cst_295 = arith.constant dense<0.000000e+00> : vector<8x256xf32>
    %561 = tpu.matmul %560, %558, %cst_295 {dimension_numbers = #tpu.dot_dimension_numbers<[1], [0], [0], [1], [0, 0, 1, 1], [], []>} : vector<8x6xf32>, vector<6x256xf32>, vector<8x256xf32> -> vector<8x256xf32>
    %562 = arith.addf %534, %561 : vector<8x256xf32>
    %c0_296 = arith.constant 0 : index
    %c113 = arith.constant 113 : index
    %563 = vector.load %arg17[%c0_296, %c113] : memref<6x512xf32, #tpu.memory_space<vmem>>, vector<6x256xf32>
    %c-1_i32_297 = arith.constant -1 : i32
    %564 = vector.broadcast %c-1_i32_297 : i32 to vector<1x256xi32>
    %565 = arith.addi %504, %564 : vector<1x256xi32>
    %c0_i32_298 = arith.constant 0 : i32
    %566 = vector.broadcast %c0_i32_298 : i32 to vector<1x256xi32>
    %567 = arith.cmpi sge, %565, %566 : vector<1x256xi32>
    %c-1_i32_299 = arith.constant -1 : i32
    %568 = vector.broadcast %c-1_i32_299 : i32 to vector<1x256xi32>
    %569 = arith.addi %504, %568 : vector<1x256xi32>
    %c16_i32_300 = arith.constant 16 : i32
    %570 = vector.broadcast %c16_i32_300 : i32 to vector<1x256xi32>
    %571 = arith.cmpi slt, %569, %570 : vector<1x256xi32>
    %572 = arith.andi %567, %571 : vector<1x256xi1>
    %c1_i32_301 = arith.constant 1 : i32
    %573 = vector.broadcast %c1_i32_301 : i32 to vector<1x256xi32>
    %574 = arith.addi %506, %573 : vector<1x256xi32>
    %c0_i32_302 = arith.constant 0 : i32
    %575 = vector.broadcast %c0_i32_302 : i32 to vector<1x256xi32>
    %576 = arith.cmpi sge, %574, %575 : vector<1x256xi32>
    %577 = arith.andi %572, %576 : vector<1x256xi1>
    %c1_i32_303 = arith.constant 1 : i32
    %578 = vector.broadcast %c1_i32_303 : i32 to vector<1x256xi32>
    %579 = arith.addi %506, %578 : vector<1x256xi32>
    %c16_i32_304 = arith.constant 16 : i32
    %580 = vector.broadcast %c16_i32_304 : i32 to vector<1x256xi32>
    %581 = arith.cmpi slt, %579, %580 : vector<1x256xi32>
    %582 = arith.andi %577, %581 : vector<1x256xi1>
    %cst_305 = arith.constant 0.000000e+00 : f32
    %583 = vector.shape_cast %582 : vector<1x256xi1> to vector<1x256xi1>
    %584 = vector.broadcast %583 : vector<1x256xi1> to vector<6x256xi1>
    %585 = vector.broadcast %cst_305 : f32 to vector<6x256xf32>
    %586 = arith.select %584, %563, %585 : vector<6x256xi1>, vector<6x256xf32>
    %c2_306 = arith.constant 2 : index
    %c0_307 = arith.constant 0 : index
    %c0_308 = arith.constant 0 : index
    %587 = vector.load %arg7[%c2_306, %c0_307, %c0_308] : memref<9x8x6xf32, #tpu.memory_space<vmem>>, vector<1x8x6xf32>
    %588 = vector.shape_cast %587 : vector<1x8x6xf32> to vector<8x6xf32>
    %cst_309 = arith.constant dense<0.000000e+00> : vector<8x256xf32>
    %589 = tpu.matmul %588, %586, %cst_309 {dimension_numbers = #tpu.dot_dimension_numbers<[1], [0], [0], [1], [0, 0, 1, 1], [], []>} : vector<8x6xf32>, vector<6x256xf32>, vector<8x256xf32> -> vector<8x256xf32>
    %590 = arith.addf %562, %589 : vector<8x256xf32>
    %c0_310 = arith.constant 0 : index
    %c127_311 = arith.constant 127 : index
    %591 = vector.load %arg17[%c0_310, %c127_311] : memref<6x512xf32, #tpu.memory_space<vmem>>, vector<6x256xf32>
    %c0_i32_312 = arith.constant 0 : i32
    %592 = vector.broadcast %c0_i32_312 : i32 to vector<1x256xi32>
    %593 = arith.addi %504, %592 : vector<1x256xi32>
    %c0_i32_313 = arith.constant 0 : i32
    %594 = vector.broadcast %c0_i32_313 : i32 to vector<1x256xi32>
    %595 = arith.cmpi sge, %593, %594 : vector<1x256xi32>
    %c0_i32_314 = arith.constant 0 : i32
    %596 = vector.broadcast %c0_i32_314 : i32 to vector<1x256xi32>
    %597 = arith.addi %504, %596 : vector<1x256xi32>
    %c16_i32_315 = arith.constant 16 : i32
    %598 = vector.broadcast %c16_i32_315 : i32 to vector<1x256xi32>
    %599 = arith.cmpi slt, %597, %598 : vector<1x256xi32>
    %600 = arith.andi %595, %599 : vector<1x256xi1>
    %c-1_i32_316 = arith.constant -1 : i32
    %601 = vector.broadcast %c-1_i32_316 : i32 to vector<1x256xi32>
    %602 = arith.addi %506, %601 : vector<1x256xi32>
    %c0_i32_317 = arith.constant 0 : i32
    %603 = vector.broadcast %c0_i32_317 : i32 to vector<1x256xi32>
    %604 = arith.cmpi sge, %602, %603 : vector<1x256xi32>
    %605 = arith.andi %600, %604 : vector<1x256xi1>
    %c-1_i32_318 = arith.constant -1 : i32
    %606 = vector.broadcast %c-1_i32_318 : i32 to vector<1x256xi32>
    %607 = arith.addi %506, %606 : vector<1x256xi32>
    %c16_i32_319 = arith.constant 16 : i32
    %608 = vector.broadcast %c16_i32_319 : i32 to vector<1x256xi32>
    %609 = arith.cmpi slt, %607, %608 : vector<1x256xi32>
    %610 = arith.andi %605, %609 : vector<1x256xi1>
    %cst_320 = arith.constant 0.000000e+00 : f32
    %611 = vector.shape_cast %610 : vector<1x256xi1> to vector<1x256xi1>
    %612 = vector.broadcast %611 : vector<1x256xi1> to vector<6x256xi1>
    %613 = vector.broadcast %cst_320 : f32 to vector<6x256xf32>
    %614 = arith.select %612, %591, %613 : vector<6x256xi1>, vector<6x256xf32>
    %c3_321 = arith.constant 3 : index
    %c0_322 = arith.constant 0 : index
    %c0_323 = arith.constant 0 : index
    %615 = vector.load %arg7[%c3_321, %c0_322, %c0_323] : memref<9x8x6xf32, #tpu.memory_space<vmem>>, vector<1x8x6xf32>
    %616 = vector.shape_cast %615 : vector<1x8x6xf32> to vector<8x6xf32>
    %cst_324 = arith.constant dense<0.000000e+00> : vector<8x256xf32>
    %617 = tpu.matmul %616, %614, %cst_324 {dimension_numbers = #tpu.dot_dimension_numbers<[1], [0], [0], [1], [0, 0, 1, 1], [], []>} : vector<8x6xf32>, vector<6x256xf32>, vector<8x256xf32> -> vector<8x256xf32>
    %618 = arith.addf %590, %617 : vector<8x256xf32>
    %c0_325 = arith.constant 0 : index
    %c128_326 = arith.constant 128 : index
    %619 = vector.load %arg17[%c0_325, %c128_326] : memref<6x512xf32, #tpu.memory_space<vmem>>, vector<6x256xf32>
    %c4_327 = arith.constant 4 : index
    %c0_328 = arith.constant 0 : index
    %c0_329 = arith.constant 0 : index
    %620 = vector.load %arg7[%c4_327, %c0_328, %c0_329] : memref<9x8x6xf32, #tpu.memory_space<vmem>>, vector<1x8x6xf32>
    %621 = vector.shape_cast %620 : vector<1x8x6xf32> to vector<8x6xf32>
    %cst_330 = arith.constant dense<0.000000e+00> : vector<8x256xf32>
    %622 = tpu.matmul %621, %619, %cst_330 {dimension_numbers = #tpu.dot_dimension_numbers<[1], [0], [0], [1], [0, 0, 1, 1], [], []>} : vector<8x6xf32>, vector<6x256xf32>, vector<8x256xf32> -> vector<8x256xf32>
    %623 = arith.addf %618, %622 : vector<8x256xf32>
    %c0_331 = arith.constant 0 : index
    %c129_332 = arith.constant 129 : index
    %624 = vector.load %arg17[%c0_331, %c129_332] : memref<6x512xf32, #tpu.memory_space<vmem>>, vector<6x256xf32>
    %c0_i32_333 = arith.constant 0 : i32
    %625 = vector.broadcast %c0_i32_333 : i32 to vector<1x256xi32>
    %626 = arith.addi %504, %625 : vector<1x256xi32>
    %c0_i32_334 = arith.constant 0 : i32
    %627 = vector.broadcast %c0_i32_334 : i32 to vector<1x256xi32>
    %628 = arith.cmpi sge, %626, %627 : vector<1x256xi32>
    %c0_i32_335 = arith.constant 0 : i32
    %629 = vector.broadcast %c0_i32_335 : i32 to vector<1x256xi32>
    %630 = arith.addi %504, %629 : vector<1x256xi32>
    %c16_i32_336 = arith.constant 16 : i32
    %631 = vector.broadcast %c16_i32_336 : i32 to vector<1x256xi32>
    %632 = arith.cmpi slt, %630, %631 : vector<1x256xi32>
    %633 = arith.andi %628, %632 : vector<1x256xi1>
    %c1_i32_337 = arith.constant 1 : i32
    %634 = vector.broadcast %c1_i32_337 : i32 to vector<1x256xi32>
    %635 = arith.addi %506, %634 : vector<1x256xi32>
    %c0_i32_338 = arith.constant 0 : i32
    %636 = vector.broadcast %c0_i32_338 : i32 to vector<1x256xi32>
    %637 = arith.cmpi sge, %635, %636 : vector<1x256xi32>
    %638 = arith.andi %633, %637 : vector<1x256xi1>
    %c1_i32_339 = arith.constant 1 : i32
    %639 = vector.broadcast %c1_i32_339 : i32 to vector<1x256xi32>
    %640 = arith.addi %506, %639 : vector<1x256xi32>
    %c16_i32_340 = arith.constant 16 : i32
    %641 = vector.broadcast %c16_i32_340 : i32 to vector<1x256xi32>
    %642 = arith.cmpi slt, %640, %641 : vector<1x256xi32>
    %643 = arith.andi %638, %642 : vector<1x256xi1>
    %cst_341 = arith.constant 0.000000e+00 : f32
    %644 = vector.shape_cast %643 : vector<1x256xi1> to vector<1x256xi1>
    %645 = vector.broadcast %644 : vector<1x256xi1> to vector<6x256xi1>
    %646 = vector.broadcast %cst_341 : f32 to vector<6x256xf32>
    %647 = arith.select %645, %624, %646 : vector<6x256xi1>, vector<6x256xf32>
    %c5_342 = arith.constant 5 : index
    %c0_343 = arith.constant 0 : index
    %c0_344 = arith.constant 0 : index
    %648 = vector.load %arg7[%c5_342, %c0_343, %c0_344] : memref<9x8x6xf32, #tpu.memory_space<vmem>>, vector<1x8x6xf32>
    %649 = vector.shape_cast %648 : vector<1x8x6xf32> to vector<8x6xf32>
    %cst_345 = arith.constant dense<0.000000e+00> : vector<8x256xf32>
    %650 = tpu.matmul %649, %647, %cst_345 {dimension_numbers = #tpu.dot_dimension_numbers<[1], [0], [0], [1], [0, 0, 1, 1], [], []>} : vector<8x6xf32>, vector<6x256xf32>, vector<8x256xf32> -> vector<8x256xf32>
    %651 = arith.addf %623, %650 : vector<8x256xf32>
    %c0_346 = arith.constant 0 : index
    %c143 = arith.constant 143 : index
    %652 = vector.load %arg17[%c0_346, %c143] : memref<6x512xf32, #tpu.memory_space<vmem>>, vector<6x256xf32>
    %c1_i32_347 = arith.constant 1 : i32
    %653 = vector.broadcast %c1_i32_347 : i32 to vector<1x256xi32>
    %654 = arith.addi %504, %653 : vector<1x256xi32>
    %c0_i32_348 = arith.constant 0 : i32
    %655 = vector.broadcast %c0_i32_348 : i32 to vector<1x256xi32>
    %656 = arith.cmpi sge, %654, %655 : vector<1x256xi32>
    %c1_i32_349 = arith.constant 1 : i32
    %657 = vector.broadcast %c1_i32_349 : i32 to vector<1x256xi32>
    %658 = arith.addi %504, %657 : vector<1x256xi32>
    %c16_i32_350 = arith.constant 16 : i32
    %659 = vector.broadcast %c16_i32_350 : i32 to vector<1x256xi32>
    %660 = arith.cmpi slt, %658, %659 : vector<1x256xi32>
    %661 = arith.andi %656, %660 : vector<1x256xi1>
    %c-1_i32_351 = arith.constant -1 : i32
    %662 = vector.broadcast %c-1_i32_351 : i32 to vector<1x256xi32>
    %663 = arith.addi %506, %662 : vector<1x256xi32>
    %c0_i32_352 = arith.constant 0 : i32
    %664 = vector.broadcast %c0_i32_352 : i32 to vector<1x256xi32>
    %665 = arith.cmpi sge, %663, %664 : vector<1x256xi32>
    %666 = arith.andi %661, %665 : vector<1x256xi1>
    %c-1_i32_353 = arith.constant -1 : i32
    %667 = vector.broadcast %c-1_i32_353 : i32 to vector<1x256xi32>
    %668 = arith.addi %506, %667 : vector<1x256xi32>
    %c16_i32_354 = arith.constant 16 : i32
    %669 = vector.broadcast %c16_i32_354 : i32 to vector<1x256xi32>
    %670 = arith.cmpi slt, %668, %669 : vector<1x256xi32>
    %671 = arith.andi %666, %670 : vector<1x256xi1>
    %cst_355 = arith.constant 0.000000e+00 : f32
    %672 = vector.shape_cast %671 : vector<1x256xi1> to vector<1x256xi1>
    %673 = vector.broadcast %672 : vector<1x256xi1> to vector<6x256xi1>
    %674 = vector.broadcast %cst_355 : f32 to vector<6x256xf32>
    %675 = arith.select %673, %652, %674 : vector<6x256xi1>, vector<6x256xf32>
    %c6_356 = arith.constant 6 : index
    %c0_357 = arith.constant 0 : index
    %c0_358 = arith.constant 0 : index
    %676 = vector.load %arg7[%c6_356, %c0_357, %c0_358] : memref<9x8x6xf32, #tpu.memory_space<vmem>>, vector<1x8x6xf32>
    %677 = vector.shape_cast %676 : vector<1x8x6xf32> to vector<8x6xf32>
    %cst_359 = arith.constant dense<0.000000e+00> : vector<8x256xf32>
    %678 = tpu.matmul %677, %675, %cst_359 {dimension_numbers = #tpu.dot_dimension_numbers<[1], [0], [0], [1], [0, 0, 1, 1], [], []>} : vector<8x6xf32>, vector<6x256xf32>, vector<8x256xf32> -> vector<8x256xf32>
    %679 = arith.addf %651, %678 : vector<8x256xf32>
    %c0_360 = arith.constant 0 : index
    %c144 = arith.constant 144 : index
    %680 = vector.load %arg17[%c0_360, %c144] : memref<6x512xf32, #tpu.memory_space<vmem>>, vector<6x256xf32>
    %c1_i32_361 = arith.constant 1 : i32
    %681 = vector.broadcast %c1_i32_361 : i32 to vector<1x256xi32>
    %682 = arith.addi %504, %681 : vector<1x256xi32>
    %c0_i32_362 = arith.constant 0 : i32
    %683 = vector.broadcast %c0_i32_362 : i32 to vector<1x256xi32>
    %684 = arith.cmpi sge, %682, %683 : vector<1x256xi32>
    %c1_i32_363 = arith.constant 1 : i32
    %685 = vector.broadcast %c1_i32_363 : i32 to vector<1x256xi32>
    %686 = arith.addi %504, %685 : vector<1x256xi32>
    %c16_i32_364 = arith.constant 16 : i32
    %687 = vector.broadcast %c16_i32_364 : i32 to vector<1x256xi32>
    %688 = arith.cmpi slt, %686, %687 : vector<1x256xi32>
    %689 = arith.andi %684, %688 : vector<1x256xi1>
    %c0_i32_365 = arith.constant 0 : i32
    %690 = vector.broadcast %c0_i32_365 : i32 to vector<1x256xi32>
    %691 = arith.addi %506, %690 : vector<1x256xi32>
    %c0_i32_366 = arith.constant 0 : i32
    %692 = vector.broadcast %c0_i32_366 : i32 to vector<1x256xi32>
    %693 = arith.cmpi sge, %691, %692 : vector<1x256xi32>
    %694 = arith.andi %689, %693 : vector<1x256xi1>
    %c0_i32_367 = arith.constant 0 : i32
    %695 = vector.broadcast %c0_i32_367 : i32 to vector<1x256xi32>
    %696 = arith.addi %506, %695 : vector<1x256xi32>
    %c16_i32_368 = arith.constant 16 : i32
    %697 = vector.broadcast %c16_i32_368 : i32 to vector<1x256xi32>
    %698 = arith.cmpi slt, %696, %697 : vector<1x256xi32>
    %699 = arith.andi %694, %698 : vector<1x256xi1>
    %cst_369 = arith.constant 0.000000e+00 : f32
    %700 = vector.shape_cast %699 : vector<1x256xi1> to vector<1x256xi1>
    %701 = vector.broadcast %700 : vector<1x256xi1> to vector<6x256xi1>
    %702 = vector.broadcast %cst_369 : f32 to vector<6x256xf32>
    %703 = arith.select %701, %680, %702 : vector<6x256xi1>, vector<6x256xf32>
    %c7_370 = arith.constant 7 : index
    %c0_371 = arith.constant 0 : index
    %c0_372 = arith.constant 0 : index
    %704 = vector.load %arg7[%c7_370, %c0_371, %c0_372] : memref<9x8x6xf32, #tpu.memory_space<vmem>>, vector<1x8x6xf32>
    %705 = vector.shape_cast %704 : vector<1x8x6xf32> to vector<8x6xf32>
    %cst_373 = arith.constant dense<0.000000e+00> : vector<8x256xf32>
    %706 = tpu.matmul %705, %703, %cst_373 {dimension_numbers = #tpu.dot_dimension_numbers<[1], [0], [0], [1], [0, 0, 1, 1], [], []>} : vector<8x6xf32>, vector<6x256xf32>, vector<8x256xf32> -> vector<8x256xf32>
    %707 = arith.addf %679, %706 : vector<8x256xf32>
    %c0_374 = arith.constant 0 : index
    %c145 = arith.constant 145 : index
    %708 = vector.load %arg17[%c0_374, %c145] : memref<6x512xf32, #tpu.memory_space<vmem>>, vector<6x256xf32>
    %c1_i32_375 = arith.constant 1 : i32
    %709 = vector.broadcast %c1_i32_375 : i32 to vector<1x256xi32>
    %710 = arith.addi %504, %709 : vector<1x256xi32>
    %c0_i32_376 = arith.constant 0 : i32
    %711 = vector.broadcast %c0_i32_376 : i32 to vector<1x256xi32>
    %712 = arith.cmpi sge, %710, %711 : vector<1x256xi32>
    %c1_i32_377 = arith.constant 1 : i32
    %713 = vector.broadcast %c1_i32_377 : i32 to vector<1x256xi32>
    %714 = arith.addi %504, %713 : vector<1x256xi32>
    %c16_i32_378 = arith.constant 16 : i32
    %715 = vector.broadcast %c16_i32_378 : i32 to vector<1x256xi32>
    %716 = arith.cmpi slt, %714, %715 : vector<1x256xi32>
    %717 = arith.andi %712, %716 : vector<1x256xi1>
    %c1_i32_379 = arith.constant 1 : i32
    %718 = vector.broadcast %c1_i32_379 : i32 to vector<1x256xi32>
    %719 = arith.addi %506, %718 : vector<1x256xi32>
    %c0_i32_380 = arith.constant 0 : i32
    %720 = vector.broadcast %c0_i32_380 : i32 to vector<1x256xi32>
    %721 = arith.cmpi sge, %719, %720 : vector<1x256xi32>
    %722 = arith.andi %717, %721 : vector<1x256xi1>
    %c1_i32_381 = arith.constant 1 : i32
    %723 = vector.broadcast %c1_i32_381 : i32 to vector<1x256xi32>
    %724 = arith.addi %506, %723 : vector<1x256xi32>
    %c16_i32_382 = arith.constant 16 : i32
    %725 = vector.broadcast %c16_i32_382 : i32 to vector<1x256xi32>
    %726 = arith.cmpi slt, %724, %725 : vector<1x256xi32>
    %727 = arith.andi %722, %726 : vector<1x256xi1>
    %cst_383 = arith.constant 0.000000e+00 : f32
    %728 = vector.shape_cast %727 : vector<1x256xi1> to vector<1x256xi1>
    %729 = vector.broadcast %728 : vector<1x256xi1> to vector<6x256xi1>
    %730 = vector.broadcast %cst_383 : f32 to vector<6x256xf32>
    %731 = arith.select %729, %708, %730 : vector<6x256xi1>, vector<6x256xf32>
    %c8_384 = arith.constant 8 : index
    %c0_385 = arith.constant 0 : index
    %c0_386 = arith.constant 0 : index
    %732 = vector.load %arg7[%c8_384, %c0_385, %c0_386] : memref<9x8x6xf32, #tpu.memory_space<vmem>>, vector<1x8x6xf32>
    %733 = vector.shape_cast %732 : vector<1x8x6xf32> to vector<8x6xf32>
    %cst_387 = arith.constant dense<0.000000e+00> : vector<8x256xf32>
    %734 = tpu.matmul %733, %731, %cst_387 {dimension_numbers = #tpu.dot_dimension_numbers<[1], [0], [0], [1], [0, 0, 1, 1], [], []>} : vector<8x6xf32>, vector<6x256xf32>, vector<8x256xf32> -> vector<8x256xf32>
    %735 = arith.addf %707, %734 : vector<8x256xf32>
    %cst_388 = arith.constant 0.000000e+00 : f32
    %736 = vector.broadcast %cst_388 : f32 to vector<8x256xf32>
    %737 = arith.maximumf %735, %736 : vector<8x256xf32>
    %c0_389 = arith.constant 0 : index
    %c0_390 = arith.constant 0 : index
    %738 = vector.load %arg13[%c0_389, %c0_390] : memref<256x1024xf32, #tpu.memory_space<vmem>>, vector<256x1024xf32>
    %cst_391 = arith.constant dense<0.000000e+00> : vector<8x1024xf32>
    %739 = tpu.matmul %737, %738, %cst_391 {dimension_numbers = #tpu.dot_dimension_numbers<[1], [0], [0], [1], [0, 0, 1, 1], [], []>} : vector<8x256xf32>, vector<256x1024xf32>, vector<8x1024xf32> -> vector<8x1024xf32>
    %cst_392 = arith.constant 0.000000e+00 : f32
    %740 = vector.broadcast %cst_392 : f32 to vector<8x1280xf32>
    %c0_393 = arith.constant 0 : index
    %c0_394 = arith.constant 0 : index
    %741 = vector.load %arg18[%c0_393, %c0_394] : memref<8x1280xf32, #tpu.memory_space<vmem>>, vector<8x1280xf32>
    tpu.vector_store %arg18[%c0_393, %c0_394], %740 {strides = array<i32>} : memref<8x1280xf32, #tpu.memory_space<vmem>>, vector<8x1280xf32>,
    %c0_395 = arith.constant 0 : index
    %c128_396 = arith.constant 128 : index
    %742 = vector.load %arg18[%c0_395, %c128_396] : memref<8x1280xf32, #tpu.memory_space<vmem>>, vector<8x1024xf32>
    tpu.vector_store %arg18[%c0_395, %c128_396], %739 {strides = array<i32>} : memref<8x1280xf32, #tpu.memory_space<vmem>>, vector<8x1024xf32>,
    %c0_397 = arith.constant 0 : index
    %c0_398 = arith.constant 0 : index
    %743 = vector.load %arg10[%c0_397, %c0_398] : memref<9x1024xf32, #tpu.memory_space<vmem>>, vector<9x1024xf32>
    %744 = tpu.iota {dimensions = array<i32: 1>} : vector<1x1024xi32>
    %c5_i32 = arith.constant 5 : i32
    %745 = vector.broadcast %c5_i32 : i32 to vector<1x1024xi32>
    %746 = arith.shrsi %744, %745 : vector<1x1024xi32>
    %c31_i32 = arith.constant 31 : i32
    %747 = vector.broadcast %c31_i32 : i32 to vector<1x1024xi32>
    %748 = arith.andi %744, %747 : vector<1x1024xi32>
    %c0_399 = arith.constant 0 : index
    %c95 = arith.constant 95 : index
    %749 = vector.load %arg18[%c0_399, %c95] : memref<8x1280xf32, #tpu.memory_space<vmem>>, vector<8x1024xf32>
    %c-1_i32_400 = arith.constant -1 : i32
    %750 = vector.broadcast %c-1_i32_400 : i32 to vector<1x1024xi32>
    %751 = arith.addi %746, %750 : vector<1x1024xi32>
    %c0_i32_401 = arith.constant 0 : i32
    %752 = vector.broadcast %c0_i32_401 : i32 to vector<1x1024xi32>
    %753 = arith.cmpi sge, %751, %752 : vector<1x1024xi32>
    %c-1_i32_402 = arith.constant -1 : i32
    %754 = vector.broadcast %c-1_i32_402 : i32 to vector<1x1024xi32>
    %755 = arith.addi %746, %754 : vector<1x1024xi32>
    %c32_i32 = arith.constant 32 : i32
    %756 = vector.broadcast %c32_i32 : i32 to vector<1x1024xi32>
    %757 = arith.cmpi slt, %755, %756 : vector<1x1024xi32>
    %758 = arith.andi %753, %757 : vector<1x1024xi1>
    %c-1_i32_403 = arith.constant -1 : i32
    %759 = vector.broadcast %c-1_i32_403 : i32 to vector<1x1024xi32>
    %760 = arith.addi %748, %759 : vector<1x1024xi32>
    %c0_i32_404 = arith.constant 0 : i32
    %761 = vector.broadcast %c0_i32_404 : i32 to vector<1x1024xi32>
    %762 = arith.cmpi sge, %760, %761 : vector<1x1024xi32>
    %763 = arith.andi %758, %762 : vector<1x1024xi1>
    %c-1_i32_405 = arith.constant -1 : i32
    %764 = vector.broadcast %c-1_i32_405 : i32 to vector<1x1024xi32>
    %765 = arith.addi %748, %764 : vector<1x1024xi32>
    %c32_i32_406 = arith.constant 32 : i32
    %766 = vector.broadcast %c32_i32_406 : i32 to vector<1x1024xi32>
    %767 = arith.cmpi slt, %765, %766 : vector<1x1024xi32>
    %768 = arith.andi %763, %767 : vector<1x1024xi1>
    %cst_407 = arith.constant 0.000000e+00 : f32
    %769 = vector.shape_cast %768 : vector<1x1024xi1> to vector<1x1024xi1>
    %770 = vector.broadcast %769 : vector<1x1024xi1> to vector<8x1024xi1>
    %771 = vector.broadcast %cst_407 : f32 to vector<8x1024xf32>
    %772 = arith.select %770, %749, %771 : vector<8x1024xi1>, vector<8x1024xf32>
    %c0_408 = arith.constant 0 : index
    %c0_409 = arith.constant 0 : index
    %c0_410 = arith.constant 0 : index
    %773 = vector.load %arg9[%c0_408, %c0_409, %c0_410] : memref<9x9x8xf32, #tpu.memory_space<vmem>>, vector<1x9x8xf32>
    %774 = vector.shape_cast %773 : vector<1x9x8xf32> to vector<9x8xf32>
    %cst_411 = arith.constant dense<0.000000e+00> : vector<9x1024xf32>
    %775 = tpu.matmul %774, %772, %cst_411 {dimension_numbers = #tpu.dot_dimension_numbers<[1], [0], [0], [1], [0, 0, 1, 1], [], []>} : vector<9x8xf32>, vector<8x1024xf32>, vector<9x1024xf32> -> vector<9x1024xf32>
    %776 = arith.addf %743, %775 : vector<9x1024xf32>
    %c0_412 = arith.constant 0 : index
    %c96 = arith.constant 96 : index
    %777 = vector.load %arg18[%c0_412, %c96] : memref<8x1280xf32, #tpu.memory_space<vmem>>, vector<8x1024xf32>
    %c-1_i32_413 = arith.constant -1 : i32
    %778 = vector.broadcast %c-1_i32_413 : i32 to vector<1x1024xi32>
    %779 = arith.addi %746, %778 : vector<1x1024xi32>
    %c0_i32_414 = arith.constant 0 : i32
    %780 = vector.broadcast %c0_i32_414 : i32 to vector<1x1024xi32>
    %781 = arith.cmpi sge, %779, %780 : vector<1x1024xi32>
    %c-1_i32_415 = arith.constant -1 : i32
    %782 = vector.broadcast %c-1_i32_415 : i32 to vector<1x1024xi32>
    %783 = arith.addi %746, %782 : vector<1x1024xi32>
    %c32_i32_416 = arith.constant 32 : i32
    %784 = vector.broadcast %c32_i32_416 : i32 to vector<1x1024xi32>
    %785 = arith.cmpi slt, %783, %784 : vector<1x1024xi32>
    %786 = arith.andi %781, %785 : vector<1x1024xi1>
    %c0_i32_417 = arith.constant 0 : i32
    %787 = vector.broadcast %c0_i32_417 : i32 to vector<1x1024xi32>
    %788 = arith.addi %748, %787 : vector<1x1024xi32>
    %c0_i32_418 = arith.constant 0 : i32
    %789 = vector.broadcast %c0_i32_418 : i32 to vector<1x1024xi32>
    %790 = arith.cmpi sge, %788, %789 : vector<1x1024xi32>
    %791 = arith.andi %786, %790 : vector<1x1024xi1>
    %c0_i32_419 = arith.constant 0 : i32
    %792 = vector.broadcast %c0_i32_419 : i32 to vector<1x1024xi32>
    %793 = arith.addi %748, %792 : vector<1x1024xi32>
    %c32_i32_420 = arith.constant 32 : i32
    %794 = vector.broadcast %c32_i32_420 : i32 to vector<1x1024xi32>
    %795 = arith.cmpi slt, %793, %794 : vector<1x1024xi32>
    %796 = arith.andi %791, %795 : vector<1x1024xi1>
    %cst_421 = arith.constant 0.000000e+00 : f32
    %797 = vector.shape_cast %796 : vector<1x1024xi1> to vector<1x1024xi1>
    %798 = vector.broadcast %797 : vector<1x1024xi1> to vector<8x1024xi1>
    %799 = vector.broadcast %cst_421 : f32 to vector<8x1024xf32>
    %800 = arith.select %798, %777, %799 : vector<8x1024xi1>, vector<8x1024xf32>
    %c1_422 = arith.constant 1 : index
    %c0_423 = arith.constant 0 : index
    %c0_424 = arith.constant 0 : index
    %801 = vector.load %arg9[%c1_422, %c0_423, %c0_424] : memref<9x9x8xf32, #tpu.memory_space<vmem>>, vector<1x9x8xf32>
    %802 = vector.shape_cast %801 : vector<1x9x8xf32> to vector<9x8xf32>
    %cst_425 = arith.constant dense<0.000000e+00> : vector<9x1024xf32>
    %803 = tpu.matmul %802, %800, %cst_425 {dimension_numbers = #tpu.dot_dimension_numbers<[1], [0], [0], [1], [0, 0, 1, 1], [], []>} : vector<9x8xf32>, vector<8x1024xf32>, vector<9x1024xf32> -> vector<9x1024xf32>
    %804 = arith.addf %776, %803 : vector<9x1024xf32>
    %c0_426 = arith.constant 0 : index
    %c97 = arith.constant 97 : index
    %805 = vector.load %arg18[%c0_426, %c97] : memref<8x1280xf32, #tpu.memory_space<vmem>>, vector<8x1024xf32>
    %c-1_i32_427 = arith.constant -1 : i32
    %806 = vector.broadcast %c-1_i32_427 : i32 to vector<1x1024xi32>
    %807 = arith.addi %746, %806 : vector<1x1024xi32>
    %c0_i32_428 = arith.constant 0 : i32
    %808 = vector.broadcast %c0_i32_428 : i32 to vector<1x1024xi32>
    %809 = arith.cmpi sge, %807, %808 : vector<1x1024xi32>
    %c-1_i32_429 = arith.constant -1 : i32
    %810 = vector.broadcast %c-1_i32_429 : i32 to vector<1x1024xi32>
    %811 = arith.addi %746, %810 : vector<1x1024xi32>
    %c32_i32_430 = arith.constant 32 : i32
    %812 = vector.broadcast %c32_i32_430 : i32 to vector<1x1024xi32>
    %813 = arith.cmpi slt, %811, %812 : vector<1x1024xi32>
    %814 = arith.andi %809, %813 : vector<1x1024xi1>
    %c1_i32_431 = arith.constant 1 : i32
    %815 = vector.broadcast %c1_i32_431 : i32 to vector<1x1024xi32>
    %816 = arith.addi %748, %815 : vector<1x1024xi32>
    %c0_i32_432 = arith.constant 0 : i32
    %817 = vector.broadcast %c0_i32_432 : i32 to vector<1x1024xi32>
    %818 = arith.cmpi sge, %816, %817 : vector<1x1024xi32>
    %819 = arith.andi %814, %818 : vector<1x1024xi1>
    %c1_i32_433 = arith.constant 1 : i32
    %820 = vector.broadcast %c1_i32_433 : i32 to vector<1x1024xi32>
    %821 = arith.addi %748, %820 : vector<1x1024xi32>
    %c32_i32_434 = arith.constant 32 : i32
    %822 = vector.broadcast %c32_i32_434 : i32 to vector<1x1024xi32>
    %823 = arith.cmpi slt, %821, %822 : vector<1x1024xi32>
    %824 = arith.andi %819, %823 : vector<1x1024xi1>
    %cst_435 = arith.constant 0.000000e+00 : f32
    %825 = vector.shape_cast %824 : vector<1x1024xi1> to vector<1x1024xi1>
    %826 = vector.broadcast %825 : vector<1x1024xi1> to vector<8x1024xi1>
    %827 = vector.broadcast %cst_435 : f32 to vector<8x1024xf32>
    %828 = arith.select %826, %805, %827 : vector<8x1024xi1>, vector<8x1024xf32>
    %c2_436 = arith.constant 2 : index
    %c0_437 = arith.constant 0 : index
    %c0_438 = arith.constant 0 : index
    %829 = vector.load %arg9[%c2_436, %c0_437, %c0_438] : memref<9x9x8xf32, #tpu.memory_space<vmem>>, vector<1x9x8xf32>
    %830 = vector.shape_cast %829 : vector<1x9x8xf32> to vector<9x8xf32>
    %cst_439 = arith.constant dense<0.000000e+00> : vector<9x1024xf32>
    %831 = tpu.matmul %830, %828, %cst_439 {dimension_numbers = #tpu.dot_dimension_numbers<[1], [0], [0], [1], [0, 0, 1, 1], [], []>} : vector<9x8xf32>, vector<8x1024xf32>, vector<9x1024xf32> -> vector<9x1024xf32>
    %832 = arith.addf %804, %831 : vector<9x1024xf32>
    %c0_440 = arith.constant 0 : index
    %c127_441 = arith.constant 127 : index
    %833 = vector.load %arg18[%c0_440, %c127_441] : memref<8x1280xf32, #tpu.memory_space<vmem>>, vector<8x1024xf32>
    %c0_i32_442 = arith.constant 0 : i32
    %834 = vector.broadcast %c0_i32_442 : i32 to vector<1x1024xi32>
    %835 = arith.addi %746, %834 : vector<1x1024xi32>
    %c0_i32_443 = arith.constant 0 : i32
    %836 = vector.broadcast %c0_i32_443 : i32 to vector<1x1024xi32>
    %837 = arith.cmpi sge, %835, %836 : vector<1x1024xi32>
    %c0_i32_444 = arith.constant 0 : i32
    %838 = vector.broadcast %c0_i32_444 : i32 to vector<1x1024xi32>
    %839 = arith.addi %746, %838 : vector<1x1024xi32>
    %c32_i32_445 = arith.constant 32 : i32
    %840 = vector.broadcast %c32_i32_445 : i32 to vector<1x1024xi32>
    %841 = arith.cmpi slt, %839, %840 : vector<1x1024xi32>
    %842 = arith.andi %837, %841 : vector<1x1024xi1>
    %c-1_i32_446 = arith.constant -1 : i32
    %843 = vector.broadcast %c-1_i32_446 : i32 to vector<1x1024xi32>
    %844 = arith.addi %748, %843 : vector<1x1024xi32>
    %c0_i32_447 = arith.constant 0 : i32
    %845 = vector.broadcast %c0_i32_447 : i32 to vector<1x1024xi32>
    %846 = arith.cmpi sge, %844, %845 : vector<1x1024xi32>
    %847 = arith.andi %842, %846 : vector<1x1024xi1>
    %c-1_i32_448 = arith.constant -1 : i32
    %848 = vector.broadcast %c-1_i32_448 : i32 to vector<1x1024xi32>
    %849 = arith.addi %748, %848 : vector<1x1024xi32>
    %c32_i32_449 = arith.constant 32 : i32
    %850 = vector.broadcast %c32_i32_449 : i32 to vector<1x1024xi32>
    %851 = arith.cmpi slt, %849, %850 : vector<1x1024xi32>
    %852 = arith.andi %847, %851 : vector<1x1024xi1>
    %cst_450 = arith.constant 0.000000e+00 : f32
    %853 = vector.shape_cast %852 : vector<1x1024xi1> to vector<1x1024xi1>
    %854 = vector.broadcast %853 : vector<1x1024xi1> to vector<8x1024xi1>
    %855 = vector.broadcast %cst_450 : f32 to vector<8x1024xf32>
    %856 = arith.select %854, %833, %855 : vector<8x1024xi1>, vector<8x1024xf32>
    %c3_451 = arith.constant 3 : index
    %c0_452 = arith.constant 0 : index
    %c0_453 = arith.constant 0 : index
    %857 = vector.load %arg9[%c3_451, %c0_452, %c0_453] : memref<9x9x8xf32, #tpu.memory_space<vmem>>, vector<1x9x8xf32>
    %858 = vector.shape_cast %857 : vector<1x9x8xf32> to vector<9x8xf32>
    %cst_454 = arith.constant dense<0.000000e+00> : vector<9x1024xf32>
    %859 = tpu.matmul %858, %856, %cst_454 {dimension_numbers = #tpu.dot_dimension_numbers<[1], [0], [0], [1], [0, 0, 1, 1], [], []>} : vector<9x8xf32>, vector<8x1024xf32>, vector<9x1024xf32> -> vector<9x1024xf32>
    %860 = arith.addf %832, %859 : vector<9x1024xf32>
    %c0_455 = arith.constant 0 : index
    %c128_456 = arith.constant 128 : index
    %861 = vector.load %arg18[%c0_455, %c128_456] : memref<8x1280xf32, #tpu.memory_space<vmem>>, vector<8x1024xf32>
    %c4_457 = arith.constant 4 : index
    %c0_458 = arith.constant 0 : index
    %c0_459 = arith.constant 0 : index
    %862 = vector.load %arg9[%c4_457, %c0_458, %c0_459] : memref<9x9x8xf32, #tpu.memory_space<vmem>>, vector<1x9x8xf32>
    %863 = vector.shape_cast %862 : vector<1x9x8xf32> to vector<9x8xf32>
    %cst_460 = arith.constant dense<0.000000e+00> : vector<9x1024xf32>
    %864 = tpu.matmul %863, %861, %cst_460 {dimension_numbers = #tpu.dot_dimension_numbers<[1], [0], [0], [1], [0, 0, 1, 1], [], []>} : vector<9x8xf32>, vector<8x1024xf32>, vector<9x1024xf32> -> vector<9x1024xf32>
    %865 = arith.addf %860, %864 : vector<9x1024xf32>
    %c0_461 = arith.constant 0 : index
    %c129_462 = arith.constant 129 : index
    %866 = vector.load %arg18[%c0_461, %c129_462] : memref<8x1280xf32, #tpu.memory_space<vmem>>, vector<8x1024xf32>
    %c0_i32_463 = arith.constant 0 : i32
    %867 = vector.broadcast %c0_i32_463 : i32 to vector<1x1024xi32>
    %868 = arith.addi %746, %867 : vector<1x1024xi32>
    %c0_i32_464 = arith.constant 0 : i32
    %869 = vector.broadcast %c0_i32_464 : i32 to vector<1x1024xi32>
    %870 = arith.cmpi sge, %868, %869 : vector<1x1024xi32>
    %c0_i32_465 = arith.constant 0 : i32
    %871 = vector.broadcast %c0_i32_465 : i32 to vector<1x1024xi32>
    %872 = arith.addi %746, %871 : vector<1x1024xi32>
    %c32_i32_466 = arith.constant 32 : i32
    %873 = vector.broadcast %c32_i32_466 : i32 to vector<1x1024xi32>
    %874 = arith.cmpi slt, %872, %873 : vector<1x1024xi32>
    %875 = arith.andi %870, %874 : vector<1x1024xi1>
    %c1_i32_467 = arith.constant 1 : i32
    %876 = vector.broadcast %c1_i32_467 : i32 to vector<1x1024xi32>
    %877 = arith.addi %748, %876 : vector<1x1024xi32>
    %c0_i32_468 = arith.constant 0 : i32
    %878 = vector.broadcast %c0_i32_468 : i32 to vector<1x1024xi32>
    %879 = arith.cmpi sge, %877, %878 : vector<1x1024xi32>
    %880 = arith.andi %875, %879 : vector<1x1024xi1>
    %c1_i32_469 = arith.constant 1 : i32
    %881 = vector.broadcast %c1_i32_469 : i32 to vector<1x1024xi32>
    %882 = arith.addi %748, %881 : vector<1x1024xi32>
    %c32_i32_470 = arith.constant 32 : i32
    %883 = vector.broadcast %c32_i32_470 : i32 to vector<1x1024xi32>
    %884 = arith.cmpi slt, %882, %883 : vector<1x1024xi32>
    %885 = arith.andi %880, %884 : vector<1x1024xi1>
    %cst_471 = arith.constant 0.000000e+00 : f32
    %886 = vector.shape_cast %885 : vector<1x1024xi1> to vector<1x1024xi1>
    %887 = vector.broadcast %886 : vector<1x1024xi1> to vector<8x1024xi1>
    %888 = vector.broadcast %cst_471 : f32 to vector<8x1024xf32>
    %889 = arith.select %887, %866, %888 : vector<8x1024xi1>, vector<8x1024xf32>
    %c5_472 = arith.constant 5 : index
    %c0_473 = arith.constant 0 : index
    %c0_474 = arith.constant 0 : index
    %890 = vector.load %arg9[%c5_472, %c0_473, %c0_474] : memref<9x9x8xf32, #tpu.memory_space<vmem>>, vector<1x9x8xf32>
    %891 = vector.shape_cast %890 : vector<1x9x8xf32> to vector<9x8xf32>
    %cst_475 = arith.constant dense<0.000000e+00> : vector<9x1024xf32>
    %892 = tpu.matmul %891, %889, %cst_475 {dimension_numbers = #tpu.dot_dimension_numbers<[1], [0], [0], [1], [0, 0, 1, 1], [], []>} : vector<9x8xf32>, vector<8x1024xf32>, vector<9x1024xf32> -> vector<9x1024xf32>
    %893 = arith.addf %865, %892 : vector<9x1024xf32>
    %c0_476 = arith.constant 0 : index
    %c159 = arith.constant 159 : index
    %894 = vector.load %arg18[%c0_476, %c159] : memref<8x1280xf32, #tpu.memory_space<vmem>>, vector<8x1024xf32>
    %c1_i32_477 = arith.constant 1 : i32
    %895 = vector.broadcast %c1_i32_477 : i32 to vector<1x1024xi32>
    %896 = arith.addi %746, %895 : vector<1x1024xi32>
    %c0_i32_478 = arith.constant 0 : i32
    %897 = vector.broadcast %c0_i32_478 : i32 to vector<1x1024xi32>
    %898 = arith.cmpi sge, %896, %897 : vector<1x1024xi32>
    %c1_i32_479 = arith.constant 1 : i32
    %899 = vector.broadcast %c1_i32_479 : i32 to vector<1x1024xi32>
    %900 = arith.addi %746, %899 : vector<1x1024xi32>
    %c32_i32_480 = arith.constant 32 : i32
    %901 = vector.broadcast %c32_i32_480 : i32 to vector<1x1024xi32>
    %902 = arith.cmpi slt, %900, %901 : vector<1x1024xi32>
    %903 = arith.andi %898, %902 : vector<1x1024xi1>
    %c-1_i32_481 = arith.constant -1 : i32
    %904 = vector.broadcast %c-1_i32_481 : i32 to vector<1x1024xi32>
    %905 = arith.addi %748, %904 : vector<1x1024xi32>
    %c0_i32_482 = arith.constant 0 : i32
    %906 = vector.broadcast %c0_i32_482 : i32 to vector<1x1024xi32>
    %907 = arith.cmpi sge, %905, %906 : vector<1x1024xi32>
    %908 = arith.andi %903, %907 : vector<1x1024xi1>
    %c-1_i32_483 = arith.constant -1 : i32
    %909 = vector.broadcast %c-1_i32_483 : i32 to vector<1x1024xi32>
    %910 = arith.addi %748, %909 : vector<1x1024xi32>
    %c32_i32_484 = arith.constant 32 : i32
    %911 = vector.broadcast %c32_i32_484 : i32 to vector<1x1024xi32>
    %912 = arith.cmpi slt, %910, %911 : vector<1x1024xi32>
    %913 = arith.andi %908, %912 : vector<1x1024xi1>
    %cst_485 = arith.constant 0.000000e+00 : f32
    %914 = vector.shape_cast %913 : vector<1x1024xi1> to vector<1x1024xi1>
    %915 = vector.broadcast %914 : vector<1x1024xi1> to vector<8x1024xi1>
    %916 = vector.broadcast %cst_485 : f32 to vector<8x1024xf32>
    %917 = arith.select %915, %894, %916 : vector<8x1024xi1>, vector<8x1024xf32>
    %c6_486 = arith.constant 6 : index
    %c0_487 = arith.constant 0 : index
    %c0_488 = arith.constant 0 : index
    %918 = vector.load %arg9[%c6_486, %c0_487, %c0_488] : memref<9x9x8xf32, #tpu.memory_space<vmem>>, vector<1x9x8xf32>
    %919 = vector.shape_cast %918 : vector<1x9x8xf32> to vector<9x8xf32>
    %cst_489 = arith.constant dense<0.000000e+00> : vector<9x1024xf32>
    %920 = tpu.matmul %919, %917, %cst_489 {dimension_numbers = #tpu.dot_dimension_numbers<[1], [0], [0], [1], [0, 0, 1, 1], [], []>} : vector<9x8xf32>, vector<8x1024xf32>, vector<9x1024xf32> -> vector<9x1024xf32>
    %921 = arith.addf %893, %920 : vector<9x1024xf32>
    %c0_490 = arith.constant 0 : index
    %c160 = arith.constant 160 : index
    %922 = vector.load %arg18[%c0_490, %c160] : memref<8x1280xf32, #tpu.memory_space<vmem>>, vector<8x1024xf32>
    %c1_i32_491 = arith.constant 1 : i32
    %923 = vector.broadcast %c1_i32_491 : i32 to vector<1x1024xi32>
    %924 = arith.addi %746, %923 : vector<1x1024xi32>
    %c0_i32_492 = arith.constant 0 : i32
    %925 = vector.broadcast %c0_i32_492 : i32 to vector<1x1024xi32>
    %926 = arith.cmpi sge, %924, %925 : vector<1x1024xi32>
    %c1_i32_493 = arith.constant 1 : i32
    %927 = vector.broadcast %c1_i32_493 : i32 to vector<1x1024xi32>
    %928 = arith.addi %746, %927 : vector<1x1024xi32>
    %c32_i32_494 = arith.constant 32 : i32
    %929 = vector.broadcast %c32_i32_494 : i32 to vector<1x1024xi32>
    %930 = arith.cmpi slt, %928, %929 : vector<1x1024xi32>
    %931 = arith.andi %926, %930 : vector<1x1024xi1>
    %c0_i32_495 = arith.constant 0 : i32
    %932 = vector.broadcast %c0_i32_495 : i32 to vector<1x1024xi32>
    %933 = arith.addi %748, %932 : vector<1x1024xi32>
    %c0_i32_496 = arith.constant 0 : i32
    %934 = vector.broadcast %c0_i32_496 : i32 to vector<1x1024xi32>
    %935 = arith.cmpi sge, %933, %934 : vector<1x1024xi32>
    %936 = arith.andi %931, %935 : vector<1x1024xi1>
    %c0_i32_497 = arith.constant 0 : i32
    %937 = vector.broadcast %c0_i32_497 : i32 to vector<1x1024xi32>
    %938 = arith.addi %748, %937 : vector<1x1024xi32>
    %c32_i32_498 = arith.constant 32 : i32
    %939 = vector.broadcast %c32_i32_498 : i32 to vector<1x1024xi32>
    %940 = arith.cmpi slt, %938, %939 : vector<1x1024xi32>
    %941 = arith.andi %936, %940 : vector<1x1024xi1>
    %cst_499 = arith.constant 0.000000e+00 : f32
    %942 = vector.shape_cast %941 : vector<1x1024xi1> to vector<1x1024xi1>
    %943 = vector.broadcast %942 : vector<1x1024xi1> to vector<8x1024xi1>
    %944 = vector.broadcast %cst_499 : f32 to vector<8x1024xf32>
    %945 = arith.select %943, %922, %944 : vector<8x1024xi1>, vector<8x1024xf32>
    %c7_500 = arith.constant 7 : index
    %c0_501 = arith.constant 0 : index
    %c0_502 = arith.constant 0 : index
    %946 = vector.load %arg9[%c7_500, %c0_501, %c0_502] : memref<9x9x8xf32, #tpu.memory_space<vmem>>, vector<1x9x8xf32>
    %947 = vector.shape_cast %946 : vector<1x9x8xf32> to vector<9x8xf32>
    %cst_503 = arith.constant dense<0.000000e+00> : vector<9x1024xf32>
    %948 = tpu.matmul %947, %945, %cst_503 {dimension_numbers = #tpu.dot_dimension_numbers<[1], [0], [0], [1], [0, 0, 1, 1], [], []>} : vector<9x8xf32>, vector<8x1024xf32>, vector<9x1024xf32> -> vector<9x1024xf32>
    %949 = arith.addf %921, %948 : vector<9x1024xf32>
    %c0_504 = arith.constant 0 : index
    %c161 = arith.constant 161 : index
    %950 = vector.load %arg18[%c0_504, %c161] : memref<8x1280xf32, #tpu.memory_space<vmem>>, vector<8x1024xf32>
    %c1_i32_505 = arith.constant 1 : i32
    %951 = vector.broadcast %c1_i32_505 : i32 to vector<1x1024xi32>
    %952 = arith.addi %746, %951 : vector<1x1024xi32>
    %c0_i32_506 = arith.constant 0 : i32
    %953 = vector.broadcast %c0_i32_506 : i32 to vector<1x1024xi32>
    %954 = arith.cmpi sge, %952, %953 : vector<1x1024xi32>
    %c1_i32_507 = arith.constant 1 : i32
    %955 = vector.broadcast %c1_i32_507 : i32 to vector<1x1024xi32>
    %956 = arith.addi %746, %955 : vector<1x1024xi32>
    %c32_i32_508 = arith.constant 32 : i32
    %957 = vector.broadcast %c32_i32_508 : i32 to vector<1x1024xi32>
    %958 = arith.cmpi slt, %956, %957 : vector<1x1024xi32>
    %959 = arith.andi %954, %958 : vector<1x1024xi1>
    %c1_i32_509 = arith.constant 1 : i32
    %960 = vector.broadcast %c1_i32_509 : i32 to vector<1x1024xi32>
    %961 = arith.addi %748, %960 : vector<1x1024xi32>
    %c0_i32_510 = arith.constant 0 : i32
    %962 = vector.broadcast %c0_i32_510 : i32 to vector<1x1024xi32>
    %963 = arith.cmpi sge, %961, %962 : vector<1x1024xi32>
    %964 = arith.andi %959, %963 : vector<1x1024xi1>
    %c1_i32_511 = arith.constant 1 : i32
    %965 = vector.broadcast %c1_i32_511 : i32 to vector<1x1024xi32>
    %966 = arith.addi %748, %965 : vector<1x1024xi32>
    %c32_i32_512 = arith.constant 32 : i32
    %967 = vector.broadcast %c32_i32_512 : i32 to vector<1x1024xi32>
    %968 = arith.cmpi slt, %966, %967 : vector<1x1024xi32>
    %969 = arith.andi %964, %968 : vector<1x1024xi1>
    %cst_513 = arith.constant 0.000000e+00 : f32
    %970 = vector.shape_cast %969 : vector<1x1024xi1> to vector<1x1024xi1>
    %971 = vector.broadcast %970 : vector<1x1024xi1> to vector<8x1024xi1>
    %972 = vector.broadcast %cst_513 : f32 to vector<8x1024xf32>
    %973 = arith.select %971, %950, %972 : vector<8x1024xi1>, vector<8x1024xf32>
    %c8_514 = arith.constant 8 : index
    %c0_515 = arith.constant 0 : index
    %c0_516 = arith.constant 0 : index
    %974 = vector.load %arg9[%c8_514, %c0_515, %c0_516] : memref<9x9x8xf32, #tpu.memory_space<vmem>>, vector<1x9x8xf32>
    %975 = vector.shape_cast %974 : vector<1x9x8xf32> to vector<9x8xf32>
    %cst_517 = arith.constant dense<0.000000e+00> : vector<9x1024xf32>
    %976 = tpu.matmul %975, %973, %cst_517 {dimension_numbers = #tpu.dot_dimension_numbers<[1], [0], [0], [1], [0, 0, 1, 1], [], []>} : vector<9x8xf32>, vector<8x1024xf32>, vector<9x1024xf32> -> vector<9x1024xf32>
    %977 = arith.addf %949, %976 : vector<9x1024xf32>
    %978 = math.tanh %977 : vector<9x1024xf32>
    %cst_518 = arith.constant 8.000000e-01 : f32
    %979 = vector.broadcast %cst_518 : f32 to vector<9x1024xf32>
    %980 = arith.mulf %978, %979 : vector<9x1024xf32>
    %c0_519 = arith.constant 0 : index
    %c0_520 = arith.constant 0 : index
    %981 = vector.load %arg14[%c0_519, %c0_520] : memref<9x1024xf32, #tpu.memory_space<vmem>>, vector<9x1024xf32>
    tpu.vector_store %arg14[%c0_519, %c0_520], %980 {strides = array<i32>} : memref<9x1024xf32, #tpu.memory_space<vmem>>, vector<9x1024xf32>,
    return
  }
}

</mosaic_0001>

<llo_original>
// kernel: hypernet_forward.1
$region0: #{hypernet_forward.1}
  #allocation0 [shape = 'u32[]', space=smem, size = 0x4, offset = 0x4, fixed_abs, tag = 'smem constant byte address 0x4 - core index']
  #allocation1 [shape = 'u32[144,128]{1,0:T(1,128)}', space=vmem, size = 0x12000, scoped, tag = 'internal scratch']
  #allocation2 [shape = 'f32[2,272]{1,0:T(2,128)}', space=vmem, size = 0xc00, scoped, tag = 'scratch operand']
  #allocation3 [shape = 'f32[4,320]{1,0:T(4,128)}', space=vmem, size = 0x1800, scoped, tag = 'scratch operand']
  #allocation4 [shape = 'f32[6,512]{1,0:T(8,128)}', space=vmem, size = 0x4000, scoped, tag = 'scratch operand']
  #allocation5 [shape = 'f32[8,1280]{1,0:T(8,128)}', space=vmem, size = 0xa000, scoped, tag = 'scratch operand']
  %s0 = inlined_call_operand.hbm [shape: f32[1,9], index: 0, kind: input, shape index: {}]
  %s1 = inlined_call_operand.vmem [shape: f32[2,9,16], index: 1, kind: input, shape index: {}]
  %s2 = inlined_call_operand.vmem [shape: f32[2,16], index: 2, kind: input, shape index: {}]
  %s3 = inlined_call_operand.vmem [shape: f32[9,4,2], index: 3, kind: input, shape index: {}]
  %s4 = inlined_call_operand.vmem [shape: f32[4,16], index: 4, kind: input, shape index: {}]
  %s5 = inlined_call_operand.vmem [shape: f32[9,6,4], index: 5, kind: input, shape index: {}]
  %s6 = inlined_call_operand.vmem [shape: f32[6,64], index: 6, kind: input, shape index: {}]
  %s7 = inlined_call_operand.hbm [shape: f32[9,8,6], index: 7, kind: input, shape index: {}]
  %s8 = inlined_call_operand.vmem [shape: f32[8,256], index: 8, kind: input, shape index: {}]
  %s9 = inlined_call_operand.vmem [shape: f32[9,9,8], index: 9, kind: input, shape index: {}]
  %s10 = inlined_call_operand.vmem [shape: f32[9,1024], index: 10, kind: input, shape index: {}]
  %s11 = inlined_call_operand.hbm [shape: f32[16,64], index: 11, kind: input, shape index: {}]
  %s12 = inlined_call_operand.hbm [shape: f32[64,256], index: 12, kind: input, shape index: {}]
  %s13 = inlined_call_operand.hbm [shape: f32[256,1024], index: 13, kind: input, shape index: {}]
  %s14 = inlined_call_operand.vmem [shape: f32[9,1024], index: 14, kind: output, shape index: {}]
  %s15 = sld [smem:[#allocation0]]
  $region86: #{hypernet_forward.1} parent=0
    _
  %s17 = ssub.s32 1, %s15
  %s18 = scalar_select 0, %s17, %s15
  $region1: #{hypernet_forward.1} parent=0
    #allocation6 [shape = 'u8[512]{0}', space=vmem, size = 0x400, scoped, tag = 'input window, operand 0, single buffered']
    #allocation7 [shape = 's32[1]{0}', space=sflag, size = 0x4, scoped, tag = 'scoped memory for hypernet_forward.1']
    #allocation8 [shape = 'u8[36864]{0}', space=vmem, size = 0x9000, scoped, tag = 'input window, operand 7, single buffered']
    #allocation9 [shape = 's32[1]{0}', space=sflag, size = 0x4, scoped, tag = 'scoped memory for hypernet_forward.1']
    #allocation10 [shape = 'u8[8192]{0}', space=vmem, size = 0x2000, scoped, tag = 'input window, operand 11, single buffered']
    #allocation11 [shape = 'u8[65536]{0}', space=vmem, size = 0x10000, scoped, tag = 'input window, operand 12, single buffered']
    #allocation12 [shape = 's32[1]{0}', space=sflag, size = 0x4, scoped, tag = 'scoped memory for hypernet_forward.1']
    #allocation13 [shape = 'u8[1048576]{0}', space=vmem, size = 0x100000, scoped, tag = 'input window, operand 13, single buffered']
    %19 = vsyncpa [#allocation7], 0
    %20 = vsyncpa [#allocation9], 0
    %21 = vsyncpa [#allocation12], 0
    // Predicated region
    $region2: #{hypernet_forward.1} parent=1 // pred_check
      _
    $region3: #{hypernet_forward.1} parent=1 // pred_check_branch
      %23 = sbr.rel (0) target = $region5
    $region4: #{hypernet_forward.1} parent=1 // pred_region
      %s25 = ssub.s32 16, 16
      %26 = vsyncadd [#allocation7], %s25
      %s28 = sshll.u32 [#allocation6], 4
      %s29 = int_to_ptr.vmem [resolvable:$true] %s28
      %31 = dma.hbm_to_vmem [thread:$0]  %s0, 16, %s29, [#allocation7]
    $region5: #{hypernet_forward.1} parent=1 // pred_fallthru
      _
    // Predicated region
    $region6: #{hypernet_forward.1} parent=1 // pred_check
      _
    $region7: #{hypernet_forward.1} parent=1 // pred_check_branch
      %33 = sbr.rel (0) target = $region9
    $region8: #{hypernet_forward.1} parent=1 // pred_region
      _
    $region9: #{hypernet_forward.1} parent=1 // pred_fallthru
      _
    // Predicated region
    $region10: #{hypernet_forward.1} parent=1 // pred_check
      _
    $region11: #{hypernet_forward.1} parent=1 // pred_check_branch
      %35 = sbr.rel (0) target = $region13
    $region12: #{hypernet_forward.1} parent=1 // pred_region
      _
    $region13: #{hypernet_forward.1} parent=1 // pred_fallthru
      _
    // Predicated region
    $region14: #{hypernet_forward.1} parent=1 // pred_check
      _
    $region15: #{hypernet_forward.1} parent=1 // pred_check_branch
      %37 = sbr.rel (0) target = $region17
    $region16: #{hypernet_forward.1} parent=1 // pred_region
      _
    $region17: #{hypernet_forward.1} parent=1 // pred_fallthru
      _
    // Predicated region
    $region18: #{hypernet_forward.1} parent=1 // pred_check
      _
    $region19: #{hypernet_forward.1} parent=1 // pred_check_branch
      %39 = sbr.rel (0) target = $region21
    $region20: #{hypernet_forward.1} parent=1 // pred_region
      _
    $region21: #{hypernet_forward.1} parent=1 // pred_fallthru
      _
    // Predicated region
    $region22: #{hypernet_forward.1} parent=1 // pred_check
      _
    $region23: #{hypernet_forward.1} parent=1 // pred_check_branch
      %41 = sbr.rel (0) target = $region25
    $region24: #{hypernet_forward.1} parent=1 // pred_region
      _
    $region25: #{hypernet_forward.1} parent=1 // pred_fallthru
      _
    // Predicated region
    $region26: #{hypernet_forward.1} parent=1 // pred_check
      _
    $region27: #{hypernet_forward.1} parent=1 // pred_check_branch
      %43 = sbr.rel (0) target = $region29
    $region28: #{hypernet_forward.1} parent=1 // pred_region
      _
    $region29: #{hypernet_forward.1} parent=1 // pred_fallthru
      _
    // Predicated region
    $region30: #{hypernet_forward.1} parent=1 // pred_check
      _
    $region31: #{hypernet_forward.1} parent=1 // pred_check_branch
      %45 = sbr.rel (0) target = $region33
    $region32: #{hypernet_forward.1} parent=1 // pred_region
      %s47 = ssub.s32 1152, 1152
      %48 = vsyncadd [#allocation9], %s47
      %s49 = sshll.u32 [#allocation8], 4
      %s50 = int_to_ptr.vmem [resolvable:$true] %s49
      %55 = dma.hbm_to_vmem [thread:$0]  %s7, 1152, %s50, [#allocation9], 128, 128, 8
    $region33: #{hypernet_forward.1} parent=1 // pred_fallthru
      _
    // Predicated region
    $region34: #{hypernet_forward.1} parent=1 // pred_check
      _
    $region35: #{hypernet_forward.1} parent=1 // pred_check_branch
      %57 = sbr.rel (0) target = $region37
    $region36: #{hypernet_forward.1} parent=1 // pred_region
      _
    $region37: #{hypernet_forward.1} parent=1 // pred_fallthru
      _
    // Predicated region
    $region38: #{hypernet_forward.1} parent=1 // pred_check
      _
    $region39: #{hypernet_forward.1} parent=1 // pred_check_branch
      %59 = sbr.rel (0) target = $region41
    $region40: #{hypernet_forward.1} parent=1 // pred_region
      _
    $region41: #{hypernet_forward.1} parent=1 // pred_fallthru
      _
    // Predicated region
    $region42: #{hypernet_forward.1} parent=1 // pred_check
      _
    $region43: #{hypernet_forward.1} parent=1 // pred_check_branch
      %61 = sbr.rel (0) target = $region45
    $region44: #{hypernet_forward.1} parent=1 // pred_region
      _
    $region45: #{hypernet_forward.1} parent=1 // pred_fallthru
      _
    // Predicated region
    $region46: #{hypernet_forward.1} parent=1 // pred_check
      _
    $region47: #{hypernet_forward.1} parent=1 // pred_check_branch
      %63 = sbr.rel (0) target = $region49
    $region48: #{hypernet_forward.1} parent=1 // pred_region
      %s65 = ssub.s32 256, 256
      %66 = vsyncadd [#allocation9], %s65
      %s67 = sshll.u32 [#allocation10], 4
      %s68 = int_to_ptr.vmem [resolvable:$true] %s67
      %73 = dma.hbm_to_vmem [thread:$0]  %s11, 256, %s68, [#allocation9], 128, 128, 8
    $region49: #{hypernet_forward.1} parent=1 // pred_fallthru
      _
    // Predicated region
    $region50: #{hypernet_forward.1} parent=1 // pred_check
      _
    $region51: #{hypernet_forward.1} parent=1 // pred_check_branch
      %75 = sbr.rel (0) target = $region53
    $region52: #{hypernet_forward.1} parent=1 // pred_region
      %s77 = ssub.s32 2048, 2048
      %78 = vsyncadd [#allocation12], %s77
      %s79 = sshll.u32 [#allocation11], 4
      %s80 = int_to_ptr.vmem [resolvable:$true] %s79
      %85 = dma.hbm_to_vmem [thread:$0]  %s12, 2048, %s80, [#allocation12], 256, 256, 16
    $region53: #{hypernet_forward.1} parent=1 // pred_fallthru
      _
    // Predicated region
    $region54: #{hypernet_forward.1} parent=1 // pred_check
      _
    $region55: #{hypernet_forward.1} parent=1 // pred_check_branch
      %87 = sbr.rel (0) target = $region57
    $region56: #{hypernet_forward.1} parent=1 // pred_region
      %s89 = ssub.s32 32768, 32768
      %90 = vsyncadd [#allocation12], %s89
      %s91 = sshll.u32 [#allocation13], 4
      %s92 = int_to_ptr.vmem [resolvable:$true] %s91
      %97 = dma.hbm_to_vmem [thread:$0]  %s13, 32768, %s92, [#allocation12], 1024, 1024, 64
    $region57: #{hypernet_forward.1} parent=1 // pred_fallthru
      _
    // Predicated region
    $region58: #{hypernet_forward.1} parent=1 // pred_check
      _
    $region59: #{hypernet_forward.1} parent=1 // pred_check_branch
      %99 = sbr.rel (0) target = $region61
    $region60: #{hypernet_forward.1} parent=1 // pred_region
      %100 = dma.done [#allocation7], 16
    $region61: #{hypernet_forward.1} parent=1 // pred_fallthru
      _
    // Predicated region
    $region62: #{hypernet_forward.1} parent=1 // pred_check
      _
    $region63: #{hypernet_forward.1} parent=1 // pred_check_branch
      %102 = sbr.rel (0) target = $region65
    $region64: #{hypernet_forward.1} parent=1 // pred_region
      %103 = dma.done [#allocation9], 1152
    $region65: #{hypernet_forward.1} parent=1 // pred_fallthru
      _
    // Predicated region
    $region66: #{hypernet_forward.1} parent=1 // pred_check
      _
    $region67: #{hypernet_forward.1} parent=1 // pred_check_branch
      %105 = sbr.rel (0) target = $region69
    $region68: #{hypernet_forward.1} parent=1 // pred_region
      %106 = dma.done [#allocation9], 256
    $region69: #{hypernet_forward.1} parent=1 // pred_fallthru
      _
    // Predicated region
    $region70: #{hypernet_forward.1} parent=1 // pred_check
      _
    $region71: #{hypernet_forward.1} parent=1 // pred_check_branch
      %108 = sbr.rel (0) target = $region73
    $region72: #{hypernet_forward.1} parent=1 // pred_region
      %109 = dma.done [#allocation12], 2048
    $region73: #{hypernet_forward.1} parent=1 // pred_fallthru
      _
    // Predicated region
    $region74: #{hypernet_forward.1} parent=1 // pred_check
      _
    $region75: #{hypernet_forward.1} parent=1 // pred_check_branch
      %111 = sbr.rel (0) target = $region77
    $region76: #{hypernet_forward.1} parent=1 // pred_region
      %112 = dma.done [#allocation12], 32768
    $region77: #{hypernet_forward.1} parent=1 // pred_fallthru
      _
    %v113 = vld [vmem:[#allocation6] sm:$0x1]
    %vm114 = vcmask 1041408
    %vm115 = vcmask 1043458
    %vm116 = vmor %vm115, %vm114
    %vm117 = vcmask 128004
    %vm118 = vmor %vm117, %vm116
    %119 = vst.msk [vmem:[#allocation2] sm:$0x3f] %vm118, 0.0
    %v120 = vld [vmem:[%s1] sm:$0xff]
    %v121 = vld [vmem:[%s1 + $0x8] sm:$0x1]
    %v122 = vld [vmem:[%s2] sm:$0x1]
    %vm123 = vcmask 72704
    %v125 = vsel %vm123, %v113, 0
    %vm127 = vcmask 1040384
    %v129 = vsel %vm127, %v121, 0
    %131 = vmatprep.subr.mxu0 0.0
    %132 = vmatpush1.msra.mxu0 0.0
    %133 = vmatprep.subr.mxu0 0.0
    %134 = vmatpush1.msra.mxu0 0.0
    %135 = vmatprep.subr.mxu0 0.0
    %136 = vmatpush1.msra.mxu0 0.0
    %137 = vmatprep.subr.mxu0 0.0
    %138 = vmatpush1.msra.mxu0 0.0
    %139 = vmatprep.subr.mxu0 0.0
    %140 = vmatpush1.msra.mxu0 0.0
    %141 = vmatprep.subr.mxu0 0.0
    %142 = vmatpush1.msra.mxu0 0.0
    %143 = vmatprep.subr.mxu0 0.0
    %144 = vmatpush1.msra.mxu0 0.0
    %145 = vmatprep.subr.mxu0 0.0
    %146 = vmatpush1.msra.mxu0 0.0
    %147 = vmatprep.subr.mxu0 0.0
    %148 = vmatpush1.msra.mxu0 0.0
    %149 = vmatprep.subr.mxu0 0.0
    %150 = vmatpush1.msra.mxu0 0.0
    %151 = vmatprep.subr.mxu0 0.0
    %152 = vmatpush1.msra.mxu0 0.0
    %153 = vmatprep.subr.mxu0 0.0
    %154 = vmatpush1.msra.mxu0 0.0
    %155 = vmatprep.subr.mxu0 0.0
    %156 = vmatpush1.msra.mxu0 0.0
    %157 = vmatprep.subr.mxu0 0.0
    %158 = vmatpush1.msra.mxu0 0.0
    %159 = vmatprep.subr.mxu0 0.0
    %160 = vmatpush1.msra.mxu0 %v129
    %161 = vmatprep.subr.mxu0 0.0
    %162 = vmatpush1.msra.mxu0 %v120
    %163 = vmatprep.subr.mxu0 0.0
    %164 = vmatpush2.msra.mxu0 0.0
    %165 = vmatprep.subr.mxu0 0.0
    %166 = vmatpush2.msra.mxu0 0.0
    %167 = vmatprep.subr.mxu0 0.0
    %168 = vmatpush2.msra.mxu0 0.0
    %169 = vmatprep.subr.mxu0 0.0
    %170 = vmatpush2.msra.mxu0 0.0
    %171 = vmatprep.subr.mxu0 0.0
    %172 = vmatpush2.msra.mxu0 0.0
    %173 = vmatprep.subr.mxu0 0.0
    %174 = vmatpush2.msra.mxu0 0.0
    %175 = vmatprep.subr.mxu0 0.0
    %176 = vmatpush2.msra.mxu0 0.0
    %177 = vmatprep.subr.mxu0 0.0
    %178 = vmatpush2.msra.mxu0 0.0
    %179 = vmatprep.subr.mxu0 0.0
    %180 = vmatpush2.msra.mxu0 0.0
    %181 = vmatprep.subr.mxu0 0.0
    %182 = vmatpush2.msra.mxu0 0.0
    %183 = vmatprep.subr.mxu0 0.0
    %184 = vmatpush2.msra.mxu0 0.0
    %185 = vmatprep.subr.mxu0 0.0
    %186 = vmatpush2.msra.mxu0 0.0
    %187 = vmatprep.subr.mxu0 0.0
    %188 = vmatpush2.msra.mxu0 0.0
    %189 = vmatprep.subr.mxu0 0.0
    %190 = vmatpush2.msra.mxu0 0.0
    %191 = vmatprep.subr.mxu0 0.0
    %192 = vmatpush2.msra.mxu0 0.0
    %193 = vmatprep.subr.mxu0 0.0
    %194 = vmatpush2.msra.mxu0 0.0
    %195 = vmatprep.mubr.f32.mxu0 0.0
    %196 = vmatmul.mubr.f32.gmra.mxu0 %v125
    %v197 = vpop.f32.mrf.mxu0
    %v198 = vadd.f32 %v122, %v197
    %v199 = vpop.f32.mrf.mxu0
    %200 = vdwg.mxu0
    %v201 = vtanh.pop %v198
    %vm202 = vcmask 122880
    %203 = vst.msk [vmem:[#allocation2 + $0x2] sm:$0x1] %vm202, %v201
    %s204 = scalar_lea.vmem %s1, 16
    %v205 = vld [vmem:[%s204] sm:$0xff]
    %v206 = vld [vmem:[%s204 + $0x8] sm:$0x1]
    %v207 = vld [vmem:[%s2 + $0x1] sm:$0x1]
    %v209 = vsel %vm127, %v206, 0
    %211 = vmatprep.subr.mxu0 0.0
    %212 = vmatpush1.msra.mxu0 0.0
    %213 = vmatprep.subr.mxu0 0.0
    %214 = vmatpush1.msra.mxu0 0.0
    %215 = vmatprep.subr.mxu0 0.0
    %216 = vmatpush1.msra.mxu0 0.0
    %217 = vmatprep.subr.mxu0 0.0
    %218 = vmatpush1.msra.mxu0 0.0
    %219 = vmatprep.subr.mxu0 0.0
    %220 = vmatpush1.msra.mxu0 0.0
    %221 = vmatprep.subr.mxu0 0.0
    %222 = vmatpush1.msra.mxu0 0.0
    %223 = vmatprep.subr.mxu0 0.0
    %224 = vmatpush1.msra.mxu0 0.0
    %225 = vmatprep.subr.mxu0 0.0
    %226 = vmatpush1.msra.mxu0 0.0
    %227 = vmatprep.subr.mxu0 0.0
    %228 = vmatpush1.msra.mxu0 0.0
    %229 = vmatprep.subr.mxu0 0.0
    %230 = vmatpush1.msra.mxu0 0.0
    %231 = vmatprep.subr.mxu0 0.0
    %232 = vmatpush1.msra.mxu0 0.0
    %233 = vmatprep.subr.mxu0 0.0
    %234 = vmatpush1.msra.mxu0 0.0
    %235 = vmatprep.subr.mxu0 0.0
    %236 = vmatpush1.msra.mxu0 0.0
    %237 = vmatprep.subr.mxu0 0.0
    %238 = vmatpush1.msra.mxu0 0.0
    %239 = vmatprep.subr.mxu0 0.0
    %240 = vmatpush1.msra.mxu0 %v209
    %241 = vmatprep.subr.mxu0 0.0
    %242 = vmatpush1.msra.mxu0 %v205
    %243 = vmatprep.subr.mxu0 0.0
    %244 = vmatpush2.msra.mxu0 0.0
    %245 = vmatprep.subr.mxu0 0.0
    %246 = vmatpush2.msra.mxu0 0.0
    %247 = vmatprep.subr.mxu0 0.0
    %248 = vmatpush2.msra.mxu0 0.0
    %249 = vmatprep.subr.mxu0 0.0
    %250 = vmatpush2.msra.mxu0 0.0
    %251 = vmatprep.subr.mxu0 0.0
    %252 = vmatpush2.msra.mxu0 0.0
    %253 = vmatprep.subr.mxu0 0.0
    %254 = vmatpush2.msra.mxu0 0.0
    %255 = vmatprep.subr.mxu0 0.0
    %256 = vmatpush2.msra.mxu0 0.0
    %257 = vmatprep.subr.mxu0 0.0
    %258 = vmatpush2.msra.mxu0 0.0
    %259 = vmatprep.subr.mxu0 0.0
    %260 = vmatpush2.msra.mxu0 0.0
    %261 = vmatprep.subr.mxu0 0.0
    %262 = vmatpush2.msra.mxu0 0.0
    %263 = vmatprep.subr.mxu0 0.0
    %264 = vmatpush2.msra.mxu0 0.0
    %265 = vmatprep.subr.mxu0 0.0
    %266 = vmatpush2.msra.mxu0 0.0
    %267 = vmatprep.subr.mxu0 0.0
    %268 = vmatpush2.msra.mxu0 0.0
    %269 = vmatprep.subr.mxu0 0.0
    %270 = vmatpush2.msra.mxu0 0.0
    %271 = vmatprep.subr.mxu0 0.0
    %272 = vmatpush2.msra.mxu0 0.0
    %273 = vmatprep.subr.mxu0 0.0
    %274 = vmatpush2.msra.mxu0 0.0
    %275 = vmatprep.mubr.f32.mxu0 0.0
    %276 = vmatmul.mubr.f32.gmra.mxu0 %v125
    %v277 = vpop.f32.mrf.mxu0
    %v278 = vadd.f32 %v207, %v277
    %v279 = vpop.f32.mrf.mxu0
    %280 = vdwg.mxu0
    %v281 = vtanh.pop %v278
    %282 = vst.msk [vmem:[#allocation2 + $0x3] sm:$0x1] %vm202, %v281
    %v283 = vld [vmem:[%s4] sm:$0xf]
    %v284 = vlaneseq
    %v285 = vand.u32 %v284, 127
    %v286 = vshra.s32 %v285, 2
    %v287 = vand.u32 %v285, 3
    %v288 = vld [vmem:[#allocation2] sm:$0xf]
    %v289 = vadd.s32 %v286, 4294967295
    %vm290 = vcmp.ge.s32.totalorder %v289, 0
    %vm291 = vcmp.lt.s32.totalorder %v289, 4
    %vm292 = vmand %vm290, %vm291
    %v293 = vadd.s32 %v287, 4294967295
    %vm294 = vcmp.ge.s32.totalorder %v293, 0
    %vm295 = vmand %vm292, %vm294
    %vm296 = vcmp.lt.s32.totalorder %v293, 4
    %vm297 = vmand %vm295, %vm296
    %v298 = vsel %vm297, 1, 0
    %vm299 = vcmp.eq.s32.totalorder %v298, 1
    %v302 = vunpack.c.l.s4 1983009808
    %v303 = vunpack.c.0.s8 %v302
    %v304 = vlaneseq
    %v305 = vshrl.u32 %v304, 7
    %v306 = vsub.s32 %v303, %v305
    %v307 = vrot.slane %v288, %v306
    %v308 = vcombine.high %v307, %v307
    %309 = vrot.lane.b32.xlu0 %v307, 5
    %v310 = vpop.permute.xlu0 %309
    %311 = vrot.lane.b32.xlu0 %v308, 5
    %v312 = vpop.permute.xlu0 %311
    %vm313 = vcmask 39936
    %v314 = vsel %vm313, %v310, %v312
    %v316 = vsel %vm299, %v314, 0.0
    %v317 = vld [vmem:[%s3] sm:$0xf]
    %vm318 = vcmask 15360
    %v320 = vsel %vm318, %v317, 0
    %v323 = vsel %vm114, %v316, 0
    %325 = vmatprep.subr.mxu0 0.0
    %326 = vmatpush1.msra.mxu0 0.0
    %327 = vmatprep.subr.mxu0 0.0
    %328 = vmatpush1.msra.mxu0 0.0
    %329 = vmatprep.subr.mxu0 0.0
    %330 = vmatpush1.msra.mxu0 0.0
    %331 = vmatprep.subr.mxu0 0.0
    %332 = vmatpush1.msra.mxu0 0.0
    %333 = vmatprep.subr.mxu0 0.0
    %334 = vmatpush1.msra.mxu0 0.0
    %335 = vmatprep.subr.mxu0 0.0
    %336 = vmatpush1.msra.mxu0 0.0
    %337 = vmatprep.subr.mxu0 0.0
    %338 = vmatpush1.msra.mxu0 0.0
    %339 = vmatprep.subr.mxu0 0.0
    %340 = vmatpush1.msra.mxu0 0.0
    %341 = vmatprep.subr.mxu0 0.0
    %342 = vmatpush1.msra.mxu0 0.0
    %343 = vmatprep.subr.mxu0 0.0
    %344 = vmatpush1.msra.mxu0 0.0
    %345 = vmatprep.subr.mxu0 0.0
    %346 = vmatpush1.msra.mxu0 0.0
    %347 = vmatprep.subr.mxu0 0.0
    %348 = vmatpush1.msra.mxu0 0.0
    %349 = vmatprep.subr.mxu0 0.0
    %350 = vmatpush1.msra.mxu0 0.0
    %351 = vmatprep.subr.mxu0 0.0
    %352 = vmatpush1.msra.mxu0 0.0
    %353 = vmatprep.subr.mxu0 0.0
    %354 = vmatpush1.msra.mxu0 0.0
    %355 = vmatprep.subr.mxu0 0.0
    %356 = vmatpush1.msra.mxu0 %v323
    %357 = vmatprep.subr.mxu0 0.0
    %358 = vmatpush2.msra.mxu0 0.0
    %359 = vmatprep.subr.mxu0 0.0
    %360 = vmatpush2.msra.mxu0 0.0
    %361 = vmatprep.subr.mxu0 0.0
    %362 = vmatpush2.msra.mxu0 0.0
    %363 = vmatprep.subr.mxu0 0.0
    %364 = vmatpush2.msra.mxu0 0.0
    %365 = vmatprep.subr.mxu0 0.0
    %366 = vmatpush2.msra.mxu0 0.0
    %367 = vmatprep.subr.mxu0 0.0
    %368 = vmatpush2.msra.mxu0 0.0
    %369 = vmatprep.subr.mxu0 0.0
    %370 = vmatpush2.msra.mxu0 0.0
    %371 = vmatprep.subr.mxu0 0.0
    %372 = vmatpush2.msra.mxu0 0.0
    %373 = vmatprep.subr.mxu0 0.0
    %374 = vmatpush2.msra.mxu0 0.0
    %375 = vmatprep.subr.mxu0 0.0
    %376 = vmatpush2.msra.mxu0 0.0
    %377 = vmatprep.subr.mxu0 0.0
    %378 = vmatpush2.msra.mxu0 0.0
    %379 = vmatprep.subr.mxu0 0.0
    %380 = vmatpush2.msra.mxu0 0.0
    %381 = vmatprep.subr.mxu0 0.0
    %382 = vmatpush2.msra.mxu0 0.0
    %383 = vmatprep.subr.mxu0 0.0
    %384 = vmatpush2.msra.mxu0 0.0
    %385 = vmatprep.subr.mxu0 0.0
    %386 = vmatpush2.msra.mxu0 0.0
    %387 = vmatprep.subr.mxu0 0.0
    %388 = vmatpush2.msra.mxu0 0.0
    %389 = vmatprep.mubr.f32.mxu0 0.0
    %390 = vmatmul.mubr.f32.gmra.mxu0 %v320
    %v391 = vpop.f32.mrf.mxu0
    %v392 = vadd.f32 0.0, %v391
    %v393 = vpop.f32.mrf.mxu0
    %394 = vdwg.mxu0
    %v395 = vadd.f32 %v283, %v392
    %v396 = vld [vmem:[#allocation2] sm:$0xf]
    %vm397 = vcmp.ge.s32.totalorder %v287, 0
    %vm398 = vmand %vm292, %vm397
    %vm399 = vcmp.lt.s32.totalorder %v287, 4
    %vm400 = vmand %vm398, %vm399
    %v401 = vsel %vm400, 1, 0
    %vm402 = vcmp.eq.s32.totalorder %v401, 1
    %v405 = vunpack.c.l.s4 1983009808
    %v406 = vunpack.c.0.s8 %v405
    %v407 = vlaneseq
    %v408 = vshrl.u32 %v407, 7
    %v409 = vsub.s32 %v406, %v408
    %v410 = vrot.slane %v396, %v409
    %v411 = vcombine.high %v410, %v410
    %412 = vrot.lane.b32.xlu0 %v410, 4
    %v413 = vpop.permute.xlu0 %412
    %414 = vrot.lane.b32.xlu0 %v411, 4
    %v415 = vpop.permute.xlu0 %414
    %vm416 = vcmask 31744
    %v417 = vsel %vm416, %v413, %v415
    %v419 = vsel %vm402, %v417, 0.0
    %s420 = scalar_lea.vmem %s3, 4
    %v421 = vld [vmem:[%s420] sm:$0xf]
    %v423 = vsel %vm318, %v421, 0
    %v426 = vsel %vm114, %v419, 0
    %428 = vmatprep.subr.mxu0 0.0
    %429 = vmatpush1.msra.mxu0 0.0
    %430 = vmatprep.subr.mxu0 0.0
    %431 = vmatpush1.msra.mxu0 0.0
    %432 = vmatprep.subr.mxu0 0.0
    %433 = vmatpush1.msra.mxu0 0.0
    %434 = vmatprep.subr.mxu0 0.0
    %435 = vmatpush1.msra.mxu0 0.0
    %436 = vmatprep.subr.mxu0 0.0
    %437 = vmatpush1.msra.mxu0 0.0
    %438 = vmatprep.subr.mxu0 0.0
    %439 = vmatpush1.msra.mxu0 0.0
    %440 = vmatprep.subr.mxu0 0.0
    %441 = vmatpush1.msra.mxu0 0.0
    %442 = vmatprep.subr.mxu0 0.0
    %443 = vmatpush1.msra.mxu0 0.0
    %444 = vmatprep.subr.mxu0 0.0
    %445 = vmatpush1.msra.mxu0 0.0
    %446 = vmatprep.subr.mxu0 0.0
    %447 = vmatpush1.msra.mxu0 0.0
    %448 = vmatprep.subr.mxu0 0.0
    %449 = vmatpush1.msra.mxu0 0.0
    %450 = vmatprep.subr.mxu0 0.0
    %451 = vmatpush1.msra.mxu0 0.0
    %452 = vmatprep.subr.mxu0 0.0
    %453 = vmatpush1.msra.mxu0 0.0
    %454 = vmatprep.subr.mxu0 0.0
    %455 = vmatpush1.msra.mxu0 0.0
    %456 = vmatprep.subr.mxu0 0.0
    %457 = vmatpush1.msra.mxu0 0.0
    %458 = vmatprep.subr.mxu0 0.0
    %459 = vmatpush1.msra.mxu0 %v426
    %460 = vmatprep.subr.mxu0 0.0
    %461 = vmatpush2.msra.mxu0 0.0
    %462 = vmatprep.subr.mxu0 0.0
    %463 = vmatpush2.msra.mxu0 0.0
    %464 = vmatprep.subr.mxu0 0.0
    %465 = vmatpush2.msra.mxu0 0.0
    %466 = vmatprep.subr.mxu0 0.0
    %467 = vmatpush2.msra.mxu0 0.0
    %468 = vmatprep.subr.mxu0 0.0
    %469 = vmatpush2.msra.mxu0 0.0
    %470 = vmatprep.subr.mxu0 0.0
    %471 = vmatpush2.msra.mxu0 0.0
    %472 = vmatprep.subr.mxu0 0.0
    %473 = vmatpush2.msra.mxu0 0.0
    %474 = vmatprep.subr.mxu0 0.0
    %475 = vmatpush2.msra.mxu0 0.0
    %476 = vmatprep.subr.mxu0 0.0
    %477 = vmatpush2.msra.mxu0 0.0
    %478 = vmatprep.subr.mxu0 0.0
    %479 = vmatpush2.msra.mxu0 0.0
    %480 = vmatprep.subr.mxu0 0.0
    %481 = vmatpush2.msra.mxu0 0.0
    %482 = vmatprep.subr.mxu0 0.0
    %483 = vmatpush2.msra.mxu0 0.0
    %484 = vmatprep.subr.mxu0 0.0
    %485 = vmatpush2.msra.mxu0 0.0
    %486 = vmatprep.subr.mxu0 0.0
    %487 = vmatpush2.msra.mxu0 0.0
    %488 = vmatprep.subr.mxu0 0.0
    %489 = vmatpush2.msra.mxu0 0.0
    %490 = vmatprep.subr.mxu0 0.0
    %491 = vmatpush2.msra.mxu0 0.0
    %492 = vmatprep.mubr.f32.mxu0 0.0
    %493 = vmatmul.mubr.f32.gmra.mxu0 %v423
    %v494 = vpop.f32.mrf.mxu0
    %v495 = vadd.f32 0.0, %v494
    %v496 = vpop.f32.mrf.mxu0
    %497 = vdwg.mxu0
    %v498 = vadd.f32 %v395, %v495
    %v499 = vld [vmem:[#allocation2] sm:$0xf]
    %v500 = vadd.s32 %v287, 1
    %vm501 = vcmp.ge.s32.totalorder %v500, 0
    %vm502 = vmand %vm292, %vm501
    %vm503 = vcmp.lt.s32.totalorder %v500, 4
    %vm504 = vmand %vm502, %vm503
    %v505 = vsel %vm504, 1, 0
    %vm506 = vcmp.eq.s32.totalorder %v505, 1
    %v509 = vunpack.c.l.s4 1983009808
    %v510 = vunpack.c.0.s8 %v509
    %v511 = vlaneseq
    %v512 = vshrl.u32 %v511, 7
    %v513 = vsub.s32 %v510, %v512
    %v514 = vrot.slane %v499, %v513
    %v515 = vcombine.high %v514, %v514
    %516 = vrot.lane.b32.xlu0 %v514, 3
    %v517 = vpop.permute.xlu0 %516
    %518 = vrot.lane.b32.xlu0 %v515, 3
    %v519 = vpop.permute.xlu0 %518
    %vm520 = vcmask 23552
    %v521 = vsel %vm520, %v517, %v519
    %v523 = vsel %vm506, %v521, 0.0
    %s524 = scalar_lea.vmem %s3, 8
    %v525 = vld [vmem:[%s524] sm:$0xf]
    %v527 = vsel %vm318, %v525, 0
    %v530 = vsel %vm114, %v523, 0
    %532 = vmatprep.subr.mxu0 0.0
    %533 = vmatpush1.msra.mxu0 0.0
    %534 = vmatprep.subr.mxu0 0.0
    %535 = vmatpush1.msra.mxu0 0.0
    %536 = vmatprep.subr.mxu0 0.0
    %537 = vmatpush1.msra.mxu0 0.0
    %538 = vmatprep.subr.mxu0 0.0
    %539 = vmatpush1.msra.mxu0 0.0
    %540 = vmatprep.subr.mxu0 0.0
    %541 = vmatpush1.msra.mxu0 0.0
    %542 = vmatprep.subr.mxu0 0.0
    %543 = vmatpush1.msra.mxu0 0.0
    %544 = vmatprep.subr.mxu0 0.0
    %545 = vmatpush1.msra.mxu0 0.0
    %546 = vmatprep.subr.mxu0 0.0
    %547 = vmatpush1.msra.mxu0 0.0
    %548 = vmatprep.subr.mxu0 0.0
    %549 = vmatpush1.msra.mxu0 0.0
    %550 = vmatprep.subr.mxu0 0.0
    %551 = vmatpush1.msra.mxu0 0.0
    %552 = vmatprep.subr.mxu0 0.0
    %553 = vmatpush1.msra.mxu0 0.0
    %554 = vmatprep.subr.mxu0 0.0
    %555 = vmatpush1.msra.mxu0 0.0
    %556 = vmatprep.subr.mxu0 0.0
    %557 = vmatpush1.msra.mxu0 0.0
    %558 = vmatprep.subr.mxu0 0.0
    %559 = vmatpush1.msra.mxu0 0.0
    %560 = vmatprep.subr.mxu0 0.0
    %561 = vmatpush1.msra.mxu0 0.0
    %562 = vmatprep.subr.mxu0 0.0
    %563 = vmatpush1.msra.mxu0 %v530
    %564 = vmatprep.subr.mxu0 0.0
    %565 = vmatpush2.msra.mxu0 0.0
    %566 = vmatprep.subr.mxu0 0.0
    %567 = vmatpush2.msra.mxu0 0.0
    %568 = vmatprep.subr.mxu0 0.0
    %569 = vmatpush2.msra.mxu0 0.0
    %570 = vmatprep.subr.mxu0 0.0
    %571 = vmatpush2.msra.mxu0 0.0
    %572 = vmatprep.subr.mxu0 0.0
    %573 = vmatpush2.msra.mxu0 0.0
    %574 = vmatprep.subr.mxu0 0.0
    %575 = vmatpush2.msra.mxu0 0.0
    %576 = vmatprep.subr.mxu0 0.0
    %577 = vmatpush2.msra.mxu0 0.0
    %578 = vmatprep.subr.mxu0 0.0
    %579 = vmatpush2.msra.mxu0 0.0
    %580 = vmatprep.subr.mxu0 0.0
    %581 = vmatpush2.msra.mxu0 0.0
    %582 = vmatprep.subr.mxu0 0.0
    %583 = vmatpush2.msra.mxu0 0.0
    %584 = vmatprep.subr.mxu0 0.0
    %585 = vmatpush2.msra.mxu0 0.0
    %586 = vmatprep.subr.mxu0 0.0
    %587 = vmatpush2.msra.mxu0 0.0
    %588 = vmatprep.subr.mxu0 0.0
    %589 = vmatpush2.msra.mxu0 0.0
    %590 = vmatprep.subr.mxu0 0.0
    %591 = vmatpush2.msra.mxu0 0.0
    %592 = vmatprep.subr.mxu0 0.0
    %593 = vmatpush2.msra.mxu0 0.0
    %594 = vmatprep.subr.mxu0 0.0
    %595 = vmatpush2.msra.mxu0 0.0
    %596 = vmatprep.mubr.f32.mxu0 0.0
    %597 = vmatmul.mubr.f32.gmra.mxu0 %v527
    %v598 = vpop.f32.mrf.mxu0
    %v599 = vadd.f32 0.0, %v598
    %v600 = vpop.f32.mrf.mxu0
    %601 = vdwg.mxu0
    %v602 = vadd.f32 %v498, %v599
    %v603 = vld [vmem:[#allocation2] sm:$0xf]
    %vm604 = vcmp.ge.s32.totalorder %v286, 0
    %vm605 = vcmp.lt.s32.totalorder %v286, 4
    %vm606 = vmand %vm604, %vm605
    %vm607 = vmand %vm606, %vm294
    %vm608 = vmand %vm607, %vm296
    %v609 = vsel %vm608, 1, 0
    %vm610 = vcmp.eq.s32.totalorder %v609, 1
    %v613 = vunpack.c.l.s4 1983009808
    %v614 = vunpack.c.0.s8 %v613
    %v615 = vlaneseq
    %v616 = vshrl.u32 %v615, 7
    %v617 = vsub.s32 %v614, %v616
    %v618 = vrot.slane %v603, %v617
    %v619 = vcombine.high %v618, %v618
    %620 = vrot.lane.b32.xlu0 %v618, 1
    %v621 = vpop.permute.xlu0 %620
    %622 = vrot.lane.b32.xlu0 %v619, 1
    %v623 = vpop.permute.xlu0 %622
    %vm624 = vcmask 7168
    %v625 = vsel %vm624, %v621, %v623
    %v627 = vsel %vm610, %v625, 0.0
    %s628 = scalar_lea.vmem %s3, 12
    %v629 = vld [vmem:[%s628] sm:$0xf]
    %v631 = vsel %vm318, %v629, 0
    %v634 = vsel %vm114, %v627, 0
    %636 = vmatprep.subr.mxu0 0.0
    %637 = vmatpush1.msra.mxu0 0.0
    %638 = vmatprep.subr.mxu0 0.0
    %639 = vmatpush1.msra.mxu0 0.0
    %640 = vmatprep.subr.mxu0 0.0
    %641 = vmatpush1.msra.mxu0 0.0
    %642 = vmatprep.subr.mxu0 0.0
    %643 = vmatpush1.msra.mxu0 0.0
    %644 = vmatprep.subr.mxu0 0.0
    %645 = vmatpush1.msra.mxu0 0.0
    %646 = vmatprep.subr.mxu0 0.0
    %647 = vmatpush1.msra.mxu0 0.0
    %648 = vmatprep.subr.mxu0 0.0
    %649 = vmatpush1.msra.mxu0 0.0
    %650 = vmatprep.subr.mxu0 0.0
    %651 = vmatpush1.msra.mxu0 0.0
    %652 = vmatprep.subr.mxu0 0.0
    %653 = vmatpush1.msra.mxu0 0.0
    %654 = vmatprep.subr.mxu0 0.0
    %655 = vmatpush1.msra.mxu0 0.0
    %656 = vmatprep.subr.mxu0 0.0
    %657 = vmatpush1.msra.mxu0 0.0
    %658 = vmatprep.subr.mxu0 0.0
    %659 = vmatpush1.msra.mxu0 0.0
    %660 = vmatprep.subr.mxu0 0.0
    %661 = vmatpush1.msra.mxu0 0.0
    %662 = vmatprep.subr.mxu0 0.0
    %663 = vmatpush1.msra.mxu0 0.0
    %664 = vmatprep.subr.mxu0 0.0
    %665 = vmatpush1.msra.mxu0 0.0
    %666 = vmatprep.subr.mxu0 0.0
    %667 = vmatpush1.msra.mxu0 %v634
    %668 = vmatprep.subr.mxu0 0.0
    %669 = vmatpush2.msra.mxu0 0.0
    %670 = vmatprep.subr.mxu0 0.0
    %671 = vmatpush2.msra.mxu0 0.0
    %672 = vmatprep.subr.mxu0 0.0
    %673 = vmatpush2.msra.mxu0 0.0
    %674 = vmatprep.subr.mxu0 0.0
    %675 = vmatpush2.msra.mxu0 0.0
    %676 = vmatprep.subr.mxu0 0.0
    %677 = vmatpush2.msra.mxu0 0.0
    %678 = vmatprep.subr.mxu0 0.0
    %679 = vmatpush2.msra.mxu0 0.0
    %680 = vmatprep.subr.mxu0 0.0
    %681 = vmatpush2.msra.mxu0 0.0
    %682 = vmatprep.subr.mxu0 0.0
    %683 = vmatpush2.msra.mxu0 0.0
    %684 = vmatprep.subr.mxu0 0.0
    %685 = vmatpush2.msra.mxu0 0.0
    %686 = vmatprep.subr.mxu0 0.0
    %687 = vmatpush2.msra.mxu0 0.0
    %688 = vmatprep.subr.mxu0 0.0
    %689 = vmatpush2.msra.mxu0 0.0
    %690 = vmatprep.subr.mxu0 0.0
    %691 = vmatpush2.msra.mxu0 0.0
    %692 = vmatprep.subr.mxu0 0.0
    %693 = vmatpush2.msra.mxu0 0.0
    %694 = vmatprep.subr.mxu0 0.0
    %695 = vmatpush2.msra.mxu0 0.0
    %696 = vmatprep.subr.mxu0 0.0
    %697 = vmatpush2.msra.mxu0 0.0
    %698 = vmatprep.subr.mxu0 0.0
    %699 = vmatpush2.msra.mxu0 0.0
    %700 = vmatprep.mubr.f32.mxu0 0.0
    %701 = vmatmul.mubr.f32.gmra.mxu0 %v631
    %v702 = vpop.f32.mrf.mxu0
    %v703 = vadd.f32 0.0, %v702
    %v704 = vpop.f32.mrf.mxu0
    %705 = vdwg.mxu0
    %v706 = vadd.f32 %v602, %v703
    %v707 = vld [vmem:[#allocation2 + $0x2] sm:$0x3]
    %s708 = scalar_lea.vmem %s3, 16
    %v709 = vld [vmem:[%s708] sm:$0xf]
    %v711 = vsel %vm318, %v709, 0
    %v714 = vsel %vm114, %v707, 0
    %716 = vmatprep.subr.mxu0 0.0
    %717 = vmatpush1.msra.mxu0 0.0
    %718 = vmatprep.subr.mxu0 0.0
    %719 = vmatpush1.msra.mxu0 0.0
    %720 = vmatprep.subr.mxu0 0.0
    %721 = vmatpush1.msra.mxu0 0.0
    %722 = vmatprep.subr.mxu0 0.0
    %723 = vmatpush1.msra.mxu0 0.0
    %724 = vmatprep.subr.mxu0 0.0
    %725 = vmatpush1.msra.mxu0 0.0
    %726 = vmatprep.subr.mxu0 0.0
    %727 = vmatpush1.msra.mxu0 0.0
    %728 = vmatprep.subr.mxu0 0.0
    %729 = vmatpush1.msra.mxu0 0.0
    %730 = vmatprep.subr.mxu0 0.0
    %731 = vmatpush1.msra.mxu0 0.0
    %732 = vmatprep.subr.mxu0 0.0
    %733 = vmatpush1.msra.mxu0 0.0
    %734 = vmatprep.subr.mxu0 0.0
    %735 = vmatpush1.msra.mxu0 0.0
    %736 = vmatprep.subr.mxu0 0.0
    %737 = vmatpush1.msra.mxu0 0.0
    %738 = vmatprep.subr.mxu0 0.0
    %739 = vmatpush1.msra.mxu0 0.0
    %740 = vmatprep.subr.mxu0 0.0
    %741 = vmatpush1.msra.mxu0 0.0
    %742 = vmatprep.subr.mxu0 0.0
    %743 = vmatpush1.msra.mxu0 0.0
    %744 = vmatprep.subr.mxu0 0.0
    %745 = vmatpush1.msra.mxu0 0.0
    %746 = vmatprep.subr.mxu0 0.0
    %747 = vmatpush1.msra.mxu0 %v714
    %748 = vmatprep.subr.mxu0 0.0
    %749 = vmatpush2.msra.mxu0 0.0
    %750 = vmatprep.subr.mxu0 0.0
    %751 = vmatpush2.msra.mxu0 0.0
    %752 = vmatprep.subr.mxu0 0.0
    %753 = vmatpush2.msra.mxu0 0.0
    %754 = vmatprep.subr.mxu0 0.0
    %755 = vmatpush2.msra.mxu0 0.0
    %756 = vmatprep.subr.mxu0 0.0
    %757 = vmatpush2.msra.mxu0 0.0
    %758 = vmatprep.subr.mxu0 0.0
    %759 = vmatpush2.msra.mxu0 0.0
    %760 = vmatprep.subr.mxu0 0.0
    %761 = vmatpush2.msra.mxu0 0.0
    %762 = vmatprep.subr.mxu0 0.0
    %763 = vmatpush2.msra.mxu0 0.0
    %764 = vmatprep.subr.mxu0 0.0
    %765 = vmatpush2.msra.mxu0 0.0
    %766 = vmatprep.subr.mxu0 0.0
    %767 = vmatpush2.msra.mxu0 0.0
    %768 = vmatprep.subr.mxu0 0.0
    %769 = vmatpush2.msra.mxu0 0.0
    %770 = vmatprep.subr.mxu0 0.0
    %771 = vmatpush2.msra.mxu0 0.0
    %772 = vmatprep.subr.mxu0 0.0
    %773 = vmatpush2.msra.mxu0 0.0
    %774 = vmatprep.subr.mxu0 0.0
    %775 = vmatpush2.msra.mxu0 0.0
    %776 = vmatprep.subr.mxu0 0.0
    %777 = vmatpush2.msra.mxu0 0.0
    %778 = vmatprep.subr.mxu0 0.0
    %779 = vmatpush2.msra.mxu0 0.0
    %780 = vmatprep.mubr.f32.mxu0 0.0
    %781 = vmatmul.mubr.f32.gmra.mxu0 %v711
    %v782 = vpop.f32.mrf.mxu0
    %v783 = vadd.f32 0.0, %v782
    %v784 = vpop.f32.mrf.mxu0
    %785 = vdwg.mxu0
    %v786 = vadd.f32 %v706, %v783
    %vm787 = vmand %vm606, %vm501
    %vm788 = vmand %vm787, %vm503
    %v789 = vsel %vm788, 1, 0
    %vm790 = vcmp.eq.s32.totalorder %v789, 1
    %v792 = vunpack.c.l.s4 1983009808
    %v793 = vunpack.c.0.s8 %v792
    %v794 = vlaneseq
    %v795 = vshrl.u32 %v794, 7
    %v796 = vsub.s32 %v793, %v795
    %v797 = vrot.slane %v707, %v796
    %798 = vrot.lane.b32.xlu0 %v797, 127
    %v799 = vpop.permute.xlu0 %798
    %v801 = vsel %vm790, %v799, 0.0
    %s802 = scalar_lea.vmem %s3, 20
    %v803 = vld [vmem:[%s802] sm:$0xf]
    %v805 = vsel %vm318, %v803, 0
    %v808 = vsel %vm114, %v801, 0
    %810 = vmatprep.subr.mxu0 0.0
    %811 = vmatpush1.msra.mxu0 0.0
    %812 = vmatprep.subr.mxu0 0.0
    %813 = vmatpush1.msra.mxu0 0.0
    %814 = vmatprep.subr.mxu0 0.0
    %815 = vmatpush1.msra.mxu0 0.0
    %816 = vmatprep.subr.mxu0 0.0
    %817 = vmatpush1.msra.mxu0 0.0
    %818 = vmatprep.subr.mxu0 0.0
    %819 = vmatpush1.msra.mxu0 0.0
    %820 = vmatprep.subr.mxu0 0.0
    %821 = vmatpush1.msra.mxu0 0.0
    %822 = vmatprep.subr.mxu0 0.0
    %823 = vmatpush1.msra.mxu0 0.0
    %824 = vmatprep.subr.mxu0 0.0
    %825 = vmatpush1.msra.mxu0 0.0
    %826 = vmatprep.subr.mxu0 0.0
    %827 = vmatpush1.msra.mxu0 0.0
    %828 = vmatprep.subr.mxu0 0.0
    %829 = vmatpush1.msra.mxu0 0.0
    %830 = vmatprep.subr.mxu0 0.0
    %831 = vmatpush1.msra.mxu0 0.0
    %832 = vmatprep.subr.mxu0 0.0
    %833 = vmatpush1.msra.mxu0 0.0
    %834 = vmatprep.subr.mxu0 0.0
    %835 = vmatpush1.msra.mxu0 0.0
    %836 = vmatprep.subr.mxu0 0.0
    %837 = vmatpush1.msra.mxu0 0.0
    %838 = vmatprep.subr.mxu0 0.0
    %839 = vmatpush1.msra.mxu0 0.0
    %840 = vmatprep.subr.mxu0 0.0
    %841 = vmatpush1.msra.mxu0 %v808
    %842 = vmatprep.subr.mxu0 0.0
    %843 = vmatpush2.msra.mxu0 0.0
    %844 = vmatprep.subr.mxu0 0.0
    %845 = vmatpush2.msra.mxu0 0.0
    %846 = vmatprep.subr.mxu0 0.0
    %847 = vmatpush2.msra.mxu0 0.0
    %848 = vmatprep.subr.mxu0 0.0
    %849 = vmatpush2.msra.mxu0 0.0
    %850 = vmatprep.subr.mxu0 0.0
    %851 = vmatpush2.msra.mxu0 0.0
    %852 = vmatprep.subr.mxu0 0.0
    %853 = vmatpush2.msra.mxu0 0.0
    %854 = vmatprep.subr.mxu0 0.0
    %855 = vmatpush2.msra.mxu0 0.0
    %856 = vmatprep.subr.mxu0 0.0
    %857 = vmatpush2.msra.mxu0 0.0
    %858 = vmatprep.subr.mxu0 0.0
    %859 = vmatpush2.msra.mxu0 0.0
    %860 = vmatprep.subr.mxu0 0.0
    %861 = vmatpush2.msra.mxu0 0.0
    %862 = vmatprep.subr.mxu0 0.0
    %863 = vmatpush2.msra.mxu0 0.0
    %864 = vmatprep.subr.mxu0 0.0
    %865 = vmatpush2.msra.mxu0 0.0
    %866 = vmatprep.subr.mxu0 0.0
    %867 = vmatpush2.msra.mxu0 0.0
    %868 = vmatprep.subr.mxu0 0.0
    %869 = vmatpush2.msra.mxu0 0.0
    %870 = vmatprep.subr.mxu0 0.0
    %871 = vmatpush2.msra.mxu0 0.0
    %872 = vmatprep.subr.mxu0 0.0
    %873 = vmatpush2.msra.mxu0 0.0
    %874 = vmatprep.mubr.f32.mxu0 0.0
    %875 = vmatmul.mubr.f32.gmra.mxu0 %v805
    %v876 = vpop.f32.mrf.mxu0
    %v877 = vadd.f32 0.0, %v876
    %v878 = vpop.f32.mrf.mxu0
    %879 = vdwg.mxu0
    %v880 = vadd.f32 %v786, %v877
    %v881 = vld [vmem:[#allocation2 + $0x2] sm:$0x3]
    %v882 = vadd.s32 %v286, 1
    %vm883 = vcmp.ge.s32.totalorder %v882, 0
    %vm884 = vcmp.lt.s32.totalorder %v882, 4
    %vm885 = vmand %vm883, %vm884
    %vm886 = vmand %vm885, %vm294
    %vm887 = vmand %vm886, %vm296
    %v888 = vsel %vm887, 1, 0
    %vm889 = vcmp.eq.s32.totalorder %v888, 1
    %v892 = vunpack.c.l.s4 1983009808
    %v893 = vunpack.c.0.s8 %v892
    %v894 = vlaneseq
    %v895 = vshrl.u32 %v894, 7
    %v896 = vsub.s32 %v893, %v895
    %v897 = vrot.slane %v881, %v896
    %898 = vrot.lane.b32.xlu0 %v897, 125
    %v899 = vpop.permute.xlu0 %898
    %v901 = vsel %vm889, %v899, 0.0
    %s902 = scalar_lea.vmem %s3, 24
    %v903 = vld [vmem:[%s902] sm:$0xf]
    %v905 = vsel %vm318, %v903, 0
    %v908 = vsel %vm114, %v901, 0
    %910 = vmatprep.subr.mxu0 0.0
    %911 = vmatpush1.msra.mxu0 0.0
    %912 = vmatprep.subr.mxu0 0.0
    %913 = vmatpush1.msra.mxu0 0.0
    %914 = vmatprep.subr.mxu0 0.0
    %915 = vmatpush1.msra.mxu0 0.0
    %916 = vmatprep.subr.mxu0 0.0
    %917 = vmatpush1.msra.mxu0 0.0
    %918 = vmatprep.subr.mxu0 0.0
    %919 = vmatpush1.msra.mxu0 0.0
    %920 = vmatprep.subr.mxu0 0.0
    %921 = vmatpush1.msra.mxu0 0.0
    %922 = vmatprep.subr.mxu0 0.0
    %923 = vmatpush1.msra.mxu0 0.0
    %924 = vmatprep.subr.mxu0 0.0
    %925 = vmatpush1.msra.mxu0 0.0
    %926 = vmatprep.subr.mxu0 0.0
    %927 = vmatpush1.msra.mxu0 0.0
    %928 = vmatprep.subr.mxu0 0.0
    %929 = vmatpush1.msra.mxu0 0.0
    %930 = vmatprep.subr.mxu0 0.0
    %931 = vmatpush1.msra.mxu0 0.0
    %932 = vmatprep.subr.mxu0 0.0
    %933 = vmatpush1.msra.mxu0 0.0
    %934 = vmatprep.subr.mxu0 0.0
    %935 = vmatpush1.msra.mxu0 0.0
    %936 = vmatprep.subr.mxu0 0.0
    %937 = vmatpush1.msra.mxu0 0.0
    %938 = vmatprep.subr.mxu0 0.0
    %939 = vmatpush1.msra.mxu0 0.0
    %940 = vmatprep.subr.mxu0 0.0
    %941 = vmatpush1.msra.mxu0 %v908
    %942 = vmatprep.subr.mxu0 0.0
    %943 = vmatpush2.msra.mxu0 0.0
    %944 = vmatprep.subr.mxu0 0.0
    %945 = vmatpush2.msra.mxu0 0.0
    %946 = vmatprep.subr.mxu0 0.0
    %947 = vmatpush2.msra.mxu0 0.0
    %948 = vmatprep.subr.mxu0 0.0
    %949 = vmatpush2.msra.mxu0 0.0
    %950 = vmatprep.subr.mxu0 0.0
    %951 = vmatpush2.msra.mxu0 0.0
    %952 = vmatprep.subr.mxu0 0.0
    %953 = vmatpush2.msra.mxu0 0.0
    %954 = vmatprep.subr.mxu0 0.0
    %955 = vmatpush2.msra.mxu0 0.0
    %956 = vmatprep.subr.mxu0 0.0
    %957 = vmatpush2.msra.mxu0 0.0
    %958 = vmatprep.subr.mxu0 0.0
    %959 = vmatpush2.msra.mxu0 0.0
    %960 = vmatprep.subr.mxu0 0.0
    %961 = vmatpush2.msra.mxu0 0.0
    %962 = vmatprep.subr.mxu0 0.0
    %963 = vmatpush2.msra.mxu0 0.0
    %964 = vmatprep.subr.mxu0 0.0
    %965 = vmatpush2.msra.mxu0 0.0
    %966 = vmatprep.subr.mxu0 0.0
    %967 = vmatpush2.msra.mxu0 0.0
    %968 = vmatprep.subr.mxu0 0.0
    %969 = vmatpush2.msra.mxu0 0.0
    %970 = vmatprep.subr.mxu0 0.0
    %971 = vmatpush2.msra.mxu0 0.0
    %972 = vmatprep.subr.mxu0 0.0
    %973 = vmatpush2.msra.mxu0 0.0
    %974 = vmatprep.mubr.f32.mxu0 0.0
    %975 = vmatmul.mubr.f32.gmra.mxu0 %v905
    %v976 = vpop.f32.mrf.mxu0
    %v977 = vadd.f32 0.0, %v976
    %v978 = vpop.f32.mrf.mxu0
    %979 = vdwg.mxu0
    %v980 = vadd.f32 %v880, %v977
    %v981 = vld [vmem:[#allocation2 + $0x2] sm:$0x3]
    %vm982 = vmand %vm885, %vm397
    %vm983 = vmand %vm982, %vm399
    %v984 = vsel %vm983, 1, 0
    %vm985 = vcmp.eq.s32.totalorder %v984, 1
    %v988 = vunpack.c.l.s4 1983009808
    %v989 = vunpack.c.0.s8 %v988
    %v990 = vlaneseq
    %v991 = vshrl.u32 %v990, 7
    %v992 = vsub.s32 %v989, %v991
    %v993 = vrot.slane %v981, %v992
    %994 = vrot.lane.b32.xlu0 %v993, 124
    %v995 = vpop.permute.xlu0 %994
    %v997 = vsel %vm985, %v995, 0.0
    %s998 = scalar_lea.vmem %s3, 28
    %v999 = vld [vmem:[%s998] sm:$0xf]
    %v1001 = vsel %vm318, %v999, 0
    %v1004 = vsel %vm114, %v997, 0
    %1006 = vmatprep.subr.mxu0 0.0
    %1007 = vmatpush1.msra.mxu0 0.0
    %1008 = vmatprep.subr.mxu0 0.0
    %1009 = vmatpush1.msra.mxu0 0.0
    %1010 = vmatprep.subr.mxu0 0.0
    %1011 = vmatpush1.msra.mxu0 0.0
    %1012 = vmatprep.subr.mxu0 0.0
    %1013 = vmatpush1.msra.mxu0 0.0
    %1014 = vmatprep.subr.mxu0 0.0
    %1015 = vmatpush1.msra.mxu0 0.0
    %1016 = vmatprep.subr.mxu0 0.0
    %1017 = vmatpush1.msra.mxu0 0.0
    %1018 = vmatprep.subr.mxu0 0.0
    %1019 = vmatpush1.msra.mxu0 0.0
    %1020 = vmatprep.subr.mxu0 0.0
    %1021 = vmatpush1.msra.mxu0 0.0
    %1022 = vmatprep.subr.mxu0 0.0
    %1023 = vmatpush1.msra.mxu0 0.0
    %1024 = vmatprep.subr.mxu0 0.0
    %1025 = vmatpush1.msra.mxu0 0.0
    %1026 = vmatprep.subr.mxu0 0.0
    %1027 = vmatpush1.msra.mxu0 0.0
    %1028 = vmatprep.subr.mxu0 0.0
    %1029 = vmatpush1.msra.mxu0 0.0
    %1030 = vmatprep.subr.mxu0 0.0
    %1031 = vmatpush1.msra.mxu0 0.0
    %1032 = vmatprep.subr.mxu0 0.0
    %1033 = vmatpush1.msra.mxu0 0.0
    %1034 = vmatprep.subr.mxu0 0.0
    %1035 = vmatpush1.msra.mxu0 0.0
    %1036 = vmatprep.subr.mxu0 0.0
    %1037 = vmatpush1.msra.mxu0 %v1004
    %1038 = vmatprep.subr.mxu0 0.0
    %1039 = vmatpush2.msra.mxu0 0.0
    %1040 = vmatprep.subr.mxu0 0.0
    %1041 = vmatpush2.msra.mxu0 0.0
    %1042 = vmatprep.subr.mxu0 0.0
    %1043 = vmatpush2.msra.mxu0 0.0
    %1044 = vmatprep.subr.mxu0 0.0
    %1045 = vmatpush2.msra.mxu0 0.0
    %1046 = vmatprep.subr.mxu0 0.0
    %1047 = vmatpush2.msra.mxu0 0.0
    %1048 = vmatprep.subr.mxu0 0.0
    %1049 = vmatpush2.msra.mxu0 0.0
    %1050 = vmatprep.subr.mxu0 0.0
    %1051 = vmatpush2.msra.mxu0 0.0
    %1052 = vmatprep.subr.mxu0 0.0
    %1053 = vmatpush2.msra.mxu0 0.0
    %1054 = vmatprep.subr.mxu0 0.0
    %1055 = vmatpush2.msra.mxu0 0.0
    %1056 = vmatprep.subr.mxu0 0.0
    %1057 = vmatpush2.msra.mxu0 0.0
    %1058 = vmatprep.subr.mxu0 0.0
    %1059 = vmatpush2.msra.mxu0 0.0
    %1060 = vmatprep.subr.mxu0 0.0
    %1061 = vmatpush2.msra.mxu0 0.0
    %1062 = vmatprep.subr.mxu0 0.0
    %1063 = vmatpush2.msra.mxu0 0.0
    %1064 = vmatprep.subr.mxu0 0.0
    %1065 = vmatpush2.msra.mxu0 0.0
    %1066 = vmatprep.subr.mxu0 0.0
    %1067 = vmatpush2.msra.mxu0 0.0
    %1068 = vmatprep.subr.mxu0 0.0
    %1069 = vmatpush2.msra.mxu0 0.0
    %1070 = vmatprep.mubr.f32.mxu0 0.0
    %1071 = vmatmul.mubr.f32.gmra.mxu0 %v1001
    %v1072 = vpop.f32.mrf.mxu0
    %v1073 = vadd.f32 0.0, %v1072
    %v1074 = vpop.f32.mrf.mxu0
    %1075 = vdwg.mxu0
    %v1076 = vadd.f32 %v980, %v1073
    %v1077 = vld [vmem:[#allocation2 + $0x2] sm:$0x3]
    %vm1078 = vmand %vm885, %vm501
    %vm1079 = vmand %vm1078, %vm503
    %v1080 = vsel %vm1079, 1, 0
    %vm1081 = vcmp.eq.s32.totalorder %v1080, 1
    %v1084 = vunpack.c.l.s4 1983009808
    %v1085 = vunpack.c.0.s8 %v1084
    %v1086 = vlaneseq
    %v1087 = vshrl.u32 %v1086, 7
    %v1088 = vsub.s32 %v1085, %v1087
    %v1089 = vrot.slane %v1077, %v1088
    %1090 = vrot.lane.b32.xlu0 %v1089, 123
    %v1091 = vpop.permute.xlu0 %1090
    %v1093 = vsel %vm1081, %v1091, 0.0
    %s1094 = scalar_lea.vmem %s3, 32
    %v1095 = vld [vmem:[%s1094] sm:$0xf]
    %v1097 = vsel %vm318, %v1095, 0
    %v1100 = vsel %vm114, %v1093, 0
    %1102 = vmatprep.subr.mxu0 0.0
    %1103 = vmatpush1.msra.mxu0 0.0
    %1104 = vmatprep.subr.mxu0 0.0
    %1105 = vmatpush1.msra.mxu0 0.0
    %1106 = vmatprep.subr.mxu0 0.0
    %1107 = vmatpush1.msra.mxu0 0.0
    %1108 = vmatprep.subr.mxu0 0.0
    %1109 = vmatpush1.msra.mxu0 0.0
    %1110 = vmatprep.subr.mxu0 0.0
    %1111 = vmatpush1.msra.mxu0 0.0
    %1112 = vmatprep.subr.mxu0 0.0
    %1113 = vmatpush1.msra.mxu0 0.0
    %1114 = vmatprep.subr.mxu0 0.0
    %1115 = vmatpush1.msra.mxu0 0.0
    %1116 = vmatprep.subr.mxu0 0.0
    %1117 = vmatpush1.msra.mxu0 0.0
    %1118 = vmatprep.subr.mxu0 0.0
    %1119 = vmatpush1.msra.mxu0 0.0
    %1120 = vmatprep.subr.mxu0 0.0
    %1121 = vmatpush1.msra.mxu0 0.0
    %1122 = vmatprep.subr.mxu0 0.0
    %1123 = vmatpush1.msra.mxu0 0.0
    %1124 = vmatprep.subr.mxu0 0.0
    %1125 = vmatpush1.msra.mxu0 0.0
    %1126 = vmatprep.subr.mxu0 0.0
    %1127 = vmatpush1.msra.mxu0 0.0
    %1128 = vmatprep.subr.mxu0 0.0
    %1129 = vmatpush1.msra.mxu0 0.0
    %1130 = vmatprep.subr.mxu0 0.0
    %1131 = vmatpush1.msra.mxu0 0.0
    %1132 = vmatprep.subr.mxu0 0.0
    %1133 = vmatpush1.msra.mxu0 %v1100
    %1134 = vmatprep.subr.mxu0 0.0
    %1135 = vmatpush2.msra.mxu0 0.0
    %1136 = vmatprep.subr.mxu0 0.0
    %1137 = vmatpush2.msra.mxu0 0.0
    %1138 = vmatprep.subr.mxu0 0.0
    %1139 = vmatpush2.msra.mxu0 0.0
    %1140 = vmatprep.subr.mxu0 0.0
    %1141 = vmatpush2.msra.mxu0 0.0
    %1142 = vmatprep.subr.mxu0 0.0
    %1143 = vmatpush2.msra.mxu0 0.0
    %1144 = vmatprep.subr.mxu0 0.0
    %1145 = vmatpush2.msra.mxu0 0.0
    %1146 = vmatprep.subr.mxu0 0.0
    %1147 = vmatpush2.msra.mxu0 0.0
    %1148 = vmatprep.subr.mxu0 0.0
    %1149 = vmatpush2.msra.mxu0 0.0
    %1150 = vmatprep.subr.mxu0 0.0
    %1151 = vmatpush2.msra.mxu0 0.0
    %1152 = vmatprep.subr.mxu0 0.0
    %1153 = vmatpush2.msra.mxu0 0.0
    %1154 = vmatprep.subr.mxu0 0.0
    %1155 = vmatpush2.msra.mxu0 0.0
    %1156 = vmatprep.subr.mxu0 0.0
    %1157 = vmatpush2.msra.mxu0 0.0
    %1158 = vmatprep.subr.mxu0 0.0
    %1159 = vmatpush2.msra.mxu0 0.0
    %1160 = vmatprep.subr.mxu0 0.0
    %1161 = vmatpush2.msra.mxu0 0.0
    %1162 = vmatprep.subr.mxu0 0.0
    %1163 = vmatpush2.msra.mxu0 0.0
    %1164 = vmatprep.subr.mxu0 0.0
    %1165 = vmatpush2.msra.mxu0 0.0
    %1166 = vmatprep.mubr.f32.mxu0 0.0
    %1167 = vmatmul.mubr.f32.gmra.mxu0 %v1097
    %v1168 = vpop.f32.mrf.mxu0
    %v1169 = vadd.f32 0.0, %v1168
    %v1170 = vpop.f32.mrf.mxu0
    %1171 = vdwg.mxu0
    %v1172 = vadd.f32 %v1076, %v1169
    %v1173 = vmax.f32 %v1172, 0.0
    %v1174 = vld [vmem:[#allocation10] sm:$0xff]
    %v1175 = vld [vmem:[#allocation10 + $0x8] sm:$0xff]
    %vm1176 = vcmask 130048
    %v1178 = vsel %vm1176, %v1173, 0
    %1180 = vmatprep.subr.mxu0 0.0
    %1181 = vmatpush1.msra.mxu0 0.0
    %1182 = vmatprep.subr.mxu0 0.0
    %1183 = vmatpush1.msra.mxu0 0.0
    %1184 = vmatprep.subr.mxu0 0.0
    %1185 = vmatpush1.msra.mxu0 0.0
    %1186 = vmatprep.subr.mxu0 0.0
    %1187 = vmatpush1.msra.mxu0 0.0
    %1188 = vmatprep.subr.mxu0 0.0
    %1189 = vmatpush1.msra.mxu0 0.0
    %1190 = vmatprep.subr.mxu0 0.0
    %1191 = vmatpush1.msra.mxu0 0.0
    %1192 = vmatprep.subr.mxu0 0.0
    %1193 = vmatpush1.msra.mxu0 0.0
    %1194 = vmatprep.subr.mxu0 0.0
    %1195 = vmatpush1.msra.mxu0 0.0
    %1196 = vmatprep.subr.mxu0 0.0
    %1197 = vmatpush1.msra.mxu0 0.0
    %1198 = vmatprep.subr.mxu0 0.0
    %1199 = vmatpush1.msra.mxu0 0.0
    %1200 = vmatprep.subr.mxu0 0.0
    %1201 = vmatpush1.msra.mxu0 0.0
    %1202 = vmatprep.subr.mxu0 0.0
    %1203 = vmatpush1.msra.mxu0 0.0
    %1204 = vmatprep.subr.mxu0 0.0
    %1205 = vmatpush1.msra.mxu0 0.0
    %1206 = vmatprep.subr.mxu0 0.0
    %1207 = vmatpush1.msra.mxu0 0.0
    %1208 = vmatprep.subr.mxu0 0.0
    %1209 = vmatpush1.msra.mxu0 %v1175
    %1210 = vmatprep.subr.mxu0 0.0
    %1211 = vmatpush1.msra.mxu0 %v1174
    %1212 = vmatprep.subr.mxu0 0.0
    %1213 = vmatpush2.msra.mxu0 0.0
    %1214 = vmatprep.subr.mxu0 0.0
    %1215 = vmatpush2.msra.mxu0 0.0
    %1216 = vmatprep.subr.mxu0 0.0
    %1217 = vmatpush2.msra.mxu0 0.0
    %1218 = vmatprep.subr.mxu0 0.0
    %1219 = vmatpush2.msra.mxu0 0.0
    %1220 = vmatprep.subr.mxu0 0.0
    %1221 = vmatpush2.msra.mxu0 0.0
    %1222 = vmatprep.subr.mxu0 0.0
    %1223 = vmatpush2.msra.mxu0 0.0
    %1224 = vmatprep.subr.mxu0 0.0
    %1225 = vmatpush2.msra.mxu0 0.0
    %1226 = vmatprep.subr.mxu0 0.0
    %1227 = vmatpush2.msra.mxu0 0.0
    %1228 = vmatprep.subr.mxu0 0.0
    %1229 = vmatpush2.msra.mxu0 0.0
    %1230 = vmatprep.subr.mxu0 0.0
    %1231 = vmatpush2.msra.mxu0 0.0
    %1232 = vmatprep.subr.mxu0 0.0
    %1233 = vmatpush2.msra.mxu0 0.0
    %1234 = vmatprep.subr.mxu0 0.0
    %1235 = vmatpush2.msra.mxu0 0.0
    %1236 = vmatprep.subr.mxu0 0.0
    %1237 = vmatpush2.msra.mxu0 0.0
    %1238 = vmatprep.subr.mxu0 0.0
    %1239 = vmatpush2.msra.mxu0 0.0
    %1240 = vmatprep.subr.mxu0 0.0
    %1241 = vmatpush2.msra.mxu0 0.0
    %1242 = vmatprep.subr.mxu0 0.0
    %1243 = vmatpush2.msra.mxu0 0.0
    %1244 = vmatprep.mubr.f32.mxu0 0.0
    %1245 = vmatmul.mubr.f32.gmra.mxu0 %v1178
    %v1246 = vpop.f32.mrf.mxu0
    %v1247 = vadd.f32 0.0, %v1246
    %v1248 = vpop.f32.mrf.mxu0
    %1249 = vdwg.mxu0
    %1250 = vst [vmem:[#allocation3] sm:$0xff] 0.0
    %vm1251 = vcmask 519168
    %1252 = vst.msk [vmem:[#allocation3 + $0x8] sm:$0xf] %vm1251, 0.0
    %1253 = vst.msk [vmem:[#allocation3 + $0x4] sm:$0xf] %vm1251, %v1247
    %v1254 = vld [vmem:[%s6] sm:$0x3f]
    %v1255 = vshra.s32 %v285, 3
    %v1256 = vand.u32 %v285, 7
    %v1257 = vld [vmem:[#allocation3] sm:$0xff]
    %v1258 = vadd.s32 %v1255, 4294967295
    %vm1259 = vcmp.ge.s32.totalorder %v1258, 0
    %vm1260 = vcmp.lt.s32.totalorder %v1258, 8
    %vm1261 = vmand %vm1259, %vm1260
    %v1262 = vadd.s32 %v1256, 4294967295
    %vm1263 = vcmp.ge.s32.totalorder %v1262, 0
    %vm1264 = vmand %vm1261, %vm1263
    %vm1265 = vcmp.lt.s32.totalorder %v1262, 8
    %vm1266 = vmand %vm1264, %vm1265
    %v1267 = vsel %vm1266, 1, 0
    %vm1268 = vcmp.eq.s32.totalorder %v1267, 1
    %v1270 = vcombine.high %v1257, %v1257
    %1271 = vrot.lane.b32.xlu0 %v1257, 9
    %v1272 = vpop.permute.xlu0 %1271
    %1273 = vrot.lane.b32.xlu0 %v1270, 9
    %v1274 = vpop.permute.xlu0 %1273
    %v1275 = vsel %vm123, %v1272, %v1274
    %v1277 = vsel %vm1268, %v1275, 0.0
    %v1278 = vld [vmem:[%s5] sm:$0x3f]
    %v1280 = vsel %vm416, %v1278, 0
    %vm1282 = vcmask 1043456
    %v1284 = vsel %vm1282, %v1277, 0
    %1286 = vmatprep.subr.mxu0 0.0
    %1287 = vmatpush1.msra.mxu0 0.0
    %1288 = vmatprep.subr.mxu0 0.0
    %1289 = vmatpush1.msra.mxu0 0.0
    %1290 = vmatprep.subr.mxu0 0.0
    %1291 = vmatpush1.msra.mxu0 0.0
    %1292 = vmatprep.subr.mxu0 0.0
    %1293 = vmatpush1.msra.mxu0 0.0
    %1294 = vmatprep.subr.mxu0 0.0
    %1295 = vmatpush1.msra.mxu0 0.0
    %1296 = vmatprep.subr.mxu0 0.0
    %1297 = vmatpush1.msra.mxu0 0.0
    %1298 = vmatprep.subr.mxu0 0.0
    %1299 = vmatpush1.msra.mxu0 0.0
    %1300 = vmatprep.subr.mxu0 0.0
    %1301 = vmatpush1.msra.mxu0 0.0
    %1302 = vmatprep.subr.mxu0 0.0
    %1303 = vmatpush1.msra.mxu0 0.0
    %1304 = vmatprep.subr.mxu0 0.0
    %1305 = vmatpush1.msra.mxu0 0.0
    %1306 = vmatprep.subr.mxu0 0.0
    %1307 = vmatpush1.msra.mxu0 0.0
    %1308 = vmatprep.subr.mxu0 0.0
    %1309 = vmatpush1.msra.mxu0 0.0
    %1310 = vmatprep.subr.mxu0 0.0
    %1311 = vmatpush1.msra.mxu0 0.0
    %1312 = vmatprep.subr.mxu0 0.0
    %1313 = vmatpush1.msra.mxu0 0.0
    %1314 = vmatprep.subr.mxu0 0.0
    %1315 = vmatpush1.msra.mxu0 0.0
    %1316 = vmatprep.subr.mxu0 0.0
    %1317 = vmatpush1.msra.mxu0 %v1284
    %1318 = vmatprep.subr.mxu0 0.0
    %1319 = vmatpush2.msra.mxu0 0.0
    %1320 = vmatprep.subr.mxu0 0.0
    %1321 = vmatpush2.msra.mxu0 0.0
    %1322 = vmatprep.subr.mxu0 0.0
    %1323 = vmatpush2.msra.mxu0 0.0
    %1324 = vmatprep.subr.mxu0 0.0
    %1325 = vmatpush2.msra.mxu0 0.0
    %1326 = vmatprep.subr.mxu0 0.0
    %1327 = vmatpush2.msra.mxu0 0.0
    %1328 = vmatprep.subr.mxu0 0.0
    %1329 = vmatpush2.msra.mxu0 0.0
    %1330 = vmatprep.subr.mxu0 0.0
    %1331 = vmatpush2.msra.mxu0 0.0
    %1332 = vmatprep.subr.mxu0 0.0
    %1333 = vmatpush2.msra.mxu0 0.0
    %1334 = vmatprep.subr.mxu0 0.0
    %1335 = vmatpush2.msra.mxu0 0.0
    %1336 = vmatprep.subr.mxu0 0.0
    %1337 = vmatpush2.msra.mxu0 0.0
    %1338 = vmatprep.subr.mxu0 0.0
    %1339 = vmatpush2.msra.mxu0 0.0
    %1340 = vmatprep.subr.mxu0 0.0
    %1341 = vmatpush2.msra.mxu0 0.0
    %1342 = vmatprep.subr.mxu0 0.0
    %1343 = vmatpush2.msra.mxu0 0.0
    %1344 = vmatprep.subr.mxu0 0.0
    %1345 = vmatpush2.msra.mxu0 0.0
    %1346 = vmatprep.subr.mxu0 0.0
    %1347 = vmatpush2.msra.mxu0 0.0
    %1348 = vmatprep.subr.mxu0 0.0
    %1349 = vmatpush2.msra.mxu0 0.0
    %1350 = vmatprep.mubr.f32.mxu0 0.0
    %1351 = vmatmul.mubr.f32.gmra.mxu0 %v1280
    %v1352 = vpop.f32.mrf.mxu0
    %v1353 = vadd.f32 0.0, %v1352
    %v1354 = vpop.f32.mrf.mxu0
    %1355 = vdwg.mxu0
    %v1356 = vadd.f32 %v1254, %v1353
    %v1357 = vld [vmem:[#allocation3] sm:$0xff]
    %vm1358 = vcmp.ge.s32.totalorder %v1256, 0
    %vm1359 = vmand %vm1261, %vm1358
    %vm1360 = vcmp.lt.s32.totalorder %v1256, 8
    %vm1361 = vmand %vm1359, %vm1360
    %v1362 = vsel %vm1361, 1, 0
    %vm1363 = vcmp.eq.s32.totalorder %v1362, 1
    %v1365 = vcombine.high %v1357, %v1357
    %1366 = vrot.lane.b32.xlu0 %v1357, 8
    %v1367 = vpop.permute.xlu0 %1366
    %1368 = vrot.lane.b32.xlu0 %v1365, 8
    %v1369 = vpop.permute.xlu0 %1368
    %vm1370 = vcmask 64512
    %v1371 = vsel %vm1370, %v1367, %v1369
    %v1373 = vsel %vm1363, %v1371, 0.0
    %s1374 = scalar_lea.vmem %s5, 8
    %v1375 = vld [vmem:[%s1374] sm:$0x3f]
    %v1377 = vsel %vm416, %v1375, 0
    %v1380 = vsel %vm1282, %v1373, 0
    %1382 = vmatprep.subr.mxu0 0.0
    %1383 = vmatpush1.msra.mxu0 0.0
    %1384 = vmatprep.subr.mxu0 0.0
    %1385 = vmatpush1.msra.mxu0 0.0
    %1386 = vmatprep.subr.mxu0 0.0
    %1387 = vmatpush1.msra.mxu0 0.0
    %1388 = vmatprep.subr.mxu0 0.0
    %1389 = vmatpush1.msra.mxu0 0.0
    %1390 = vmatprep.subr.mxu0 0.0
    %1391 = vmatpush1.msra.mxu0 0.0
    %1392 = vmatprep.subr.mxu0 0.0
    %1393 = vmatpush1.msra.mxu0 0.0
    %1394 = vmatprep.subr.mxu0 0.0
    %1395 = vmatpush1.msra.mxu0 0.0
    %1396 = vmatprep.subr.mxu0 0.0
    %1397 = vmatpush1.msra.mxu0 0.0
    %1398 = vmatprep.subr.mxu0 0.0
    %1399 = vmatpush1.msra.mxu0 0.0
    %1400 = vmatprep.subr.mxu0 0.0
    %1401 = vmatpush1.msra.mxu0 0.0
    %1402 = vmatprep.subr.mxu0 0.0
    %1403 = vmatpush1.msra.mxu0 0.0
    %1404 = vmatprep.subr.mxu0 0.0
    %1405 = vmatpush1.msra.mxu0 0.0
    %1406 = vmatprep.subr.mxu0 0.0
    %1407 = vmatpush1.msra.mxu0 0.0
    %1408 = vmatprep.subr.mxu0 0.0
    %1409 = vmatpush1.msra.mxu0 0.0
    %1410 = vmatprep.subr.mxu0 0.0
    %1411 = vmatpush1.msra.mxu0 0.0
    %1412 = vmatprep.subr.mxu0 0.0
    %1413 = vmatpush1.msra.mxu0 %v1380
    %1414 = vmatprep.subr.mxu0 0.0
    %1415 = vmatpush2.msra.mxu0 0.0
    %1416 = vmatprep.subr.mxu0 0.0
    %1417 = vmatpush2.msra.mxu0 0.0
    %1418 = vmatprep.subr.mxu0 0.0
    %1419 = vmatpush2.msra.mxu0 0.0
    %1420 = vmatprep.subr.mxu0 0.0
    %1421 = vmatpush2.msra.mxu0 0.0
    %1422 = vmatprep.subr.mxu0 0.0
    %1423 = vmatpush2.msra.mxu0 0.0
    %1424 = vmatprep.subr.mxu0 0.0
    %1425 = vmatpush2.msra.mxu0 0.0
    %1426 = vmatprep.subr.mxu0 0.0
    %1427 = vmatpush2.msra.mxu0 0.0
    %1428 = vmatprep.subr.mxu0 0.0
    %1429 = vmatpush2.msra.mxu0 0.0
    %1430 = vmatprep.subr.mxu0 0.0
    %1431 = vmatpush2.msra.mxu0 0.0
    %1432 = vmatprep.subr.mxu0 0.0
    %1433 = vmatpush2.msra.mxu0 0.0
    %1434 = vmatprep.subr.mxu0 0.0
    %1435 = vmatpush2.msra.mxu0 0.0
    %1436 = vmatprep.subr.mxu0 0.0
    %1437 = vmatpush2.msra.mxu0 0.0
    %1438 = vmatprep.subr.mxu0 0.0
    %1439 = vmatpush2.msra.mxu0 0.0
    %1440 = vmatprep.subr.mxu0 0.0
    %1441 = vmatpush2.msra.mxu0 0.0
    %1442 = vmatprep.subr.mxu0 0.0
    %1443 = vmatpush2.msra.mxu0 0.0
    %1444 = vmatprep.subr.mxu0 0.0
    %1445 = vmatpush2.msra.mxu0 0.0
    %1446 = vmatprep.mubr.f32.mxu0 0.0
    %1447 = vmatmul.mubr.f32.gmra.mxu0 %v1377
    %v1448 = vpop.f32.mrf.mxu0
    %v1449 = vadd.f32 0.0, %v1448
    %v1450 = vpop.f32.mrf.mxu0
    %1451 = vdwg.mxu0
    %v1452 = vadd.f32 %v1356, %v1449
    %v1453 = vld [vmem:[#allocation3] sm:$0xff]
    %v1454 = vadd.s32 %v1256, 1
    %vm1455 = vcmp.ge.s32.totalorder %v1454, 0
    %vm1456 = vmand %vm1261, %vm1455
    %vm1457 = vcmp.lt.s32.totalorder %v1454, 8
    %vm1458 = vmand %vm1456, %vm1457
    %v1459 = vsel %vm1458, 1, 0
    %vm1460 = vcmp.eq.s32.totalorder %v1459, 1
    %v1462 = vcombine.high %v1453, %v1453
    %1463 = vrot.lane.b32.xlu0 %v1453, 7
    %v1464 = vpop.permute.xlu0 %1463
    %1465 = vrot.lane.b32.xlu0 %v1462, 7
    %v1466 = vpop.permute.xlu0 %1465
    %vm1467 = vcmask 56320
    %v1468 = vsel %vm1467, %v1464, %v1466
    %v1470 = vsel %vm1460, %v1468, 0.0
    %s1471 = scalar_lea.vmem %s5, 16
    %v1472 = vld [vmem:[%s1471] sm:$0x3f]
    %v1474 = vsel %vm416, %v1472, 0
    %v1477 = vsel %vm1282, %v1470, 0
    %1479 = vmatprep.subr.mxu0 0.0
    %1480 = vmatpush1.msra.mxu0 0.0
    %1481 = vmatprep.subr.mxu0 0.0
    %1482 = vmatpush1.msra.mxu0 0.0
    %1483 = vmatprep.subr.mxu0 0.0
    %1484 = vmatpush1.msra.mxu0 0.0
    %1485 = vmatprep.subr.mxu0 0.0
    %1486 = vmatpush1.msra.mxu0 0.0
    %1487 = vmatprep.subr.mxu0 0.0
    %1488 = vmatpush1.msra.mxu0 0.0
    %1489 = vmatprep.subr.mxu0 0.0
    %1490 = vmatpush1.msra.mxu0 0.0
    %1491 = vmatprep.subr.mxu0 0.0
    %1492 = vmatpush1.msra.mxu0 0.0
    %1493 = vmatprep.subr.mxu0 0.0
    %1494 = vmatpush1.msra.mxu0 0.0
    %1495 = vmatprep.subr.mxu0 0.0
    %1496 = vmatpush1.msra.mxu0 0.0
    %1497 = vmatprep.subr.mxu0 0.0
    %1498 = vmatpush1.msra.mxu0 0.0
    %1499 = vmatprep.subr.mxu0 0.0
    %1500 = vmatpush1.msra.mxu0 0.0
    %1501 = vmatprep.subr.mxu0 0.0
    %1502 = vmatpush1.msra.mxu0 0.0
    %1503 = vmatprep.subr.mxu0 0.0
    %1504 = vmatpush1.msra.mxu0 0.0
    %1505 = vmatprep.subr.mxu0 0.0
    %1506 = vmatpush1.msra.mxu0 0.0
    %1507 = vmatprep.subr.mxu0 0.0
    %1508 = vmatpush1.msra.mxu0 0.0
    %1509 = vmatprep.subr.mxu0 0.0
    %1510 = vmatpush1.msra.mxu0 %v1477
    %1511 = vmatprep.subr.mxu0 0.0
    %1512 = vmatpush2.msra.mxu0 0.0
    %1513 = vmatprep.subr.mxu0 0.0
    %1514 = vmatpush2.msra.mxu0 0.0
    %1515 = vmatprep.subr.mxu0 0.0
    %1516 = vmatpush2.msra.mxu0 0.0
    %1517 = vmatprep.subr.mxu0 0.0
    %1518 = vmatpush2.msra.mxu0 0.0
    %1519 = vmatprep.subr.mxu0 0.0
    %1520 = vmatpush2.msra.mxu0 0.0
    %1521 = vmatprep.subr.mxu0 0.0
    %1522 = vmatpush2.msra.mxu0 0.0
    %1523 = vmatprep.subr.mxu0 0.0
    %1524 = vmatpush2.msra.mxu0 0.0
    %1525 = vmatprep.subr.mxu0 0.0
    %1526 = vmatpush2.msra.mxu0 0.0
    %1527 = vmatprep.subr.mxu0 0.0
    %1528 = vmatpush2.msra.mxu0 0.0
    %1529 = vmatprep.subr.mxu0 0.0
    %1530 = vmatpush2.msra.mxu0 0.0
    %1531 = vmatprep.subr.mxu0 0.0
    %1532 = vmatpush2.msra.mxu0 0.0
    %1533 = vmatprep.subr.mxu0 0.0
    %1534 = vmatpush2.msra.mxu0 0.0
    %1535 = vmatprep.subr.mxu0 0.0
    %1536 = vmatpush2.msra.mxu0 0.0
    %1537 = vmatprep.subr.mxu0 0.0
    %1538 = vmatpush2.msra.mxu0 0.0
    %1539 = vmatprep.subr.mxu0 0.0
    %1540 = vmatpush2.msra.mxu0 0.0
    %1541 = vmatprep.subr.mxu0 0.0
    %1542 = vmatpush2.msra.mxu0 0.0
    %1543 = vmatprep.mubr.f32.mxu0 0.0
    %1544 = vmatmul.mubr.f32.gmra.mxu0 %v1474
    %v1545 = vpop.f32.mrf.mxu0
    %v1546 = vadd.f32 0.0, %v1545
    %v1547 = vpop.f32.mrf.mxu0
    %1548 = vdwg.mxu0
    %v1549 = vadd.f32 %v1452, %v1546
    %v1550 = vld [vmem:[#allocation3] sm:$0xff]
    %vm1551 = vcmp.ge.s32.totalorder %v1255, 0
    %vm1552 = vcmp.lt.s32.totalorder %v1255, 8
    %vm1553 = vmand %vm1551, %vm1552
    %vm1554 = vmand %vm1553, %vm1263
    %vm1555 = vmand %vm1554, %vm1265
    %v1556 = vsel %vm1555, 1, 0
    %vm1557 = vcmp.eq.s32.totalorder %v1556, 1
    %v1559 = vcombine.high %v1550, %v1550
    %1560 = vrot.lane.b32.xlu0 %v1550, 1
    %v1561 = vpop.permute.xlu0 %1560
    %1562 = vrot.lane.b32.xlu0 %v1559, 1
    %v1563 = vpop.permute.xlu0 %1562
    %v1564 = vsel %vm624, %v1561, %v1563
    %v1566 = vsel %vm1557, %v1564, 0.0
    %s1567 = scalar_lea.vmem %s5, 24
    %v1568 = vld [vmem:[%s1567] sm:$0x3f]
    %v1570 = vsel %vm416, %v1568, 0
    %v1573 = vsel %vm1282, %v1566, 0
    %1575 = vmatprep.subr.mxu0 0.0
    %1576 = vmatpush1.msra.mxu0 0.0
    %1577 = vmatprep.subr.mxu0 0.0
    %1578 = vmatpush1.msra.mxu0 0.0
    %1579 = vmatprep.subr.mxu0 0.0
    %1580 = vmatpush1.msra.mxu0 0.0
    %1581 = vmatprep.subr.mxu0 0.0
    %1582 = vmatpush1.msra.mxu0 0.0
    %1583 = vmatprep.subr.mxu0 0.0
    %1584 = vmatpush1.msra.mxu0 0.0
    %1585 = vmatprep.subr.mxu0 0.0
    %1586 = vmatpush1.msra.mxu0 0.0
    %1587 = vmatprep.subr.mxu0 0.0
    %1588 = vmatpush1.msra.mxu0 0.0
    %1589 = vmatprep.subr.mxu0 0.0
    %1590 = vmatpush1.msra.mxu0 0.0
    %1591 = vmatprep.subr.mxu0 0.0
    %1592 = vmatpush1.msra.mxu0 0.0
    %1593 = vmatprep.subr.mxu0 0.0
    %1594 = vmatpush1.msra.mxu0 0.0
    %1595 = vmatprep.subr.mxu0 0.0
    %1596 = vmatpush1.msra.mxu0 0.0
    %1597 = vmatprep.subr.mxu0 0.0
    %1598 = vmatpush1.msra.mxu0 0.0
    %1599 = vmatprep.subr.mxu0 0.0
    %1600 = vmatpush1.msra.mxu0 0.0
    %1601 = vmatprep.subr.mxu0 0.0
    %1602 = vmatpush1.msra.mxu0 0.0
    %1603 = vmatprep.subr.mxu0 0.0
    %1604 = vmatpush1.msra.mxu0 0.0
    %1605 = vmatprep.subr.mxu0 0.0
    %1606 = vmatpush1.msra.mxu0 %v1573
    %1607 = vmatprep.subr.mxu0 0.0
    %1608 = vmatpush2.msra.mxu0 0.0
    %1609 = vmatprep.subr.mxu0 0.0
    %1610 = vmatpush2.msra.mxu0 0.0
    %1611 = vmatprep.subr.mxu0 0.0
    %1612 = vmatpush2.msra.mxu0 0.0
    %1613 = vmatprep.subr.mxu0 0.0
    %1614 = vmatpush2.msra.mxu0 0.0
    %1615 = vmatprep.subr.mxu0 0.0
    %1616 = vmatpush2.msra.mxu0 0.0
    %1617 = vmatprep.subr.mxu0 0.0
    %1618 = vmatpush2.msra.mxu0 0.0
    %1619 = vmatprep.subr.mxu0 0.0
    %1620 = vmatpush2.msra.mxu0 0.0
    %1621 = vmatprep.subr.mxu0 0.0
    %1622 = vmatpush2.msra.mxu0 0.0
    %1623 = vmatprep.subr.mxu0 0.0
    %1624 = vmatpush2.msra.mxu0 0.0
    %1625 = vmatprep.subr.mxu0 0.0
    %1626 = vmatpush2.msra.mxu0 0.0
    %1627 = vmatprep.subr.mxu0 0.0
    %1628 = vmatpush2.msra.mxu0 0.0
    %1629 = vmatprep.subr.mxu0 0.0
    %1630 = vmatpush2.msra.mxu0 0.0
    %1631 = vmatprep.subr.mxu0 0.0
    %1632 = vmatpush2.msra.mxu0 0.0
    %1633 = vmatprep.subr.mxu0 0.0
    %1634 = vmatpush2.msra.mxu0 0.0
    %1635 = vmatprep.subr.mxu0 0.0
    %1636 = vmatpush2.msra.mxu0 0.0
    %1637 = vmatprep.subr.mxu0 0.0
    %1638 = vmatpush2.msra.mxu0 0.0
    %1639 = vmatprep.mubr.f32.mxu0 0.0
    %1640 = vmatmul.mubr.f32.gmra.mxu0 %v1570
    %v1641 = vpop.f32.mrf.mxu0
    %v1642 = vadd.f32 0.0, %v1641
    %v1643 = vpop.f32.mrf.mxu0
    %1644 = vdwg.mxu0
    %v1645 = vadd.f32 %v1549, %v1642
    %v1646 = vld [vmem:[#allocation3 + $0x4] sm:$0xf]
    %s1647 = scalar_lea.vmem %s5, 32
    %v1648 = vld [vmem:[%s1647] sm:$0x3f]
    %v1650 = vsel %vm416, %v1648, 0
    %v1653 = vsel %vm1282, %v1646, 0
    %1655 = vmatprep.subr.mxu0 0.0
    %1656 = vmatpush1.msra.mxu0 0.0
    %1657 = vmatprep.subr.mxu0 0.0
    %1658 = vmatpush1.msra.mxu0 0.0
    %1659 = vmatprep.subr.mxu0 0.0
    %1660 = vmatpush1.msra.mxu0 0.0
    %1661 = vmatprep.subr.mxu0 0.0
    %1662 = vmatpush1.msra.mxu0 0.0
    %1663 = vmatprep.subr.mxu0 0.0
    %1664 = vmatpush1.msra.mxu0 0.0
    %1665 = vmatprep.subr.mxu0 0.0
    %1666 = vmatpush1.msra.mxu0 0.0
    %1667 = vmatprep.subr.mxu0 0.0
    %1668 = vmatpush1.msra.mxu0 0.0
    %1669 = vmatprep.subr.mxu0 0.0
    %1670 = vmatpush1.msra.mxu0 0.0
    %1671 = vmatprep.subr.mxu0 0.0
    %1672 = vmatpush1.msra.mxu0 0.0
    %1673 = vmatprep.subr.mxu0 0.0
    %1674 = vmatpush1.msra.mxu0 0.0
    %1675 = vmatprep.subr.mxu0 0.0
    %1676 = vmatpush1.msra.mxu0 0.0
    %1677 = vmatprep.subr.mxu0 0.0
    %1678 = vmatpush1.msra.mxu0 0.0
    %1679 = vmatprep.subr.mxu0 0.0
    %1680 = vmatpush1.msra.mxu0 0.0
    %1681 = vmatprep.subr.mxu0 0.0
    %1682 = vmatpush1.msra.mxu0 0.0
    %1683 = vmatprep.subr.mxu0 0.0
    %1684 = vmatpush1.msra.mxu0 0.0
    %1685 = vmatprep.subr.mxu0 0.0
    %1686 = vmatpush1.msra.mxu0 %v1653
    %1687 = vmatprep.subr.mxu0 0.0
    %1688 = vmatpush2.msra.mxu0 0.0
    %1689 = vmatprep.subr.mxu0 0.0
    %1690 = vmatpush2.msra.mxu0 0.0
    %1691 = vmatprep.subr.mxu0 0.0
    %1692 = vmatpush2.msra.mxu0 0.0
    %1693 = vmatprep.subr.mxu0 0.0
    %1694 = vmatpush2.msra.mxu0 0.0
    %1695 = vmatprep.subr.mxu0 0.0
    %1696 = vmatpush2.msra.mxu0 0.0
    %1697 = vmatprep.subr.mxu0 0.0
    %1698 = vmatpush2.msra.mxu0 0.0
    %1699 = vmatprep.subr.mxu0 0.0
    %1700 = vmatpush2.msra.mxu0 0.0
    %1701 = vmatprep.subr.mxu0 0.0
    %1702 = vmatpush2.msra.mxu0 0.0
    %1703 = vmatprep.subr.mxu0 0.0
    %1704 = vmatpush2.msra.mxu0 0.0
    %1705 = vmatprep.subr.mxu0 0.0
    %1706 = vmatpush2.msra.mxu0 0.0
    %1707 = vmatprep.subr.mxu0 0.0
    %1708 = vmatpush2.msra.mxu0 0.0
    %1709 = vmatprep.subr.mxu0 0.0
    %1710 = vmatpush2.msra.mxu0 0.0
    %1711 = vmatprep.subr.mxu0 0.0
    %1712 = vmatpush2.msra.mxu0 0.0
    %1713 = vmatprep.subr.mxu0 0.0
    %1714 = vmatpush2.msra.mxu0 0.0
    %1715 = vmatprep.subr.mxu0 0.0
    %1716 = vmatpush2.msra.mxu0 0.0
    %1717 = vmatprep.subr.mxu0 0.0
    %1718 = vmatpush2.msra.mxu0 0.0
    %1719 = vmatprep.mubr.f32.mxu0 0.0
    %1720 = vmatmul.mubr.f32.gmra.mxu0 %v1650
    %v1721 = vpop.f32.mrf.mxu0
    %v1722 = vadd.f32 0.0, %v1721
    %v1723 = vpop.f32.mrf.mxu0
    %1724 = vdwg.mxu0
    %v1725 = vadd.f32 %v1645, %v1722
    %vm1726 = vmand %vm1553, %vm1455
    %vm1727 = vmand %vm1726, %vm1457
    %v1728 = vsel %vm1727, 1, 0
    %vm1729 = vcmp.eq.s32.totalorder %v1728, 1
    %1730 = vrot.lane.b32.xlu0 %v1646, 127
    %v1731 = vpop.permute.xlu0 %1730
    %v1733 = vsel %vm1729, %v1731, 0.0
    %s1734 = scalar_lea.vmem %s5, 40
    %v1735 = vld [vmem:[%s1734] sm:$0x3f]
    %v1737 = vsel %vm416, %v1735, 0
    %v1740 = vsel %vm1282, %v1733, 0
    %1742 = vmatprep.subr.mxu0 0.0
    %1743 = vmatpush1.msra.mxu0 0.0
    %1744 = vmatprep.subr.mxu0 0.0
    %1745 = vmatpush1.msra.mxu0 0.0
    %1746 = vmatprep.subr.mxu0 0.0
    %1747 = vmatpush1.msra.mxu0 0.0
    %1748 = vmatprep.subr.mxu0 0.0
    %1749 = vmatpush1.msra.mxu0 0.0
    %1750 = vmatprep.subr.mxu0 0.0
    %1751 = vmatpush1.msra.mxu0 0.0
    %1752 = vmatprep.subr.mxu0 0.0
    %1753 = vmatpush1.msra.mxu0 0.0
    %1754 = vmatprep.subr.mxu0 0.0
    %1755 = vmatpush1.msra.mxu0 0.0
    %1756 = vmatprep.subr.mxu0 0.0
    %1757 = vmatpush1.msra.mxu0 0.0
    %1758 = vmatprep.subr.mxu0 0.0
    %1759 = vmatpush1.msra.mxu0 0.0
    %1760 = vmatprep.subr.mxu0 0.0
    %1761 = vmatpush1.msra.mxu0 0.0
    %1762 = vmatprep.subr.mxu0 0.0
    %1763 = vmatpush1.msra.mxu0 0.0
    %1764 = vmatprep.subr.mxu0 0.0
    %1765 = vmatpush1.msra.mxu0 0.0
    %1766 = vmatprep.subr.mxu0 0.0
    %1767 = vmatpush1.msra.mxu0 0.0
    %1768 = vmatprep.subr.mxu0 0.0
    %1769 = vmatpush1.msra.mxu0 0.0
    %1770 = vmatprep.subr.mxu0 0.0
    %1771 = vmatpush1.msra.mxu0 0.0
    %1772 = vmatprep.subr.mxu0 0.0
    %1773 = vmatpush1.msra.mxu0 %v1740
    %1774 = vmatprep.subr.mxu0 0.0
    %1775 = vmatpush2.msra.mxu0 0.0
    %1776 = vmatprep.subr.mxu0 0.0
    %1777 = vmatpush2.msra.mxu0 0.0
    %1778 = vmatprep.subr.mxu0 0.0
    %1779 = vmatpush2.msra.mxu0 0.0
    %1780 = vmatprep.subr.mxu0 0.0
    %1781 = vmatpush2.msra.mxu0 0.0
    %1782 = vmatprep.subr.mxu0 0.0
    %1783 = vmatpush2.msra.mxu0 0.0
    %1784 = vmatprep.subr.mxu0 0.0
    %1785 = vmatpush2.msra.mxu0 0.0
    %1786 = vmatprep.subr.mxu0 0.0
    %1787 = vmatpush2.msra.mxu0 0.0
    %1788 = vmatprep.subr.mxu0 0.0
    %1789 = vmatpush2.msra.mxu0 0.0
    %1790 = vmatprep.subr.mxu0 0.0
    %1791 = vmatpush2.msra.mxu0 0.0
    %1792 = vmatprep.subr.mxu0 0.0
    %1793 = vmatpush2.msra.mxu0 0.0
    %1794 = vmatprep.subr.mxu0 0.0
    %1795 = vmatpush2.msra.mxu0 0.0
    %1796 = vmatprep.subr.mxu0 0.0
    %1797 = vmatpush2.msra.mxu0 0.0
    %1798 = vmatprep.subr.mxu0 0.0
    %1799 = vmatpush2.msra.mxu0 0.0
    %1800 = vmatprep.subr.mxu0 0.0
    %1801 = vmatpush2.msra.mxu0 0.0
    %1802 = vmatprep.subr.mxu0 0.0
    %1803 = vmatpush2.msra.mxu0 0.0
    %1804 = vmatprep.subr.mxu0 0.0
    %1805 = vmatpush2.msra.mxu0 0.0
    %1806 = vmatprep.mubr.f32.mxu0 0.0
    %1807 = vmatmul.mubr.f32.gmra.mxu0 %v1737
    %v1808 = vpop.f32.mrf.mxu0
    %v1809 = vadd.f32 0.0, %v1808
    %v1810 = vpop.f32.mrf.mxu0
    %1811 = vdwg.mxu0
    %v1812 = vadd.f32 %v1725, %v1809
    %v1813 = vld [vmem:[#allocation3 + $0x4] sm:$0xf]
    %v1814 = vadd.s32 %v1255, 1
    %vm1815 = vcmp.ge.s32.totalorder %v1814, 0
    %vm1816 = vcmp.lt.s32.totalorder %v1814, 8
    %vm1817 = vmand %vm1815, %vm1816
    %vm1818 = vmand %vm1817, %vm1263
    %vm1819 = vmand %vm1818, %vm1265
    %v1820 = vsel %vm1819, 1, 0
    %vm1821 = vcmp.eq.s32.totalorder %v1820, 1
    %1823 = vrot.lane.b32.xlu0 %v1813, 121
    %v1824 = vpop.permute.xlu0 %1823
    %v1826 = vsel %vm1821, %v1824, 0.0
    %s1827 = scalar_lea.vmem %s5, 48
    %v1828 = vld [vmem:[%s1827] sm:$0x3f]
    %v1830 = vsel %vm416, %v1828, 0
    %v1833 = vsel %vm1282, %v1826, 0
    %1835 = vmatprep.subr.mxu0 0.0
    %1836 = vmatpush1.msra.mxu0 0.0
    %1837 = vmatprep.subr.mxu0 0.0
    %1838 = vmatpush1.msra.mxu0 0.0
    %1839 = vmatprep.subr.mxu0 0.0
    %1840 = vmatpush1.msra.mxu0 0.0
    %1841 = vmatprep.subr.mxu0 0.0
    %1842 = vmatpush1.msra.mxu0 0.0
    %1843 = vmatprep.subr.mxu0 0.0
    %1844 = vmatpush1.msra.mxu0 0.0
    %1845 = vmatprep.subr.mxu0 0.0
    %1846 = vmatpush1.msra.mxu0 0.0
    %1847 = vmatprep.subr.mxu0 0.0
    %1848 = vmatpush1.msra.mxu0 0.0
    %1849 = vmatprep.subr.mxu0 0.0
    %1850 = vmatpush1.msra.mxu0 0.0
    %1851 = vmatprep.subr.mxu0 0.0
    %1852 = vmatpush1.msra.mxu0 0.0
    %1853 = vmatprep.subr.mxu0 0.0
    %1854 = vmatpush1.msra.mxu0 0.0
    %1855 = vmatprep.subr.mxu0 0.0
    %1856 = vmatpush1.msra.mxu0 0.0
    %1857 = vmatprep.subr.mxu0 0.0
    %1858 = vmatpush1.msra.mxu0 0.0
    %1859 = vmatprep.subr.mxu0 0.0
    %1860 = vmatpush1.msra.mxu0 0.0
    %1861 = vmatprep.subr.mxu0 0.0
    %1862 = vmatpush1.msra.mxu0 0.0
    %1863 = vmatprep.subr.mxu0 0.0
    %1864 = vmatpush1.msra.mxu0 0.0
    %1865 = vmatprep.subr.mxu0 0.0
    %1866 = vmatpush1.msra.mxu0 %v1833
    %1867 = vmatprep.subr.mxu0 0.0
    %1868 = vmatpush2.msra.mxu0 0.0
    %1869 = vmatprep.subr.mxu0 0.0
    %1870 = vmatpush2.msra.mxu0 0.0
    %1871 = vmatprep.subr.mxu0 0.0
    %1872 = vmatpush2.msra.mxu0 0.0
    %1873 = vmatprep.subr.mxu0 0.0
    %1874 = vmatpush2.msra.mxu0 0.0
    %1875 = vmatprep.subr.mxu0 0.0
    %1876 = vmatpush2.msra.mxu0 0.0
    %1877 = vmatprep.subr.mxu0 0.0
    %1878 = vmatpush2.msra.mxu0 0.0
    %1879 = vmatprep.subr.mxu0 0.0
    %1880 = vmatpush2.msra.mxu0 0.0
    %1881 = vmatprep.subr.mxu0 0.0
    %1882 = vmatpush2.msra.mxu0 0.0
    %1883 = vmatprep.subr.mxu0 0.0
    %1884 = vmatpush2.msra.mxu0 0.0
    %1885 = vmatprep.subr.mxu0 0.0
    %1886 = vmatpush2.msra.mxu0 0.0
    %1887 = vmatprep.subr.mxu0 0.0
    %1888 = vmatpush2.msra.mxu0 0.0
    %1889 = vmatprep.subr.mxu0 0.0
    %1890 = vmatpush2.msra.mxu0 0.0
    %1891 = vmatprep.subr.mxu0 0.0
    %1892 = vmatpush2.msra.mxu0 0.0
    %1893 = vmatprep.subr.mxu0 0.0
    %1894 = vmatpush2.msra.mxu0 0.0
    %1895 = vmatprep.subr.mxu0 0.0
    %1896 = vmatpush2.msra.mxu0 0.0
    %1897 = vmatprep.subr.mxu0 0.0
    %1898 = vmatpush2.msra.mxu0 0.0
    %1899 = vmatprep.mubr.f32.mxu0 0.0
    %1900 = vmatmul.mubr.f32.gmra.mxu0 %v1830
    %v1901 = vpop.f32.mrf.mxu0
    %v1902 = vadd.f32 0.0, %v1901
    %v1903 = vpop.f32.mrf.mxu0
    %1904 = vdwg.mxu0
    %v1905 = vadd.f32 %v1812, %v1902
    %v1906 = vld [vmem:[#allocation3 + $0x4] sm:$0xf]
    %vm1907 = vmand %vm1817, %vm1358
    %vm1908 = vmand %vm1907, %vm1360
    %v1909 = vsel %vm1908, 1, 0
    %vm1910 = vcmp.eq.s32.totalorder %v1909, 1
    %1912 = vrot.lane.b32.xlu0 %v1906, 120
    %v1913 = vpop.permute.xlu0 %1912
    %v1915 = vsel %vm1910, %v1913, 0.0
    %s1916 = scalar_lea.vmem %s5, 56
    %v1917 = vld [vmem:[%s1916] sm:$0x3f]
    %v1919 = vsel %vm416, %v1917, 0
    %v1922 = vsel %vm1282, %v1915, 0
    %1924 = vmatprep.subr.mxu0 0.0
    %1925 = vmatpush1.msra.mxu0 0.0
    %1926 = vmatprep.subr.mxu0 0.0
    %1927 = vmatpush1.msra.mxu0 0.0
    %1928 = vmatprep.subr.mxu0 0.0
    %1929 = vmatpush1.msra.mxu0 0.0
    %1930 = vmatprep.subr.mxu0 0.0
    %1931 = vmatpush1.msra.mxu0 0.0
    %1932 = vmatprep.subr.mxu0 0.0
    %1933 = vmatpush1.msra.mxu0 0.0
    %1934 = vmatprep.subr.mxu0 0.0
    %1935 = vmatpush1.msra.mxu0 0.0
    %1936 = vmatprep.subr.mxu0 0.0
    %1937 = vmatpush1.msra.mxu0 0.0
    %1938 = vmatprep.subr.mxu0 0.0
    %1939 = vmatpush1.msra.mxu0 0.0
    %1940 = vmatprep.subr.mxu0 0.0
    %1941 = vmatpush1.msra.mxu0 0.0
    %1942 = vmatprep.subr.mxu0 0.0
    %1943 = vmatpush1.msra.mxu0 0.0
    %1944 = vmatprep.subr.mxu0 0.0
    %1945 = vmatpush1.msra.mxu0 0.0
    %1946 = vmatprep.subr.mxu0 0.0
    %1947 = vmatpush1.msra.mxu0 0.0
    %1948 = vmatprep.subr.mxu0 0.0
    %1949 = vmatpush1.msra.mxu0 0.0
    %1950 = vmatprep.subr.mxu0 0.0
    %1951 = vmatpush1.msra.mxu0 0.0
    %1952 = vmatprep.subr.mxu0 0.0
    %1953 = vmatpush1.msra.mxu0 0.0
    %1954 = vmatprep.subr.mxu0 0.0
    %1955 = vmatpush1.msra.mxu0 %v1922
    %1956 = vmatprep.subr.mxu0 0.0
    %1957 = vmatpush2.msra.mxu0 0.0
    %1958 = vmatprep.subr.mxu0 0.0
    %1959 = vmatpush2.msra.mxu0 0.0
    %1960 = vmatprep.subr.mxu0 0.0
    %1961 = vmatpush2.msra.mxu0 0.0
    %1962 = vmatprep.subr.mxu0 0.0
    %1963 = vmatpush2.msra.mxu0 0.0
    %1964 = vmatprep.subr.mxu0 0.0
    %1965 = vmatpush2.msra.mxu0 0.0
    %1966 = vmatprep.subr.mxu0 0.0
    %1967 = vmatpush2.msra.mxu0 0.0
    %1968 = vmatprep.subr.mxu0 0.0
    %1969 = vmatpush2.msra.mxu0 0.0
    %1970 = vmatprep.subr.mxu0 0.0
    %1971 = vmatpush2.msra.mxu0 0.0
    %1972 = vmatprep.subr.mxu0 0.0
    %1973 = vmatpush2.msra.mxu0 0.0
    %1974 = vmatprep.subr.mxu0 0.0
    %1975 = vmatpush2.msra.mxu0 0.0
    %1976 = vmatprep.subr.mxu0 0.0
    %1977 = vmatpush2.msra.mxu0 0.0
    %1978 = vmatprep.subr.mxu0 0.0
    %1979 = vmatpush2.msra.mxu0 0.0
    %1980 = vmatprep.subr.mxu0 0.0
    %1981 = vmatpush2.msra.mxu0 0.0
    %1982 = vmatprep.subr.mxu0 0.0
    %1983 = vmatpush2.msra.mxu0 0.0
    %1984 = vmatprep.subr.mxu0 0.0
    %1985 = vmatpush2.msra.mxu0 0.0
    %1986 = vmatprep.subr.mxu0 0.0
    %1987 = vmatpush2.msra.mxu0 0.0
    %1988 = vmatprep.mubr.f32.mxu0 0.0
    %1989 = vmatmul.mubr.f32.gmra.mxu0 %v1919
    %v1990 = vpop.f32.mrf.mxu0
    %v1991 = vadd.f32 0.0, %v1990
    %v1992 = vpop.f32.mrf.mxu0
    %1993 = vdwg.mxu0
    %v1994 = vadd.f32 %v1905, %v1991
    %v1995 = vld [vmem:[#allocation3 + $0x4] sm:$0xf]
    %vm1996 = vmand %vm1817, %vm1455
    %vm1997 = vmand %vm1996, %vm1457
    %v1998 = vsel %vm1997, 1, 0
    %vm1999 = vcmp.eq.s32.totalorder %v1998, 1
    %2001 = vrot.lane.b32.xlu0 %v1995, 119
    %v2002 = vpop.permute.xlu0 %2001
    %v2004 = vsel %vm1999, %v2002, 0.0
    %s2005 = scalar_lea.vmem %s5, 64
    %v2006 = vld [vmem:[%s2005] sm:$0x3f]
    %v2008 = vsel %vm416, %v2006, 0
    %v2011 = vsel %vm1282, %v2004, 0
    %2013 = vmatprep.subr.mxu0 0.0
    %2014 = vmatpush1.msra.mxu0 0.0
    %2015 = vmatprep.subr.mxu0 0.0
    %2016 = vmatpush1.msra.mxu0 0.0
    %2017 = vmatprep.subr.mxu0 0.0
    %2018 = vmatpush1.msra.mxu0 0.0
    %2019 = vmatprep.subr.mxu0 0.0
    %2020 = vmatpush1.msra.mxu0 0.0
    %2021 = vmatprep.subr.mxu0 0.0
    %2022 = vmatpush1.msra.mxu0 0.0
    %2023 = vmatprep.subr.mxu0 0.0
    %2024 = vmatpush1.msra.mxu0 0.0
    %2025 = vmatprep.subr.mxu0 0.0
    %2026 = vmatpush1.msra.mxu0 0.0
    %2027 = vmatprep.subr.mxu0 0.0
    %2028 = vmatpush1.msra.mxu0 0.0
    %2029 = vmatprep.subr.mxu0 0.0
    %2030 = vmatpush1.msra.mxu0 0.0
    %2031 = vmatprep.subr.mxu0 0.0
    %2032 = vmatpush1.msra.mxu0 0.0
    %2033 = vmatprep.subr.mxu0 0.0
    %2034 = vmatpush1.msra.mxu0 0.0
    %2035 = vmatprep.subr.mxu0 0.0
    %2036 = vmatpush1.msra.mxu0 0.0
    %2037 = vmatprep.subr.mxu0 0.0
    %2038 = vmatpush1.msra.mxu0 0.0
    %2039 = vmatprep.subr.mxu0 0.0
    %2040 = vmatpush1.msra.mxu0 0.0
    %2041 = vmatprep.subr.mxu0 0.0
    %2042 = vmatpush1.msra.mxu0 0.0
    %2043 = vmatprep.subr.mxu0 0.0
    %2044 = vmatpush1.msra.mxu0 %v2011
    %2045 = vmatprep.subr.mxu0 0.0
    %2046 = vmatpush2.msra.mxu0 0.0
    %2047 = vmatprep.subr.mxu0 0.0
    %2048 = vmatpush2.msra.mxu0 0.0
    %2049 = vmatprep.subr.mxu0 0.0
    %2050 = vmatpush2.msra.mxu0 0.0
    %2051 = vmatprep.subr.mxu0 0.0
    %2052 = vmatpush2.msra.mxu0 0.0
    %2053 = vmatprep.subr.mxu0 0.0
    %2054 = vmatpush2.msra.mxu0 0.0
    %2055 = vmatprep.subr.mxu0 0.0
    %2056 = vmatpush2.msra.mxu0 0.0
    %2057 = vmatprep.subr.mxu0 0.0
    %2058 = vmatpush2.msra.mxu0 0.0
    %2059 = vmatprep.subr.mxu0 0.0
    %2060 = vmatpush2.msra.mxu0 0.0
    %2061 = vmatprep.subr.mxu0 0.0
    %2062 = vmatpush2.msra.mxu0 0.0
    %2063 = vmatprep.subr.mxu0 0.0
    %2064 = vmatpush2.msra.mxu0 0.0
    %2065 = vmatprep.subr.mxu0 0.0
    %2066 = vmatpush2.msra.mxu0 0.0
    %2067 = vmatprep.subr.mxu0 0.0
    %2068 = vmatpush2.msra.mxu0 0.0
    %2069 = vmatprep.subr.mxu0 0.0
    %2070 = vmatpush2.msra.mxu0 0.0
    %2071 = vmatprep.subr.mxu0 0.0
    %2072 = vmatpush2.msra.mxu0 0.0
    %2073 = vmatprep.subr.mxu0 0.0
    %2074 = vmatpush2.msra.mxu0 0.0
    %2075 = vmatprep.subr.mxu0 0.0
    %2076 = vmatpush2.msra.mxu0 0.0
    %2077 = vmatprep.mubr.f32.mxu0 0.0
    %2078 = vmatmul.mubr.f32.gmra.mxu0 %v2008
    %v2079 = vpop.f32.mrf.mxu0
    %v2080 = vadd.f32 0.0, %v2079
    %v2081 = vpop.f32.mrf.mxu0
    %2082 = vdwg.mxu0
    %v2083 = vadd.f32 %v1994, %v2080
    %v2084 = vmax.f32 %v2083, 0.0
    %v2085 = vld [vmem:[#allocation11] sm:$0xff]
    %v2086 = vld [vmem:[#allocation11 + $0x8] sm:$0xff]
    %v2087 = vld [vmem:[#allocation11 + $0x10] sm:$0xff]
    %v2088 = vld [vmem:[#allocation11 + $0x18] sm:$0xff]
    %v2089 = vld [vmem:[#allocation11 + $0x20] sm:$0xff]
    %v2090 = vld [vmem:[#allocation11 + $0x28] sm:$0xff]
    %v2091 = vld [vmem:[#allocation11 + $0x30] sm:$0xff]
    %v2092 = vld [vmem:[#allocation11 + $0x38] sm:$0xff]
    %v2093 = vld [vmem:[#allocation11 + $0x40] sm:$0xff]
    %v2094 = vld [vmem:[#allocation11 + $0x48] sm:$0xff]
    %v2095 = vld [vmem:[#allocation11 + $0x50] sm:$0xff]
    %v2096 = vld [vmem:[#allocation11 + $0x58] sm:$0xff]
    %v2097 = vld [vmem:[#allocation11 + $0x60] sm:$0xff]
    %v2098 = vld [vmem:[#allocation11 + $0x68] sm:$0xff]
    %v2099 = vld [vmem:[#allocation11 + $0x70] sm:$0xff]
    %v2100 = vld [vmem:[#allocation11 + $0x78] sm:$0xff]
    %vm2101 = vcmask 523264
    %v2103 = vsel %vm2101, %v2084, 0
    %2105 = vmatprep.subr.mxu0 0.0
    %2106 = vmatpush1.msra.mxu0 0.0
    %2107 = vmatprep.subr.mxu0 0.0
    %2108 = vmatpush1.msra.mxu0 0.0
    %2109 = vmatprep.subr.mxu0 0.0
    %2110 = vmatpush1.msra.mxu0 0.0
    %2111 = vmatprep.subr.mxu0 0.0
    %2112 = vmatpush1.msra.mxu0 0.0
    %2113 = vmatprep.subr.mxu0 0.0
    %2114 = vmatpush1.msra.mxu0 0.0
    %2115 = vmatprep.subr.mxu0 0.0
    %2116 = vmatpush1.msra.mxu0 0.0
    %2117 = vmatprep.subr.mxu0 0.0
    %2118 = vmatpush1.msra.mxu0 0.0
    %2119 = vmatprep.subr.mxu0 0.0
    %2120 = vmatpush1.msra.mxu0 0.0
    %2121 = vmatprep.subr.mxu0 %v2100
    %2122 = vmatpush1.msra.mxu0 %v2099
    %2123 = vmatprep.subr.mxu0 %v2098
    %2124 = vmatpush1.msra.mxu0 %v2097
    %2125 = vmatprep.subr.mxu0 %v2096
    %2126 = vmatpush1.msra.mxu0 %v2095
    %2127 = vmatprep.subr.mxu0 %v2094
    %2128 = vmatpush1.msra.mxu0 %v2093
    %2129 = vmatprep.subr.mxu0 %v2092
    %2130 = vmatpush1.msra.mxu0 %v2091
    %2131 = vmatprep.subr.mxu0 %v2090
    %2132 = vmatpush1.msra.mxu0 %v2089
    %2133 = vmatprep.subr.mxu0 %v2088
    %2134 = vmatpush1.msra.mxu0 %v2087
    %2135 = vmatprep.subr.mxu0 %v2086
    %2136 = vmatpush1.msra.mxu0 %v2085
    %2137 = vmatprep.subr.mxu0 0.0
    %2138 = vmatpush2.msra.mxu0 0.0
    %2139 = vmatprep.subr.mxu0 0.0
    %2140 = vmatpush2.msra.mxu0 0.0
    %2141 = vmatprep.subr.mxu0 0.0
    %2142 = vmatpush2.msra.mxu0 0.0
    %2143 = vmatprep.subr.mxu0 0.0
    %2144 = vmatpush2.msra.mxu0 0.0
    %2145 = vmatprep.subr.mxu0 0.0
    %2146 = vmatpush2.msra.mxu0 0.0
    %2147 = vmatprep.subr.mxu0 0.0
    %2148 = vmatpush2.msra.mxu0 0.0
    %2149 = vmatprep.subr.mxu0 0.0
    %2150 = vmatpush2.msra.mxu0 0.0
    %2151 = vmatprep.subr.mxu0 0.0
    %2152 = vmatpush2.msra.mxu0 0.0
    %2153 = vmatprep.subr.mxu0 0.0
    %2154 = vmatpush2.msra.mxu0 0.0
    %2155 = vmatprep.subr.mxu0 0.0
    %2156 = vmatpush2.msra.mxu0 0.0
    %2157 = vmatprep.subr.mxu0 0.0
    %2158 = vmatpush2.msra.mxu0 0.0
    %2159 = vmatprep.subr.mxu0 0.0
    %2160 = vmatpush2.msra.mxu0 0.0
    %2161 = vmatprep.subr.mxu0 0.0
    %2162 = vmatpush2.msra.mxu0 0.0
    %2163 = vmatprep.subr.mxu0 0.0
    %2164 = vmatpush2.msra.mxu0 0.0
    %2165 = vmatprep.subr.mxu0 0.0
    %2166 = vmatpush2.msra.mxu0 0.0
    %2167 = vmatprep.subr.mxu0 0.0
    %2168 = vmatpush2.msra.mxu0 0.0
    %2169 = vmatprep.mubr.f32.mxu0 0.0
    %2170 = vmatmul.mubr.f32.gmra.mxu0 %v2103
    %v2171 = vpop.f32.mrf.mxu0
    %v2172 = vadd.f32 0.0, %v2171
    %v2173 = vpop.f32.mrf.mxu0
    %v2174 = vadd.f32 0.0, %v2173
    %2175 = vdwg.mxu0
    %2176 = vst [vmem:[#allocation4] sm:$0x3f] 0.0
    %2177 = vst [vmem:[#allocation4 + $0x8] sm:$0x3f] 0.0
    %2178 = vst [vmem:[#allocation4 + $0x10] sm:$0x3f] 0.0
    %2179 = vst [vmem:[#allocation4 + $0x18] sm:$0x3f] 0.0
    %2180 = vst [vmem:[#allocation4 + $0x8] sm:$0x3f] %v2172
    %2181 = vst [vmem:[#allocation4 + $0x10] sm:$0x3f] %v2174
    %v2182 = vld [vmem:[%s8] sm:$0xff]
    %v2183 = vld [vmem:[%s8 + $0x8] sm:$0xff]
    %v2184 = vadd.s32 %v285, 128
    %v2185 = vshra.s32 %v285, 4
    %v2186 = vshra.s32 %v2184, 4
    %v2187 = vand.u32 %v285, 15
    %v2188 = vand.u32 %v2184, 15
    %v2189 = vld [vmem:[#allocation4] sm:$0x3f]
    %v2190 = vld [vmem:[#allocation4 + $0x8] sm:$0x3f]
    %v2191 = vld [vmem:[#allocation4 + $0x10] sm:$0x3f]
    %v2192 = vadd.s32 %v2185, 4294967295
    %v2193 = vadd.s32 %v2186, 4294967295
    %vm2194 = vcmp.ge.s32.totalorder %v2192, 0
    %vm2195 = vcmp.ge.s32.totalorder %v2193, 0
    %vm2196 = vcmp.lt.s32.totalorder %v2192, 16
    %vm2197 = vcmp.lt.s32.totalorder %v2193, 16
    %vm2198 = vmand %vm2194, %vm2196
    %vm2199 = vmand %vm2195, %vm2197
    %v2200 = vadd.s32 %v2187, 4294967295
    %v2201 = vadd.s32 %v2188, 4294967295
    %vm2202 = vcmp.ge.s32.totalorder %v2200, 0
    %vm2203 = vcmp.ge.s32.totalorder %v2201, 0
    %vm2204 = vmand %vm2198, %vm2202
    %vm2205 = vmand %vm2199, %vm2203
    %vm2206 = vcmp.lt.s32.totalorder %v2200, 16
    %vm2207 = vcmp.lt.s32.totalorder %v2201, 16
    %vm2208 = vmand %vm2204, %vm2206
    %vm2209 = vmand %vm2205, %vm2207
    %v2210 = vsel %vm2208, 1, 0
    %v2211 = vsel %vm2209, 1, 0
    %vm2212 = vcmp.eq.s32.totalorder %v2210, 1
    %vm2213 = vcmp.eq.s32.totalorder %v2211, 1
    %2217 = vrot.lane.b32.xlu0 %v2189, 17
    %v2218 = vpop.permute.xlu0 %2217
    %2219 = vrot.lane.b32.xlu0 %v2190, 17
    %v2220 = vpop.permute.xlu0 %2219
    %2221 = vrot.lane.b32.xlu0 %v2191, 17
    %v2222 = vpop.permute.xlu0 %2221
    %vm2223 = vcmask 138240
    %v2224 = vsel %vm2223, %v2218, %v2220
    %v2225 = vsel %vm2223, %v2220, %v2222
    %v2228 = vsel %vm2212, %v2224, 0.0
    %v2229 = vsel %vm2213, %v2225, 0.0
    %v2230 = vld [vmem:[#allocation8] sm:$0xff]
    %vm2231 = vcmask 48128
    %v2233 = vsel %vm2231, %v2230, 0
    %vm2235 = vcmask 1045504
    %v2237 = vsel %vm2235, %v2228, 0
    %v2240 = vsel %vm2235, %v2229, 0
    %2242 = vmatprep.subr.mxu0 0.0
    %2243 = vmatpush1.msra.mxu0 0.0
    %2244 = vmatprep.subr.mxu0 0.0
    %2245 = vmatpush1.msra.mxu0 0.0
    %2246 = vmatprep.subr.mxu0 0.0
    %2247 = vmatpush1.msra.mxu0 0.0
    %2248 = vmatprep.subr.mxu0 0.0
    %2249 = vmatpush1.msra.mxu0 0.0
    %2250 = vmatprep.subr.mxu0 0.0
    %2251 = vmatpush1.msra.mxu0 0.0
    %2252 = vmatprep.subr.mxu0 0.0
    %2253 = vmatpush1.msra.mxu0 0.0
    %2254 = vmatprep.subr.mxu0 0.0
    %2255 = vmatpush1.msra.mxu0 0.0
    %2256 = vmatprep.subr.mxu0 0.0
    %2257 = vmatpush1.msra.mxu0 0.0
    %2258 = vmatprep.subr.mxu0 0.0
    %2259 = vmatpush1.msra.mxu0 0.0
    %2260 = vmatprep.subr.mxu0 0.0
    %2261 = vmatpush1.msra.mxu0 0.0
    %2262 = vmatprep.subr.mxu0 0.0
    %2263 = vmatpush1.msra.mxu0 0.0
    %2264 = vmatprep.subr.mxu0 0.0
    %2265 = vmatpush1.msra.mxu0 0.0
    %2266 = vmatprep.subr.mxu0 0.0
    %2267 = vmatpush1.msra.mxu0 0.0
    %2268 = vmatprep.subr.mxu0 0.0
    %2269 = vmatpush1.msra.mxu0 0.0
    %2270 = vmatprep.subr.mxu0 0.0
    %2271 = vmatpush1.msra.mxu0 0.0
    %2272 = vmatprep.subr.mxu0 %v2240
    %2273 = vmatpush1.msra.mxu0 %v2237
    %2274 = vmatprep.subr.mxu0 0.0
    %2275 = vmatpush2.msra.mxu0 0.0
    %2276 = vmatprep.subr.mxu0 0.0
    %2277 = vmatpush2.msra.mxu0 0.0
    %2278 = vmatprep.subr.mxu0 0.0
    %2279 = vmatpush2.msra.mxu0 0.0
    %2280 = vmatprep.subr.mxu0 0.0
    %2281 = vmatpush2.msra.mxu0 0.0
    %2282 = vmatprep.subr.mxu0 0.0
    %2283 = vmatpush2.msra.mxu0 0.0
    %2284 = vmatprep.subr.mxu0 0.0
    %2285 = vmatpush2.msra.mxu0 0.0
    %2286 = vmatprep.subr.mxu0 0.0
    %2287 = vmatpush2.msra.mxu0 0.0
    %2288 = vmatprep.subr.mxu0 0.0
    %2289 = vmatpush2.msra.mxu0 0.0
    %2290 = vmatprep.subr.mxu0 0.0
    %2291 = vmatpush2.msra.mxu0 0.0
    %2292 = vmatprep.subr.mxu0 0.0
    %2293 = vmatpush2.msra.mxu0 0.0
    %2294 = vmatprep.subr.mxu0 0.0
    %2295 = vmatpush2.msra.mxu0 0.0
    %2296 = vmatprep.subr.mxu0 0.0
    %2297 = vmatpush2.msra.mxu0 0.0
    %2298 = vmatprep.subr.mxu0 0.0
    %2299 = vmatpush2.msra.mxu0 0.0
    %2300 = vmatprep.subr.mxu0 0.0
    %2301 = vmatpush2.msra.mxu0 0.0
    %2302 = vmatprep.subr.mxu0 0.0
    %2303 = vmatpush2.msra.mxu0 0.0
    %2304 = vmatprep.subr.mxu0 0.0
    %2305 = vmatpush2.msra.mxu0 0.0
    %2306 = vmatprep.mubr.f32.mxu0 0.0
    %2307 = vmatmul.mubr.f32.gmra.mxu0 %v2233
    %v2308 = vpop.f32.mrf.mxu0
    %v2309 = vadd.f32 0.0, %v2308
    %v2310 = vpop.f32.mrf.mxu0
    %v2311 = vadd.f32 0.0, %v2310
    %2312 = vdwg.mxu0
    %v2313 = vadd.f32 %v2182, %v2309
    %v2314 = vadd.f32 %v2183, %v2311
    %vm2315 = vcmp.ge.s32.totalorder %v2187, 0
    %vm2316 = vcmp.ge.s32.totalorder %v2188, 0
    %vm2317 = vmand %vm2198, %vm2315
    %vm2318 = vmand %vm2199, %vm2316
    %vm2319 = vcmp.lt.s32.totalorder %v2187, 16
    %vm2320 = vcmp.lt.s32.totalorder %v2188, 16
    %vm2321 = vmand %vm2317, %vm2319
    %vm2322 = vmand %vm2318, %vm2320
    %v2323 = vsel %vm2321, 1, 0
    %v2324 = vsel %vm2322, 1, 0
    %vm2325 = vcmp.eq.s32.totalorder %v2323, 1
    %vm2326 = vcmp.eq.s32.totalorder %v2324, 1
    %2327 = vrot.lane.b32.xlu0 %v2189, 16
    %v2328 = vpop.permute.xlu0 %2327
    %2329 = vrot.lane.b32.xlu0 %v2190, 16
    %v2330 = vpop.permute.xlu0 %2329
    %2331 = vrot.lane.b32.xlu0 %v2191, 16
    %v2332 = vpop.permute.xlu0 %2331
    %v2333 = vsel %vm1176, %v2328, %v2330
    %v2334 = vsel %vm1176, %v2330, %v2332
    %v2337 = vsel %vm2325, %v2333, 0.0
    %v2338 = vsel %vm2326, %v2334, 0.0
    %s2339 = scalar_lea.vmem [#allocation8], 8
    %v2340 = vld [vmem:[%s2339] sm:$0xff]
    %v2342 = vsel %vm2231, %v2340, 0
    %v2345 = vsel %vm2235, %v2337, 0
    %v2348 = vsel %vm2235, %v2338, 0
    %2350 = vmatprep.subr.mxu0 0.0
    %2351 = vmatpush1.msra.mxu0 0.0
    %2352 = vmatprep.subr.mxu0 0.0
    %2353 = vmatpush1.msra.mxu0 0.0
    %2354 = vmatprep.subr.mxu0 0.0
    %2355 = vmatpush1.msra.mxu0 0.0
    %2356 = vmatprep.subr.mxu0 0.0
    %2357 = vmatpush1.msra.mxu0 0.0
    %2358 = vmatprep.subr.mxu0 0.0
    %2359 = vmatpush1.msra.mxu0 0.0
    %2360 = vmatprep.subr.mxu0 0.0
    %2361 = vmatpush1.msra.mxu0 0.0
    %2362 = vmatprep.subr.mxu0 0.0
    %2363 = vmatpush1.msra.mxu0 0.0
    %2364 = vmatprep.subr.mxu0 0.0
    %2365 = vmatpush1.msra.mxu0 0.0
    %2366 = vmatprep.subr.mxu0 0.0
    %2367 = vmatpush1.msra.mxu0 0.0
    %2368 = vmatprep.subr.mxu0 0.0
    %2369 = vmatpush1.msra.mxu0 0.0
    %2370 = vmatprep.subr.mxu0 0.0
    %2371 = vmatpush1.msra.mxu0 0.0
    %2372 = vmatprep.subr.mxu0 0.0
    %2373 = vmatpush1.msra.mxu0 0.0
    %2374 = vmatprep.subr.mxu0 0.0
    %2375 = vmatpush1.msra.mxu0 0.0
    %2376 = vmatprep.subr.mxu0 0.0
    %2377 = vmatpush1.msra.mxu0 0.0
    %2378 = vmatprep.subr.mxu0 0.0
    %2379 = vmatpush1.msra.mxu0 0.0
    %2380 = vmatprep.subr.mxu0 %v2348
    %2381 = vmatpush1.msra.mxu0 %v2345
    %2382 = vmatprep.subr.mxu0 0.0
    %2383 = vmatpush2.msra.mxu0 0.0
    %2384 = vmatprep.subr.mxu0 0.0
    %2385 = vmatpush2.msra.mxu0 0.0
    %2386 = vmatprep.subr.mxu0 0.0
    %2387 = vmatpush2.msra.mxu0 0.0
    %2388 = vmatprep.subr.mxu0 0.0
    %2389 = vmatpush2.msra.mxu0 0.0
    %2390 = vmatprep.subr.mxu0 0.0
    %2391 = vmatpush2.msra.mxu0 0.0
    %2392 = vmatprep.subr.mxu0 0.0
    %2393 = vmatpush2.msra.mxu0 0.0
    %2394 = vmatprep.subr.mxu0 0.0
    %2395 = vmatpush2.msra.mxu0 0.0
    %2396 = vmatprep.subr.mxu0 0.0
    %2397 = vmatpush2.msra.mxu0 0.0
    %2398 = vmatprep.subr.mxu0 0.0
    %2399 = vmatpush2.msra.mxu0 0.0
    %2400 = vmatprep.subr.mxu0 0.0
    %2401 = vmatpush2.msra.mxu0 0.0
    %2402 = vmatprep.subr.mxu0 0.0
    %2403 = vmatpush2.msra.mxu0 0.0
    %2404 = vmatprep.subr.mxu0 0.0
    %2405 = vmatpush2.msra.mxu0 0.0
    %2406 = vmatprep.subr.mxu0 0.0
    %2407 = vmatpush2.msra.mxu0 0.0
    %2408 = vmatprep.subr.mxu0 0.0
    %2409 = vmatpush2.msra.mxu0 0.0
    %2410 = vmatprep.subr.mxu0 0.0
    %2411 = vmatpush2.msra.mxu0 0.0
    %2412 = vmatprep.subr.mxu0 0.0
    %2413 = vmatpush2.msra.mxu0 0.0
    %2414 = vmatprep.mubr.f32.mxu0 0.0
    %2415 = vmatmul.mubr.f32.gmra.mxu0 %v2342
    %v2416 = vpop.f32.mrf.mxu0
    %v2417 = vadd.f32 0.0, %v2416
    %v2418 = vpop.f32.mrf.mxu0
    %v2419 = vadd.f32 0.0, %v2418
    %2420 = vdwg.mxu0
    %v2421 = vadd.f32 %v2313, %v2417
    %v2422 = vadd.f32 %v2314, %v2419
    %v2423 = vadd.s32 %v2187, 1
    %v2424 = vadd.s32 %v2188, 1
    %vm2425 = vcmp.ge.s32.totalorder %v2423, 0
    %vm2426 = vcmp.ge.s32.totalorder %v2424, 0
    %vm2427 = vmand %vm2198, %vm2425
    %vm2428 = vmand %vm2199, %vm2426
    %vm2429 = vcmp.lt.s32.totalorder %v2423, 16
    %vm2430 = vcmp.lt.s32.totalorder %v2424, 16
    %vm2431 = vmand %vm2427, %vm2429
    %vm2432 = vmand %vm2428, %vm2430
    %v2433 = vsel %vm2431, 1, 0
    %v2434 = vsel %vm2432, 1, 0
    %vm2435 = vcmp.eq.s32.totalorder %v2433, 1
    %vm2436 = vcmp.eq.s32.totalorder %v2434, 1
    %2437 = vrot.lane.b32.xlu0 %v2189, 15
    %v2438 = vpop.permute.xlu0 %2437
    %2439 = vrot.lane.b32.xlu0 %v2190, 15
    %v2440 = vpop.permute.xlu0 %2439
    %2441 = vrot.lane.b32.xlu0 %v2191, 15
    %v2442 = vpop.permute.xlu0 %2441
    %vm2443 = vcmask 121856
    %v2444 = vsel %vm2443, %v2438, %v2440
    %v2445 = vsel %vm2443, %v2440, %v2442
    %v2448 = vsel %vm2435, %v2444, 0.0
    %v2449 = vsel %vm2436, %v2445, 0.0
    %s2450 = scalar_lea.vmem [#allocation8], 16
    %v2451 = vld [vmem:[%s2450] sm:$0xff]
    %v2453 = vsel %vm2231, %v2451, 0
    %v2456 = vsel %vm2235, %v2448, 0
    %v2459 = vsel %vm2235, %v2449, 0
    %2461 = vmatprep.subr.mxu0 0.0
    %2462 = vmatpush1.msra.mxu0 0.0
    %2463 = vmatprep.subr.mxu0 0.0
    %2464 = vmatpush1.msra.mxu0 0.0
    %2465 = vmatprep.subr.mxu0 0.0
    %2466 = vmatpush1.msra.mxu0 0.0
    %2467 = vmatprep.subr.mxu0 0.0
    %2468 = vmatpush1.msra.mxu0 0.0
    %2469 = vmatprep.subr.mxu0 0.0
    %2470 = vmatpush1.msra.mxu0 0.0
    %2471 = vmatprep.subr.mxu0 0.0
    %2472 = vmatpush1.msra.mxu0 0.0
    %2473 = vmatprep.subr.mxu0 0.0
    %2474 = vmatpush1.msra.mxu0 0.0
    %2475 = vmatprep.subr.mxu0 0.0
    %2476 = vmatpush1.msra.mxu0 0.0
    %2477 = vmatprep.subr.mxu0 0.0
    %2478 = vmatpush1.msra.mxu0 0.0
    %2479 = vmatprep.subr.mxu0 0.0
    %2480 = vmatpush1.msra.mxu0 0.0
    %2481 = vmatprep.subr.mxu0 0.0
    %2482 = vmatpush1.msra.mxu0 0.0
    %2483 = vmatprep.subr.mxu0 0.0
    %2484 = vmatpush1.msra.mxu0 0.0
    %2485 = vmatprep.subr.mxu0 0.0
    %2486 = vmatpush1.msra.mxu0 0.0
    %2487 = vmatprep.subr.mxu0 0.0
    %2488 = vmatpush1.msra.mxu0 0.0
    %2489 = vmatprep.subr.mxu0 0.0
    %2490 = vmatpush1.msra.mxu0 0.0
    %2491 = vmatprep.subr.mxu0 %v2459
    %2492 = vmatpush1.msra.mxu0 %v2456
    %2493 = vmatprep.subr.mxu0 0.0
    %2494 = vmatpush2.msra.mxu0 0.0
    %2495 = vmatprep.subr.mxu0 0.0
    %2496 = vmatpush2.msra.mxu0 0.0
    %2497 = vmatprep.subr.mxu0 0.0
    %2498 = vmatpush2.msra.mxu0 0.0
    %2499 = vmatprep.subr.mxu0 0.0
    %2500 = vmatpush2.msra.mxu0 0.0
    %2501 = vmatprep.subr.mxu0 0.0
    %2502 = vmatpush2.msra.mxu0 0.0
    %2503 = vmatprep.subr.mxu0 0.0
    %2504 = vmatpush2.msra.mxu0 0.0
    %2505 = vmatprep.subr.mxu0 0.0
    %2506 = vmatpush2.msra.mxu0 0.0
    %2507 = vmatprep.subr.mxu0 0.0
    %2508 = vmatpush2.msra.mxu0 0.0
    %2509 = vmatprep.subr.mxu0 0.0
    %2510 = vmatpush2.msra.mxu0 0.0
    %2511 = vmatprep.subr.mxu0 0.0
    %2512 = vmatpush2.msra.mxu0 0.0
    %2513 = vmatprep.subr.mxu0 0.0
    %2514 = vmatpush2.msra.mxu0 0.0
    %2515 = vmatprep.subr.mxu0 0.0
    %2516 = vmatpush2.msra.mxu0 0.0
    %2517 = vmatprep.subr.mxu0 0.0
    %2518 = vmatpush2.msra.mxu0 0.0
    %2519 = vmatprep.subr.mxu0 0.0
    %2520 = vmatpush2.msra.mxu0 0.0
    %2521 = vmatprep.subr.mxu0 0.0
    %2522 = vmatpush2.msra.mxu0 0.0
    %2523 = vmatprep.subr.mxu0 0.0
    %2524 = vmatpush2.msra.mxu0 0.0
    %2525 = vmatprep.mubr.f32.mxu0 0.0
    %2526 = vmatmul.mubr.f32.gmra.mxu0 %v2453
    %v2527 = vpop.f32.mrf.mxu0
    %v2528 = vadd.f32 0.0, %v2527
    %v2529 = vpop.f32.mrf.mxu0
    %v2530 = vadd.f32 0.0, %v2529
    %2531 = vdwg.mxu0
    %v2532 = vadd.f32 %v2421, %v2528
    %v2533 = vadd.f32 %v2422, %v2530
    %vm2534 = vcmp.ge.s32.totalorder %v2185, 0
    %vm2535 = vcmp.ge.s32.totalorder %v2186, 0
    %vm2536 = vcmp.lt.s32.totalorder %v2185, 16
    %vm2537 = vcmp.lt.s32.totalorder %v2186, 16
    %vm2538 = vmand %vm2534, %vm2536
    %vm2539 = vmand %vm2535, %vm2537
    %vm2540 = vmand %vm2538, %vm2202
    %vm2541 = vmand %vm2539, %vm2203
    %vm2542 = vmand %vm2540, %vm2206
    %vm2543 = vmand %vm2541, %vm2207
    %v2544 = vsel %vm2542, 1, 0
    %v2545 = vsel %vm2543, 1, 0
    %vm2546 = vcmp.eq.s32.totalorder %v2544, 1
    %vm2547 = vcmp.eq.s32.totalorder %v2545, 1
    %2548 = vrot.lane.b32.xlu0 %v2189, 1
    %v2549 = vpop.permute.xlu0 %2548
    %2550 = vrot.lane.b32.xlu0 %v2190, 1
    %v2551 = vpop.permute.xlu0 %2550
    %2552 = vrot.lane.b32.xlu0 %v2191, 1
    %v2553 = vpop.permute.xlu0 %2552
    %v2554 = vsel %vm624, %v2549, %v2551
    %v2555 = vsel %vm624, %v2551, %v2553
    %v2558 = vsel %vm2546, %v2554, 0.0
    %v2559 = vsel %vm2547, %v2555, 0.0
    %s2560 = scalar_lea.vmem [#allocation8], 24
    %v2561 = vld [vmem:[%s2560] sm:$0xff]
    %v2563 = vsel %vm2231, %v2561, 0
    %v2566 = vsel %vm2235, %v2558, 0
    %v2569 = vsel %vm2235, %v2559, 0
    %2571 = vmatprep.subr.mxu0 0.0
    %2572 = vmatpush1.msra.mxu0 0.0
    %2573 = vmatprep.subr.mxu0 0.0
    %2574 = vmatpush1.msra.mxu0 0.0
    %2575 = vmatprep.subr.mxu0 0.0
    %2576 = vmatpush1.msra.mxu0 0.0
    %2577 = vmatprep.subr.mxu0 0.0
    %2578 = vmatpush1.msra.mxu0 0.0
    %2579 = vmatprep.subr.mxu0 0.0
    %2580 = vmatpush1.msra.mxu0 0.0
    %2581 = vmatprep.subr.mxu0 0.0
    %2582 = vmatpush1.msra.mxu0 0.0
    %2583 = vmatprep.subr.mxu0 0.0
    %2584 = vmatpush1.msra.mxu0 0.0
    %2585 = vmatprep.subr.mxu0 0.0
    %2586 = vmatpush1.msra.mxu0 0.0
    %2587 = vmatprep.subr.mxu0 0.0
    %2588 = vmatpush1.msra.mxu0 0.0
    %2589 = vmatprep.subr.mxu0 0.0
    %2590 = vmatpush1.msra.mxu0 0.0
    %2591 = vmatprep.subr.mxu0 0.0
    %2592 = vmatpush1.msra.mxu0 0.0
    %2593 = vmatprep.subr.mxu0 0.0
    %2594 = vmatpush1.msra.mxu0 0.0
    %2595 = vmatprep.subr.mxu0 0.0
    %2596 = vmatpush1.msra.mxu0 0.0
    %2597 = vmatprep.subr.mxu0 0.0
    %2598 = vmatpush1.msra.mxu0 0.0
    %2599 = vmatprep.subr.mxu0 0.0
    %2600 = vmatpush1.msra.mxu0 0.0
    %2601 = vmatprep.subr.mxu0 %v2569
    %2602 = vmatpush1.msra.mxu0 %v2566
    %2603 = vmatprep.subr.mxu0 0.0
    %2604 = vmatpush2.msra.mxu0 0.0
    %2605 = vmatprep.subr.mxu0 0.0
    %2606 = vmatpush2.msra.mxu0 0.0
    %2607 = vmatprep.subr.mxu0 0.0
    %2608 = vmatpush2.msra.mxu0 0.0
    %2609 = vmatprep.subr.mxu0 0.0
    %2610 = vmatpush2.msra.mxu0 0.0
    %2611 = vmatprep.subr.mxu0 0.0
    %2612 = vmatpush2.msra.mxu0 0.0
    %2613 = vmatprep.subr.mxu0 0.0
    %2614 = vmatpush2.msra.mxu0 0.0
    %2615 = vmatprep.subr.mxu0 0.0
    %2616 = vmatpush2.msra.mxu0 0.0
    %2617 = vmatprep.subr.mxu0 0.0
    %2618 = vmatpush2.msra.mxu0 0.0
    %2619 = vmatprep.subr.mxu0 0.0
    %2620 = vmatpush2.msra.mxu0 0.0
    %2621 = vmatprep.subr.mxu0 0.0
    %2622 = vmatpush2.msra.mxu0 0.0
    %2623 = vmatprep.subr.mxu0 0.0
    %2624 = vmatpush2.msra.mxu0 0.0
    %2625 = vmatprep.subr.mxu0 0.0
    %2626 = vmatpush2.msra.mxu0 0.0
    %2627 = vmatprep.subr.mxu0 0.0
    %2628 = vmatpush2.msra.mxu0 0.0
    %2629 = vmatprep.subr.mxu0 0.0
    %2630 = vmatpush2.msra.mxu0 0.0
    %2631 = vmatprep.subr.mxu0 0.0
    %2632 = vmatpush2.msra.mxu0 0.0
    %2633 = vmatprep.subr.mxu0 0.0
    %2634 = vmatpush2.msra.mxu0 0.0
    %2635 = vmatprep.mubr.f32.mxu0 0.0
    %2636 = vmatmul.mubr.f32.gmra.mxu0 %v2563
    %v2637 = vpop.f32.mrf.mxu0
    %v2638 = vadd.f32 0.0, %v2637
    %v2639 = vpop.f32.mrf.mxu0
    %v2640 = vadd.f32 0.0, %v2639
    %2641 = vdwg.mxu0
    %v2642 = vadd.f32 %v2532, %v2638
    %v2643 = vadd.f32 %v2533, %v2640
    %s2644 = scalar_lea.vmem [#allocation8], 32
    %v2645 = vld [vmem:[%s2644] sm:$0xff]
    %v2647 = vsel %vm2231, %v2645, 0
    %v2649 = vsel %vm2235, %v2190, 0
    %v2651 = vsel %vm2235, %v2191, 0
    %2653 = vmatprep.subr.mxu0 0.0
    %2654 = vmatpush1.msra.mxu0 0.0
    %2655 = vmatprep.subr.mxu0 0.0
    %2656 = vmatpush1.msra.mxu0 0.0
    %2657 = vmatprep.subr.mxu0 0.0
    %2658 = vmatpush1.msra.mxu0 0.0
    %2659 = vmatprep.subr.mxu0 0.0
    %2660 = vmatpush1.msra.mxu0 0.0
    %2661 = vmatprep.subr.mxu0 0.0
    %2662 = vmatpush1.msra.mxu0 0.0
    %2663 = vmatprep.subr.mxu0 0.0
    %2664 = vmatpush1.msra.mxu0 0.0
    %2665 = vmatprep.subr.mxu0 0.0
    %2666 = vmatpush1.msra.mxu0 0.0
    %2667 = vmatprep.subr.mxu0 0.0
    %2668 = vmatpush1.msra.mxu0 0.0
    %2669 = vmatprep.subr.mxu0 0.0
    %2670 = vmatpush1.msra.mxu0 0.0
    %2671 = vmatprep.subr.mxu0 0.0
    %2672 = vmatpush1.msra.mxu0 0.0
    %2673 = vmatprep.subr.mxu0 0.0
    %2674 = vmatpush1.msra.mxu0 0.0
    %2675 = vmatprep.subr.mxu0 0.0
    %2676 = vmatpush1.msra.mxu0 0.0
    %2677 = vmatprep.subr.mxu0 0.0
    %2678 = vmatpush1.msra.mxu0 0.0
    %2679 = vmatprep.subr.mxu0 0.0
    %2680 = vmatpush1.msra.mxu0 0.0
    %2681 = vmatprep.subr.mxu0 0.0
    %2682 = vmatpush1.msra.mxu0 0.0
    %2683 = vmatprep.subr.mxu0 %v2651
    %2684 = vmatpush1.msra.mxu0 %v2649
    %2685 = vmatprep.subr.mxu0 0.0
    %2686 = vmatpush2.msra.mxu0 0.0
    %2687 = vmatprep.subr.mxu0 0.0
    %2688 = vmatpush2.msra.mxu0 0.0
    %2689 = vmatprep.subr.mxu0 0.0
    %2690 = vmatpush2.msra.mxu0 0.0
    %2691 = vmatprep.subr.mxu0 0.0
    %2692 = vmatpush2.msra.mxu0 0.0
    %2693 = vmatprep.subr.mxu0 0.0
    %2694 = vmatpush2.msra.mxu0 0.0
    %2695 = vmatprep.subr.mxu0 0.0
    %2696 = vmatpush2.msra.mxu0 0.0
    %2697 = vmatprep.subr.mxu0 0.0
    %2698 = vmatpush2.msra.mxu0 0.0
    %2699 = vmatprep.subr.mxu0 0.0
    %2700 = vmatpush2.msra.mxu0 0.0
    %2701 = vmatprep.subr.mxu0 0.0
    %2702 = vmatpush2.msra.mxu0 0.0
    %2703 = vmatprep.subr.mxu0 0.0
    %2704 = vmatpush2.msra.mxu0 0.0
    %2705 = vmatprep.subr.mxu0 0.0
    %2706 = vmatpush2.msra.mxu0 0.0
    %2707 = vmatprep.subr.mxu0 0.0
    %2708 = vmatpush2.msra.mxu0 0.0
    %2709 = vmatprep.subr.mxu0 0.0
    %2710 = vmatpush2.msra.mxu0 0.0
    %2711 = vmatprep.subr.mxu0 0.0
    %2712 = vmatpush2.msra.mxu0 0.0
    %2713 = vmatprep.subr.mxu0 0.0
    %2714 = vmatpush2.msra.mxu0 0.0
    %2715 = vmatprep.subr.mxu0 0.0
    %2716 = vmatpush2.msra.mxu0 0.0
    %2717 = vmatprep.mubr.f32.mxu0 0.0
    %2718 = vmatmul.mubr.f32.gmra.mxu0 %v2647
    %v2719 = vpop.f32.mrf.mxu0
    %v2720 = vadd.f32 0.0, %v2719
    %v2721 = vpop.f32.mrf.mxu0
    %v2722 = vadd.f32 0.0, %v2721
    %2723 = vdwg.mxu0
    %v2724 = vadd.f32 %v2642, %v2720
    %v2725 = vadd.f32 %v2643, %v2722
    %v2726 = vld [vmem:[#allocation4 + $0x8] sm:$0x3f]
    %v2727 = vld [vmem:[#allocation4 + $0x10] sm:$0x3f]
    %v2728 = vld [vmem:[#allocation4 + $0x18] sm:$0x3f]
    %vm2729 = vmand %vm2538, %vm2425
    %vm2730 = vmand %vm2539, %vm2426
    %vm2731 = vmand %vm2729, %vm2429
    %vm2732 = vmand %vm2730, %vm2430
    %v2733 = vsel %vm2731, 1, 0
    %v2734 = vsel %vm2732, 1, 0
    %vm2735 = vcmp.eq.s32.totalorder %v2733, 1
    %vm2736 = vcmp.eq.s32.totalorder %v2734, 1
    %2740 = vrot.lane.b32.xlu0 %v2726, 127
    %v2741 = vpop.permute.xlu0 %2740
    %2742 = vrot.lane.b32.xlu0 %v2727, 127
    %v2743 = vpop.permute.xlu0 %2742
    %2744 = vrot.lane.b32.xlu0 %v2728, 127
    %v2745 = vpop.permute.xlu0 %2744
    %vm2746 = vcmask 1039360
    %v2747 = vsel %vm2746, %v2741, %v2743
    %v2748 = vsel %vm2746, %v2743, %v2745
    %v2751 = vsel %vm2735, %v2747, 0.0
    %v2752 = vsel %vm2736, %v2748, 0.0
    %s2753 = scalar_lea.vmem [#allocation8], 40
    %v2754 = vld [vmem:[%s2753] sm:$0xff]
    %v2756 = vsel %vm2231, %v2754, 0
    %v2759 = vsel %vm2235, %v2751, 0
    %v2762 = vsel %vm2235, %v2752, 0
    %2764 = vmatprep.subr.mxu0 0.0
    %2765 = vmatpush1.msra.mxu0 0.0
    %2766 = vmatprep.subr.mxu0 0.0
    %2767 = vmatpush1.msra.mxu0 0.0
    %2768 = vmatprep.subr.mxu0 0.0
    %2769 = vmatpush1.msra.mxu0 0.0
    %2770 = vmatprep.subr.mxu0 0.0
    %2771 = vmatpush1.msra.mxu0 0.0
    %2772 = vmatprep.subr.mxu0 0.0
    %2773 = vmatpush1.msra.mxu0 0.0
    %2774 = vmatprep.subr.mxu0 0.0
    %2775 = vmatpush1.msra.mxu0 0.0
    %2776 = vmatprep.subr.mxu0 0.0
    %2777 = vmatpush1.msra.mxu0 0.0
    %2778 = vmatprep.subr.mxu0 0.0
    %2779 = vmatpush1.msra.mxu0 0.0
    %2780 = vmatprep.subr.mxu0 0.0
    %2781 = vmatpush1.msra.mxu0 0.0
    %2782 = vmatprep.subr.mxu0 0.0
    %2783 = vmatpush1.msra.mxu0 0.0
    %2784 = vmatprep.subr.mxu0 0.0
    %2785 = vmatpush1.msra.mxu0 0.0
    %2786 = vmatprep.subr.mxu0 0.0
    %2787 = vmatpush1.msra.mxu0 0.0
    %2788 = vmatprep.subr.mxu0 0.0
    %2789 = vmatpush1.msra.mxu0 0.0
    %2790 = vmatprep.subr.mxu0 0.0
    %2791 = vmatpush1.msra.mxu0 0.0
    %2792 = vmatprep.subr.mxu0 0.0
    %2793 = vmatpush1.msra.mxu0 0.0
    %2794 = vmatprep.subr.mxu0 %v2762
    %2795 = vmatpush1.msra.mxu0 %v2759
    %2796 = vmatprep.subr.mxu0 0.0
    %2797 = vmatpush2.msra.mxu0 0.0
    %2798 = vmatprep.subr.mxu0 0.0
    %2799 = vmatpush2.msra.mxu0 0.0
    %2800 = vmatprep.subr.mxu0 0.0
    %2801 = vmatpush2.msra.mxu0 0.0
    %2802 = vmatprep.subr.mxu0 0.0
    %2803 = vmatpush2.msra.mxu0 0.0
    %2804 = vmatprep.subr.mxu0 0.0
    %2805 = vmatpush2.msra.mxu0 0.0
    %2806 = vmatprep.subr.mxu0 0.0
    %2807 = vmatpush2.msra.mxu0 0.0
    %2808 = vmatprep.subr.mxu0 0.0
    %2809 = vmatpush2.msra.mxu0 0.0
    %2810 = vmatprep.subr.mxu0 0.0
    %2811 = vmatpush2.msra.mxu0 0.0
    %2812 = vmatprep.subr.mxu0 0.0
    %2813 = vmatpush2.msra.mxu0 0.0
    %2814 = vmatprep.subr.mxu0 0.0
    %2815 = vmatpush2.msra.mxu0 0.0
    %2816 = vmatprep.subr.mxu0 0.0
    %2817 = vmatpush2.msra.mxu0 0.0
    %2818 = vmatprep.subr.mxu0 0.0
    %2819 = vmatpush2.msra.mxu0 0.0
    %2820 = vmatprep.subr.mxu0 0.0
    %2821 = vmatpush2.msra.mxu0 0.0
    %2822 = vmatprep.subr.mxu0 0.0
    %2823 = vmatpush2.msra.mxu0 0.0
    %2824 = vmatprep.subr.mxu0 0.0
    %2825 = vmatpush2.msra.mxu0 0.0
    %2826 = vmatprep.subr.mxu0 0.0
    %2827 = vmatpush2.msra.mxu0 0.0
    %2828 = vmatprep.mubr.f32.mxu0 0.0
    %2829 = vmatmul.mubr.f32.gmra.mxu0 %v2756
    %v2830 = vpop.f32.mrf.mxu0
    %v2831 = vadd.f32 0.0, %v2830
    %v2832 = vpop.f32.mrf.mxu0
    %v2833 = vadd.f32 0.0, %v2832
    %2834 = vdwg.mxu0
    %v2835 = vadd.f32 %v2724, %v2831
    %v2836 = vadd.f32 %v2725, %v2833
    %v2837 = vadd.s32 %v2185, 1
    %v2838 = vadd.s32 %v2186, 1
    %vm2839 = vcmp.ge.s32.totalorder %v2837, 0
    %vm2840 = vcmp.ge.s32.totalorder %v2838, 0
    %vm2841 = vcmp.lt.s32.totalorder %v2837, 16
    %vm2842 = vcmp.lt.s32.totalorder %v2838, 16
    %vm2843 = vmand %vm2839, %vm2841
    %vm2844 = vmand %vm2840, %vm2842
    %vm2845 = vmand %vm2843, %vm2202
    %vm2846 = vmand %vm2844, %vm2203
    %vm2847 = vmand %vm2845, %vm2206
    %vm2848 = vmand %vm2846, %vm2207
    %v2849 = vsel %vm2847, 1, 0
    %v2850 = vsel %vm2848, 1, 0
    %vm2851 = vcmp.eq.s32.totalorder %v2849, 1
    %vm2852 = vcmp.eq.s32.totalorder %v2850, 1
    %2853 = vrot.lane.b32.xlu0 %v2726, 113
    %v2854 = vpop.permute.xlu0 %2853
    %2855 = vrot.lane.b32.xlu0 %v2727, 113
    %v2856 = vpop.permute.xlu0 %2855
    %2857 = vrot.lane.b32.xlu0 %v2728, 113
    %v2858 = vpop.permute.xlu0 %2857
    %vm2859 = vcmask 924672
    %v2860 = vsel %vm2859, %v2854, %v2856
    %v2861 = vsel %vm2859, %v2856, %v2858
    %v2864 = vsel %vm2851, %v2860, 0.0
    %v2865 = vsel %vm2852, %v2861, 0.0
    %s2866 = scalar_lea.vmem [#allocation8], 48
    %v2867 = vld [vmem:[%s2866] sm:$0xff]
    %v2869 = vsel %vm2231, %v2867, 0
    %v2872 = vsel %vm2235, %v2864, 0
    %v2875 = vsel %vm2235, %v2865, 0
    %2877 = vmatprep.subr.mxu0 0.0
    %2878 = vmatpush1.msra.mxu0 0.0
    %2879 = vmatprep.subr.mxu0 0.0
    %2880 = vmatpush1.msra.mxu0 0.0
    %2881 = vmatprep.subr.mxu0 0.0
    %2882 = vmatpush1.msra.mxu0 0.0
    %2883 = vmatprep.subr.mxu0 0.0
    %2884 = vmatpush1.msra.mxu0 0.0
    %2885 = vmatprep.subr.mxu0 0.0
    %2886 = vmatpush1.msra.mxu0 0.0
    %2887 = vmatprep.subr.mxu0 0.0
    %2888 = vmatpush1.msra.mxu0 0.0
    %2889 = vmatprep.subr.mxu0 0.0
    %2890 = vmatpush1.msra.mxu0 0.0
    %2891 = vmatprep.subr.mxu0 0.0
    %2892 = vmatpush1.msra.mxu0 0.0
    %2893 = vmatprep.subr.mxu0 0.0
    %2894 = vmatpush1.msra.mxu0 0.0
    %2895 = vmatprep.subr.mxu0 0.0
    %2896 = vmatpush1.msra.mxu0 0.0
    %2897 = vmatprep.subr.mxu0 0.0
    %2898 = vmatpush1.msra.mxu0 0.0
    %2899 = vmatprep.subr.mxu0 0.0
    %2900 = vmatpush1.msra.mxu0 0.0
    %2901 = vmatprep.subr.mxu0 0.0
    %2902 = vmatpush1.msra.mxu0 0.0
    %2903 = vmatprep.subr.mxu0 0.0
    %2904 = vmatpush1.msra.mxu0 0.0
    %2905 = vmatprep.subr.mxu0 0.0
    %2906 = vmatpush1.msra.mxu0 0.0
    %2907 = vmatprep.subr.mxu0 %v2875
    %2908 = vmatpush1.msra.mxu0 %v2872
    %2909 = vmatprep.subr.mxu0 0.0
    %2910 = vmatpush2.msra.mxu0 0.0
    %2911 = vmatprep.subr.mxu0 0.0
    %2912 = vmatpush2.msra.mxu0 0.0
    %2913 = vmatprep.subr.mxu0 0.0
    %2914 = vmatpush2.msra.mxu0 0.0
    %2915 = vmatprep.subr.mxu0 0.0
    %2916 = vmatpush2.msra.mxu0 0.0
    %2917 = vmatprep.subr.mxu0 0.0
    %2918 = vmatpush2.msra.mxu0 0.0
    %2919 = vmatprep.subr.mxu0 0.0
    %2920 = vmatpush2.msra.mxu0 0.0
    %2921 = vmatprep.subr.mxu0 0.0
    %2922 = vmatpush2.msra.mxu0 0.0
    %2923 = vmatprep.subr.mxu0 0.0
    %2924 = vmatpush2.msra.mxu0 0.0
    %2925 = vmatprep.subr.mxu0 0.0
    %2926 = vmatpush2.msra.mxu0 0.0
    %2927 = vmatprep.subr.mxu0 0.0
    %2928 = vmatpush2.msra.mxu0 0.0
    %2929 = vmatprep.subr.mxu0 0.0
    %2930 = vmatpush2.msra.mxu0 0.0
    %2931 = vmatprep.subr.mxu0 0.0
    %2932 = vmatpush2.msra.mxu0 0.0
    %2933 = vmatprep.subr.mxu0 0.0
    %2934 = vmatpush2.msra.mxu0 0.0
    %2935 = vmatprep.subr.mxu0 0.0
    %2936 = vmatpush2.msra.mxu0 0.0
    %2937 = vmatprep.subr.mxu0 0.0
    %2938 = vmatpush2.msra.mxu0 0.0
    %2939 = vmatprep.subr.mxu0 0.0
    %2940 = vmatpush2.msra.mxu0 0.0
    %2941 = vmatprep.mubr.f32.mxu0 0.0
    %2942 = vmatmul.mubr.f32.gmra.mxu0 %v2869
    %v2943 = vpop.f32.mrf.mxu0
    %v2944 = vadd.f32 0.0, %v2943
    %v2945 = vpop.f32.mrf.mxu0
    %v2946 = vadd.f32 0.0, %v2945
    %2947 = vdwg.mxu0
    %v2948 = vadd.f32 %v2835, %v2944
    %v2949 = vadd.f32 %v2836, %v2946
    %vm2950 = vmand %vm2843, %vm2315
    %vm2951 = vmand %vm2844, %vm2316
    %vm2952 = vmand %vm2950, %vm2319
    %vm2953 = vmand %vm2951, %vm2320
    %v2954 = vsel %vm2952, 1, 0
    %v2955 = vsel %vm2953, 1, 0
    %vm2956 = vcmp.eq.s32.totalorder %v2954, 1
    %vm2957 = vcmp.eq.s32.totalorder %v2955, 1
    %2958 = vrot.lane.b32.xlu0 %v2726, 112
    %v2959 = vpop.permute.xlu0 %2958
    %2960 = vrot.lane.b32.xlu0 %v2727, 112
    %v2961 = vpop.permute.xlu0 %2960
    %2962 = vrot.lane.b32.xlu0 %v2728, 112
    %v2963 = vpop.permute.xlu0 %2962
    %vm2964 = vcmask 916480
    %v2965 = vsel %vm2964, %v2959, %v2961
    %v2966 = vsel %vm2964, %v2961, %v2963
    %v2969 = vsel %vm2956, %v2965, 0.0
    %v2970 = vsel %vm2957, %v2966, 0.0
    %s2971 = scalar_lea.vmem [#allocation8], 56
    %v2972 = vld [vmem:[%s2971] sm:$0xff]
    %v2974 = vsel %vm2231, %v2972, 0
    %v2977 = vsel %vm2235, %v2969, 0
    %v2980 = vsel %vm2235, %v2970, 0
    %2982 = vmatprep.subr.mxu0 0.0
    %2983 = vmatpush1.msra.mxu0 0.0
    %2984 = vmatprep.subr.mxu0 0.0
    %2985 = vmatpush1.msra.mxu0 0.0
    %2986 = vmatprep.subr.mxu0 0.0
    %2987 = vmatpush1.msra.mxu0 0.0
    %2988 = vmatprep.subr.mxu0 0.0
    %2989 = vmatpush1.msra.mxu0 0.0
    %2990 = vmatprep.subr.mxu0 0.0
    %2991 = vmatpush1.msra.mxu0 0.0
    %2992 = vmatprep.subr.mxu0 0.0
    %2993 = vmatpush1.msra.mxu0 0.0
    %2994 = vmatprep.subr.mxu0 0.0
    %2995 = vmatpush1.msra.mxu0 0.0
    %2996 = vmatprep.subr.mxu0 0.0
    %2997 = vmatpush1.msra.mxu0 0.0
    %2998 = vmatprep.subr.mxu0 0.0
    %2999 = vmatpush1.msra.mxu0 0.0
    %3000 = vmatprep.subr.mxu0 0.0
    %3001 = vmatpush1.msra.mxu0 0.0
    %3002 = vmatprep.subr.mxu0 0.0
    %3003 = vmatpush1.msra.mxu0 0.0
    %3004 = vmatprep.subr.mxu0 0.0
    %3005 = vmatpush1.msra.mxu0 0.0
    %3006 = vmatprep.subr.mxu0 0.0
    %3007 = vmatpush1.msra.mxu0 0.0
    %3008 = vmatprep.subr.mxu0 0.0
    %3009 = vmatpush1.msra.mxu0 0.0
    %3010 = vmatprep.subr.mxu0 0.0
    %3011 = vmatpush1.msra.mxu0 0.0
    %3012 = vmatprep.subr.mxu0 %v2980
    %3013 = vmatpush1.msra.mxu0 %v2977
    %3014 = vmatprep.subr.mxu0 0.0
    %3015 = vmatpush2.msra.mxu0 0.0
    %3016 = vmatprep.subr.mxu0 0.0
    %3017 = vmatpush2.msra.mxu0 0.0
    %3018 = vmatprep.subr.mxu0 0.0
    %3019 = vmatpush2.msra.mxu0 0.0
    %3020 = vmatprep.subr.mxu0 0.0
    %3021 = vmatpush2.msra.mxu0 0.0
    %3022 = vmatprep.subr.mxu0 0.0
    %3023 = vmatpush2.msra.mxu0 0.0
    %3024 = vmatprep.subr.mxu0 0.0
    %3025 = vmatpush2.msra.mxu0 0.0
    %3026 = vmatprep.subr.mxu0 0.0
    %3027 = vmatpush2.msra.mxu0 0.0
    %3028 = vmatprep.subr.mxu0 0.0
    %3029 = vmatpush2.msra.mxu0 0.0
    %3030 = vmatprep.subr.mxu0 0.0
    %3031 = vmatpush2.msra.mxu0 0.0
    %3032 = vmatprep.subr.mxu0 0.0
    %3033 = vmatpush2.msra.mxu0 0.0
    %3034 = vmatprep.subr.mxu0 0.0
    %3035 = vmatpush2.msra.mxu0 0.0
    %3036 = vmatprep.subr.mxu0 0.0
    %3037 = vmatpush2.msra.mxu0 0.0
    %3038 = vmatprep.subr.mxu0 0.0
    %3039 = vmatpush2.msra.mxu0 0.0
    %3040 = vmatprep.subr.mxu0 0.0
    %3041 = vmatpush2.msra.mxu0 0.0
    %3042 = vmatprep.subr.mxu0 0.0
    %3043 = vmatpush2.msra.mxu0 0.0
    %3044 = vmatprep.subr.mxu0 0.0
    %3045 = vmatpush2.msra.mxu0 0.0
    %3046 = vmatprep.mubr.f32.mxu0 0.0
    %3047 = vmatmul.mubr.f32.gmra.mxu0 %v2974
    %v3048 = vpop.f32.mrf.mxu0
    %v3049 = vadd.f32 0.0, %v3048
    %v3050 = vpop.f32.mrf.mxu0
    %v3051 = vadd.f32 0.0, %v3050
    %3052 = vdwg.mxu0
    %v3053 = vadd.f32 %v2948, %v3049
    %v3054 = vadd.f32 %v2949, %v3051
    %vm3055 = vmand %vm2843, %vm2425
    %vm3056 = vmand %vm2844, %vm2426
    %vm3057 = vmand %vm3055, %vm2429
    %vm3058 = vmand %vm3056, %vm2430
    %v3059 = vsel %vm3057, 1, 0
    %v3060 = vsel %vm3058, 1, 0
    %vm3061 = vcmp.eq.s32.totalorder %v3059, 1
    %vm3062 = vcmp.eq.s32.totalorder %v3060, 1
    %3063 = vrot.lane.b32.xlu0 %v2726, 111
    %v3064 = vpop.permute.xlu0 %3063
    %3065 = vrot.lane.b32.xlu0 %v2727, 111
    %v3066 = vpop.permute.xlu0 %3065
    %3067 = vrot.lane.b32.xlu0 %v2728, 111
    %v3068 = vpop.permute.xlu0 %3067
    %vm3069 = vcmask 908288
    %v3070 = vsel %vm3069, %v3064, %v3066
    %v3071 = vsel %vm3069, %v3066, %v3068
    %v3074 = vsel %vm3061, %v3070, 0.0
    %v3075 = vsel %vm3062, %v3071, 0.0
    %s3076 = scalar_lea.vmem [#allocation8], 64
    %v3077 = vld [vmem:[%s3076] sm:$0xff]
    %v3079 = vsel %vm2231, %v3077, 0
    %v3082 = vsel %vm2235, %v3074, 0
    %v3085 = vsel %vm2235, %v3075, 0
    %3087 = vmatprep.subr.mxu0 0.0
    %3088 = vmatpush1.msra.mxu0 0.0
    %3089 = vmatprep.subr.mxu0 0.0
    %3090 = vmatpush1.msra.mxu0 0.0
    %3091 = vmatprep.subr.mxu0 0.0
    %3092 = vmatpush1.msra.mxu0 0.0
    %3093 = vmatprep.subr.mxu0 0.0
    %3094 = vmatpush1.msra.mxu0 0.0
    %3095 = vmatprep.subr.mxu0 0.0
    %3096 = vmatpush1.msra.mxu0 0.0
    %3097 = vmatprep.subr.mxu0 0.0
    %3098 = vmatpush1.msra.mxu0 0.0
    %3099 = vmatprep.subr.mxu0 0.0
    %3100 = vmatpush1.msra.mxu0 0.0
    %3101 = vmatprep.subr.mxu0 0.0
    %3102 = vmatpush1.msra.mxu0 0.0
    %3103 = vmatprep.subr.mxu0 0.0
    %3104 = vmatpush1.msra.mxu0 0.0
    %3105 = vmatprep.subr.mxu0 0.0
    %3106 = vmatpush1.msra.mxu0 0.0
    %3107 = vmatprep.subr.mxu0 0.0
    %3108 = vmatpush1.msra.mxu0 0.0
    %3109 = vmatprep.subr.mxu0 0.0
    %3110 = vmatpush1.msra.mxu0 0.0
    %3111 = vmatprep.subr.mxu0 0.0
    %3112 = vmatpush1.msra.mxu0 0.0
    %3113 = vmatprep.subr.mxu0 0.0
    %3114 = vmatpush1.msra.mxu0 0.0
    %3115 = vmatprep.subr.mxu0 0.0
    %3116 = vmatpush1.msra.mxu0 0.0
    %3117 = vmatprep.subr.mxu0 %v3085
    %3118 = vmatpush1.msra.mxu0 %v3082
    %3119 = vmatprep.subr.mxu0 0.0
    %3120 = vmatpush2.msra.mxu0 0.0
    %3121 = vmatprep.subr.mxu0 0.0
    %3122 = vmatpush2.msra.mxu0 0.0
    %3123 = vmatprep.subr.mxu0 0.0
    %3124 = vmatpush2.msra.mxu0 0.0
    %3125 = vmatprep.subr.mxu0 0.0
    %3126 = vmatpush2.msra.mxu0 0.0
    %3127 = vmatprep.subr.mxu0 0.0
    %3128 = vmatpush2.msra.mxu0 0.0
    %3129 = vmatprep.subr.mxu0 0.0
    %3130 = vmatpush2.msra.mxu0 0.0
    %3131 = vmatprep.subr.mxu0 0.0
    %3132 = vmatpush2.msra.mxu0 0.0
    %3133 = vmatprep.subr.mxu0 0.0
    %3134 = vmatpush2.msra.mxu0 0.0
    %3135 = vmatprep.subr.mxu0 0.0
    %3136 = vmatpush2.msra.mxu0 0.0
    %3137 = vmatprep.subr.mxu0 0.0
    %3138 = vmatpush2.msra.mxu0 0.0
    %3139 = vmatprep.subr.mxu0 0.0
    %3140 = vmatpush2.msra.mxu0 0.0
    %3141 = vmatprep.subr.mxu0 0.0
    %3142 = vmatpush2.msra.mxu0 0.0
    %3143 = vmatprep.subr.mxu0 0.0
    %3144 = vmatpush2.msra.mxu0 0.0
    %3145 = vmatprep.subr.mxu0 0.0
    %3146 = vmatpush2.msra.mxu0 0.0
    %3147 = vmatprep.subr.mxu0 0.0
    %3148 = vmatpush2.msra.mxu0 0.0
    %3149 = vmatprep.subr.mxu0 0.0
    %3150 = vmatpush2.msra.mxu0 0.0
    %3151 = vmatprep.mubr.f32.mxu0 0.0
    %3152 = vmatmul.mubr.f32.gmra.mxu0 %v3079
    %v3153 = vpop.f32.mrf.mxu0
    %v3154 = vadd.f32 0.0, %v3153
    %v3155 = vpop.f32.mrf.mxu0
    %v3156 = vadd.f32 0.0, %v3155
    %3157 = vdwg.mxu0
    %v3158 = vadd.f32 %v3053, %v3154
    %v3159 = vadd.f32 %v3054, %v3156
    %v3160 = vmax.f32 %v3158, 0.0
    %v3161 = vmax.f32 %v3159, 0.0
    %v3162 = vld [vmem:[#allocation13] sm:$0xff]
    %v3163 = vld [vmem:[#allocation13 + $0x8] sm:$0xff]
    %v3164 = vld [vmem:[#allocation13 + $0x10] sm:$0xff]
    %v3165 = vld [vmem:[#allocation13 + $0x18] sm:$0xff]
    %v3166 = vld [vmem:[#allocation13 + $0x20] sm:$0xff]
    %v3167 = vld [vmem:[#allocation13 + $0x28] sm:$0xff]
    %v3168 = vld [vmem:[#allocation13 + $0x30] sm:$0xff]
    %v3169 = vld [vmem:[#allocation13 + $0x38] sm:$0xff]
    %v3170 = vld [vmem:[#allocation13 + $0x40] sm:$0xff]
    %v3171 = vld [vmem:[#allocation13 + $0x48] sm:$0xff]
    %v3172 = vld [vmem:[#allocation13 + $0x50] sm:$0xff]
    %v3173 = vld [vmem:[#allocation13 + $0x58] sm:$0xff]
    %v3174 = vld [vmem:[#allocation13 + $0x60] sm:$0xff]
    %v3175 = vld [vmem:[#allocation13 + $0x68] sm:$0xff]
    %v3176 = vld [vmem:[#allocation13 + $0x70] sm:$0xff]
    %v3177 = vld [vmem:[#allocation13 + $0x78] sm:$0xff]
    %v3178 = vld [vmem:[#allocation13 + $0x80] sm:$0xff]
    %v3179 = vld [vmem:[#allocation13 + $0x88] sm:$0xff]
    %v3180 = vld [vmem:[#allocation13 + $0x90] sm:$0xff]
    %v3181 = vld [vmem:[#allocation13 + $0x98] sm:$0xff]
    %v3182 = vld [vmem:[#allocation13 + $0xa0] sm:$0xff]
    %v3183 = vld [vmem:[#allocation13 + $0xa8] sm:$0xff]
    %v3184 = vld [vmem:[#allocation13 + $0xb0] sm:$0xff]
    %v3185 = vld [vmem:[#allocation13 + $0xb8] sm:$0xff]
    %v3186 = vld [vmem:[#allocation13 + $0xc0] sm:$0xff]
    %v3187 = vld [vmem:[#allocation13 + $0xc8] sm:$0xff]
    %v3188 = vld [vmem:[#allocation13 + $0xd0] sm:$0xff]
    %v3189 = vld [vmem:[#allocation13 + $0xd8] sm:$0xff]
    %v3190 = vld [vmem:[#allocation13 + $0xe0] sm:$0xff]
    %v3191 = vld [vmem:[#allocation13 + $0xe8] sm:$0xff]
    %v3192 = vld [vmem:[#allocation13 + $0xf0] sm:$0xff]
    %v3193 = vld [vmem:[#allocation13 + $0xf8] sm:$0xff]
    %v3194 = vld [vmem:[#allocation13 + $0x100] sm:$0xff]
    %v3195 = vld [vmem:[#allocation13 + $0x108] sm:$0xff]
    %v3196 = vld [vmem:[#allocation13 + $0x110] sm:$0xff]
    %v3197 = vld [vmem:[#allocation13 + $0x118] sm:$0xff]
    %v3198 = vld [vmem:[#allocation13 + $0x120] sm:$0xff]
    %v3199 = vld [vmem:[#allocation13 + $0x128] sm:$0xff]
    %v3200 = vld [vmem:[#allocation13 + $0x130] sm:$0xff]
    %v3201 = vld [vmem:[#allocation13 + $0x138] sm:$0xff]
    %v3202 = vld [vmem:[#allocation13 + $0x140] sm:$0xff]
    %v3203 = vld [vmem:[#allocation13 + $0x148] sm:$0xff]
    %v3204 = vld [vmem:[#allocation13 + $0x150] sm:$0xff]
    %v3205 = vld [vmem:[#allocation13 + $0x158] sm:$0xff]
    %v3206 = vld [vmem:[#allocation13 + $0x160] sm:$0xff]
    %v3207 = vld [vmem:[#allocation13 + $0x168] sm:$0xff]
    %v3208 = vld [vmem:[#allocation13 + $0x170] sm:$0xff]
    %v3209 = vld [vmem:[#allocation13 + $0x178] sm:$0xff]
    %v3210 = vld [vmem:[#allocation13 + $0x180] sm:$0xff]
    %v3211 = vld [vmem:[#allocation13 + $0x188] sm:$0xff]
    %v3212 = vld [vmem:[#allocation13 + $0x190] sm:$0xff]
    %v3213 = vld [vmem:[#allocation13 + $0x198] sm:$0xff]
    %v3214 = vld [vmem:[#allocation13 + $0x1a0] sm:$0xff]
    %v3215 = vld [vmem:[#allocation13 + $0x1a8] sm:$0xff]
    %v3216 = vld [vmem:[#allocation13 + $0x1b0] sm:$0xff]
    %v3217 = vld [vmem:[#allocation13 + $0x1b8] sm:$0xff]
    %v3218 = vld [vmem:[#allocation13 + $0x1c0] sm:$0xff]
    %v3219 = vld [vmem:[#allocation13 + $0x1c8] sm:$0xff]
    %v3220 = vld [vmem:[#allocation13 + $0x1d0] sm:$0xff]
    %v3221 = vld [vmem:[#allocation13 + $0x1d8] sm:$0xff]
    %v3222 = vld [vmem:[#allocation13 + $0x1e0] sm:$0xff]
    %v3223 = vld [vmem:[#allocation13 + $0x1e8] sm:$0xff]
    %v3224 = vld [vmem:[#allocation13 + $0x1f0] sm:$0xff]
    %v3225 = vld [vmem:[#allocation13 + $0x1f8] sm:$0xff]
    %v3226 = vld [vmem:[#allocation13 + $0x200] sm:$0xff]
    %v3227 = vld [vmem:[#allocation13 + $0x208] sm:$0xff]
    %v3228 = vld [vmem:[#allocation13 + $0x210] sm:$0xff]
    %v3229 = vld [vmem:[#allocation13 + $0x218] sm:$0xff]
    %v3230 = vld [vmem:[#allocation13 + $0x220] sm:$0xff]
    %v3231 = vld [vmem:[#allocation13 + $0x228] sm:$0xff]
    %v3232 = vld [vmem:[#allocation13 + $0x230] sm:$0xff]
    %v3233 = vld [vmem:[#allocation13 + $0x238] sm:$0xff]
    %v3234 = vld [vmem:[#allocation13 + $0x240] sm:$0xff]
    %v3235 = vld [vmem:[#allocation13 + $0x248] sm:$0xff]
    %v3236 = vld [vmem:[#allocation13 + $0x250] sm:$0xff]
    %v3237 = vld [vmem:[#allocation13 + $0x258] sm:$0xff]
    %v3238 = vld [vmem:[#allocation13 + $0x260] sm:$0xff]
    %v3239 = vld [vmem:[#allocation13 + $0x268] sm:$0xff]
    %v3240 = vld [vmem:[#allocation13 + $0x270] sm:$0xff]
    %v3241 = vld [vmem:[#allocation13 + $0x278] sm:$0xff]
    %v3242 = vld [vmem:[#allocation13 + $0x280] sm:$0xff]
    %v3243 = vld [vmem:[#allocation13 + $0x288] sm:$0xff]
    %v3244 = vld [vmem:[#allocation13 + $0x290] sm:$0xff]
    %v3245 = vld [vmem:[#allocation13 + $0x298] sm:$0xff]
    %v3246 = vld [vmem:[#allocation13 + $0x2a0] sm:$0xff]
    %v3247 = vld [vmem:[#allocation13 + $0x2a8] sm:$0xff]
    %v3248 = vld [vmem:[#allocation13 + $0x2b0] sm:$0xff]
    %v3249 = vld [vmem:[#allocation13 + $0x2b8] sm:$0xff]
    %v3250 = vld [vmem:[#allocation13 + $0x2c0] sm:$0xff]
    %v3251 = vld [vmem:[#allocation13 + $0x2c8] sm:$0xff]
    %v3252 = vld [vmem:[#allocation13 + $0x2d0] sm:$0xff]
    %v3253 = vld [vmem:[#allocation13 + $0x2d8] sm:$0xff]
    %v3254 = vld [vmem:[#allocation13 + $0x2e0] sm:$0xff]
    %v3255 = vld [vmem:[#allocation13 + $0x2e8] sm:$0xff]
    %v3256 = vld [vmem:[#allocation13 + $0x2f0] sm:$0xff]
    %v3257 = vld [vmem:[#allocation13 + $0x2f8] sm:$0xff]
    %v3258 = vld [vmem:[#allocation13 + $0x300] sm:$0xff]
    %v3259 = vld [vmem:[#allocation13 + $0x308] sm:$0xff]
    %v3260 = vld [vmem:[#allocation13 + $0x310] sm:$0xff]
    %v3261 = vld [vmem:[#allocation13 + $0x318] sm:$0xff]
    %v3262 = vld [vmem:[#allocation13 + $0x320] sm:$0xff]
    %v3263 = vld [vmem:[#allocation13 + $0x328] sm:$0xff]
    %v3264 = vld [vmem:[#allocation13 + $0x330] sm:$0xff]
    %v3265 = vld [vmem:[#allocation13 + $0x338] sm:$0xff]
    %v3266 = vld [vmem:[#allocation13 + $0x340] sm:$0xff]
    %v3267 = vld [vmem:[#allocation13 + $0x348] sm:$0xff]
    %v3268 = vld [vmem:[#allocation13 + $0x350] sm:$0xff]
    %v3269 = vld [vmem:[#allocation13 + $0x358] sm:$0xff]
    %v3270 = vld [vmem:[#allocation13 + $0x360] sm:$0xff]
    %v3271 = vld [vmem:[#allocation13 + $0x368] sm:$0xff]
    %v3272 = vld [vmem:[#allocation13 + $0x370] sm:$0xff]
    %v3273 = vld [vmem:[#allocation13 + $0x378] sm:$0xff]
    %v3274 = vld [vmem:[#allocation13 + $0x380] sm:$0xff]
    %v3275 = vld [vmem:[#allocation13 + $0x388] sm:$0xff]
    %v3276 = vld [vmem:[#allocation13 + $0x390] sm:$0xff]
    %v3277 = vld [vmem:[#allocation13 + $0x398] sm:$0xff]
    %v3278 = vld [vmem:[#allocation13 + $0x3a0] sm:$0xff]
    %v3279 = vld [vmem:[#allocation13 + $0x3a8] sm:$0xff]
    %v3280 = vld [vmem:[#allocation13 + $0x3b0] sm:$0xff]
    %v3281 = vld [vmem:[#allocation13 + $0x3b8] sm:$0xff]
    %v3282 = vld [vmem:[#allocation13 + $0x3c0] sm:$0xff]
    %v3283 = vld [vmem:[#allocation13 + $0x3c8] sm:$0xff]
    %v3284 = vld [vmem:[#allocation13 + $0x3d0] sm:$0xff]
    %v3285 = vld [vmem:[#allocation13 + $0x3d8] sm:$0xff]
    %v3286 = vld [vmem:[#allocation13 + $0x3e0] sm:$0xff]
    %v3287 = vld [vmem:[#allocation13 + $0x3e8] sm:$0xff]
    %v3288 = vld [vmem:[#allocation13 + $0x3f0] sm:$0xff]
    %v3289 = vld [vmem:[#allocation13 + $0x3f8] sm:$0xff]
    %v3290 = vld [vmem:[#allocation13 + $0x400] sm:$0xff]
    %v3291 = vld [vmem:[#allocation13 + $0x408] sm:$0xff]
    %v3292 = vld [vmem:[#allocation13 + $0x410] sm:$0xff]
    %v3293 = vld [vmem:[#allocation13 + $0x418] sm:$0xff]
    %v3294 = vld [vmem:[#allocation13 + $0x420] sm:$0xff]
    %v3295 = vld [vmem:[#allocation13 + $0x428] sm:$0xff]
    %v3296 = vld [vmem:[#allocation13 + $0x430] sm:$0xff]
    %v3297 = vld [vmem:[#allocation13 + $0x438] sm:$0xff]
    %v3298 = vld [vmem:[#allocation13 + $0x440] sm:$0xff]
    %v3299 = vld [vmem:[#allocation13 + $0x448] sm:$0xff]
    %v3300 = vld [vmem:[#allocation13 + $0x450] sm:$0xff]
    %v3301 = vld [vmem:[#allocation13 + $0x458] sm:$0xff]
    %v3302 = vld [vmem:[#allocation13 + $0x460] sm:$0xff]
    %v3303 = vld [vmem:[#allocation13 + $0x468] sm:$0xff]
    %v3304 = vld [vmem:[#allocation13 + $0x470] sm:$0xff]
    %v3305 = vld [vmem:[#allocation13 + $0x478] sm:$0xff]
    %v3306 = vld [vmem:[#allocation13 + $0x480] sm:$0xff]
    %v3307 = vld [vmem:[#allocation13 + $0x488] sm:$0xff]
    %v3308 = vld [vmem:[#allocation13 + $0x490] sm:$0xff]
    %v3309 = vld [vmem:[#allocation13 + $0x498] sm:$0xff]
    %v3310 = vld [vmem:[#allocation13 + $0x4a0] sm:$0xff]
    %v3311 = vld [vmem:[#allocation13 + $0x4a8] sm:$0xff]
    %v3312 = vld [vmem:[#allocation13 + $0x4b0] sm:$0xff]
    %v3313 = vld [vmem:[#allocation13 + $0x4b8] sm:$0xff]
    %v3314 = vld [vmem:[#allocation13 + $0x4c0] sm:$0xff]
    %v3315 = vld [vmem:[#allocation13 + $0x4c8] sm:$0xff]
    %v3316 = vld [vmem:[#allocation13 + $0x4d0] sm:$0xff]
    %v3317 = vld [vmem:[#allocation13 + $0x4d8] sm:$0xff]
    %v3318 = vld [vmem:[#allocation13 + $0x4e0] sm:$0xff]
    %v3319 = vld [vmem:[#allocation13 + $0x4e8] sm:$0xff]
    %v3320 = vld [vmem:[#allocation13 + $0x4f0] sm:$0xff]
    %v3321 = vld [vmem:[#allocation13 + $0x4f8] sm:$0xff]
    %v3322 = vld [vmem:[#allocation13 + $0x500] sm:$0xff]
    %v3323 = vld [vmem:[#allocation13 + $0x508] sm:$0xff]
    %v3324 = vld [vmem:[#allocation13 + $0x510] sm:$0xff]
    %v3325 = vld [vmem:[#allocation13 + $0x518] sm:$0xff]
    %v3326 = vld [vmem:[#allocation13 + $0x520] sm:$0xff]
    %v3327 = vld [vmem:[#allocation13 + $0x528] sm:$0xff]
    %v3328 = vld [vmem:[#allocation13 + $0x530] sm:$0xff]
    %v3329 = vld [vmem:[#allocation13 + $0x538] sm:$0xff]
    %v3330 = vld [vmem:[#allocation13 + $0x540] sm:$0xff]
    %v3331 = vld [vmem:[#allocation13 + $0x548] sm:$0xff]
    %v3332 = vld [vmem:[#allocation13 + $0x550] sm:$0xff]
    %v3333 = vld [vmem:[#allocation13 + $0x558] sm:$0xff]
    %v3334 = vld [vmem:[#allocation13 + $0x560] sm:$0xff]
    %v3335 = vld [vmem:[#allocation13 + $0x568] sm:$0xff]
    %v3336 = vld [vmem:[#allocation13 + $0x570] sm:$0xff]
    %v3337 = vld [vmem:[#allocation13 + $0x578] sm:$0xff]
    %v3338 = vld [vmem:[#allocation13 + $0x580] sm:$0xff]
    %v3339 = vld [vmem:[#allocation13 + $0x588] sm:$0xff]
    %v3340 = vld [vmem:[#allocation13 + $0x590] sm:$0xff]
    %v3341 = vld [vmem:[#allocation13 + $0x598] sm:$0xff]
    %v3342 = vld [vmem:[#allocation13 + $0x5a0] sm:$0xff]
    %v3343 = vld [vmem:[#allocation13 + $0x5a8] sm:$0xff]
    %v3344 = vld [vmem:[#allocation13 + $0x5b0] sm:$0xff]
    %v3345 = vld [vmem:[#allocation13 + $0x5b8] sm:$0xff]
    %v3346 = vld [vmem:[#allocation13 + $0x5c0] sm:$0xff]
    %v3347 = vld [vmem:[#allocation13 + $0x5c8] sm:$0xff]
    %v3348 = vld [vmem:[#allocation13 + $0x5d0] sm:$0xff]
    %v3349 = vld [vmem:[#allocation13 + $0x5d8] sm:$0xff]
    %v3350 = vld [vmem:[#allocation13 + $0x5e0] sm:$0xff]
    %v3351 = vld [vmem:[#allocation13 + $0x5e8] sm:$0xff]
    %v3352 = vld [vmem:[#allocation13 + $0x5f0] sm:$0xff]
    %v3353 = vld [vmem:[#allocation13 + $0x5f8] sm:$0xff]
    %v3354 = vld [vmem:[#allocation13 + $0x600] sm:$0xff]
    %v3355 = vld [vmem:[#allocation13 + $0x608] sm:$0xff]
    %v3356 = vld [vmem:[#allocation13 + $0x610] sm:$0xff]
    %v3357 = vld [vmem:[#allocation13 + $0x618] sm:$0xff]
    %v3358 = vld [vmem:[#allocation13 + $0x620] sm:$0xff]
    %v3359 = vld [vmem:[#allocation13 + $0x628] sm:$0xff]
    %v3360 = vld [vmem:[#allocation13 + $0x630] sm:$0xff]
    %v3361 = vld [vmem:[#allocation13 + $0x638] sm:$0xff]
    %v3362 = vld [vmem:[#allocation13 + $0x640] sm:$0xff]
    %v3363 = vld [vmem:[#allocation13 + $0x648] sm:$0xff]
    %v3364 = vld [vmem:[#allocation13 + $0x650] sm:$0xff]
    %v3365 = vld [vmem:[#allocation13 + $0x658] sm:$0xff]
    %v3366 = vld [vmem:[#allocation13 + $0x660] sm:$0xff]
    %v3367 = vld [vmem:[#allocation13 + $0x668] sm:$0xff]
    %v3368 = vld [vmem:[#allocation13 + $0x670] sm:$0xff]
    %v3369 = vld [vmem:[#allocation13 + $0x678] sm:$0xff]
    %v3370 = vld [vmem:[#allocation13 + $0x680] sm:$0xff]
    %v3371 = vld [vmem:[#allocation13 + $0x688] sm:$0xff]
    %v3372 = vld [vmem:[#allocation13 + $0x690] sm:$0xff]
    %v3373 = vld [vmem:[#allocation13 + $0x698] sm:$0xff]
    %v3374 = vld [vmem:[#allocation13 + $0x6a0] sm:$0xff]
    %v3375 = vld [vmem:[#allocation13 + $0x6a8] sm:$0xff]
    %v3376 = vld [vmem:[#allocation13 + $0x6b0] sm:$0xff]
    %v3377 = vld [vmem:[#allocation13 + $0x6b8] sm:$0xff]
    %v3378 = vld [vmem:[#allocation13 + $0x6c0] sm:$0xff]
    %v3379 = vld [vmem:[#allocation13 + $0x6c8] sm:$0xff]
    %v3380 = vld [vmem:[#allocation13 + $0x6d0] sm:$0xff]
    %v3381 = vld [vmem:[#allocation13 + $0x6d8] sm:$0xff]
    %v3382 = vld [vmem:[#allocation13 + $0x6e0] sm:$0xff]
    %v3383 = vld [vmem:[#allocation13 + $0x6e8] sm:$0xff]
    %v3384 = vld [vmem:[#allocation13 + $0x6f0] sm:$0xff]
    %v3385 = vld [vmem:[#allocation13 + $0x6f8] sm:$0xff]
    %v3386 = vld [vmem:[#allocation13 + $0x700] sm:$0xff]
    %v3387 = vld [vmem:[#allocation13 + $0x708] sm:$0xff]
    %v3388 = vld [vmem:[#allocation13 + $0x710] sm:$0xff]
    %v3389 = vld [vmem:[#allocation13 + $0x718] sm:$0xff]
    %v3390 = vld [vmem:[#allocation13 + $0x720] sm:$0xff]
    %v3391 = vld [vmem:[#allocation13 + $0x728] sm:$0xff]
    %v3392 = vld [vmem:[#allocation13 + $0x730] sm:$0xff]
    %v3393 = vld [vmem:[#allocation13 + $0x738] sm:$0xff]
    %v3394 = vld [vmem:[#allocation13 + $0x740] sm:$0xff]
    %v3395 = vld [vmem:[#allocation13 + $0x748] sm:$0xff]
    %v3396 = vld [vmem:[#allocation13 + $0x750] sm:$0xff]
    %v3397 = vld [vmem:[#allocation13 + $0x758] sm:$0xff]
    %v3398 = vld [vmem:[#allocation13 + $0x760] sm:$0xff]
    %v3399 = vld [vmem:[#allocation13 + $0x768] sm:$0xff]
    %v3400 = vld [vmem:[#allocation13 + $0x770] sm:$0xff]
    %v3401 = vld [vmem:[#allocation13 + $0x778] sm:$0xff]
    %v3402 = vld [vmem:[#allocation13 + $0x780] sm:$0xff]
    %v3403 = vld [vmem:[#allocation13 + $0x788] sm:$0xff]
    %v3404 = vld [vmem:[#allocation13 + $0x790] sm:$0xff]
    %v3405 = vld [vmem:[#allocation13 + $0x798] sm:$0xff]
    %v3406 = vld [vmem:[#allocation13 + $0x7a0] sm:$0xff]
    %v3407 = vld [vmem:[#allocation13 + $0x7a8] sm:$0xff]
    %v3408 = vld [vmem:[#allocation13 + $0x7b0] sm:$0xff]
    %v3409 = vld [vmem:[#allocation13 + $0x7b8] sm:$0xff]
    %v3410 = vld [vmem:[#allocation13 + $0x7c0] sm:$0xff]
    %v3411 = vld [vmem:[#allocation13 + $0x7c8] sm:$0xff]
    %v3412 = vld [vmem:[#allocation13 + $0x7d0] sm:$0xff]
    %v3413 = vld [vmem:[#allocation13 + $0x7d8] sm:$0xff]
    %v3414 = vld [vmem:[#allocation13 + $0x7e0] sm:$0xff]
    %v3415 = vld [vmem:[#allocation13 + $0x7e8] sm:$0xff]
    %v3416 = vld [vmem:[#allocation13 + $0x7f0] sm:$0xff]
    %v3417 = vld [vmem:[#allocation13 + $0x7f8] sm:$0xff]
    %3418 = vmatprep.subr.mxu0 %v3283
    %3419 = vmatpush1.msra.mxu0 %v3282
    %3420 = vmatprep.subr.mxu0 %v3275
    %3421 = vmatpush1.msra.mxu0 %v3274
    %3422 = vmatprep.subr.mxu0 %v3267
    %3423 = vmatpush1.msra.mxu0 %v3266
    %3424 = vmatprep.subr.mxu0 %v3259
    %3425 = vmatpush1.msra.mxu0 %v3258
    %3426 = vmatprep.subr.mxu0 %v3251
    %3427 = vmatpush1.msra.mxu0 %v3250
    %3428 = vmatprep.subr.mxu0 %v3243
    %3429 = vmatpush1.msra.mxu0 %v3242
    %3430 = vmatprep.subr.mxu0 %v3235
    %3431 = vmatpush1.msra.mxu0 %v3234
    %3432 = vmatprep.subr.mxu0 %v3227
    %3433 = vmatpush1.msra.mxu0 %v3226
    %3434 = vmatprep.subr.mxu0 %v3219
    %3435 = vmatpush1.msra.mxu0 %v3218
    %3436 = vmatprep.subr.mxu0 %v3211
    %3437 = vmatpush1.msra.mxu0 %v3210
    %3438 = vmatprep.subr.mxu0 %v3203
    %3439 = vmatpush1.msra.mxu0 %v3202
    %3440 = vmatprep.subr.mxu0 %v3195
    %3441 = vmatpush1.msra.mxu0 %v3194
    %3442 = vmatprep.subr.mxu0 %v3187
    %3443 = vmatpush1.msra.mxu0 %v3186
    %3444 = vmatprep.subr.mxu0 %v3179
    %3445 = vmatpush1.msra.mxu0 %v3178
    %3446 = vmatprep.subr.mxu0 %v3171
    %3447 = vmatpush1.msra.mxu0 %v3170
    %3448 = vmatprep.subr.mxu0 %v3163
    %3449 = vmatpush1.msra.mxu0 %v3162
    %3450 = vmatprep.subr.mxu0 %v3411
    %3451 = vmatpush2.msra.mxu0 %v3410
    %3452 = vmatprep.subr.mxu0 %v3403
    %3453 = vmatpush2.msra.mxu0 %v3402
    %3454 = vmatprep.subr.mxu0 %v3395
    %3455 = vmatpush2.msra.mxu0 %v3394
    %3456 = vmatprep.subr.mxu0 %v3387
    %3457 = vmatpush2.msra.mxu0 %v3386
    %3458 = vmatprep.subr.mxu0 %v3379
    %3459 = vmatpush2.msra.mxu0 %v3378
    %3460 = vmatprep.subr.mxu0 %v3371
    %3461 = vmatpush2.msra.mxu0 %v3370
    %3462 = vmatprep.subr.mxu0 %v3363
    %3463 = vmatpush2.msra.mxu0 %v3362
    %3464 = vmatprep.subr.mxu0 %v3355
    %3465 = vmatpush2.msra.mxu0 %v3354
    %3466 = vmatprep.subr.mxu0 %v3347
    %3467 = vmatpush2.msra.mxu0 %v3346
    %3468 = vmatprep.subr.mxu0 %v3339
    %3469 = vmatpush2.msra.mxu0 %v3338
    %3470 = vmatprep.subr.mxu0 %v3331
    %3471 = vmatpush2.msra.mxu0 %v3330
    %3472 = vmatprep.subr.mxu0 %v3323
    %3473 = vmatpush2.msra.mxu0 %v3322
    %3474 = vmatprep.subr.mxu0 %v3315
    %3475 = vmatpush2.msra.mxu0 %v3314
    %3476 = vmatprep.subr.mxu0 %v3307
    %3477 = vmatpush2.msra.mxu0 %v3306
    %3478 = vmatprep.subr.mxu0 %v3299
    %3479 = vmatpush2.msra.mxu0 %v3298
    %3480 = vmatprep.subr.mxu0 %v3291
    %3481 = vmatpush2.msra.mxu0 %v3290
    %3482 = vmatprep.mubr.f32.mxu0 %v3161
    %3483 = vmatmul.mubr.f32.gmra.mxu0 %v3160
    %v3484 = vpop.f32.mrf.mxu0
    %v3485 = vadd.f32 0.0, %v3484
    %v3486 = vpop.f32.mrf.mxu0
    %v3487 = vadd.f32 0.0, %v3486
    %3488 = vdwg.mxu0
    %3489 = vmatprep.subr.mxu0 %v3285
    %3490 = vmatpush1.msra.mxu0 %v3284
    %3491 = vmatprep.subr.mxu0 %v3277
    %3492 = vmatpush1.msra.mxu0 %v3276
    %3493 = vmatprep.subr.mxu0 %v3269
    %3494 = vmatpush1.msra.mxu0 %v3268
    %3495 = vmatprep.subr.mxu0 %v3261
    %3496 = vmatpush1.msra.mxu0 %v3260
    %3497 = vmatprep.subr.mxu0 %v3253
    %3498 = vmatpush1.msra.mxu0 %v3252
    %3499 = vmatprep.subr.mxu0 %v3245
    %3500 = vmatpush1.msra.mxu0 %v3244
    %3501 = vmatprep.subr.mxu0 %v3237
    %3502 = vmatpush1.msra.mxu0 %v3236
    %3503 = vmatprep.subr.mxu0 %v3229
    %3504 = vmatpush1.msra.mxu0 %v3228
    %3505 = vmatprep.subr.mxu0 %v3221
    %3506 = vmatpush1.msra.mxu0 %v3220
    %3507 = vmatprep.subr.mxu0 %v3213
    %3508 = vmatpush1.msra.mxu0 %v3212
    %3509 = vmatprep.subr.mxu0 %v3205
    %3510 = vmatpush1.msra.mxu0 %v3204
    %3511 = vmatprep.subr.mxu0 %v3197
    %3512 = vmatpush1.msra.mxu0 %v3196
    %3513 = vmatprep.subr.mxu0 %v3189
    %3514 = vmatpush1.msra.mxu0 %v3188
    %3515 = vmatprep.subr.mxu0 %v3181
    %3516 = vmatpush1.msra.mxu0 %v3180
    %3517 = vmatprep.subr.mxu0 %v3173
    %3518 = vmatpush1.msra.mxu0 %v3172
    %3519 = vmatprep.subr.mxu0 %v3165
    %3520 = vmatpush1.msra.mxu0 %v3164
    %3521 = vmatprep.subr.mxu0 %v3413
    %3522 = vmatpush2.msra.mxu0 %v3412
    %3523 = vmatprep.subr.mxu0 %v3405
    %3524 = vmatpush2.msra.mxu0 %v3404
    %3525 = vmatprep.subr.mxu0 %v3397
    %3526 = vmatpush2.msra.mxu0 %v3396
    %3527 = vmatprep.subr.mxu0 %v3389
    %3528 = vmatpush2.msra.mxu0 %v3388
    %3529 = vmatprep.subr.mxu0 %v3381
    %3530 = vmatpush2.msra.mxu0 %v3380
    %3531 = vmatprep.subr.mxu0 %v3373
    %3532 = vmatpush2.msra.mxu0 %v3372
    %3533 = vmatprep.subr.mxu0 %v3365
    %3534 = vmatpush2.msra.mxu0 %v3364
    %3535 = vmatprep.subr.mxu0 %v3357
    %3536 = vmatpush2.msra.mxu0 %v3356
    %3537 = vmatprep.subr.mxu0 %v3349
    %3538 = vmatpush2.msra.mxu0 %v3348
    %3539 = vmatprep.subr.mxu0 %v3341
    %3540 = vmatpush2.msra.mxu0 %v3340
    %3541 = vmatprep.subr.mxu0 %v3333
    %3542 = vmatpush2.msra.mxu0 %v3332
    %3543 = vmatprep.subr.mxu0 %v3325
    %3544 = vmatpush2.msra.mxu0 %v3324
    %3545 = vmatprep.subr.mxu0 %v3317
    %3546 = vmatpush2.msra.mxu0 %v3316
    %3547 = vmatprep.subr.mxu0 %v3309
    %3548 = vmatpush2.msra.mxu0 %v3308
    %3549 = vmatprep.subr.mxu0 %v3301
    %3550 = vmatpush2.msra.mxu0 %v3300
    %3551 = vmatprep.subr.mxu0 %v3293
    %3552 = vmatpush2.msra.mxu0 %v3292
    %3553 = vmatprep.mubr.f32.mxu0 %v3161
    %3554 = vmatmul.mubr.f32.gmra.mxu0 %v3160
    %v3555 = vpop.f32.mrf.mxu0
    %v3556 = vadd.f32 0.0, %v3555
    %v3557 = vpop.f32.mrf.mxu0
    %v3558 = vadd.f32 0.0, %v3557
    %3559 = vdwg.mxu0
    %3560 = vmatprep.subr.mxu0 %v3287
    %3561 = vmatpush1.msra.mxu0 %v3286
    %3562 = vmatprep.subr.mxu0 %v3279
    %3563 = vmatpush1.msra.mxu0 %v3278
    %3564 = vmatprep.subr.mxu0 %v3271
    %3565 = vmatpush1.msra.mxu0 %v3270
    %3566 = vmatprep.subr.mxu0 %v3263
    %3567 = vmatpush1.msra.mxu0 %v3262
    %3568 = vmatprep.subr.mxu0 %v3255
    %3569 = vmatpush1.msra.mxu0 %v3254
    %3570 = vmatprep.subr.mxu0 %v3247
    %3571 = vmatpush1.msra.mxu0 %v3246
    %3572 = vmatprep.subr.mxu0 %v3239
    %3573 = vmatpush1.msra.mxu0 %v3238
    %3574 = vmatprep.subr.mxu0 %v3231
    %3575 = vmatpush1.msra.mxu0 %v3230
    %3576 = vmatprep.subr.mxu0 %v3223
    %3577 = vmatpush1.msra.mxu0 %v3222
    %3578 = vmatprep.subr.mxu0 %v3215
    %3579 = vmatpush1.msra.mxu0 %v3214
    %3580 = vmatprep.subr.mxu0 %v3207
    %3581 = vmatpush1.msra.mxu0 %v3206
    %3582 = vmatprep.subr.mxu0 %v3199
    %3583 = vmatpush1.msra.mxu0 %v3198
    %3584 = vmatprep.subr.mxu0 %v3191
    %3585 = vmatpush1.msra.mxu0 %v3190
    %3586 = vmatprep.subr.mxu0 %v3183
    %3587 = vmatpush1.msra.mxu0 %v3182
    %3588 = vmatprep.subr.mxu0 %v3175
    %3589 = vmatpush1.msra.mxu0 %v3174
    %3590 = vmatprep.subr.mxu0 %v3167
    %3591 = vmatpush1.msra.mxu0 %v3166
    %3592 = vmatprep.subr.mxu0 %v3415
    %3593 = vmatpush2.msra.mxu0 %v3414
    %3594 = vmatprep.subr.mxu0 %v3407
    %3595 = vmatpush2.msra.mxu0 %v3406
    %3596 = vmatprep.subr.mxu0 %v3399
    %3597 = vmatpush2.msra.mxu0 %v3398
    %3598 = vmatprep.subr.mxu0 %v3391
    %3599 = vmatpush2.msra.mxu0 %v3390
    %3600 = vmatprep.subr.mxu0 %v3383
    %3601 = vmatpush2.msra.mxu0 %v3382
    %3602 = vmatprep.subr.mxu0 %v3375
    %3603 = vmatpush2.msra.mxu0 %v3374
    %3604 = vmatprep.subr.mxu0 %v3367
    %3605 = vmatpush2.msra.mxu0 %v3366
    %3606 = vmatprep.subr.mxu0 %v3359
    %3607 = vmatpush2.msra.mxu0 %v3358
    %3608 = vmatprep.subr.mxu0 %v3351
    %3609 = vmatpush2.msra.mxu0 %v3350
    %3610 = vmatprep.subr.mxu0 %v3343
    %3611 = vmatpush2.msra.mxu0 %v3342
    %3612 = vmatprep.subr.mxu0 %v3335
    %3613 = vmatpush2.msra.mxu0 %v3334
    %3614 = vmatprep.subr.mxu0 %v3327
    %3615 = vmatpush2.msra.mxu0 %v3326
    %3616 = vmatprep.subr.mxu0 %v3319
    %3617 = vmatpush2.msra.mxu0 %v3318
    %3618 = vmatprep.subr.mxu0 %v3311
    %3619 = vmatpush2.msra.mxu0 %v3310
    %3620 = vmatprep.subr.mxu0 %v3303
    %3621 = vmatpush2.msra.mxu0 %v3302
    %3622 = vmatprep.subr.mxu0 %v3295
    %3623 = vmatpush2.msra.mxu0 %v3294
    %3624 = vmatprep.mubr.f32.mxu0 %v3161
    %3625 = vmatmul.mubr.f32.gmra.mxu0 %v3160
    %v3626 = vpop.f32.mrf.mxu0
    %v3627 = vadd.f32 0.0, %v3626
    %v3628 = vpop.f32.mrf.mxu0
    %v3629 = vadd.f32 0.0, %v3628
    %3630 = vdwg.mxu0
    %3631 = vmatprep.subr.mxu0 %v3289
    %3632 = vmatpush1.msra.mxu0 %v3288
    %3633 = vmatprep.subr.mxu0 %v3281
    %3634 = vmatpush1.msra.mxu0 %v3280
    %3635 = vmatprep.subr.mxu0 %v3273
    %3636 = vmatpush1.msra.mxu0 %v3272
    %3637 = vmatprep.subr.mxu0 %v3265
    %3638 = vmatpush1.msra.mxu0 %v3264
    %3639 = vmatprep.subr.mxu0 %v3257
    %3640 = vmatpush1.msra.mxu0 %v3256
    %3641 = vmatprep.subr.mxu0 %v3249
    %3642 = vmatpush1.msra.mxu0 %v3248
    %3643 = vmatprep.subr.mxu0 %v3241
    %3644 = vmatpush1.msra.mxu0 %v3240
    %3645 = vmatprep.subr.mxu0 %v3233
    %3646 = vmatpush1.msra.mxu0 %v3232
    %3647 = vmatprep.subr.mxu0 %v3225
    %3648 = vmatpush1.msra.mxu0 %v3224
    %3649 = vmatprep.subr.mxu0 %v3217
    %3650 = vmatpush1.msra.mxu0 %v3216
    %3651 = vmatprep.subr.mxu0 %v3209
    %3652 = vmatpush1.msra.mxu0 %v3208
    %3653 = vmatprep.subr.mxu0 %v3201
    %3654 = vmatpush1.msra.mxu0 %v3200
    %3655 = vmatprep.subr.mxu0 %v3193
    %3656 = vmatpush1.msra.mxu0 %v3192
    %3657 = vmatprep.subr.mxu0 %v3185
    %3658 = vmatpush1.msra.mxu0 %v3184
    %3659 = vmatprep.subr.mxu0 %v3177
    %3660 = vmatpush1.msra.mxu0 %v3176
    %3661 = vmatprep.subr.mxu0 %v3169
    %3662 = vmatpush1.msra.mxu0 %v3168
    %3663 = vmatprep.subr.mxu0 %v3417
    %3664 = vmatpush2.msra.mxu0 %v3416
    %3665 = vmatprep.subr.mxu0 %v3409
    %3666 = vmatpush2.msra.mxu0 %v3408
    %3667 = vmatprep.subr.mxu0 %v3401
    %3668 = vmatpush2.msra.mxu0 %v3400
    %3669 = vmatprep.subr.mxu0 %v3393
    %3670 = vmatpush2.msra.mxu0 %v3392
    %3671 = vmatprep.subr.mxu0 %v3385
    %3672 = vmatpush2.msra.mxu0 %v3384
    %3673 = vmatprep.subr.mxu0 %v3377
    %3674 = vmatpush2.msra.mxu0 %v3376
    %3675 = vmatprep.subr.mxu0 %v3369
    %3676 = vmatpush2.msra.mxu0 %v3368
    %3677 = vmatprep.subr.mxu0 %v3361
    %3678 = vmatpush2.msra.mxu0 %v3360
    %3679 = vmatprep.subr.mxu0 %v3353
    %3680 = vmatpush2.msra.mxu0 %v3352
    %3681 = vmatprep.subr.mxu0 %v3345
    %3682 = vmatpush2.msra.mxu0 %v3344
    %3683 = vmatprep.subr.mxu0 %v3337
    %3684 = vmatpush2.msra.mxu0 %v3336
    %3685 = vmatprep.subr.mxu0 %v3329
    %3686 = vmatpush2.msra.mxu0 %v3328
    %3687 = vmatprep.subr.mxu0 %v3321
    %3688 = vmatpush2.msra.mxu0 %v3320
    %3689 = vmatprep.subr.mxu0 %v3313
    %3690 = vmatpush2.msra.mxu0 %v3312
    %3691 = vmatprep.subr.mxu0 %v3305
    %3692 = vmatpush2.msra.mxu0 %v3304
    %3693 = vmatprep.subr.mxu0 %v3297
    %3694 = vmatpush2.msra.mxu0 %v3296
    %3695 = vmatprep.mubr.f32.mxu0 %v3161
    %3696 = vmatmul.mubr.f32.gmra.mxu0 %v3160
    %v3697 = vpop.f32.mrf.mxu0
    %v3698 = vadd.f32 0.0, %v3697
    %v3699 = vpop.f32.mrf.mxu0
    %v3700 = vadd.f32 0.0, %v3699
    %3701 = vdwg.mxu0
    %3702 = vst [vmem:[#allocation5] sm:$0xff] 0.0
    %3703 = vst [vmem:[#allocation5 + $0x8] sm:$0xff] 0.0
    %3704 = vst [vmem:[#allocation5 + $0x10] sm:$0xff] 0.0
    %3705 = vst [vmem:[#allocation5 + $0x18] sm:$0xff] 0.0
    %3706 = vst [vmem:[#allocation5 + $0x20] sm:$0xff] 0.0
    %3707 = vst [vmem:[#allocation5 + $0x28] sm:$0xff] 0.0
    %3708 = vst [vmem:[#allocation5 + $0x30] sm:$0xff] 0.0
    %3709 = vst [vmem:[#allocation5 + $0x38] sm:$0xff] 0.0
    %3710 = vst [vmem:[#allocation5 + $0x40] sm:$0xff] 0.0
    %3711 = vst [vmem:[#allocation5 + $0x48] sm:$0xff] 0.0
    %3712 = vst [vmem:[#allocation5 + $0x8] sm:$0xff] %v3485
    %3713 = vst [vmem:[#allocation5 + $0x10] sm:$0xff] %v3487
    %3714 = vst [vmem:[#allocation5 + $0x18] sm:$0xff] %v3556
    %3715 = vst [vmem:[#allocation5 + $0x20] sm:$0xff] %v3558
    %3716 = vst [vmem:[#allocation5 + $0x28] sm:$0xff] %v3627
    %3717 = vst [vmem:[#allocation5 + $0x30] sm:$0xff] %v3629
    %3718 = vst [vmem:[#allocation5 + $0x38] sm:$0xff] %v3698
    %3719 = vst [vmem:[#allocation5 + $0x40] sm:$0xff] %v3700
    %v3720 = vld [vmem:[%s10] sm:$0xff]
    %v3721 = vld [vmem:[%s10 + $0x8] sm:$0xff]
    %v3722 = vld [vmem:[%s10 + $0x10] sm:$0xff]
    %v3723 = vld [vmem:[%s10 + $0x18] sm:$0xff]
    %v3724 = vld [vmem:[%s10 + $0x20] sm:$0xff]
    %v3725 = vld [vmem:[%s10 + $0x28] sm:$0xff]
    %v3726 = vld [vmem:[%s10 + $0x30] sm:$0xff]
    %v3727 = vld [vmem:[%s10 + $0x38] sm:$0xff]
    %v3728 = vld [vmem:[%s10 + $0x40] sm:$0x1]
    %v3729 = vld [vmem:[%s10 + $0x48] sm:$0x1]
    %v3730 = vld [vmem:[%s10 + $0x50] sm:$0x1]
    %v3731 = vld [vmem:[%s10 + $0x58] sm:$0x1]
    %v3732 = vld [vmem:[%s10 + $0x60] sm:$0x1]
    %v3733 = vld [vmem:[%s10 + $0x68] sm:$0x1]
    %v3734 = vld [vmem:[%s10 + $0x70] sm:$0x1]
    %v3735 = vld [vmem:[%s10 + $0x78] sm:$0x1]
    %v3736 = vadd.s32 %v285, 256
    %v3737 = vadd.s32 %v285, 384
    %v3738 = vadd.s32 %v285, 512
    %v3739 = vadd.s32 %v285, 640
    %v3740 = vadd.s32 %v285, 768
    %v3741 = vadd.s32 %v285, 896
    %v3742 = vshra.s32 %v285, 5
    %v3743 = vshra.s32 %v2184, 5
    %v3744 = vshra.s32 %v3736, 5
    %v3745 = vshra.s32 %v3737, 5
    %v3746 = vshra.s32 %v3738, 5
    %v3747 = vshra.s32 %v3739, 5
    %v3748 = vshra.s32 %v3740, 5
    %v3749 = vshra.s32 %v3741, 5
    %v3750 = vand.u32 %v285, 31
    %v3751 = vand.u32 %v2184, 31
    %v3752 = vand.u32 %v3736, 31
    %v3753 = vand.u32 %v3737, 31
    %v3754 = vand.u32 %v3738, 31
    %v3755 = vand.u32 %v3739, 31
    %v3756 = vand.u32 %v3740, 31
    %v3757 = vand.u32 %v3741, 31
    %v3758 = vld [vmem:[#allocation5] sm:$0xff]
    %v3759 = vld [vmem:[#allocation5 + $0x8] sm:$0xff]
    %v3760 = vld [vmem:[#allocation5 + $0x10] sm:$0xff]
    %v3761 = vld [vmem:[#allocation5 + $0x18] sm:$0xff]
    %v3762 = vld [vmem:[#allocation5 + $0x20] sm:$0xff]
    %v3763 = vld [vmem:[#allocation5 + $0x28] sm:$0xff]
    %v3764 = vld [vmem:[#allocation5 + $0x30] sm:$0xff]
    %v3765 = vld [vmem:[#allocation5 + $0x38] sm:$0xff]
    %v3766 = vld [vmem:[#allocation5 + $0x40] sm:$0xff]
    %v3767 = vadd.s32 %v3742, 4294967295
    %v3768 = vadd.s32 %v3743, 4294967295
    %v3769 = vadd.s32 %v3744, 4294967295
    %v3770 = vadd.s32 %v3745, 4294967295
    %v3771 = vadd.s32 %v3746, 4294967295
    %v3772 = vadd.s32 %v3747, 4294967295
    %v3773 = vadd.s32 %v3748, 4294967295
    %v3774 = vadd.s32 %v3749, 4294967295
    %vm3775 = vcmp.ge.s32.totalorder %v3767, 0
    %vm3776 = vcmp.ge.s32.totalorder %v3768, 0
    %vm3777 = vcmp.ge.s32.totalorder %v3769, 0
    %vm3778 = vcmp.ge.s32.totalorder %v3770, 0
    %vm3779 = vcmp.ge.s32.totalorder %v3771, 0
    %vm3780 = vcmp.ge.s32.totalorder %v3772, 0
    %vm3781 = vcmp.ge.s32.totalorder %v3773, 0
    %vm3782 = vcmp.ge.s32.totalorder %v3774, 0
    %vm3783 = vcmp.lt.s32.totalorder %v3767, 32
    %vm3784 = vcmp.lt.s32.totalorder %v3768, 32
    %vm3785 = vcmp.lt.s32.totalorder %v3769, 32
    %vm3786 = vcmp.lt.s32.totalorder %v3770, 32
    %vm3787 = vcmp.lt.s32.totalorder %v3771, 32
    %vm3788 = vcmp.lt.s32.totalorder %v3772, 32
    %vm3789 = vcmp.lt.s32.totalorder %v3773, 32
    %vm3790 = vcmp.lt.s32.totalorder %v3774, 32
    %vm3791 = vmand %vm3775, %vm3783
    %vm3792 = vmand %vm3776, %vm3784
    %vm3793 = vmand %vm3777, %vm3785
    %vm3794 = vmand %vm3778, %vm3786
    %vm3795 = vmand %vm3779, %vm3787
    %vm3796 = vmand %vm3780, %vm3788
    %vm3797 = vmand %vm3781, %vm3789
    %vm3798 = vmand %vm3782, %vm3790
    %v3799 = vadd.s32 %v3750, 4294967295
    %v3800 = vadd.s32 %v3751, 4294967295
    %v3801 = vadd.s32 %v3752, 4294967295
    %v3802 = vadd.s32 %v3753, 4294967295
    %v3803 = vadd.s32 %v3754, 4294967295
    %v3804 = vadd.s32 %v3755, 4294967295
    %v3805 = vadd.s32 %v3756, 4294967295
    %v3806 = vadd.s32 %v3757, 4294967295
    %vm3807 = vcmp.ge.s32.totalorder %v3799, 0
    %vm3808 = vcmp.ge.s32.totalorder %v3800, 0
    %vm3809 = vcmp.ge.s32.totalorder %v3801, 0
    %vm3810 = vcmp.ge.s32.totalorder %v3802, 0
    %vm3811 = vcmp.ge.s32.totalorder %v3803, 0
    %vm3812 = vcmp.ge.s32.totalorder %v3804, 0
    %vm3813 = vcmp.ge.s32.totalorder %v3805, 0
    %vm3814 = vcmp.ge.s32.totalorder %v3806, 0
    %vm3815 = vmand %vm3791, %vm3807
    %vm3816 = vmand %vm3792, %vm3808
    %vm3817 = vmand %vm3793, %vm3809
    %vm3818 = vmand %vm3794, %vm3810
    %vm3819 = vmand %vm3795, %vm3811
    %vm3820 = vmand %vm3796, %vm3812
    %vm3821 = vmand %vm3797, %vm3813
    %vm3822 = vmand %vm3798, %vm3814
    %vm3823 = vcmp.lt.s32.totalorder %v3799, 32
    %vm3824 = vcmp.lt.s32.totalorder %v3800, 32
    %vm3825 = vcmp.lt.s32.totalorder %v3801, 32
    %vm3826 = vcmp.lt.s32.totalorder %v3802, 32
    %vm3827 = vcmp.lt.s32.totalorder %v3803, 32
    %vm3828 = vcmp.lt.s32.totalorder %v3804, 32
    %vm3829 = vcmp.lt.s32.totalorder %v3805, 32
    %vm3830 = vcmp.lt.s32.totalorder %v3806, 32
    %vm3831 = vmand %vm3815, %vm3823
    %vm3832 = vmand %vm3816, %vm3824
    %vm3833 = vmand %vm3817, %vm3825
    %vm3834 = vmand %vm3818, %vm3826
    %vm3835 = vmand %vm3819, %vm3827
    %vm3836 = vmand %vm3820, %vm3828
    %vm3837 = vmand %vm3821, %vm3829
    %vm3838 = vmand %vm3822, %vm3830
    %v3839 = vsel %vm3831, 1, 0
    %v3840 = vsel %vm3832, 1, 0
    %v3841 = vsel %vm3833, 1, 0
    %v3842 = vsel %vm3834, 1, 0
    %v3843 = vsel %vm3835, 1, 0
    %v3844 = vsel %vm3836, 1, 0
    %v3845 = vsel %vm3837, 1, 0
    %v3846 = vsel %vm3838, 1, 0
    %vm3847 = vcmp.eq.s32.totalorder %v3839, 1
    %vm3848 = vcmp.eq.s32.totalorder %v3840, 1
    %vm3849 = vcmp.eq.s32.totalorder %v3841, 1
    %vm3850 = vcmp.eq.s32.totalorder %v3842, 1
    %vm3851 = vcmp.eq.s32.totalorder %v3843, 1
    %vm3852 = vcmp.eq.s32.totalorder %v3844, 1
    %vm3853 = vcmp.eq.s32.totalorder %v3845, 1
    %vm3854 = vcmp.eq.s32.totalorder %v3846, 1
    %3864 = vrot.lane.b32.xlu0 %v3758, 33
    %v3865 = vpop.permute.xlu0 %3864
    %3866 = vrot.lane.b32.xlu0 %v3759, 33
    %v3867 = vpop.permute.xlu0 %3866
    %3868 = vrot.lane.b32.xlu0 %v3760, 33
    %v3869 = vpop.permute.xlu0 %3868
    %3870 = vrot.lane.b32.xlu0 %v3761, 33
    %v3871 = vpop.permute.xlu0 %3870
    %3872 = vrot.lane.b32.xlu0 %v3762, 33
    %v3873 = vpop.permute.xlu0 %3872
    %3874 = vrot.lane.b32.xlu0 %v3763, 33
    %v3875 = vpop.permute.xlu0 %3874
    %3876 = vrot.lane.b32.xlu0 %v3764, 33
    %v3877 = vpop.permute.xlu0 %3876
    %3878 = vrot.lane.b32.xlu0 %v3765, 33
    %v3879 = vpop.permute.xlu0 %3878
    %3880 = vrot.lane.b32.xlu0 %v3766, 33
    %v3881 = vpop.permute.xlu0 %3880
    %vm3882 = vcmask 269312
    %v3883 = vsel %vm3882, %v3865, %v3867
    %v3884 = vsel %vm3882, %v3867, %v3869
    %v3885 = vsel %vm3882, %v3869, %v3871
    %v3886 = vsel %vm3882, %v3871, %v3873
    %v3887 = vsel %vm3882, %v3873, %v3875
    %v3888 = vsel %vm3882, %v3875, %v3877
    %v3889 = vsel %vm3882, %v3877, %v3879
    %v3890 = vsel %vm3882, %v3879, %v3881
    %v3899 = vsel %vm3847, %v3883, 0.0
    %v3900 = vsel %vm3848, %v3884, 0.0
    %v3901 = vsel %vm3849, %v3885, 0.0
    %v3902 = vsel %vm3850, %v3886, 0.0
    %v3903 = vsel %vm3851, %v3887, 0.0
    %v3904 = vsel %vm3852, %v3888, 0.0
    %v3905 = vsel %vm3853, %v3889, 0.0
    %v3906 = vsel %vm3854, %v3890, 0.0
    %v3907 = vld [vmem:[%s9] sm:$0xff]
    %v3908 = vld [vmem:[%s9 + $0x8] sm:$0x1]
    %v3910 = vsel %vm1370, %v3907, 0
    %v3913 = vsel %vm1370, %v3908, 0
    %3915 = vmatprep.subr.mxu0 0.0
    %3916 = vmatpush1.msra.mxu0 0.0
    %3917 = vmatprep.subr.mxu0 0.0
    %3918 = vmatpush1.msra.mxu0 0.0
    %3919 = vmatprep.subr.mxu0 0.0
    %3920 = vmatpush1.msra.mxu0 0.0
    %3921 = vmatprep.subr.mxu0 0.0
    %3922 = vmatpush1.msra.mxu0 0.0
    %3923 = vmatprep.subr.mxu0 0.0
    %3924 = vmatpush1.msra.mxu0 0.0
    %3925 = vmatprep.subr.mxu0 0.0
    %3926 = vmatpush1.msra.mxu0 0.0
    %3927 = vmatprep.subr.mxu0 0.0
    %3928 = vmatpush1.msra.mxu0 0.0
    %3929 = vmatprep.subr.mxu0 0.0
    %3930 = vmatpush1.msra.mxu0 0.0
    %3931 = vmatprep.subr.mxu0 0.0
    %3932 = vmatpush1.msra.mxu0 0.0
    %3933 = vmatprep.subr.mxu0 0.0
    %3934 = vmatpush1.msra.mxu0 0.0
    %3935 = vmatprep.subr.mxu0 0.0
    %3936 = vmatpush1.msra.mxu0 0.0
    %3937 = vmatprep.subr.mxu0 0.0
    %3938 = vmatpush1.msra.mxu0 0.0
    %3939 = vmatprep.subr.mxu0 0.0
    %3940 = vmatpush1.msra.mxu0 0.0
    %3941 = vmatprep.subr.mxu0 0.0
    %3942 = vmatpush1.msra.mxu0 0.0
    %3943 = vmatprep.subr.mxu0 0.0
    %3944 = vmatpush1.msra.mxu0 0.0
    %3945 = vmatprep.subr.mxu0 %v3900
    %3946 = vmatpush1.msra.mxu0 %v3899
    %3947 = vmatprep.subr.mxu0 0.0
    %3948 = vmatpush2.msra.mxu0 0.0
    %3949 = vmatprep.subr.mxu0 0.0
    %3950 = vmatpush2.msra.mxu0 0.0
    %3951 = vmatprep.subr.mxu0 0.0
    %3952 = vmatpush2.msra.mxu0 0.0
    %3953 = vmatprep.subr.mxu0 0.0
    %3954 = vmatpush2.msra.mxu0 0.0
    %3955 = vmatprep.subr.mxu0 0.0
    %3956 = vmatpush2.msra.mxu0 0.0
    %3957 = vmatprep.subr.mxu0 0.0
    %3958 = vmatpush2.msra.mxu0 0.0
    %3959 = vmatprep.subr.mxu0 0.0
    %3960 = vmatpush2.msra.mxu0 0.0
    %3961 = vmatprep.subr.mxu0 0.0
    %3962 = vmatpush2.msra.mxu0 0.0
    %3963 = vmatprep.subr.mxu0 0.0
    %3964 = vmatpush2.msra.mxu0 0.0
    %3965 = vmatprep.subr.mxu0 0.0
    %3966 = vmatpush2.msra.mxu0 0.0
    %3967 = vmatprep.subr.mxu0 0.0
    %3968 = vmatpush2.msra.mxu0 0.0
    %3969 = vmatprep.subr.mxu0 0.0
    %3970 = vmatpush2.msra.mxu0 0.0
    %3971 = vmatprep.subr.mxu0 0.0
    %3972 = vmatpush2.msra.mxu0 0.0
    %3973 = vmatprep.subr.mxu0 0.0
    %3974 = vmatpush2.msra.mxu0 0.0
    %3975 = vmatprep.subr.mxu0 0.0
    %3976 = vmatpush2.msra.mxu0 0.0
    %3977 = vmatprep.subr.mxu0 0.0
    %3978 = vmatpush2.msra.mxu0 0.0
    %3979 = vmatprep.mubr.f32.mxu0 0.0
    %3980 = vmatmul.mubr.f32.gmra.mxu0 %v3910
    %v3981 = vpop.f32.mrf.mxu0
    %v3982 = vadd.f32 0.0, %v3981
    %v3983 = vpop.f32.mrf.mxu0
    %v3984 = vadd.f32 0.0, %v3983
    %3985 = vmatprep.mubr.f32.mxu0 0.0
    %3986 = vmatmul.mubr.f32.gmra.mxu0 %v3913
    %v3987 = vpop.f32.mrf.mxu0
    %v3988 = vadd.f32 0.0, %v3987
    %v3989 = vpop.f32.mrf.mxu0
    %v3990 = vadd.f32 0.0, %v3989
    %3991 = vdwg.mxu0
    %3992 = vmatprep.subr.mxu0 0.0
    %3993 = vmatpush1.msra.mxu0 0.0
    %3994 = vmatprep.subr.mxu0 0.0
    %3995 = vmatpush1.msra.mxu0 0.0
    %3996 = vmatprep.subr.mxu0 0.0
    %3997 = vmatpush1.msra.mxu0 0.0
    %3998 = vmatprep.subr.mxu0 0.0
    %3999 = vmatpush1.msra.mxu0 0.0
    %4000 = vmatprep.subr.mxu0 0.0
    %4001 = vmatpush1.msra.mxu0 0.0
    %4002 = vmatprep.subr.mxu0 0.0
    %4003 = vmatpush1.msra.mxu0 0.0
    %4004 = vmatprep.subr.mxu0 0.0
    %4005 = vmatpush1.msra.mxu0 0.0
    %4006 = vmatprep.subr.mxu0 0.0
    %4007 = vmatpush1.msra.mxu0 0.0
    %4008 = vmatprep.subr.mxu0 0.0
    %4009 = vmatpush1.msra.mxu0 0.0
    %4010 = vmatprep.subr.mxu0 0.0
    %4011 = vmatpush1.msra.mxu0 0.0
    %4012 = vmatprep.subr.mxu0 0.0
    %4013 = vmatpush1.msra.mxu0 0.0
    %4014 = vmatprep.subr.mxu0 0.0
    %4015 = vmatpush1.msra.mxu0 0.0
    %4016 = vmatprep.subr.mxu0 0.0
    %4017 = vmatpush1.msra.mxu0 0.0
    %4018 = vmatprep.subr.mxu0 0.0
    %4019 = vmatpush1.msra.mxu0 0.0
    %4020 = vmatprep.subr.mxu0 0.0
    %4021 = vmatpush1.msra.mxu0 0.0
    %4022 = vmatprep.subr.mxu0 %v3902
    %4023 = vmatpush1.msra.mxu0 %v3901
    %4024 = vmatprep.subr.mxu0 0.0
    %4025 = vmatpush2.msra.mxu0 0.0
    %4026 = vmatprep.subr.mxu0 0.0
    %4027 = vmatpush2.msra.mxu0 0.0
    %4028 = vmatprep.subr.mxu0 0.0
    %4029 = vmatpush2.msra.mxu0 0.0
    %4030 = vmatprep.subr.mxu0 0.0
    %4031 = vmatpush2.msra.mxu0 0.0
    %4032 = vmatprep.subr.mxu0 0.0
    %4033 = vmatpush2.msra.mxu0 0.0
    %4034 = vmatprep.subr.mxu0 0.0
    %4035 = vmatpush2.msra.mxu0 0.0
    %4036 = vmatprep.subr.mxu0 0.0
    %4037 = vmatpush2.msra.mxu0 0.0
    %4038 = vmatprep.subr.mxu0 0.0
    %4039 = vmatpush2.msra.mxu0 0.0
    %4040 = vmatprep.subr.mxu0 0.0
    %4041 = vmatpush2.msra.mxu0 0.0
    %4042 = vmatprep.subr.mxu0 0.0
    %4043 = vmatpush2.msra.mxu0 0.0
    %4044 = vmatprep.subr.mxu0 0.0
    %4045 = vmatpush2.msra.mxu0 0.0
    %4046 = vmatprep.subr.mxu0 0.0
    %4047 = vmatpush2.msra.mxu0 0.0
    %4048 = vmatprep.subr.mxu0 0.0
    %4049 = vmatpush2.msra.mxu0 0.0
    %4050 = vmatprep.subr.mxu0 0.0
    %4051 = vmatpush2.msra.mxu0 0.0
    %4052 = vmatprep.subr.mxu0 0.0
    %4053 = vmatpush2.msra.mxu0 0.0
    %4054 = vmatprep.subr.mxu0 0.0
    %4055 = vmatpush2.msra.mxu0 0.0
    %4056 = vmatprep.mubr.f32.mxu0 0.0
    %4057 = vmatmul.mubr.f32.gmra.mxu0 %v3910
    %v4058 = vpop.f32.mrf.mxu0
    %v4059 = vadd.f32 0.0, %v4058
    %v4060 = vpop.f32.mrf.mxu0
    %v4061 = vadd.f32 0.0, %v4060
    %4062 = vmatprep.mubr.f32.mxu0 0.0
    %4063 = vmatmul.mubr.f32.gmra.mxu0 %v3913
    %v4064 = vpop.f32.mrf.mxu0
    %v4065 = vadd.f32 0.0, %v4064
    %v4066 = vpop.f32.mrf.mxu0
    %v4067 = vadd.f32 0.0, %v4066
    %4068 = vdwg.mxu0
    %4069 = vmatprep.subr.mxu0 0.0
    %4070 = vmatpush1.msra.mxu0 0.0
    %4071 = vmatprep.subr.mxu0 0.0
    %4072 = vmatpush1.msra.mxu0 0.0
    %4073 = vmatprep.subr.mxu0 0.0
    %4074 = vmatpush1.msra.mxu0 0.0
    %4075 = vmatprep.subr.mxu0 0.0
    %4076 = vmatpush1.msra.mxu0 0.0
    %4077 = vmatprep.subr.mxu0 0.0
    %4078 = vmatpush1.msra.mxu0 0.0
    %4079 = vmatprep.subr.mxu0 0.0
    %4080 = vmatpush1.msra.mxu0 0.0
    %4081 = vmatprep.subr.mxu0 0.0
    %4082 = vmatpush1.msra.mxu0 0.0
    %4083 = vmatprep.subr.mxu0 0.0
    %4084 = vmatpush1.msra.mxu0 0.0
    %4085 = vmatprep.subr.mxu0 0.0
    %4086 = vmatpush1.msra.mxu0 0.0
    %4087 = vmatprep.subr.mxu0 0.0
    %4088 = vmatpush1.msra.mxu0 0.0
    %4089 = vmatprep.subr.mxu0 0.0
    %4090 = vmatpush1.msra.mxu0 0.0
    %4091 = vmatprep.subr.mxu0 0.0
    %4092 = vmatpush1.msra.mxu0 0.0
    %4093 = vmatprep.subr.mxu0 0.0
    %4094 = vmatpush1.msra.mxu0 0.0
    %4095 = vmatprep.subr.mxu0 0.0
    %4096 = vmatpush1.msra.mxu0 0.0
    %4097 = vmatprep.subr.mxu0 0.0
    %4098 = vmatpush1.msra.mxu0 0.0
    %4099 = vmatprep.subr.mxu0 %v3904
    %4100 = vmatpush1.msra.mxu0 %v3903
    %4101 = vmatprep.subr.mxu0 0.0
    %4102 = vmatpush2.msra.mxu0 0.0
    %4103 = vmatprep.subr.mxu0 0.0
    %4104 = vmatpush2.msra.mxu0 0.0
    %4105 = vmatprep.subr.mxu0 0.0
    %4106 = vmatpush2.msra.mxu0 0.0
    %4107 = vmatprep.subr.mxu0 0.0
    %4108 = vmatpush2.msra.mxu0 0.0
    %4109 = vmatprep.subr.mxu0 0.0
    %4110 = vmatpush2.msra.mxu0 0.0
    %4111 = vmatprep.subr.mxu0 0.0
    %4112 = vmatpush2.msra.mxu0 0.0
    %4113 = vmatprep.subr.mxu0 0.0
    %4114 = vmatpush2.msra.mxu0 0.0
    %4115 = vmatprep.subr.mxu0 0.0
    %4116 = vmatpush2.msra.mxu0 0.0
    %4117 = vmatprep.subr.mxu0 0.0
    %4118 = vmatpush2.msra.mxu0 0.0
    %4119 = vmatprep.subr.mxu0 0.0
    %4120 = vmatpush2.msra.mxu0 0.0
    %4121 = vmatprep.subr.mxu0 0.0
    %4122 = vmatpush2.msra.mxu0 0.0
    %4123 = vmatprep.subr.mxu0 0.0
    %4124 = vmatpush2.msra.mxu0 0.0
    %4125 = vmatprep.subr.mxu0 0.0
    %4126 = vmatpush2.msra.mxu0 0.0
    %4127 = vmatprep.subr.mxu0 0.0
    %4128 = vmatpush2.msra.mxu0 0.0
    %4129 = vmatprep.subr.mxu0 0.0
    %4130 = vmatpush2.msra.mxu0 0.0
    %4131 = vmatprep.subr.mxu0 0.0
    %4132 = vmatpush2.msra.mxu0 0.0
    %4133 = vmatprep.mubr.f32.mxu0 0.0
    %4134 = vmatmul.mubr.f32.gmra.mxu0 %v3910
    %v4135 = vpop.f32.mrf.mxu0
    %v4136 = vadd.f32 0.0, %v4135
    %v4137 = vpop.f32.mrf.mxu0
    %v4138 = vadd.f32 0.0, %v4137
    %4139 = vmatprep.mubr.f32.mxu0 0.0
    %4140 = vmatmul.mubr.f32.gmra.mxu0 %v3913
    %v4141 = vpop.f32.mrf.mxu0
    %v4142 = vadd.f32 0.0, %v4141
    %v4143 = vpop.f32.mrf.mxu0
    %v4144 = vadd.f32 0.0, %v4143
    %4145 = vdwg.mxu0
    %4146 = vmatprep.subr.mxu0 0.0
    %4147 = vmatpush1.msra.mxu0 0.0
    %4148 = vmatprep.subr.mxu0 0.0
    %4149 = vmatpush1.msra.mxu0 0.0
    %4150 = vmatprep.subr.mxu0 0.0
    %4151 = vmatpush1.msra.mxu0 0.0
    %4152 = vmatprep.subr.mxu0 0.0
    %4153 = vmatpush1.msra.mxu0 0.0
    %4154 = vmatprep.subr.mxu0 0.0
    %4155 = vmatpush1.msra.mxu0 0.0
    %4156 = vmatprep.subr.mxu0 0.0
    %4157 = vmatpush1.msra.mxu0 0.0
    %4158 = vmatprep.subr.mxu0 0.0
    %4159 = vmatpush1.msra.mxu0 0.0
    %4160 = vmatprep.subr.mxu0 0.0
    %4161 = vmatpush1.msra.mxu0 0.0
    %4162 = vmatprep.subr.mxu0 0.0
    %4163 = vmatpush1.msra.mxu0 0.0
    %4164 = vmatprep.subr.mxu0 0.0
    %4165 = vmatpush1.msra.mxu0 0.0
    %4166 = vmatprep.subr.mxu0 0.0
    %4167 = vmatpush1.msra.mxu0 0.0
    %4168 = vmatprep.subr.mxu0 0.0
    %4169 = vmatpush1.msra.mxu0 0.0
    %4170 = vmatprep.subr.mxu0 0.0
    %4171 = vmatpush1.msra.mxu0 0.0
    %4172 = vmatprep.subr.mxu0 0.0
    %4173 = vmatpush1.msra.mxu0 0.0
    %4174 = vmatprep.subr.mxu0 0.0
    %4175 = vmatpush1.msra.mxu0 0.0
    %4176 = vmatprep.subr.mxu0 %v3906
    %4177 = vmatpush1.msra.mxu0 %v3905
    %4178 = vmatprep.subr.mxu0 0.0
    %4179 = vmatpush2.msra.mxu0 0.0
    %4180 = vmatprep.subr.mxu0 0.0
    %4181 = vmatpush2.msra.mxu0 0.0
    %4182 = vmatprep.subr.mxu0 0.0
    %4183 = vmatpush2.msra.mxu0 0.0
    %4184 = vmatprep.subr.mxu0 0.0
    %4185 = vmatpush2.msra.mxu0 0.0
    %4186 = vmatprep.subr.mxu0 0.0
    %4187 = vmatpush2.msra.mxu0 0.0
    %4188 = vmatprep.subr.mxu0 0.0
    %4189 = vmatpush2.msra.mxu0 0.0
    %4190 = vmatprep.subr.mxu0 0.0
    %4191 = vmatpush2.msra.mxu0 0.0
    %4192 = vmatprep.subr.mxu0 0.0
    %4193 = vmatpush2.msra.mxu0 0.0
    %4194 = vmatprep.subr.mxu0 0.0
    %4195 = vmatpush2.msra.mxu0 0.0
    %4196 = vmatprep.subr.mxu0 0.0
    %4197 = vmatpush2.msra.mxu0 0.0
    %4198 = vmatprep.subr.mxu0 0.0
    %4199 = vmatpush2.msra.mxu0 0.0
    %4200 = vmatprep.subr.mxu0 0.0
    %4201 = vmatpush2.msra.mxu0 0.0
    %4202 = vmatprep.subr.mxu0 0.0
    %4203 = vmatpush2.msra.mxu0 0.0
    %4204 = vmatprep.subr.mxu0 0.0
    %4205 = vmatpush2.msra.mxu0 0.0
    %4206 = vmatprep.subr.mxu0 0.0
    %4207 = vmatpush2.msra.mxu0 0.0
    %4208 = vmatprep.subr.mxu0 0.0
    %4209 = vmatpush2.msra.mxu0 0.0
    %4210 = vmatprep.mubr.f32.mxu0 0.0
    %4211 = vmatmul.mubr.f32.gmra.mxu0 %v3910
    %v4212 = vpop.f32.mrf.mxu0
    %v4213 = vadd.f32 0.0, %v4212
    %v4214 = vpop.f32.mrf.mxu0
    %v4215 = vadd.f32 0.0, %v4214
    %4216 = vmatprep.mubr.f32.mxu0 0.0
    %4217 = vmatmul.mubr.f32.gmra.mxu0 %v3913
    %v4218 = vpop.f32.mrf.mxu0
    %v4219 = vadd.f32 0.0, %v4218
    %v4220 = vpop.f32.mrf.mxu0
    %v4221 = vadd.f32 0.0, %v4220
    %4222 = vdwg.mxu0
    %v4223 = vadd.f32 %v3720, %v3982
    %v4224 = vadd.f32 %v3721, %v3984
    %v4225 = vadd.f32 %v3722, %v4059
    %v4226 = vadd.f32 %v3723, %v4061
    %v4227 = vadd.f32 %v3724, %v4136
    %v4228 = vadd.f32 %v3725, %v4138
    %v4229 = vadd.f32 %v3726, %v4213
    %v4230 = vadd.f32 %v3727, %v4215
    %v4231 = vadd.f32 %v3728, %v3988
    %v4232 = vadd.f32 %v3729, %v3990
    %v4233 = vadd.f32 %v3730, %v4065
    %v4234 = vadd.f32 %v3731, %v4067
    %v4235 = vadd.f32 %v3732, %v4142
    %v4236 = vadd.f32 %v3733, %v4144
    %v4237 = vadd.f32 %v3734, %v4219
    %v4238 = vadd.f32 %v3735, %v4221
    %vm4239 = vcmp.ge.s32.totalorder %v3750, 0
    %vm4240 = vcmp.ge.s32.totalorder %v3751, 0
    %vm4241 = vcmp.ge.s32.totalorder %v3752, 0
    %vm4242 = vcmp.ge.s32.totalorder %v3753, 0
    %vm4243 = vcmp.ge.s32.totalorder %v3754, 0
    %vm4244 = vcmp.ge.s32.totalorder %v3755, 0
    %vm4245 = vcmp.ge.s32.totalorder %v3756, 0
    %vm4246 = vcmp.ge.s32.totalorder %v3757, 0
    %vm4247 = vmand %vm3791, %vm4239
    %vm4248 = vmand %vm3792, %vm4240
    %vm4249 = vmand %vm3793, %vm4241
    %vm4250 = vmand %vm3794, %vm4242
    %vm4251 = vmand %vm3795, %vm4243
    %vm4252 = vmand %vm3796, %vm4244
    %vm4253 = vmand %vm3797, %vm4245
    %vm4254 = vmand %vm3798, %vm4246
    %vm4255 = vcmp.lt.s32.totalorder %v3750, 32
    %vm4256 = vcmp.lt.s32.totalorder %v3751, 32
    %vm4257 = vcmp.lt.s32.totalorder %v3752, 32
    %vm4258 = vcmp.lt.s32.totalorder %v3753, 32
    %vm4259 = vcmp.lt.s32.totalorder %v3754, 32
    %vm4260 = vcmp.lt.s32.totalorder %v3755, 32
    %vm4261 = vcmp.lt.s32.totalorder %v3756, 32
    %vm4262 = vcmp.lt.s32.totalorder %v3757, 32
    %vm4263 = vmand %vm4247, %vm4255
    %vm4264 = vmand %vm4248, %vm4256
    %vm4265 = vmand %vm4249, %vm4257
    %vm4266 = vmand %vm4250, %vm4258
    %vm4267 = vmand %vm4251, %vm4259
    %vm4268 = vmand %vm4252, %vm4260
    %vm4269 = vmand %vm4253, %vm4261
    %vm4270 = vmand %vm4254, %vm4262
    %v4271 = vsel %vm4263, 1, 0
    %v4272 = vsel %vm4264, 1, 0
    %v4273 = vsel %vm4265, 1, 0
    %v4274 = vsel %vm4266, 1, 0
    %v4275 = vsel %vm4267, 1, 0
    %v4276 = vsel %vm4268, 1, 0
    %v4277 = vsel %vm4269, 1, 0
    %v4278 = vsel %vm4270, 1, 0
    %vm4279 = vcmp.eq.s32.totalorder %v4271, 1
    %vm4280 = vcmp.eq.s32.totalorder %v4272, 1
    %vm4281 = vcmp.eq.s32.totalorder %v4273, 1
    %vm4282 = vcmp.eq.s32.totalorder %v4274, 1
    %vm4283 = vcmp.eq.s32.totalorder %v4275, 1
    %vm4284 = vcmp.eq.s32.totalorder %v4276, 1
    %vm4285 = vcmp.eq.s32.totalorder %v4277, 1
    %vm4286 = vcmp.eq.s32.totalorder %v4278, 1
    %4287 = vrot.lane.b32.xlu0 %v3758, 32
    %v4288 = vpop.permute.xlu0 %4287
    %4289 = vrot.lane.b32.xlu0 %v3759, 32
    %v4290 = vpop.permute.xlu0 %4289
    %4291 = vrot.lane.b32.xlu0 %v3760, 32
    %v4292 = vpop.permute.xlu0 %4291
    %4293 = vrot.lane.b32.xlu0 %v3761, 32
    %v4294 = vpop.permute.xlu0 %4293
    %4295 = vrot.lane.b32.xlu0 %v3762, 32
    %v4296 = vpop.permute.xlu0 %4295
    %4297 = vrot.lane.b32.xlu0 %v3763, 32
    %v4298 = vpop.permute.xlu0 %4297
    %4299 = vrot.lane.b32.xlu0 %v3764, 32
    %v4300 = vpop.permute.xlu0 %4299
    %4301 = vrot.lane.b32.xlu0 %v3765, 32
    %v4302 = vpop.permute.xlu0 %4301
    %4303 = vrot.lane.b32.xlu0 %v3766, 32
    %v4304 = vpop.permute.xlu0 %4303
    %vm4305 = vcmask 261120
    %v4306 = vsel %vm4305, %v4288, %v4290
    %v4307 = vsel %vm4305, %v4290, %v4292
    %v4308 = vsel %vm4305, %v4292, %v4294
    %v4309 = vsel %vm4305, %v4294, %v4296
    %v4310 = vsel %vm4305, %v4296, %v4298
    %v4311 = vsel %vm4305, %v4298, %v4300
    %v4312 = vsel %vm4305, %v4300, %v4302
    %v4313 = vsel %vm4305, %v4302, %v4304
    %v4322 = vsel %vm4279, %v4306, 0.0
    %v4323 = vsel %vm4280, %v4307, 0.0
    %v4324 = vsel %vm4281, %v4308, 0.0
    %v4325 = vsel %vm4282, %v4309, 0.0
    %v4326 = vsel %vm4283, %v4310, 0.0
    %v4327 = vsel %vm4284, %v4311, 0.0
    %v4328 = vsel %vm4285, %v4312, 0.0
    %v4329 = vsel %vm4286, %v4313, 0.0
    %s4330 = scalar_lea.vmem %s9, 16
    %v4331 = vld [vmem:[%s4330] sm:$0xff]
    %v4332 = vld [vmem:[%s4330 + $0x8] sm:$0x1]
    %v4334 = vsel %vm1370, %v4331, 0
    %v4337 = vsel %vm1370, %v4332, 0
    %4339 = vmatprep.subr.mxu0 0.0
    %4340 = vmatpush1.msra.mxu0 0.0
    %4341 = vmatprep.subr.mxu0 0.0
    %4342 = vmatpush1.msra.mxu0 0.0
    %4343 = vmatprep.subr.mxu0 0.0
    %4344 = vmatpush1.msra.mxu0 0.0
    %4345 = vmatprep.subr.mxu0 0.0
    %4346 = vmatpush1.msra.mxu0 0.0
    %4347 = vmatprep.subr.mxu0 0.0
    %4348 = vmatpush1.msra.mxu0 0.0
    %4349 = vmatprep.subr.mxu0 0.0
    %4350 = vmatpush1.msra.mxu0 0.0
    %4351 = vmatprep.subr.mxu0 0.0
    %4352 = vmatpush1.msra.mxu0 0.0
    %4353 = vmatprep.subr.mxu0 0.0
    %4354 = vmatpush1.msra.mxu0 0.0
    %4355 = vmatprep.subr.mxu0 0.0
    %4356 = vmatpush1.msra.mxu0 0.0
    %4357 = vmatprep.subr.mxu0 0.0
    %4358 = vmatpush1.msra.mxu0 0.0
    %4359 = vmatprep.subr.mxu0 0.0
    %4360 = vmatpush1.msra.mxu0 0.0
    %4361 = vmatprep.subr.mxu0 0.0
    %4362 = vmatpush1.msra.mxu0 0.0
    %4363 = vmatprep.subr.mxu0 0.0
    %4364 = vmatpush1.msra.mxu0 0.0
    %4365 = vmatprep.subr.mxu0 0.0
    %4366 = vmatpush1.msra.mxu0 0.0
    %4367 = vmatprep.subr.mxu0 0.0
    %4368 = vmatpush1.msra.mxu0 0.0
    %4369 = vmatprep.subr.mxu0 %v4323
    %4370 = vmatpush1.msra.mxu0 %v4322
    %4371 = vmatprep.subr.mxu0 0.0
    %4372 = vmatpush2.msra.mxu0 0.0
    %4373 = vmatprep.subr.mxu0 0.0
    %4374 = vmatpush2.msra.mxu0 0.0
    %4375 = vmatprep.subr.mxu0 0.0
    %4376 = vmatpush2.msra.mxu0 0.0
    %4377 = vmatprep.subr.mxu0 0.0
    %4378 = vmatpush2.msra.mxu0 0.0
    %4379 = vmatprep.subr.mxu0 0.0
    %4380 = vmatpush2.msra.mxu0 0.0
    %4381 = vmatprep.subr.mxu0 0.0
    %4382 = vmatpush2.msra.mxu0 0.0
    %4383 = vmatprep.subr.mxu0 0.0
    %4384 = vmatpush2.msra.mxu0 0.0
    %4385 = vmatprep.subr.mxu0 0.0
    %4386 = vmatpush2.msra.mxu0 0.0
    %4387 = vmatprep.subr.mxu0 0.0
    %4388 = vmatpush2.msra.mxu0 0.0
    %4389 = vmatprep.subr.mxu0 0.0
    %4390 = vmatpush2.msra.mxu0 0.0
    %4391 = vmatprep.subr.mxu0 0.0
    %4392 = vmatpush2.msra.mxu0 0.0
    %4393 = vmatprep.subr.mxu0 0.0
    %4394 = vmatpush2.msra.mxu0 0.0
    %4395 = vmatprep.subr.mxu0 0.0
    %4396 = vmatpush2.msra.mxu0 0.0
    %4397 = vmatprep.subr.mxu0 0.0
    %4398 = vmatpush2.msra.mxu0 0.0
    %4399 = vmatprep.subr.mxu0 0.0
    %4400 = vmatpush2.msra.mxu0 0.0
    %4401 = vmatprep.subr.mxu0 0.0
    %4402 = vmatpush2.msra.mxu0 0.0
    %4403 = vmatprep.mubr.f32.mxu0 0.0
    %4404 = vmatmul.mubr.f32.gmra.mxu0 %v4334
    %v4405 = vpop.f32.mrf.mxu0
    %v4406 = vadd.f32 0.0, %v4405
    %v4407 = vpop.f32.mrf.mxu0
    %v4408 = vadd.f32 0.0, %v4407
    %4409 = vmatprep.mubr.f32.mxu0 0.0
    %4410 = vmatmul.mubr.f32.gmra.mxu0 %v4337
    %v4411 = vpop.f32.mrf.mxu0
    %v4412 = vadd.f32 0.0, %v4411
    %v4413 = vpop.f32.mrf.mxu0
    %v4414 = vadd.f32 0.0, %v4413
    %4415 = vdwg.mxu0
    %4416 = vmatprep.subr.mxu0 0.0
    %4417 = vmatpush1.msra.mxu0 0.0
    %4418 = vmatprep.subr.mxu0 0.0
    %4419 = vmatpush1.msra.mxu0 0.0
    %4420 = vmatprep.subr.mxu0 0.0
    %4421 = vmatpush1.msra.mxu0 0.0
    %4422 = vmatprep.subr.mxu0 0.0
    %4423 = vmatpush1.msra.mxu0 0.0
    %4424 = vmatprep.subr.mxu0 0.0
    %4425 = vmatpush1.msra.mxu0 0.0
    %4426 = vmatprep.subr.mxu0 0.0
    %4427 = vmatpush1.msra.mxu0 0.0
    %4428 = vmatprep.subr.mxu0 0.0
    %4429 = vmatpush1.msra.mxu0 0.0
    %4430 = vmatprep.subr.mxu0 0.0
    %4431 = vmatpush1.msra.mxu0 0.0
    %4432 = vmatprep.subr.mxu0 0.0
    %4433 = vmatpush1.msra.mxu0 0.0
    %4434 = vmatprep.subr.mxu0 0.0
    %4435 = vmatpush1.msra.mxu0 0.0
    %4436 = vmatprep.subr.mxu0 0.0
    %4437 = vmatpush1.msra.mxu0 0.0
    %4438 = vmatprep.subr.mxu0 0.0
    %4439 = vmatpush1.msra.mxu0 0.0
    %4440 = vmatprep.subr.mxu0 0.0
    %4441 = vmatpush1.msra.mxu0 0.0
    %4442 = vmatprep.subr.mxu0 0.0
    %4443 = vmatpush1.msra.mxu0 0.0
    %4444 = vmatprep.subr.mxu0 0.0
    %4445 = vmatpush1.msra.mxu0 0.0
    %4446 = vmatprep.subr.mxu0 %v4325
    %4447 = vmatpush1.msra.mxu0 %v4324
    %4448 = vmatprep.subr.mxu0 0.0
    %4449 = vmatpush2.msra.mxu0 0.0
    %4450 = vmatprep.subr.mxu0 0.0
    %4451 = vmatpush2.msra.mxu0 0.0
    %4452 = vmatprep.subr.mxu0 0.0
    %4453 = vmatpush2.msra.mxu0 0.0
    %4454 = vmatprep.subr.mxu0 0.0
    %4455 = vmatpush2.msra.mxu0 0.0
    %4456 = vmatprep.subr.mxu0 0.0
    %4457 = vmatpush2.msra.mxu0 0.0
    %4458 = vmatprep.subr.mxu0 0.0
    %4459 = vmatpush2.msra.mxu0 0.0
    %4460 = vmatprep.subr.mxu0 0.0
    %4461 = vmatpush2.msra.mxu0 0.0
    %4462 = vmatprep.subr.mxu0 0.0
    %4463 = vmatpush2.msra.mxu0 0.0
    %4464 = vmatprep.subr.mxu0 0.0
    %4465 = vmatpush2.msra.mxu0 0.0
    %4466 = vmatprep.subr.mxu0 0.0
    %4467 = vmatpush2.msra.mxu0 0.0
    %4468 = vmatprep.subr.mxu0 0.0
    %4469 = vmatpush2.msra.mxu0 0.0
    %4470 = vmatprep.subr.mxu0 0.0
    %4471 = vmatpush2.msra.mxu0 0.0
    %4472 = vmatprep.subr.mxu0 0.0
    %4473 = vmatpush2.msra.mxu0 0.0
    %4474 = vmatprep.subr.mxu0 0.0
    %4475 = vmatpush2.msra.mxu0 0.0
    %4476 = vmatprep.subr.mxu0 0.0
    %4477 = vmatpush2.msra.mxu0 0.0
    %4478 = vmatprep.subr.mxu0 0.0
    %4479 = vmatpush2.msra.mxu0 0.0
    %4480 = vmatprep.mubr.f32.mxu0 0.0
    %4481 = vmatmul.mubr.f32.gmra.mxu0 %v4334
    %v4482 = vpop.f32.mrf.mxu0
    %v4483 = vadd.f32 0.0, %v4482
    %v4484 = vpop.f32.mrf.mxu0
    %v4485 = vadd.f32 0.0, %v4484
    %4486 = vmatprep.mubr.f32.mxu0 0.0
    %4487 = vmatmul.mubr.f32.gmra.mxu0 %v4337
    %v4488 = vpop.f32.mrf.mxu0
    %v4489 = vadd.f32 0.0, %v4488
    %v4490 = vpop.f32.mrf.mxu0
    %v4491 = vadd.f32 0.0, %v4490
    %4492 = vdwg.mxu0
    %4493 = vmatprep.subr.mxu0 0.0
    %4494 = vmatpush1.msra.mxu0 0.0
    %4495 = vmatprep.subr.mxu0 0.0
    %4496 = vmatpush1.msra.mxu0 0.0
    %4497 = vmatprep.subr.mxu0 0.0
    %4498 = vmatpush1.msra.mxu0 0.0
    %4499 = vmatprep.subr.mxu0 0.0
    %4500 = vmatpush1.msra.mxu0 0.0
    %4501 = vmatprep.subr.mxu0 0.0
    %4502 = vmatpush1.msra.mxu0 0.0
    %4503 = vmatprep.subr.mxu0 0.0
    %4504 = vmatpush1.msra.mxu0 0.0
    %4505 = vmatprep.subr.mxu0 0.0
    %4506 = vmatpush1.msra.mxu0 0.0
    %4507 = vmatprep.subr.mxu0 0.0
    %4508 = vmatpush1.msra.mxu0 0.0
    %4509 = vmatprep.subr.mxu0 0.0
    %4510 = vmatpush1.msra.mxu0 0.0
    %4511 = vmatprep.subr.mxu0 0.0
    %4512 = vmatpush1.msra.mxu0 0.0
    %4513 = vmatprep.subr.mxu0 0.0
    %4514 = vmatpush1.msra.mxu0 0.0
    %4515 = vmatprep.subr.mxu0 0.0
    %4516 = vmatpush1.msra.mxu0 0.0
    %4517 = vmatprep.subr.mxu0 0.0
    %4518 = vmatpush1.msra.mxu0 0.0
    %4519 = vmatprep.subr.mxu0 0.0
    %4520 = vmatpush1.msra.mxu0 0.0
    %4521 = vmatprep.subr.mxu0 0.0
    %4522 = vmatpush1.msra.mxu0 0.0
    %4523 = vmatprep.subr.mxu0 %v4327
    %4524 = vmatpush1.msra.mxu0 %v4326
    %4525 = vmatprep.subr.mxu0 0.0
    %4526 = vmatpush2.msra.mxu0 0.0
    %4527 = vmatprep.subr.mxu0 0.0
    %4528 = vmatpush2.msra.mxu0 0.0
    %4529 = vmatprep.subr.mxu0 0.0
    %4530 = vmatpush2.msra.mxu0 0.0
    %4531 = vmatprep.subr.mxu0 0.0
    %4532 = vmatpush2.msra.mxu0 0.0
    %4533 = vmatprep.subr.mxu0 0.0
    %4534 = vmatpush2.msra.mxu0 0.0
    %4535 = vmatprep.subr.mxu0 0.0
    %4536 = vmatpush2.msra.mxu0 0.0
    %4537 = vmatprep.subr.mxu0 0.0
    %4538 = vmatpush2.msra.mxu0 0.0
    %4539 = vmatprep.subr.mxu0 0.0
    %4540 = vmatpush2.msra.mxu0 0.0
    %4541 = vmatprep.subr.mxu0 0.0
    %4542 = vmatpush2.msra.mxu0 0.0
    %4543 = vmatprep.subr.mxu0 0.0
    %4544 = vmatpush2.msra.mxu0 0.0
    %4545 = vmatprep.subr.mxu0 0.0
    %4546 = vmatpush2.msra.mxu0 0.0
    %4547 = vmatprep.subr.mxu0 0.0
    %4548 = vmatpush2.msra.mxu0 0.0
    %4549 = vmatprep.subr.mxu0 0.0
    %4550 = vmatpush2.msra.mxu0 0.0
    %4551 = vmatprep.subr.mxu0 0.0
    %4552 = vmatpush2.msra.mxu0 0.0
    %4553 = vmatprep.subr.mxu0 0.0
    %4554 = vmatpush2.msra.mxu0 0.0
    %4555 = vmatprep.subr.mxu0 0.0
    %4556 = vmatpush2.msra.mxu0 0.0
    %4557 = vmatprep.mubr.f32.mxu0 0.0
    %4558 = vmatmul.mubr.f32.gmra.mxu0 %v4334
    %v4559 = vpop.f32.mrf.mxu0
    %v4560 = vadd.f32 0.0, %v4559
    %v4561 = vpop.f32.mrf.mxu0
    %v4562 = vadd.f32 0.0, %v4561
    %4563 = vmatprep.mubr.f32.mxu0 0.0
    %4564 = vmatmul.mubr.f32.gmra.mxu0 %v4337
    %v4565 = vpop.f32.mrf.mxu0
    %v4566 = vadd.f32 0.0, %v4565
    %v4567 = vpop.f32.mrf.mxu0
    %v4568 = vadd.f32 0.0, %v4567
    %4569 = vdwg.mxu0
    %4570 = vmatprep.subr.mxu0 0.0
    %4571 = vmatpush1.msra.mxu0 0.0
    %4572 = vmatprep.subr.mxu0 0.0
    %4573 = vmatpush1.msra.mxu0 0.0
    %4574 = vmatprep.subr.mxu0 0.0
    %4575 = vmatpush1.msra.mxu0 0.0
    %4576 = vmatprep.subr.mxu0 0.0
    %4577 = vmatpush1.msra.mxu0 0.0
    %4578 = vmatprep.subr.mxu0 0.0
    %4579 = vmatpush1.msra.mxu0 0.0
    %4580 = vmatprep.subr.mxu0 0.0
    %4581 = vmatpush1.msra.mxu0 0.0
    %4582 = vmatprep.subr.mxu0 0.0
    %4583 = vmatpush1.msra.mxu0 0.0
    %4584 = vmatprep.subr.mxu0 0.0
    %4585 = vmatpush1.msra.mxu0 0.0
    %4586 = vmatprep.subr.mxu0 0.0
    %4587 = vmatpush1.msra.mxu0 0.0
    %4588 = vmatprep.subr.mxu0 0.0
    %4589 = vmatpush1.msra.mxu0 0.0
    %4590 = vmatprep.subr.mxu0 0.0
    %4591 = vmatpush1.msra.mxu0 0.0
    %4592 = vmatprep.subr.mxu0 0.0
    %4593 = vmatpush1.msra.mxu0 0.0
    %4594 = vmatprep.subr.mxu0 0.0
    %4595 = vmatpush1.msra.mxu0 0.0
    %4596 = vmatprep.subr.mxu0 0.0
    %4597 = vmatpush1.msra.mxu0 0.0
    %4598 = vmatprep.subr.mxu0 0.0
    %4599 = vmatpush1.msra.mxu0 0.0
    %4600 = vmatprep.subr.mxu0 %v4329
    %4601 = vmatpush1.msra.mxu0 %v4328
    %4602 = vmatprep.subr.mxu0 0.0
    %4603 = vmatpush2.msra.mxu0 0.0
    %4604 = vmatprep.subr.mxu0 0.0
    %4605 = vmatpush2.msra.mxu0 0.0
    %4606 = vmatprep.subr.mxu0 0.0
    %4607 = vmatpush2.msra.mxu0 0.0
    %4608 = vmatprep.subr.mxu0 0.0
    %4609 = vmatpush2.msra.mxu0 0.0
    %4610 = vmatprep.subr.mxu0 0.0
    %4611 = vmatpush2.msra.mxu0 0.0
    %4612 = vmatprep.subr.mxu0 0.0
    %4613 = vmatpush2.msra.mxu0 0.0
    %4614 = vmatprep.subr.mxu0 0.0
    %4615 = vmatpush2.msra.mxu0 0.0
    %4616 = vmatprep.subr.mxu0 0.0
    %4617 = vmatpush2.msra.mxu0 0.0
    %4618 = vmatprep.subr.mxu0 0.0
    %4619 = vmatpush2.msra.mxu0 0.0
    %4620 = vmatprep.subr.mxu0 0.0
    %4621 = vmatpush2.msra.mxu0 0.0
    %4622 = vmatprep.subr.mxu0 0.0
    %4623 = vmatpush2.msra.mxu0 0.0
    %4624 = vmatprep.subr.mxu0 0.0
    %4625 = vmatpush2.msra.mxu0 0.0
    %4626 = vmatprep.subr.mxu0 0.0
    %4627 = vmatpush2.msra.mxu0 0.0
    %4628 = vmatprep.subr.mxu0 0.0
    %4629 = vmatpush2.msra.mxu0 0.0
    %4630 = vmatprep.subr.mxu0 0.0
    %4631 = vmatpush2.msra.mxu0 0.0
    %4632 = vmatprep.subr.mxu0 0.0
    %4633 = vmatpush2.msra.mxu0 0.0
    %4634 = vmatprep.mubr.f32.mxu0 0.0
    %4635 = vmatmul.mubr.f32.gmra.mxu0 %v4334
    %v4636 = vpop.f32.mrf.mxu0
    %v4637 = vadd.f32 0.0, %v4636
    %v4638 = vpop.f32.mrf.mxu0
    %v4639 = vadd.f32 0.0, %v4638
    %4640 = vmatprep.mubr.f32.mxu0 0.0
    %4641 = vmatmul.mubr.f32.gmra.mxu0 %v4337
    %v4642 = vpop.f32.mrf.mxu0
    %v4643 = vadd.f32 0.0, %v4642
    %v4644 = vpop.f32.mrf.mxu0
    %v4645 = vadd.f32 0.0, %v4644
    %4646 = vdwg.mxu0
    %v4647 = vadd.f32 %v4223, %v4406
    %v4648 = vadd.f32 %v4224, %v4408
    %v4649 = vadd.f32 %v4225, %v4483
    %v4650 = vadd.f32 %v4226, %v4485
    %v4651 = vadd.f32 %v4227, %v4560
    %v4652 = vadd.f32 %v4228, %v4562
    %v4653 = vadd.f32 %v4229, %v4637
    %v4654 = vadd.f32 %v4230, %v4639
    %v4655 = vadd.f32 %v4231, %v4412
    %v4656 = vadd.f32 %v4232, %v4414
    %v4657 = vadd.f32 %v4233, %v4489
    %v4658 = vadd.f32 %v4234, %v4491
    %v4659 = vadd.f32 %v4235, %v4566
    %v4660 = vadd.f32 %v4236, %v4568
    %v4661 = vadd.f32 %v4237, %v4643
    %v4662 = vadd.f32 %v4238, %v4645
    %v4663 = vadd.s32 %v3750, 1
    %v4664 = vadd.s32 %v3751, 1
    %v4665 = vadd.s32 %v3752, 1
    %v4666 = vadd.s32 %v3753, 1
    %v4667 = vadd.s32 %v3754, 1
    %v4668 = vadd.s32 %v3755, 1
    %v4669 = vadd.s32 %v3756, 1
    %v4670 = vadd.s32 %v3757, 1
    %vm4671 = vcmp.ge.s32.totalorder %v4663, 0
    %vm4672 = vcmp.ge.s32.totalorder %v4664, 0
    %vm4673 = vcmp.ge.s32.totalorder %v4665, 0
    %vm4674 = vcmp.ge.s32.totalorder %v4666, 0
    %vm4675 = vcmp.ge.s32.totalorder %v4667, 0
    %vm4676 = vcmp.ge.s32.totalorder %v4668, 0
    %vm4677 = vcmp.ge.s32.totalorder %v4669, 0
    %vm4678 = vcmp.ge.s32.totalorder %v4670, 0
    %vm4679 = vmand %vm3791, %vm4671
    %vm4680 = vmand %vm3792, %vm4672
    %vm4681 = vmand %vm3793, %vm4673
    %vm4682 = vmand %vm3794, %vm4674
    %vm4683 = vmand %vm3795, %vm4675
    %vm4684 = vmand %vm3796, %vm4676
    %vm4685 = vmand %vm3797, %vm4677
    %vm4686 = vmand %vm3798, %vm4678
    %vm4687 = vcmp.lt.s32.totalorder %v4663, 32
    %vm4688 = vcmp.lt.s32.totalorder %v4664, 32
    %vm4689 = vcmp.lt.s32.totalorder %v4665, 32
    %vm4690 = vcmp.lt.s32.totalorder %v4666, 32
    %vm4691 = vcmp.lt.s32.totalorder %v4667, 32
    %vm4692 = vcmp.lt.s32.totalorder %v4668, 32
    %vm4693 = vcmp.lt.s32.totalorder %v4669, 32
    %vm4694 = vcmp.lt.s32.totalorder %v4670, 32
    %vm4695 = vmand %vm4679, %vm4687
    %vm4696 = vmand %vm4680, %vm4688
    %vm4697 = vmand %vm4681, %vm4689
    %vm4698 = vmand %vm4682, %vm4690
    %vm4699 = vmand %vm4683, %vm4691
    %vm4700 = vmand %vm4684, %vm4692
    %vm4701 = vmand %vm4685, %vm4693
    %vm4702 = vmand %vm4686, %vm4694
    %v4703 = vsel %vm4695, 1, 0
    %v4704 = vsel %vm4696, 1, 0
    %v4705 = vsel %vm4697, 1, 0
    %v4706 = vsel %vm4698, 1, 0
    %v4707 = vsel %vm4699, 1, 0
    %v4708 = vsel %vm4700, 1, 0
    %v4709 = vsel %vm4701, 1, 0
    %v4710 = vsel %vm4702, 1, 0
    %vm4711 = vcmp.eq.s32.totalorder %v4703, 1
    %vm4712 = vcmp.eq.s32.totalorder %v4704, 1
    %vm4713 = vcmp.eq.s32.totalorder %v4705, 1
    %vm4714 = vcmp.eq.s32.totalorder %v4706, 1
    %vm4715 = vcmp.eq.s32.totalorder %v4707, 1
    %vm4716 = vcmp.eq.s32.totalorder %v4708, 1
    %vm4717 = vcmp.eq.s32.totalorder %v4709, 1
    %vm4718 = vcmp.eq.s32.totalorder %v4710, 1
    %4719 = vrot.lane.b32.xlu0 %v3758, 31
    %v4720 = vpop.permute.xlu0 %4719
    %4721 = vrot.lane.b32.xlu0 %v3759, 31
    %v4722 = vpop.permute.xlu0 %4721
    %4723 = vrot.lane.b32.xlu0 %v3760, 31
    %v4724 = vpop.permute.xlu0 %4723
    %4725 = vrot.lane.b32.xlu0 %v3761, 31
    %v4726 = vpop.permute.xlu0 %4725
    %4727 = vrot.lane.b32.xlu0 %v3762, 31
    %v4728 = vpop.permute.xlu0 %4727
    %4729 = vrot.lane.b32.xlu0 %v3763, 31
    %v4730 = vpop.permute.xlu0 %4729
    %4731 = vrot.lane.b32.xlu0 %v3764, 31
    %v4732 = vpop.permute.xlu0 %4731
    %4733 = vrot.lane.b32.xlu0 %v3765, 31
    %v4734 = vpop.permute.xlu0 %4733
    %4735 = vrot.lane.b32.xlu0 %v3766, 31
    %v4736 = vpop.permute.xlu0 %4735
    %vm4737 = vcmask 252928
    %v4738 = vsel %vm4737, %v4720, %v4722
    %v4739 = vsel %vm4737, %v4722, %v4724
    %v4740 = vsel %vm4737, %v4724, %v4726
    %v4741 = vsel %vm4737, %v4726, %v4728
    %v4742 = vsel %vm4737, %v4728, %v4730
    %v4743 = vsel %vm4737, %v4730, %v4732
    %v4744 = vsel %vm4737, %v4732, %v4734
    %v4745 = vsel %vm4737, %v4734, %v4736
    %v4754 = vsel %vm4711, %v4738, 0.0
    %v4755 = vsel %vm4712, %v4739, 0.0
    %v4756 = vsel %vm4713, %v4740, 0.0
    %v4757 = vsel %vm4714, %v4741, 0.0
    %v4758 = vsel %vm4715, %v4742, 0.0
    %v4759 = vsel %vm4716, %v4743, 0.0
    %v4760 = vsel %vm4717, %v4744, 0.0
    %v4761 = vsel %vm4718, %v4745, 0.0
    %s4762 = scalar_lea.vmem %s9, 32
    %v4763 = vld [vmem:[%s4762] sm:$0xff]
    %v4764 = vld [vmem:[%s4762 + $0x8] sm:$0x1]
    %v4766 = vsel %vm1370, %v4763, 0
    %v4769 = vsel %vm1370, %v4764, 0
    %4771 = vmatprep.subr.mxu0 0.0
    %4772 = vmatpush1.msra.mxu0 0.0
    %4773 = vmatprep.subr.mxu0 0.0
    %4774 = vmatpush1.msra.mxu0 0.0
    %4775 = vmatprep.subr.mxu0 0.0
    %4776 = vmatpush1.msra.mxu0 0.0
    %4777 = vmatprep.subr.mxu0 0.0
    %4778 = vmatpush1.msra.mxu0 0.0
    %4779 = vmatprep.subr.mxu0 0.0
    %4780 = vmatpush1.msra.mxu0 0.0
    %4781 = vmatprep.subr.mxu0 0.0
    %4782 = vmatpush1.msra.mxu0 0.0
    %4783 = vmatprep.subr.mxu0 0.0
    %4784 = vmatpush1.msra.mxu0 0.0
    %4785 = vmatprep.subr.mxu0 0.0
    %4786 = vmatpush1.msra.mxu0 0.0
    %4787 = vmatprep.subr.mxu0 0.0
    %4788 = vmatpush1.msra.mxu0 0.0
    %4789 = vmatprep.subr.mxu0 0.0
    %4790 = vmatpush1.msra.mxu0 0.0
    %4791 = vmatprep.subr.mxu0 0.0
    %4792 = vmatpush1.msra.mxu0 0.0
    %4793 = vmatprep.subr.mxu0 0.0
    %4794 = vmatpush1.msra.mxu0 0.0
    %4795 = vmatprep.subr.mxu0 0.0
    %4796 = vmatpush1.msra.mxu0 0.0
    %4797 = vmatprep.subr.mxu0 0.0
    %4798 = vmatpush1.msra.mxu0 0.0
    %4799 = vmatprep.subr.mxu0 0.0
    %4800 = vmatpush1.msra.mxu0 0.0
    %4801 = vmatprep.subr.mxu0 %v4755
    %4802 = vmatpush1.msra.mxu0 %v4754
    %4803 = vmatprep.subr.mxu0 0.0
    %4804 = vmatpush2.msra.mxu0 0.0
    %4805 = vmatprep.subr.mxu0 0.0
    %4806 = vmatpush2.msra.mxu0 0.0
    %4807 = vmatprep.subr.mxu0 0.0
    %4808 = vmatpush2.msra.mxu0 0.0
    %4809 = vmatprep.subr.mxu0 0.0
    %4810 = vmatpush2.msra.mxu0 0.0
    %4811 = vmatprep.subr.mxu0 0.0
    %4812 = vmatpush2.msra.mxu0 0.0
    %4813 = vmatprep.subr.mxu0 0.0
    %4814 = vmatpush2.msra.mxu0 0.0
    %4815 = vmatprep.subr.mxu0 0.0
    %4816 = vmatpush2.msra.mxu0 0.0
    %4817 = vmatprep.subr.mxu0 0.0
    %4818 = vmatpush2.msra.mxu0 0.0
    %4819 = vmatprep.subr.mxu0 0.0
    %4820 = vmatpush2.msra.mxu0 0.0
    %4821 = vmatprep.subr.mxu0 0.0
    %4822 = vmatpush2.msra.mxu0 0.0
    %4823 = vmatprep.subr.mxu0 0.0
    %4824 = vmatpush2.msra.mxu0 0.0
    %4825 = vmatprep.subr.mxu0 0.0
    %4826 = vmatpush2.msra.mxu0 0.0
    %4827 = vmatprep.subr.mxu0 0.0
    %4828 = vmatpush2.msra.mxu0 0.0
    %4829 = vmatprep.subr.mxu0 0.0
    %4830 = vmatpush2.msra.mxu0 0.0
    %4831 = vmatprep.subr.mxu0 0.0
    %4832 = vmatpush2.msra.mxu0 0.0
    %4833 = vmatprep.subr.mxu0 0.0
    %4834 = vmatpush2.msra.mxu0 0.0
    %4835 = vmatprep.mubr.f32.mxu0 0.0
    %4836 = vmatmul.mubr.f32.gmra.mxu0 %v4766
    %v4837 = vpop.f32.mrf.mxu0
    %v4838 = vadd.f32 0.0, %v4837
    %v4839 = vpop.f32.mrf.mxu0
    %v4840 = vadd.f32 0.0, %v4839
    %4841 = vmatprep.mubr.f32.mxu0 0.0
    %4842 = vmatmul.mubr.f32.gmra.mxu0 %v4769
    %v4843 = vpop.f32.mrf.mxu0
    %v4844 = vadd.f32 0.0, %v4843
    %v4845 = vpop.f32.mrf.mxu0
    %v4846 = vadd.f32 0.0, %v4845
    %4847 = vdwg.mxu0
    %4848 = vmatprep.subr.mxu0 0.0
    %4849 = vmatpush1.msra.mxu0 0.0
    %4850 = vmatprep.subr.mxu0 0.0
    %4851 = vmatpush1.msra.mxu0 0.0
    %4852 = vmatprep.subr.mxu0 0.0
    %4853 = vmatpush1.msra.mxu0 0.0
    %4854 = vmatprep.subr.mxu0 0.0
    %4855 = vmatpush1.msra.mxu0 0.0
    %4856 = vmatprep.subr.mxu0 0.0
    %4857 = vmatpush1.msra.mxu0 0.0
    %4858 = vmatprep.subr.mxu0 0.0
    %4859 = vmatpush1.msra.mxu0 0.0
    %4860 = vmatprep.subr.mxu0 0.0
    %4861 = vmatpush1.msra.mxu0 0.0
    %4862 = vmatprep.subr.mxu0 0.0
    %4863 = vmatpush1.msra.mxu0 0.0
    %4864 = vmatprep.subr.mxu0 0.0
    %4865 = vmatpush1.msra.mxu0 0.0
    %4866 = vmatprep.subr.mxu0 0.0
    %4867 = vmatpush1.msra.mxu0 0.0
    %4868 = vmatprep.subr.mxu0 0.0
    %4869 = vmatpush1.msra.mxu0 0.0
    %4870 = vmatprep.subr.mxu0 0.0
    %4871 = vmatpush1.msra.mxu0 0.0
    %4872 = vmatprep.subr.mxu0 0.0
    %4873 = vmatpush1.msra.mxu0 0.0
    %4874 = vmatprep.subr.mxu0 0.0
    %4875 = vmatpush1.msra.mxu0 0.0
    %4876 = vmatprep.subr.mxu0 0.0
    %4877 = vmatpush1.msra.mxu0 0.0
    %4878 = vmatprep.subr.mxu0 %v4757
    %4879 = vmatpush1.msra.mxu0 %v4756
    %4880 = vmatprep.subr.mxu0 0.0
    %4881 = vmatpush2.msra.mxu0 0.0
    %4882 = vmatprep.subr.mxu0 0.0
    %4883 = vmatpush2.msra.mxu0 0.0
    %4884 = vmatprep.subr.mxu0 0.0
    %4885 = vmatpush2.msra.mxu0 0.0
    %4886 = vmatprep.subr.mxu0 0.0
    %4887 = vmatpush2.msra.mxu0 0.0
    %4888 = vmatprep.subr.mxu0 0.0
    %4889 = vmatpush2.msra.mxu0 0.0
    %4890 = vmatprep.subr.mxu0 0.0
    %4891 = vmatpush2.msra.mxu0 0.0
    %4892 = vmatprep.subr.mxu0 0.0
    %4893 = vmatpush2.msra.mxu0 0.0
    %4894 = vmatprep.subr.mxu0 0.0
    %4895 = vmatpush2.msra.mxu0 0.0
    %4896 = vmatprep.subr.mxu0 0.0
    %4897 = vmatpush2.msra.mxu0 0.0
    %4898 = vmatprep.subr.mxu0 0.0
    %4899 = vmatpush2.msra.mxu0 0.0
    %4900 = vmatprep.subr.mxu0 0.0
    %4901 = vmatpush2.msra.mxu0 0.0
    %4902 = vmatprep.subr.mxu0 0.0
    %4903 = vmatpush2.msra.mxu0 0.0
    %4904 = vmatprep.subr.mxu0 0.0
    %4905 = vmatpush2.msra.mxu0 0.0
    %4906 = vmatprep.subr.mxu0 0.0
    %4907 = vmatpush2.msra.mxu0 0.0
    %4908 = vmatprep.subr.mxu0 0.0
    %4909 = vmatpush2.msra.mxu0 0.0
    %4910 = vmatprep.subr.mxu0 0.0
    %4911 = vmatpush2.msra.mxu0 0.0
    %4912 = vmatprep.mubr.f32.mxu0 0.0
    %4913 = vmatmul.mubr.f32.gmra.mxu0 %v4766
    %v4914 = vpop.f32.mrf.mxu0
    %v4915 = vadd.f32 0.0, %v4914
    %v4916 = vpop.f32.mrf.mxu0
    %v4917 = vadd.f32 0.0, %v4916
    %4918 = vmatprep.mubr.f32.mxu0 0.0
    %4919 = vmatmul.mubr.f32.gmra.mxu0 %v4769
    %v4920 = vpop.f32.mrf.mxu0
    %v4921 = vadd.f32 0.0, %v4920
    %v4922 = vpop.f32.mrf.mxu0
    %v4923 = vadd.f32 0.0, %v4922
    %4924 = vdwg.mxu0
    %4925 = vmatprep.subr.mxu0 0.0
    %4926 = vmatpush1.msra.mxu0 0.0
    %4927 = vmatprep.subr.mxu0 0.0
    %4928 = vmatpush1.msra.mxu0 0.0
    %4929 = vmatprep.subr.mxu0 0.0
    %4930 = vmatpush1.msra.mxu0 0.0
    %4931 = vmatprep.subr.mxu0 0.0
    %4932 = vmatpush1.msra.mxu0 0.0
    %4933 = vmatprep.subr.mxu0 0.0
    %4934 = vmatpush1.msra.mxu0 0.0
    %4935 = vmatprep.subr.mxu0 0.0
    %4936 = vmatpush1.msra.mxu0 0.0
    %4937 = vmatprep.subr.mxu0 0.0
    %4938 = vmatpush1.msra.mxu0 0.0
    %4939 = vmatprep.subr.mxu0 0.0
    %4940 = vmatpush1.msra.mxu0 0.0
    %4941 = vmatprep.subr.mxu0 0.0
    %4942 = vmatpush1.msra.mxu0 0.0
    %4943 = vmatprep.subr.mxu0 0.0
    %4944 = vmatpush1.msra.mxu0 0.0
    %4945 = vmatprep.subr.mxu0 0.0
    %4946 = vmatpush1.msra.mxu0 0.0
    %4947 = vmatprep.subr.mxu0 0.0
    %4948 = vmatpush1.msra.mxu0 0.0
    %4949 = vmatprep.subr.mxu0 0.0
    %4950 = vmatpush1.msra.mxu0 0.0
    %4951 = vmatprep.subr.mxu0 0.0
    %4952 = vmatpush1.msra.mxu0 0.0
    %4953 = vmatprep.subr.mxu0 0.0
    %4954 = vmatpush1.msra.mxu0 0.0
    %4955 = vmatprep.subr.mxu0 %v4759
    %4956 = vmatpush1.msra.mxu0 %v4758
    %4957 = vmatprep.subr.mxu0 0.0
    %4958 = vmatpush2.msra.mxu0 0.0
    %4959 = vmatprep.subr.mxu0 0.0
    %4960 = vmatpush2.msra.mxu0 0.0
    %4961 = vmatprep.subr.mxu0 0.0
    %4962 = vmatpush2.msra.mxu0 0.0
    %4963 = vmatprep.subr.mxu0 0.0
    %4964 = vmatpush2.msra.mxu0 0.0
    %4965 = vmatprep.subr.mxu0 0.0
    %4966 = vmatpush2.msra.mxu0 0.0
    %4967 = vmatprep.subr.mxu0 0.0
    %4968 = vmatpush2.msra.mxu0 0.0
    %4969 = vmatprep.subr.mxu0 0.0
    %4970 = vmatpush2.msra.mxu0 0.0
    %4971 = vmatprep.subr.mxu0 0.0
    %4972 = vmatpush2.msra.mxu0 0.0
    %4973 = vmatprep.subr.mxu0 0.0
    %4974 = vmatpush2.msra.mxu0 0.0
    %4975 = vmatprep.subr.mxu0 0.0
    %4976 = vmatpush2.msra.mxu0 0.0
    %4977 = vmatprep.subr.mxu0 0.0
    %4978 = vmatpush2.msra.mxu0 0.0
    %4979 = vmatprep.subr.mxu0 0.0
    %4980 = vmatpush2.msra.mxu0 0.0
    %4981 = vmatprep.subr.mxu0 0.0
    %4982 = vmatpush2.msra.mxu0 0.0
    %4983 = vmatprep.subr.mxu0 0.0
    %4984 = vmatpush2.msra.mxu0 0.0
    %4985 = vmatprep.subr.mxu0 0.0
    %4986 = vmatpush2.msra.mxu0 0.0
    %4987 = vmatprep.subr.mxu0 0.0
    %4988 = vmatpush2.msra.mxu0 0.0
    %4989 = vmatprep.mubr.f32.mxu0 0.0
    %4990 = vmatmul.mubr.f32.gmra.mxu0 %v4766
    %v4991 = vpop.f32.mrf.mxu0
    %v4992 = vadd.f32 0.0, %v4991
    %v4993 = vpop.f32.mrf.mxu0
    %v4994 = vadd.f32 0.0, %v4993
    %4995 = vmatprep.mubr.f32.mxu0 0.0
    %4996 = vmatmul.mubr.f32.gmra.mxu0 %v4769
    %v4997 = vpop.f32.mrf.mxu0
    %v4998 = vadd.f32 0.0, %v4997
    %v4999 = vpop.f32.mrf.mxu0
    %v5000 = vadd.f32 0.0, %v4999
    %5001 = vdwg.mxu0
    %5002 = vmatprep.subr.mxu0 0.0
    %5003 = vmatpush1.msra.mxu0 0.0
    %5004 = vmatprep.subr.mxu0 0.0
    %5005 = vmatpush1.msra.mxu0 0.0
    %5006 = vmatprep.subr.mxu0 0.0
    %5007 = vmatpush1.msra.mxu0 0.0
    %5008 = vmatprep.subr.mxu0 0.0
    %5009 = vmatpush1.msra.mxu0 0.0
    %5010 = vmatprep.subr.mxu0 0.0
    %5011 = vmatpush1.msra.mxu0 0.0
    %5012 = vmatprep.subr.mxu0 0.0
    %5013 = vmatpush1.msra.mxu0 0.0
    %5014 = vmatprep.subr.mxu0 0.0
    %5015 = vmatpush1.msra.mxu0 0.0
    %5016 = vmatprep.subr.mxu0 0.0
    %5017 = vmatpush1.msra.mxu0 0.0
    %5018 = vmatprep.subr.mxu0 0.0
    %5019 = vmatpush1.msra.mxu0 0.0
    %5020 = vmatprep.subr.mxu0 0.0
    %5021 = vmatpush1.msra.mxu0 0.0
    %5022 = vmatprep.subr.mxu0 0.0
    %5023 = vmatpush1.msra.mxu0 0.0
    %5024 = vmatprep.subr.mxu0 0.0
    %5025 = vmatpush1.msra.mxu0 0.0
    %5026 = vmatprep.subr.mxu0 0.0
    %5027 = vmatpush1.msra.mxu0 0.0
    %5028 = vmatprep.subr.mxu0 0.0
    %5029 = vmatpush1.msra.mxu0 0.0
    %5030 = vmatprep.subr.mxu0 0.0
    %5031 = vmatpush1.msra.mxu0 0.0
    %5032 = vmatprep.subr.mxu0 %v4761
    %5033 = vmatpush1.msra.mxu0 %v4760
    %5034 = vmatprep.subr.mxu0 0.0
    %5035 = vmatpush2.msra.mxu0 0.0
    %5036 = vmatprep.subr.mxu0 0.0
    %5037 = vmatpush2.msra.mxu0 0.0
    %5038 = vmatprep.subr.mxu0 0.0
    %5039 = vmatpush2.msra.mxu0 0.0
    %5040 = vmatprep.subr.mxu0 0.0
    %5041 = vmatpush2.msra.mxu0 0.0
    %5042 = vmatprep.subr.mxu0 0.0
    %5043 = vmatpush2.msra.mxu0 0.0
    %5044 = vmatprep.subr.mxu0 0.0
    %5045 = vmatpush2.msra.mxu0 0.0
    %5046 = vmatprep.subr.mxu0 0.0
    %5047 = vmatpush2.msra.mxu0 0.0
    %5048 = vmatprep.subr.mxu0 0.0
    %5049 = vmatpush2.msra.mxu0 0.0
    %5050 = vmatprep.subr.mxu0 0.0
    %5051 = vmatpush2.msra.mxu0 0.0
    %5052 = vmatprep.subr.mxu0 0.0
    %5053 = vmatpush2.msra.mxu0 0.0
    %5054 = vmatprep.subr.mxu0 0.0
    %5055 = vmatpush2.msra.mxu0 0.0
    %5056 = vmatprep.subr.mxu0 0.0
    %5057 = vmatpush2.msra.mxu0 0.0
    %5058 = vmatprep.subr.mxu0 0.0
    %5059 = vmatpush2.msra.mxu0 0.0
    %5060 = vmatprep.subr.mxu0 0.0
    %5061 = vmatpush2.msra.mxu0 0.0
    %5062 = vmatprep.subr.mxu0 0.0
    %5063 = vmatpush2.msra.mxu0 0.0
    %5064 = vmatprep.subr.mxu0 0.0
    %5065 = vmatpush2.msra.mxu0 0.0
    %5066 = vmatprep.mubr.f32.mxu0 0.0
    %5067 = vmatmul.mubr.f32.gmra.mxu0 %v4766
    %v5068 = vpop.f32.mrf.mxu0
    %v5069 = vadd.f32 0.0, %v5068
    %v5070 = vpop.f32.mrf.mxu0
    %v5071 = vadd.f32 0.0, %v5070
    %5072 = vmatprep.mubr.f32.mxu0 0.0
    %5073 = vmatmul.mubr.f32.gmra.mxu0 %v4769
    %v5074 = vpop.f32.mrf.mxu0
    %v5075 = vadd.f32 0.0, %v5074
    %v5076 = vpop.f32.mrf.mxu0
    %v5077 = vadd.f32 0.0, %v5076
    %5078 = vdwg.mxu0
    %v5079 = vadd.f32 %v4647, %v4838
    %v5080 = vadd.f32 %v4648, %v4840
    %v5081 = vadd.f32 %v4649, %v4915
    %v5082 = vadd.f32 %v4650, %v4917
    %v5083 = vadd.f32 %v4651, %v4992
    %v5084 = vadd.f32 %v4652, %v4994
    %v5085 = vadd.f32 %v4653, %v5069
    %v5086 = vadd.f32 %v4654, %v5071
    %v5087 = vadd.f32 %v4655, %v4844
    %v5088 = vadd.f32 %v4656, %v4846
    %v5089 = vadd.f32 %v4657, %v4921
    %v5090 = vadd.f32 %v4658, %v4923
    %v5091 = vadd.f32 %v4659, %v4998
    %v5092 = vadd.f32 %v4660, %v5000
    %v5093 = vadd.f32 %v4661, %v5075
    %v5094 = vadd.f32 %v4662, %v5077
    %vm5095 = vcmp.ge.s32.totalorder %v3742, 0
    %vm5096 = vcmp.ge.s32.totalorder %v3743, 0
    %vm5097 = vcmp.ge.s32.totalorder %v3744, 0
    %vm5098 = vcmp.ge.s32.totalorder %v3745, 0
    %vm5099 = vcmp.ge.s32.totalorder %v3746, 0
    %vm5100 = vcmp.ge.s32.totalorder %v3747, 0
    %vm5101 = vcmp.ge.s32.totalorder %v3748, 0
    %vm5102 = vcmp.ge.s32.totalorder %v3749, 0
    %vm5103 = vcmp.lt.s32.totalorder %v3742, 32
    %vm5104 = vcmp.lt.s32.totalorder %v3743, 32
    %vm5105 = vcmp.lt.s32.totalorder %v3744, 32
    %vm5106 = vcmp.lt.s32.totalorder %v3745, 32
    %vm5107 = vcmp.lt.s32.totalorder %v3746, 32
    %vm5108 = vcmp.lt.s32.totalorder %v3747, 32
    %vm5109 = vcmp.lt.s32.totalorder %v3748, 32
    %vm5110 = vcmp.lt.s32.totalorder %v3749, 32
    %vm5111 = vmand %vm5095, %vm5103
    %vm5112 = vmand %vm5096, %vm5104
    %vm5113 = vmand %vm5097, %vm5105
    %vm5114 = vmand %vm5098, %vm5106
    %vm5115 = vmand %vm5099, %vm5107
    %vm5116 = vmand %vm5100, %vm5108
    %vm5117 = vmand %vm5101, %vm5109
    %vm5118 = vmand %vm5102, %vm5110
    %vm5119 = vmand %vm5111, %vm3807
    %vm5120 = vmand %vm5112, %vm3808
    %vm5121 = vmand %vm5113, %vm3809
    %vm5122 = vmand %vm5114, %vm3810
    %vm5123 = vmand %vm5115, %vm3811
    %vm5124 = vmand %vm5116, %vm3812
    %vm5125 = vmand %vm5117, %vm3813
    %vm5126 = vmand %vm5118, %vm3814
    %vm5127 = vmand %vm5119, %vm3823
    %vm5128 = vmand %vm5120, %vm3824
    %vm5129 = vmand %vm5121, %vm3825
    %vm5130 = vmand %vm5122, %vm3826
    %vm5131 = vmand %vm5123, %vm3827
    %vm5132 = vmand %vm5124, %vm3828
    %vm5133 = vmand %vm5125, %vm3829
    %vm5134 = vmand %vm5126, %vm3830
    %v5135 = vsel %vm5127, 1, 0
    %v5136 = vsel %vm5128, 1, 0
    %v5137 = vsel %vm5129, 1, 0
    %v5138 = vsel %vm5130, 1, 0
    %v5139 = vsel %vm5131, 1, 0
    %v5140 = vsel %vm5132, 1, 0
    %v5141 = vsel %vm5133, 1, 0
    %v5142 = vsel %vm5134, 1, 0
    %vm5143 = vcmp.eq.s32.totalorder %v5135, 1
    %vm5144 = vcmp.eq.s32.totalorder %v5136, 1
    %vm5145 = vcmp.eq.s32.totalorder %v5137, 1
    %vm5146 = vcmp.eq.s32.totalorder %v5138, 1
    %vm5147 = vcmp.eq.s32.totalorder %v5139, 1
    %vm5148 = vcmp.eq.s32.totalorder %v5140, 1
    %vm5149 = vcmp.eq.s32.totalorder %v5141, 1
    %vm5150 = vcmp.eq.s32.totalorder %v5142, 1
    %5151 = vrot.lane.b32.xlu0 %v3758, 1
    %v5152 = vpop.permute.xlu0 %5151
    %5153 = vrot.lane.b32.xlu0 %v3759, 1
    %v5154 = vpop.permute.xlu0 %5153
    %5155 = vrot.lane.b32.xlu0 %v3760, 1
    %v5156 = vpop.permute.xlu0 %5155
    %5157 = vrot.lane.b32.xlu0 %v3761, 1
    %v5158 = vpop.permute.xlu0 %5157
    %5159 = vrot.lane.b32.xlu0 %v3762, 1
    %v5160 = vpop.permute.xlu0 %5159
    %5161 = vrot.lane.b32.xlu0 %v3763, 1
    %v5162 = vpop.permute.xlu0 %5161
    %5163 = vrot.lane.b32.xlu0 %v3764, 1
    %v5164 = vpop.permute.xlu0 %5163
    %5165 = vrot.lane.b32.xlu0 %v3765, 1
    %v5166 = vpop.permute.xlu0 %5165
    %5167 = vrot.lane.b32.xlu0 %v3766, 1
    %v5168 = vpop.permute.xlu0 %5167
    %v5169 = vsel %vm624, %v5152, %v5154
    %v5170 = vsel %vm624, %v5154, %v5156
    %v5171 = vsel %vm624, %v5156, %v5158
    %v5172 = vsel %vm624, %v5158, %v5160
    %v5173 = vsel %vm624, %v5160, %v5162
    %v5174 = vsel %vm624, %v5162, %v5164
    %v5175 = vsel %vm624, %v5164, %v5166
    %v5176 = vsel %vm624, %v5166, %v5168
    %v5185 = vsel %vm5143, %v5169, 0.0
    %v5186 = vsel %vm5144, %v5170, 0.0
    %v5187 = vsel %vm5145, %v5171, 0.0
    %v5188 = vsel %vm5146, %v5172, 0.0
    %v5189 = vsel %vm5147, %v5173, 0.0
    %v5190 = vsel %vm5148, %v5174, 0.0
    %v5191 = vsel %vm5149, %v5175, 0.0
    %v5192 = vsel %vm5150, %v5176, 0.0
    %s5193 = scalar_lea.vmem %s9, 48
    %v5194 = vld [vmem:[%s5193] sm:$0xff]
    %v5195 = vld [vmem:[%s5193 + $0x8] sm:$0x1]
    %v5197 = vsel %vm1370, %v5194, 0
    %v5200 = vsel %vm1370, %v5195, 0
    %5202 = vmatprep.subr.mxu0 0.0
    %5203 = vmatpush1.msra.mxu0 0.0
    %5204 = vmatprep.subr.mxu0 0.0
    %5205 = vmatpush1.msra.mxu0 0.0
    %5206 = vmatprep.subr.mxu0 0.0
    %5207 = vmatpush1.msra.mxu0 0.0
    %5208 = vmatprep.subr.mxu0 0.0
    %5209 = vmatpush1.msra.mxu0 0.0
    %5210 = vmatprep.subr.mxu0 0.0
    %5211 = vmatpush1.msra.mxu0 0.0
    %5212 = vmatprep.subr.mxu0 0.0
    %5213 = vmatpush1.msra.mxu0 0.0
    %5214 = vmatprep.subr.mxu0 0.0
    %5215 = vmatpush1.msra.mxu0 0.0
    %5216 = vmatprep.subr.mxu0 0.0
    %5217 = vmatpush1.msra.mxu0 0.0
    %5218 = vmatprep.subr.mxu0 0.0
    %5219 = vmatpush1.msra.mxu0 0.0
    %5220 = vmatprep.subr.mxu0 0.0
    %5221 = vmatpush1.msra.mxu0 0.0
    %5222 = vmatprep.subr.mxu0 0.0
    %5223 = vmatpush1.msra.mxu0 0.0
    %5224 = vmatprep.subr.mxu0 0.0
    %5225 = vmatpush1.msra.mxu0 0.0
    %5226 = vmatprep.subr.mxu0 0.0
    %5227 = vmatpush1.msra.mxu0 0.0
    %5228 = vmatprep.subr.mxu0 0.0
    %5229 = vmatpush1.msra.mxu0 0.0
    %5230 = vmatprep.subr.mxu0 0.0
    %5231 = vmatpush1.msra.mxu0 0.0
    %5232 = vmatprep.subr.mxu0 %v5186
    %5233 = vmatpush1.msra.mxu0 %v5185
    %5234 = vmatprep.subr.mxu0 0.0
    %5235 = vmatpush2.msra.mxu0 0.0
    %5236 = vmatprep.subr.mxu0 0.0
    %5237 = vmatpush2.msra.mxu0 0.0
    %5238 = vmatprep.subr.mxu0 0.0
    %5239 = vmatpush2.msra.mxu0 0.0
    %5240 = vmatprep.subr.mxu0 0.0
    %5241 = vmatpush2.msra.mxu0 0.0
    %5242 = vmatprep.subr.mxu0 0.0
    %5243 = vmatpush2.msra.mxu0 0.0
    %5244 = vmatprep.subr.mxu0 0.0
    %5245 = vmatpush2.msra.mxu0 0.0
    %5246 = vmatprep.subr.mxu0 0.0
    %5247 = vmatpush2.msra.mxu0 0.0
    %5248 = vmatprep.subr.mxu0 0.0
    %5249 = vmatpush2.msra.mxu0 0.0
    %5250 = vmatprep.subr.mxu0 0.0
    %5251 = vmatpush2.msra.mxu0 0.0
    %5252 = vmatprep.subr.mxu0 0.0
    %5253 = vmatpush2.msra.mxu0 0.0
    %5254 = vmatprep.subr.mxu0 0.0
    %5255 = vmatpush2.msra.mxu0 0.0
    %5256 = vmatprep.subr.mxu0 0.0
    %5257 = vmatpush2.msra.mxu0 0.0
    %5258 = vmatprep.subr.mxu0 0.0
    %5259 = vmatpush2.msra.mxu0 0.0
    %5260 = vmatprep.subr.mxu0 0.0
    %5261 = vmatpush2.msra.mxu0 0.0
    %5262 = vmatprep.subr.mxu0 0.0
    %5263 = vmatpush2.msra.mxu0 0.0
    %5264 = vmatprep.subr.mxu0 0.0
    %5265 = vmatpush2.msra.mxu0 0.0
    %5266 = vmatprep.mubr.f32.mxu0 0.0
    %5267 = vmatmul.mubr.f32.gmra.mxu0 %v5197
    %v5268 = vpop.f32.mrf.mxu0
    %v5269 = vadd.f32 0.0, %v5268
    %v5270 = vpop.f32.mrf.mxu0
    %v5271 = vadd.f32 0.0, %v5270
    %5272 = vmatprep.mubr.f32.mxu0 0.0
    %5273 = vmatmul.mubr.f32.gmra.mxu0 %v5200
    %v5274 = vpop.f32.mrf.mxu0
    %v5275 = vadd.f32 0.0, %v5274
    %v5276 = vpop.f32.mrf.mxu0
    %v5277 = vadd.f32 0.0, %v5276
    %5278 = vdwg.mxu0
    %5279 = vmatprep.subr.mxu0 0.0
    %5280 = vmatpush1.msra.mxu0 0.0
    %5281 = vmatprep.subr.mxu0 0.0
    %5282 = vmatpush1.msra.mxu0 0.0
    %5283 = vmatprep.subr.mxu0 0.0
    %5284 = vmatpush1.msra.mxu0 0.0
    %5285 = vmatprep.subr.mxu0 0.0
    %5286 = vmatpush1.msra.mxu0 0.0
    %5287 = vmatprep.subr.mxu0 0.0
    %5288 = vmatpush1.msra.mxu0 0.0
    %5289 = vmatprep.subr.mxu0 0.0
    %5290 = vmatpush1.msra.mxu0 0.0
    %5291 = vmatprep.subr.mxu0 0.0
    %5292 = vmatpush1.msra.mxu0 0.0
    %5293 = vmatprep.subr.mxu0 0.0
    %5294 = vmatpush1.msra.mxu0 0.0
    %5295 = vmatprep.subr.mxu0 0.0
    %5296 = vmatpush1.msra.mxu0 0.0
    %5297 = vmatprep.subr.mxu0 0.0
    %5298 = vmatpush1.msra.mxu0 0.0
    %5299 = vmatprep.subr.mxu0 0.0
    %5300 = vmatpush1.msra.mxu0 0.0
    %5301 = vmatprep.subr.mxu0 0.0
    %5302 = vmatpush1.msra.mxu0 0.0
    %5303 = vmatprep.subr.mxu0 0.0
    %5304 = vmatpush1.msra.mxu0 0.0
    %5305 = vmatprep.subr.mxu0 0.0
    %5306 = vmatpush1.msra.mxu0 0.0
    %5307 = vmatprep.subr.mxu0 0.0
    %5308 = vmatpush1.msra.mxu0 0.0
    %5309 = vmatprep.subr.mxu0 %v5188
    %5310 = vmatpush1.msra.mxu0 %v5187
    %5311 = vmatprep.subr.mxu0 0.0
    %5312 = vmatpush2.msra.mxu0 0.0
    %5313 = vmatprep.subr.mxu0 0.0
    %5314 = vmatpush2.msra.mxu0 0.0
    %5315 = vmatprep.subr.mxu0 0.0
    %5316 = vmatpush2.msra.mxu0 0.0
    %5317 = vmatprep.subr.mxu0 0.0
    %5318 = vmatpush2.msra.mxu0 0.0
    %5319 = vmatprep.subr.mxu0 0.0
    %5320 = vmatpush2.msra.mxu0 0.0
    %5321 = vmatprep.subr.mxu0 0.0
    %5322 = vmatpush2.msra.mxu0 0.0
    %5323 = vmatprep.subr.mxu0 0.0
    %5324 = vmatpush2.msra.mxu0 0.0
    %5325 = vmatprep.subr.mxu0 0.0
    %5326 = vmatpush2.msra.mxu0 0.0
    %5327 = vmatprep.subr.mxu0 0.0
    %5328 = vmatpush2.msra.mxu0 0.0
    %5329 = vmatprep.subr.mxu0 0.0
    %5330 = vmatpush2.msra.mxu0 0.0
    %5331 = vmatprep.subr.mxu0 0.0
    %5332 = vmatpush2.msra.mxu0 0.0
    %5333 = vmatprep.subr.mxu0 0.0
    %5334 = vmatpush2.msra.mxu0 0.0
    %5335 = vmatprep.subr.mxu0 0.0
    %5336 = vmatpush2.msra.mxu0 0.0
    %5337 = vmatprep.subr.mxu0 0.0
    %5338 = vmatpush2.msra.mxu0 0.0
    %5339 = vmatprep.subr.mxu0 0.0
    %5340 = vmatpush2.msra.mxu0 0.0
    %5341 = vmatprep.subr.mxu0 0.0
    %5342 = vmatpush2.msra.mxu0 0.0
    %5343 = vmatprep.mubr.f32.mxu0 0.0
    %5344 = vmatmul.mubr.f32.gmra.mxu0 %v5197
    %v5345 = vpop.f32.mrf.mxu0
    %v5346 = vadd.f32 0.0, %v5345
    %v5347 = vpop.f32.mrf.mxu0
    %v5348 = vadd.f32 0.0, %v5347
    %5349 = vmatprep.mubr.f32.mxu0 0.0
    %5350 = vmatmul.mubr.f32.gmra.mxu0 %v5200
    %v5351 = vpop.f32.mrf.mxu0
    %v5352 = vadd.f32 0.0, %v5351
    %v5353 = vpop.f32.mrf.mxu0
    %v5354 = vadd.f32 0.0, %v5353
    %5355 = vdwg.mxu0
    %5356 = vmatprep.subr.mxu0 0.0
    %5357 = vmatpush1.msra.mxu0 0.0
    %5358 = vmatprep.subr.mxu0 0.0
    %5359 = vmatpush1.msra.mxu0 0.0
    %5360 = vmatprep.subr.mxu0 0.0
    %5361 = vmatpush1.msra.mxu0 0.0
    %5362 = vmatprep.subr.mxu0 0.0
    %5363 = vmatpush1.msra.mxu0 0.0
    %5364 = vmatprep.subr.mxu0 0.0
    %5365 = vmatpush1.msra.mxu0 0.0
    %5366 = vmatprep.subr.mxu0 0.0
    %5367 = vmatpush1.msra.mxu0 0.0
    %5368 = vmatprep.subr.mxu0 0.0
    %5369 = vmatpush1.msra.mxu0 0.0
    %5370 = vmatprep.subr.mxu0 0.0
    %5371 = vmatpush1.msra.mxu0 0.0
    %5372 = vmatprep.subr.mxu0 0.0
    %5373 = vmatpush1.msra.mxu0 0.0
    %5374 = vmatprep.subr.mxu0 0.0
    %5375 = vmatpush1.msra.mxu0 0.0
    %5376 = vmatprep.subr.mxu0 0.0
    %5377 = vmatpush1.msra.mxu0 0.0
    %5378 = vmatprep.subr.mxu0 0.0
    %5379 = vmatpush1.msra.mxu0 0.0
    %5380 = vmatprep.subr.mxu0 0.0
    %5381 = vmatpush1.msra.mxu0 0.0
    %5382 = vmatprep.subr.mxu0 0.0
    %5383 = vmatpush1.msra.mxu0 0.0
    %5384 = vmatprep.subr.mxu0 0.0
    %5385 = vmatpush1.msra.mxu0 0.0
    %5386 = vmatprep.subr.mxu0 %v5190
    %5387 = vmatpush1.msra.mxu0 %v5189
    %5388 = vmatprep.subr.mxu0 0.0
    %5389 = vmatpush2.msra.mxu0 0.0
    %5390 = vmatprep.subr.mxu0 0.0
    %5391 = vmatpush2.msra.mxu0 0.0
    %5392 = vmatprep.subr.mxu0 0.0
    %5393 = vmatpush2.msra.mxu0 0.0
    %5394 = vmatprep.subr.mxu0 0.0
    %5395 = vmatpush2.msra.mxu0 0.0
    %5396 = vmatprep.subr.mxu0 0.0
    %5397 = vmatpush2.msra.mxu0 0.0
    %5398 = vmatprep.subr.mxu0 0.0
    %5399 = vmatpush2.msra.mxu0 0.0
    %5400 = vmatprep.subr.mxu0 0.0
    %5401 = vmatpush2.msra.mxu0 0.0
    %5402 = vmatprep.subr.mxu0 0.0
    %5403 = vmatpush2.msra.mxu0 0.0
    %5404 = vmatprep.subr.mxu0 0.0
    %5405 = vmatpush2.msra.mxu0 0.0
    %5406 = vmatprep.subr.mxu0 0.0
    %5407 = vmatpush2.msra.mxu0 0.0
    %5408 = vmatprep.subr.mxu0 0.0
    %5409 = vmatpush2.msra.mxu0 0.0
    %5410 = vmatprep.subr.mxu0 0.0
    %5411 = vmatpush2.msra.mxu0 0.0
    %5412 = vmatprep.subr.mxu0 0.0
    %5413 = vmatpush2.msra.mxu0 0.0
    %5414 = vmatprep.subr.mxu0 0.0
    %5415 = vmatpush2.msra.mxu0 0.0
    %5416 = vmatprep.subr.mxu0 0.0
    %5417 = vmatpush2.msra.mxu0 0.0
    %5418 = vmatprep.subr.mxu0 0.0
    %5419 = vmatpush2.msra.mxu0 0.0
    %5420 = vmatprep.mubr.f32.mxu0 0.0
    %5421 = vmatmul.mubr.f32.gmra.mxu0 %v5197
    %v5422 = vpop.f32.mrf.mxu0
    %v5423 = vadd.f32 0.0, %v5422
    %v5424 = vpop.f32.mrf.mxu0
    %v5425 = vadd.f32 0.0, %v5424
    %5426 = vmatprep.mubr.f32.mxu0 0.0
    %5427 = vmatmul.mubr.f32.gmra.mxu0 %v5200
    %v5428 = vpop.f32.mrf.mxu0
    %v5429 = vadd.f32 0.0, %v5428
    %v5430 = vpop.f32.mrf.mxu0
    %v5431 = vadd.f32 0.0, %v5430
    %5432 = vdwg.mxu0
    %5433 = vmatprep.subr.mxu0 0.0
    %5434 = vmatpush1.msra.mxu0 0.0
    %5435 = vmatprep.subr.mxu0 0.0
    %5436 = vmatpush1.msra.mxu0 0.0
    %5437 = vmatprep.subr.mxu0 0.0
    %5438 = vmatpush1.msra.mxu0 0.0
    %5439 = vmatprep.subr.mxu0 0.0
    %5440 = vmatpush1.msra.mxu0 0.0
    %5441 = vmatprep.subr.mxu0 0.0
    %5442 = vmatpush1.msra.mxu0 0.0
    %5443 = vmatprep.subr.mxu0 0.0
    %5444 = vmatpush1.msra.mxu0 0.0
    %5445 = vmatprep.subr.mxu0 0.0
    %5446 = vmatpush1.msra.mxu0 0.0
    %5447 = vmatprep.subr.mxu0 0.0
    %5448 = vmatpush1.msra.mxu0 0.0
    %5449 = vmatprep.subr.mxu0 0.0
    %5450 = vmatpush1.msra.mxu0 0.0
    %5451 = vmatprep.subr.mxu0 0.0
    %5452 = vmatpush1.msra.mxu0 0.0
    %5453 = vmatprep.subr.mxu0 0.0
    %5454 = vmatpush1.msra.mxu0 0.0
    %5455 = vmatprep.subr.mxu0 0.0
    %5456 = vmatpush1.msra.mxu0 0.0
    %5457 = vmatprep.subr.mxu0 0.0
    %5458 = vmatpush1.msra.mxu0 0.0
    %5459 = vmatprep.subr.mxu0 0.0
    %5460 = vmatpush1.msra.mxu0 0.0
    %5461 = vmatprep.subr.mxu0 0.0
    %5462 = vmatpush1.msra.mxu0 0.0
    %5463 = vmatprep.subr.mxu0 %v5192
    %5464 = vmatpush1.msra.mxu0 %v5191
    %5465 = vmatprep.subr.mxu0 0.0
    %5466 = vmatpush2.msra.mxu0 0.0
    %5467 = vmatprep.subr.mxu0 0.0
    %5468 = vmatpush2.msra.mxu0 0.0
    %5469 = vmatprep.subr.mxu0 0.0
    %5470 = vmatpush2.msra.mxu0 0.0
    %5471 = vmatprep.subr.mxu0 0.0
    %5472 = vmatpush2.msra.mxu0 0.0
    %5473 = vmatprep.subr.mxu0 0.0
    %5474 = vmatpush2.msra.mxu0 0.0
    %5475 = vmatprep.subr.mxu0 0.0
    %5476 = vmatpush2.msra.mxu0 0.0
    %5477 = vmatprep.subr.mxu0 0.0
    %5478 = vmatpush2.msra.mxu0 0.0
    %5479 = vmatprep.subr.mxu0 0.0
    %5480 = vmatpush2.msra.mxu0 0.0
    %5481 = vmatprep.subr.mxu0 0.0
    %5482 = vmatpush2.msra.mxu0 0.0
    %5483 = vmatprep.subr.mxu0 0.0
    %5484 = vmatpush2.msra.mxu0 0.0
    %5485 = vmatprep.subr.mxu0 0.0
    %5486 = vmatpush2.msra.mxu0 0.0
    %5487 = vmatprep.subr.mxu0 0.0
    %5488 = vmatpush2.msra.mxu0 0.0
    %5489 = vmatprep.subr.mxu0 0.0
    %5490 = vmatpush2.msra.mxu0 0.0
    %5491 = vmatprep.subr.mxu0 0.0
    %5492 = vmatpush2.msra.mxu0 0.0
    %5493 = vmatprep.subr.mxu0 0.0
    %5494 = vmatpush2.msra.mxu0 0.0
    %5495 = vmatprep.subr.mxu0 0.0
    %5496 = vmatpush2.msra.mxu0 0.0
    %5497 = vmatprep.mubr.f32.mxu0 0.0
    %5498 = vmatmul.mubr.f32.gmra.mxu0 %v5197
    %v5499 = vpop.f32.mrf.mxu0
    %v5500 = vadd.f32 0.0, %v5499
    %v5501 = vpop.f32.mrf.mxu0
    %v5502 = vadd.f32 0.0, %v5501
    %5503 = vmatprep.mubr.f32.mxu0 0.0
    %5504 = vmatmul.mubr.f32.gmra.mxu0 %v5200
    %v5505 = vpop.f32.mrf.mxu0
    %v5506 = vadd.f32 0.0, %v5505
    %v5507 = vpop.f32.mrf.mxu0
    %v5508 = vadd.f32 0.0, %v5507
    %5509 = vdwg.mxu0
    %v5510 = vadd.f32 %v5079, %v5269
    %v5511 = vadd.f32 %v5080, %v5271
    %v5512 = vadd.f32 %v5081, %v5346
    %v5513 = vadd.f32 %v5082, %v5348
    %v5514 = vadd.f32 %v5083, %v5423
    %v5515 = vadd.f32 %v5084, %v5425
    %v5516 = vadd.f32 %v5085, %v5500
    %v5517 = vadd.f32 %v5086, %v5502
    %v5518 = vadd.f32 %v5087, %v5275
    %v5519 = vadd.f32 %v5088, %v5277
    %v5520 = vadd.f32 %v5089, %v5352
    %v5521 = vadd.f32 %v5090, %v5354
    %v5522 = vadd.f32 %v5091, %v5429
    %v5523 = vadd.f32 %v5092, %v5431
    %v5524 = vadd.f32 %v5093, %v5506
    %v5525 = vadd.f32 %v5094, %v5508
    %s5526 = scalar_lea.vmem %s9, 64
    %v5527 = vld [vmem:[%s5526] sm:$0xff]
    %v5528 = vld [vmem:[%s5526 + $0x8] sm:$0x1]
    %v5530 = vsel %vm1370, %v5527, 0
    %v5533 = vsel %vm1370, %v5528, 0
    %5535 = vmatprep.subr.mxu0 0.0
    %5536 = vmatpush1.msra.mxu0 0.0
    %5537 = vmatprep.subr.mxu0 0.0
    %5538 = vmatpush1.msra.mxu0 0.0
    %5539 = vmatprep.subr.mxu0 0.0
    %5540 = vmatpush1.msra.mxu0 0.0
    %5541 = vmatprep.subr.mxu0 0.0
    %5542 = vmatpush1.msra.mxu0 0.0
    %5543 = vmatprep.subr.mxu0 0.0
    %5544 = vmatpush1.msra.mxu0 0.0
    %5545 = vmatprep.subr.mxu0 0.0
    %5546 = vmatpush1.msra.mxu0 0.0
    %5547 = vmatprep.subr.mxu0 0.0
    %5548 = vmatpush1.msra.mxu0 0.0
    %5549 = vmatprep.subr.mxu0 0.0
    %5550 = vmatpush1.msra.mxu0 0.0
    %5551 = vmatprep.subr.mxu0 0.0
    %5552 = vmatpush1.msra.mxu0 0.0
    %5553 = vmatprep.subr.mxu0 0.0
    %5554 = vmatpush1.msra.mxu0 0.0
    %5555 = vmatprep.subr.mxu0 0.0
    %5556 = vmatpush1.msra.mxu0 0.0
    %5557 = vmatprep.subr.mxu0 0.0
    %5558 = vmatpush1.msra.mxu0 0.0
    %5559 = vmatprep.subr.mxu0 0.0
    %5560 = vmatpush1.msra.mxu0 0.0
    %5561 = vmatprep.subr.mxu0 0.0
    %5562 = vmatpush1.msra.mxu0 0.0
    %5563 = vmatprep.subr.mxu0 0.0
    %5564 = vmatpush1.msra.mxu0 0.0
    %5565 = vmatprep.subr.mxu0 %v3760
    %5566 = vmatpush1.msra.mxu0 %v3759
    %5567 = vmatprep.subr.mxu0 0.0
    %5568 = vmatpush2.msra.mxu0 0.0
    %5569 = vmatprep.subr.mxu0 0.0
    %5570 = vmatpush2.msra.mxu0 0.0
    %5571 = vmatprep.subr.mxu0 0.0
    %5572 = vmatpush2.msra.mxu0 0.0
    %5573 = vmatprep.subr.mxu0 0.0
    %5574 = vmatpush2.msra.mxu0 0.0
    %5575 = vmatprep.subr.mxu0 0.0
    %5576 = vmatpush2.msra.mxu0 0.0
    %5577 = vmatprep.subr.mxu0 0.0
    %5578 = vmatpush2.msra.mxu0 0.0
    %5579 = vmatprep.subr.mxu0 0.0
    %5580 = vmatpush2.msra.mxu0 0.0
    %5581 = vmatprep.subr.mxu0 0.0
    %5582 = vmatpush2.msra.mxu0 0.0
    %5583 = vmatprep.subr.mxu0 0.0
    %5584 = vmatpush2.msra.mxu0 0.0
    %5585 = vmatprep.subr.mxu0 0.0
    %5586 = vmatpush2.msra.mxu0 0.0
    %5587 = vmatprep.subr.mxu0 0.0
    %5588 = vmatpush2.msra.mxu0 0.0
    %5589 = vmatprep.subr.mxu0 0.0
    %5590 = vmatpush2.msra.mxu0 0.0
    %5591 = vmatprep.subr.mxu0 0.0
    %5592 = vmatpush2.msra.mxu0 0.0
    %5593 = vmatprep.subr.mxu0 0.0
    %5594 = vmatpush2.msra.mxu0 0.0
    %5595 = vmatprep.subr.mxu0 0.0
    %5596 = vmatpush2.msra.mxu0 0.0
    %5597 = vmatprep.subr.mxu0 0.0
    %5598 = vmatpush2.msra.mxu0 0.0
    %5599 = vmatprep.mubr.f32.mxu0 0.0
    %5600 = vmatmul.mubr.f32.gmra.mxu0 %v5530
    %v5601 = vpop.f32.mrf.mxu0
    %v5602 = vadd.f32 0.0, %v5601
    %v5603 = vpop.f32.mrf.mxu0
    %v5604 = vadd.f32 0.0, %v5603
    %5605 = vmatprep.mubr.f32.mxu0 0.0
    %5606 = vmatmul.mubr.f32.gmra.mxu0 %v5533
    %v5607 = vpop.f32.mrf.mxu0
    %v5608 = vadd.f32 0.0, %v5607
    %v5609 = vpop.f32.mrf.mxu0
    %v5610 = vadd.f32 0.0, %v5609
    %5611 = vdwg.mxu0
    %5612 = vmatprep.subr.mxu0 0.0
    %5613 = vmatpush1.msra.mxu0 0.0
    %5614 = vmatprep.subr.mxu0 0.0
    %5615 = vmatpush1.msra.mxu0 0.0
    %5616 = vmatprep.subr.mxu0 0.0
    %5617 = vmatpush1.msra.mxu0 0.0
    %5618 = vmatprep.subr.mxu0 0.0
    %5619 = vmatpush1.msra.mxu0 0.0
    %5620 = vmatprep.subr.mxu0 0.0
    %5621 = vmatpush1.msra.mxu0 0.0
    %5622 = vmatprep.subr.mxu0 0.0
    %5623 = vmatpush1.msra.mxu0 0.0
    %5624 = vmatprep.subr.mxu0 0.0
    %5625 = vmatpush1.msra.mxu0 0.0
    %5626 = vmatprep.subr.mxu0 0.0
    %5627 = vmatpush1.msra.mxu0 0.0
    %5628 = vmatprep.subr.mxu0 0.0
    %5629 = vmatpush1.msra.mxu0 0.0
    %5630 = vmatprep.subr.mxu0 0.0
    %5631 = vmatpush1.msra.mxu0 0.0
    %5632 = vmatprep.subr.mxu0 0.0
    %5633 = vmatpush1.msra.mxu0 0.0
    %5634 = vmatprep.subr.mxu0 0.0
    %5635 = vmatpush1.msra.mxu0 0.0
    %5636 = vmatprep.subr.mxu0 0.0
    %5637 = vmatpush1.msra.mxu0 0.0
    %5638 = vmatprep.subr.mxu0 0.0
    %5639 = vmatpush1.msra.mxu0 0.0
    %5640 = vmatprep.subr.mxu0 0.0
    %5641 = vmatpush1.msra.mxu0 0.0
    %5642 = vmatprep.subr.mxu0 %v3762
    %5643 = vmatpush1.msra.mxu0 %v3761
    %5644 = vmatprep.subr.mxu0 0.0
    %5645 = vmatpush2.msra.mxu0 0.0
    %5646 = vmatprep.subr.mxu0 0.0
    %5647 = vmatpush2.msra.mxu0 0.0
    %5648 = vmatprep.subr.mxu0 0.0
    %5649 = vmatpush2.msra.mxu0 0.0
    %5650 = vmatprep.subr.mxu0 0.0
    %5651 = vmatpush2.msra.mxu0 0.0
    %5652 = vmatprep.subr.mxu0 0.0
    %5653 = vmatpush2.msra.mxu0 0.0
    %5654 = vmatprep.subr.mxu0 0.0
    %5655 = vmatpush2.msra.mxu0 0.0
    %5656 = vmatprep.subr.mxu0 0.0
    %5657 = vmatpush2.msra.mxu0 0.0
    %5658 = vmatprep.subr.mxu0 0.0
    %5659 = vmatpush2.msra.mxu0 0.0
    %5660 = vmatprep.subr.mxu0 0.0
    %5661 = vmatpush2.msra.mxu0 0.0
    %5662 = vmatprep.subr.mxu0 0.0
    %5663 = vmatpush2.msra.mxu0 0.0
    %5664 = vmatprep.subr.mxu0 0.0
    %5665 = vmatpush2.msra.mxu0 0.0
    %5666 = vmatprep.subr.mxu0 0.0
    %5667 = vmatpush2.msra.mxu0 0.0
    %5668 = vmatprep.subr.mxu0 0.0
    %5669 = vmatpush2.msra.mxu0 0.0
    %5670 = vmatprep.subr.mxu0 0.0
    %5671 = vmatpush2.msra.mxu0 0.0
    %5672 = vmatprep.subr.mxu0 0.0
    %5673 = vmatpush2.msra.mxu0 0.0
    %5674 = vmatprep.subr.mxu0 0.0
    %5675 = vmatpush2.msra.mxu0 0.0
    %5676 = vmatprep.mubr.f32.mxu0 0.0
    %5677 = vmatmul.mubr.f32.gmra.mxu0 %v5530
    %v5678 = vpop.f32.mrf.mxu0
    %v5679 = vadd.f32 0.0, %v5678
    %v5680 = vpop.f32.mrf.mxu0
    %v5681 = vadd.f32 0.0, %v5680
    %5682 = vmatprep.mubr.f32.mxu0 0.0
    %5683 = vmatmul.mubr.f32.gmra.mxu0 %v5533
    %v5684 = vpop.f32.mrf.mxu0
    %v5685 = vadd.f32 0.0, %v5684
    %v5686 = vpop.f32.mrf.mxu0
    %v5687 = vadd.f32 0.0, %v5686
    %5688 = vdwg.mxu0
    %5689 = vmatprep.subr.mxu0 0.0
    %5690 = vmatpush1.msra.mxu0 0.0
    %5691 = vmatprep.subr.mxu0 0.0
    %5692 = vmatpush1.msra.mxu0 0.0
    %5693 = vmatprep.subr.mxu0 0.0
    %5694 = vmatpush1.msra.mxu0 0.0
    %5695 = vmatprep.subr.mxu0 0.0
    %5696 = vmatpush1.msra.mxu0 0.0
    %5697 = vmatprep.subr.mxu0 0.0
    %5698 = vmatpush1.msra.mxu0 0.0
    %5699 = vmatprep.subr.mxu0 0.0
    %5700 = vmatpush1.msra.mxu0 0.0
    %5701 = vmatprep.subr.mxu0 0.0
    %5702 = vmatpush1.msra.mxu0 0.0
    %5703 = vmatprep.subr.mxu0 0.0
    %5704 = vmatpush1.msra.mxu0 0.0
    %5705 = vmatprep.subr.mxu0 0.0
    %5706 = vmatpush1.msra.mxu0 0.0
    %5707 = vmatprep.subr.mxu0 0.0
    %5708 = vmatpush1.msra.mxu0 0.0
    %5709 = vmatprep.subr.mxu0 0.0
    %5710 = vmatpush1.msra.mxu0 0.0
    %5711 = vmatprep.subr.mxu0 0.0
    %5712 = vmatpush1.msra.mxu0 0.0
    %5713 = vmatprep.subr.mxu0 0.0
    %5714 = vmatpush1.msra.mxu0 0.0
    %5715 = vmatprep.subr.mxu0 0.0
    %5716 = vmatpush1.msra.mxu0 0.0
    %5717 = vmatprep.subr.mxu0 0.0
    %5718 = vmatpush1.msra.mxu0 0.0
    %5719 = vmatprep.subr.mxu0 %v3764
    %5720 = vmatpush1.msra.mxu0 %v3763
    %5721 = vmatprep.subr.mxu0 0.0
    %5722 = vmatpush2.msra.mxu0 0.0
    %5723 = vmatprep.subr.mxu0 0.0
    %5724 = vmatpush2.msra.mxu0 0.0
    %5725 = vmatprep.subr.mxu0 0.0
    %5726 = vmatpush2.msra.mxu0 0.0
    %5727 = vmatprep.subr.mxu0 0.0
    %5728 = vmatpush2.msra.mxu0 0.0
    %5729 = vmatprep.subr.mxu0 0.0
    %5730 = vmatpush2.msra.mxu0 0.0
    %5731 = vmatprep.subr.mxu0 0.0
    %5732 = vmatpush2.msra.mxu0 0.0
    %5733 = vmatprep.subr.mxu0 0.0
    %5734 = vmatpush2.msra.mxu0 0.0
    %5735 = vmatprep.subr.mxu0 0.0
    %5736 = vmatpush2.msra.mxu0 0.0
    %5737 = vmatprep.subr.mxu0 0.0
    %5738 = vmatpush2.msra.mxu0 0.0
    %5739 = vmatprep.subr.mxu0 0.0
    %5740 = vmatpush2.msra.mxu0 0.0
    %5741 = vmatprep.subr.mxu0 0.0
    %5742 = vmatpush2.msra.mxu0 0.0
    %5743 = vmatprep.subr.mxu0 0.0
    %5744 = vmatpush2.msra.mxu0 0.0
    %5745 = vmatprep.subr.mxu0 0.0
    %5746 = vmatpush2.msra.mxu0 0.0
    %5747 = vmatprep.subr.mxu0 0.0
    %5748 = vmatpush2.msra.mxu0 0.0
    %5749 = vmatprep.subr.mxu0 0.0
    %5750 = vmatpush2.msra.mxu0 0.0
    %5751 = vmatprep.subr.mxu0 0.0
    %5752 = vmatpush2.msra.mxu0 0.0
    %5753 = vmatprep.mubr.f32.mxu0 0.0
    %5754 = vmatmul.mubr.f32.gmra.mxu0 %v5530
    %v5755 = vpop.f32.mrf.mxu0
    %v5756 = vadd.f32 0.0, %v5755
    %v5757 = vpop.f32.mrf.mxu0
    %v5758 = vadd.f32 0.0, %v5757
    %5759 = vmatprep.mubr.f32.mxu0 0.0
    %5760 = vmatmul.mubr.f32.gmra.mxu0 %v5533
    %v5761 = vpop.f32.mrf.mxu0
    %v5762 = vadd.f32 0.0, %v5761
    %v5763 = vpop.f32.mrf.mxu0
    %v5764 = vadd.f32 0.0, %v5763
    %5765 = vdwg.mxu0
    %5766 = vmatprep.subr.mxu0 0.0
    %5767 = vmatpush1.msra.mxu0 0.0
    %5768 = vmatprep.subr.mxu0 0.0
    %5769 = vmatpush1.msra.mxu0 0.0
    %5770 = vmatprep.subr.mxu0 0.0
    %5771 = vmatpush1.msra.mxu0 0.0
    %5772 = vmatprep.subr.mxu0 0.0
    %5773 = vmatpush1.msra.mxu0 0.0
    %5774 = vmatprep.subr.mxu0 0.0
    %5775 = vmatpush1.msra.mxu0 0.0
    %5776 = vmatprep.subr.mxu0 0.0
    %5777 = vmatpush1.msra.mxu0 0.0
    %5778 = vmatprep.subr.mxu0 0.0
    %5779 = vmatpush1.msra.mxu0 0.0
    %5780 = vmatprep.subr.mxu0 0.0
    %5781 = vmatpush1.msra.mxu0 0.0
    %5782 = vmatprep.subr.mxu0 0.0
    %5783 = vmatpush1.msra.mxu0 0.0
    %5784 = vmatprep.subr.mxu0 0.0
    %5785 = vmatpush1.msra.mxu0 0.0
    %5786 = vmatprep.subr.mxu0 0.0
    %5787 = vmatpush1.msra.mxu0 0.0
    %5788 = vmatprep.subr.mxu0 0.0
    %5789 = vmatpush1.msra.mxu0 0.0
    %5790 = vmatprep.subr.mxu0 0.0
    %5791 = vmatpush1.msra.mxu0 0.0
    %5792 = vmatprep.subr.mxu0 0.0
    %5793 = vmatpush1.msra.mxu0 0.0
    %5794 = vmatprep.subr.mxu0 0.0
    %5795 = vmatpush1.msra.mxu0 0.0
    %5796 = vmatprep.subr.mxu0 %v3766
    %5797 = vmatpush1.msra.mxu0 %v3765
    %5798 = vmatprep.subr.mxu0 0.0
    %5799 = vmatpush2.msra.mxu0 0.0
    %5800 = vmatprep.subr.mxu0 0.0
    %5801 = vmatpush2.msra.mxu0 0.0
    %5802 = vmatprep.subr.mxu0 0.0
    %5803 = vmatpush2.msra.mxu0 0.0
    %5804 = vmatprep.subr.mxu0 0.0
    %5805 = vmatpush2.msra.mxu0 0.0
    %5806 = vmatprep.subr.mxu0 0.0
    %5807 = vmatpush2.msra.mxu0 0.0
    %5808 = vmatprep.subr.mxu0 0.0
    %5809 = vmatpush2.msra.mxu0 0.0
    %5810 = vmatprep.subr.mxu0 0.0
    %5811 = vmatpush2.msra.mxu0 0.0
    %5812 = vmatprep.subr.mxu0 0.0
    %5813 = vmatpush2.msra.mxu0 0.0
    %5814 = vmatprep.subr.mxu0 0.0
    %5815 = vmatpush2.msra.mxu0 0.0
    %5816 = vmatprep.subr.mxu0 0.0
    %5817 = vmatpush2.msra.mxu0 0.0
    %5818 = vmatprep.subr.mxu0 0.0
    %5819 = vmatpush2.msra.mxu0 0.0
    %5820 = vmatprep.subr.mxu0 0.0
    %5821 = vmatpush2.msra.mxu0 0.0
    %5822 = vmatprep.subr.mxu0 0.0
    %5823 = vmatpush2.msra.mxu0 0.0
    %5824 = vmatprep.subr.mxu0 0.0
    %5825 = vmatpush2.msra.mxu0 0.0
    %5826 = vmatprep.subr.mxu0 0.0
    %5827 = vmatpush2.msra.mxu0 0.0
    %5828 = vmatprep.subr.mxu0 0.0
    %5829 = vmatpush2.msra.mxu0 0.0
    %5830 = vmatprep.mubr.f32.mxu0 0.0
    %5831 = vmatmul.mubr.f32.gmra.mxu0 %v5530
    %v5832 = vpop.f32.mrf.mxu0
    %v5833 = vadd.f32 0.0, %v5832
    %v5834 = vpop.f32.mrf.mxu0
    %v5835 = vadd.f32 0.0, %v5834
    %5836 = vmatprep.mubr.f32.mxu0 0.0
    %5837 = vmatmul.mubr.f32.gmra.mxu0 %v5533
    %v5838 = vpop.f32.mrf.mxu0
    %v5839 = vadd.f32 0.0, %v5838
    %v5840 = vpop.f32.mrf.mxu0
    %v5841 = vadd.f32 0.0, %v5840
    %5842 = vdwg.mxu0
    %v5843 = vadd.f32 %v5510, %v5602
    %v5844 = vadd.f32 %v5511, %v5604
    %v5845 = vadd.f32 %v5512, %v5679
    %v5846 = vadd.f32 %v5513, %v5681
    %v5847 = vadd.f32 %v5514, %v5756
    %v5848 = vadd.f32 %v5515, %v5758
    %v5849 = vadd.f32 %v5516, %v5833
    %v5850 = vadd.f32 %v5517, %v5835
    %v5851 = vadd.f32 %v5518, %v5608
    %v5852 = vadd.f32 %v5519, %v5610
    %v5853 = vadd.f32 %v5520, %v5685
    %v5854 = vadd.f32 %v5521, %v5687
    %v5855 = vadd.f32 %v5522, %v5762
    %v5856 = vadd.f32 %v5523, %v5764
    %v5857 = vadd.f32 %v5524, %v5839
    %v5858 = vadd.f32 %v5525, %v5841
    %v5859 = vld [vmem:[#allocation5 + $0x8] sm:$0xff]
    %v5860 = vld [vmem:[#allocation5 + $0x10] sm:$0xff]
    %v5861 = vld [vmem:[#allocation5 + $0x18] sm:$0xff]
    %v5862 = vld [vmem:[#allocation5 + $0x20] sm:$0xff]
    %v5863 = vld [vmem:[#allocation5 + $0x28] sm:$0xff]
    %v5864 = vld [vmem:[#allocation5 + $0x30] sm:$0xff]
    %v5865 = vld [vmem:[#allocation5 + $0x38] sm:$0xff]
    %v5866 = vld [vmem:[#allocation5 + $0x40] sm:$0xff]
    %v5867 = vld [vmem:[#allocation5 + $0x48] sm:$0xff]
    %vm5868 = vmand %vm5111, %vm4671
    %vm5869 = vmand %vm5112, %vm4672
    %vm5870 = vmand %vm5113, %vm4673
    %vm5871 = vmand %vm5114, %vm4674
    %vm5872 = vmand %vm5115, %vm4675
    %vm5873 = vmand %vm5116, %vm4676
    %vm5874 = vmand %vm5117, %vm4677
    %vm5875 = vmand %vm5118, %vm4678
    %vm5876 = vmand %vm5868, %vm4687
    %vm5877 = vmand %vm5869, %vm4688
    %vm5878 = vmand %vm5870, %vm4689
    %vm5879 = vmand %vm5871, %vm4690
    %vm5880 = vmand %vm5872, %vm4691
    %vm5881 = vmand %vm5873, %vm4692
    %vm5882 = vmand %vm5874, %vm4693
    %vm5883 = vmand %vm5875, %vm4694
    %v5884 = vsel %vm5876, 1, 0
    %v5885 = vsel %vm5877, 1, 0
    %v5886 = vsel %vm5878, 1, 0
    %v5887 = vsel %vm5879, 1, 0
    %v5888 = vsel %vm5880, 1, 0
    %v5889 = vsel %vm5881, 1, 0
    %v5890 = vsel %vm5882, 1, 0
    %v5891 = vsel %vm5883, 1, 0
    %vm5892 = vcmp.eq.s32.totalorder %v5884, 1
    %vm5893 = vcmp.eq.s32.totalorder %v5885, 1
    %vm5894 = vcmp.eq.s32.totalorder %v5886, 1
    %vm5895 = vcmp.eq.s32.totalorder %v5887, 1
    %vm5896 = vcmp.eq.s32.totalorder %v5888, 1
    %vm5897 = vcmp.eq.s32.totalorder %v5889, 1
    %vm5898 = vcmp.eq.s32.totalorder %v5890, 1
    %vm5899 = vcmp.eq.s32.totalorder %v5891, 1
    %5909 = vrot.lane.b32.xlu0 %v5859, 127
    %v5910 = vpop.permute.xlu0 %5909
    %5911 = vrot.lane.b32.xlu0 %v5860, 127
    %v5912 = vpop.permute.xlu0 %5911
    %5913 = vrot.lane.b32.xlu0 %v5861, 127
    %v5914 = vpop.permute.xlu0 %5913
    %5915 = vrot.lane.b32.xlu0 %v5862, 127
    %v5916 = vpop.permute.xlu0 %5915
    %5917 = vrot.lane.b32.xlu0 %v5863, 127
    %v5918 = vpop.permute.xlu0 %5917
    %5919 = vrot.lane.b32.xlu0 %v5864, 127
    %v5920 = vpop.permute.xlu0 %5919
    %5921 = vrot.lane.b32.xlu0 %v5865, 127
    %v5922 = vpop.permute.xlu0 %5921
    %5923 = vrot.lane.b32.xlu0 %v5866, 127
    %v5924 = vpop.permute.xlu0 %5923
    %5925 = vrot.lane.b32.xlu0 %v5867, 127
    %v5926 = vpop.permute.xlu0 %5925
    %v5927 = vsel %vm2746, %v5910, %v5912
    %v5928 = vsel %vm2746, %v5912, %v5914
    %v5929 = vsel %vm2746, %v5914, %v5916
    %v5930 = vsel %vm2746, %v5916, %v5918
    %v5931 = vsel %vm2746, %v5918, %v5920
    %v5932 = vsel %vm2746, %v5920, %v5922
    %v5933 = vsel %vm2746, %v5922, %v5924
    %v5934 = vsel %vm2746, %v5924, %v5926
    %v5943 = vsel %vm5892, %v5927, 0.0
    %v5944 = vsel %vm5893, %v5928, 0.0
    %v5945 = vsel %vm5894, %v5929, 0.0
    %v5946 = vsel %vm5895, %v5930, 0.0
    %v5947 = vsel %vm5896, %v5931, 0.0
    %v5948 = vsel %vm5897, %v5932, 0.0
    %v5949 = vsel %vm5898, %v5933, 0.0
    %v5950 = vsel %vm5899, %v5934, 0.0
    %s5951 = scalar_lea.vmem %s9, 80
    %v5952 = vld [vmem:[%s5951] sm:$0xff]
    %v5953 = vld [vmem:[%s5951 + $0x8] sm:$0x1]
    %v5955 = vsel %vm1370, %v5952, 0
    %v5958 = vsel %vm1370, %v5953, 0
    %5960 = vmatprep.subr.mxu0 0.0
    %5961 = vmatpush1.msra.mxu0 0.0
    %5962 = vmatprep.subr.mxu0 0.0
    %5963 = vmatpush1.msra.mxu0 0.0
    %5964 = vmatprep.subr.mxu0 0.0
    %5965 = vmatpush1.msra.mxu0 0.0
    %5966 = vmatprep.subr.mxu0 0.0
    %5967 = vmatpush1.msra.mxu0 0.0
    %5968 = vmatprep.subr.mxu0 0.0
    %5969 = vmatpush1.msra.mxu0 0.0
    %5970 = vmatprep.subr.mxu0 0.0
    %5971 = vmatpush1.msra.mxu0 0.0
    %5972 = vmatprep.subr.mxu0 0.0
    %5973 = vmatpush1.msra.mxu0 0.0
    %5974 = vmatprep.subr.mxu0 0.0
    %5975 = vmatpush1.msra.mxu0 0.0
    %5976 = vmatprep.subr.mxu0 0.0
    %5977 = vmatpush1.msra.mxu0 0.0
    %5978 = vmatprep.subr.mxu0 0.0
    %5979 = vmatpush1.msra.mxu0 0.0
    %5980 = vmatprep.subr.mxu0 0.0
    %5981 = vmatpush1.msra.mxu0 0.0
    %5982 = vmatprep.subr.mxu0 0.0
    %5983 = vmatpush1.msra.mxu0 0.0
    %5984 = vmatprep.subr.mxu0 0.0
    %5985 = vmatpush1.msra.mxu0 0.0
    %5986 = vmatprep.subr.mxu0 0.0
    %5987 = vmatpush1.msra.mxu0 0.0
    %5988 = vmatprep.subr.mxu0 0.0
    %5989 = vmatpush1.msra.mxu0 0.0
    %5990 = vmatprep.subr.mxu0 %v5944
    %5991 = vmatpush1.msra.mxu0 %v5943
    %5992 = vmatprep.subr.mxu0 0.0
    %5993 = vmatpush2.msra.mxu0 0.0
    %5994 = vmatprep.subr.mxu0 0.0
    %5995 = vmatpush2.msra.mxu0 0.0
    %5996 = vmatprep.subr.mxu0 0.0
    %5997 = vmatpush2.msra.mxu0 0.0
    %5998 = vmatprep.subr.mxu0 0.0
    %5999 = vmatpush2.msra.mxu0 0.0
    %6000 = vmatprep.subr.mxu0 0.0
    %6001 = vmatpush2.msra.mxu0 0.0
    %6002 = vmatprep.subr.mxu0 0.0
    %6003 = vmatpush2.msra.mxu0 0.0
    %6004 = vmatprep.subr.mxu0 0.0
    %6005 = vmatpush2.msra.mxu0 0.0
    %6006 = vmatprep.subr.mxu0 0.0
    %6007 = vmatpush2.msra.mxu0 0.0
    %6008 = vmatprep.subr.mxu0 0.0
    %6009 = vmatpush2.msra.mxu0 0.0
    %6010 = vmatprep.subr.mxu0 0.0
    %6011 = vmatpush2.msra.mxu0 0.0
    %6012 = vmatprep.subr.mxu0 0.0
    %6013 = vmatpush2.msra.mxu0 0.0
    %6014 = vmatprep.subr.mxu0 0.0
    %6015 = vmatpush2.msra.mxu0 0.0
    %6016 = vmatprep.subr.mxu0 0.0
    %6017 = vmatpush2.msra.mxu0 0.0
    %6018 = vmatprep.subr.mxu0 0.0
    %6019 = vmatpush2.msra.mxu0 0.0
    %6020 = vmatprep.subr.mxu0 0.0
    %6021 = vmatpush2.msra.mxu0 0.0
    %6022 = vmatprep.subr.mxu0 0.0
    %6023 = vmatpush2.msra.mxu0 0.0
    %6024 = vmatprep.mubr.f32.mxu0 0.0
    %6025 = vmatmul.mubr.f32.gmra.mxu0 %v5955
    %v6026 = vpop.f32.mrf.mxu0
    %v6027 = vadd.f32 0.0, %v6026
    %v6028 = vpop.f32.mrf.mxu0
    %v6029 = vadd.f32 0.0, %v6028
    %6030 = vmatprep.mubr.f32.mxu0 0.0
    %6031 = vmatmul.mubr.f32.gmra.mxu0 %v5958
    %v6032 = vpop.f32.mrf.mxu0
    %v6033 = vadd.f32 0.0, %v6032
    %v6034 = vpop.f32.mrf.mxu0
    %v6035 = vadd.f32 0.0, %v6034
    %6036 = vdwg.mxu0
    %6037 = vmatprep.subr.mxu0 0.0
    %6038 = vmatpush1.msra.mxu0 0.0
    %6039 = vmatprep.subr.mxu0 0.0
    %6040 = vmatpush1.msra.mxu0 0.0
    %6041 = vmatprep.subr.mxu0 0.0
    %6042 = vmatpush1.msra.mxu0 0.0
    %6043 = vmatprep.subr.mxu0 0.0
    %6044 = vmatpush1.msra.mxu0 0.0
    %6045 = vmatprep.subr.mxu0 0.0
    %6046 = vmatpush1.msra.mxu0 0.0
    %6047 = vmatprep.subr.mxu0 0.0
    %6048 = vmatpush1.msra.mxu0 0.0
    %6049 = vmatprep.subr.mxu0 0.0
    %6050 = vmatpush1.msra.mxu0 0.0
    %6051 = vmatprep.subr.mxu0 0.0
    %6052 = vmatpush1.msra.mxu0 0.0
    %6053 = vmatprep.subr.mxu0 0.0
    %6054 = vmatpush1.msra.mxu0 0.0
    %6055 = vmatprep.subr.mxu0 0.0
    %6056 = vmatpush1.msra.mxu0 0.0
    %6057 = vmatprep.subr.mxu0 0.0
    %6058 = vmatpush1.msra.mxu0 0.0
    %6059 = vmatprep.subr.mxu0 0.0
    %6060 = vmatpush1.msra.mxu0 0.0
    %6061 = vmatprep.subr.mxu0 0.0
    %6062 = vmatpush1.msra.mxu0 0.0
    %6063 = vmatprep.subr.mxu0 0.0
    %6064 = vmatpush1.msra.mxu0 0.0
    %6065 = vmatprep.subr.mxu0 0.0
    %6066 = vmatpush1.msra.mxu0 0.0
    %6067 = vmatprep.subr.mxu0 %v5946
    %6068 = vmatpush1.msra.mxu0 %v5945
    %6069 = vmatprep.subr.mxu0 0.0
    %6070 = vmatpush2.msra.mxu0 0.0
    %6071 = vmatprep.subr.mxu0 0.0
    %6072 = vmatpush2.msra.mxu0 0.0
    %6073 = vmatprep.subr.mxu0 0.0
    %6074 = vmatpush2.msra.mxu0 0.0
    %6075 = vmatprep.subr.mxu0 0.0
    %6076 = vmatpush2.msra.mxu0 0.0
    %6077 = vmatprep.subr.mxu0 0.0
    %6078 = vmatpush2.msra.mxu0 0.0
    %6079 = vmatprep.subr.mxu0 0.0
    %6080 = vmatpush2.msra.mxu0 0.0
    %6081 = vmatprep.subr.mxu0 0.0
    %6082 = vmatpush2.msra.mxu0 0.0
    %6083 = vmatprep.subr.mxu0 0.0
    %6084 = vmatpush2.msra.mxu0 0.0
    %6085 = vmatprep.subr.mxu0 0.0
    %6086 = vmatpush2.msra.mxu0 0.0
    %6087 = vmatprep.subr.mxu0 0.0
    %6088 = vmatpush2.msra.mxu0 0.0
    %6089 = vmatprep.subr.mxu0 0.0
    %6090 = vmatpush2.msra.mxu0 0.0
    %6091 = vmatprep.subr.mxu0 0.0
    %6092 = vmatpush2.msra.mxu0 0.0
    %6093 = vmatprep.subr.mxu0 0.0
    %6094 = vmatpush2.msra.mxu0 0.0
    %6095 = vmatprep.subr.mxu0 0.0
    %6096 = vmatpush2.msra.mxu0 0.0
    %6097 = vmatprep.subr.mxu0 0.0
    %6098 = vmatpush2.msra.mxu0 0.0
    %6099 = vmatprep.subr.mxu0 0.0
    %6100 = vmatpush2.msra.mxu0 0.0
    %6101 = vmatprep.mubr.f32.mxu0 0.0
    %6102 = vmatmul.mubr.f32.gmra.mxu0 %v5955
    %v6103 = vpop.f32.mrf.mxu0
    %v6104 = vadd.f32 0.0, %v6103
    %v6105 = vpop.f32.mrf.mxu0
    %v6106 = vadd.f32 0.0, %v6105
    %6107 = vmatprep.mubr.f32.mxu0 0.0
    %6108 = vmatmul.mubr.f32.gmra.mxu0 %v5958
    %v6109 = vpop.f32.mrf.mxu0
    %v6110 = vadd.f32 0.0, %v6109
    %v6111 = vpop.f32.mrf.mxu0
    %v6112 = vadd.f32 0.0, %v6111
    %6113 = vdwg.mxu0
    %6114 = vmatprep.subr.mxu0 0.0
    %6115 = vmatpush1.msra.mxu0 0.0
    %6116 = vmatprep.subr.mxu0 0.0
    %6117 = vmatpush1.msra.mxu0 0.0
    %6118 = vmatprep.subr.mxu0 0.0
    %6119 = vmatpush1.msra.mxu0 0.0
    %6120 = vmatprep.subr.mxu0 0.0
    %6121 = vmatpush1.msra.mxu0 0.0
    %6122 = vmatprep.subr.mxu0 0.0
    %6123 = vmatpush1.msra.mxu0 0.0
    %6124 = vmatprep.subr.mxu0 0.0
    %6125 = vmatpush1.msra.mxu0 0.0
    %6126 = vmatprep.subr.mxu0 0.0
    %6127 = vmatpush1.msra.mxu0 0.0
    %6128 = vmatprep.subr.mxu0 0.0
    %6129 = vmatpush1.msra.mxu0 0.0
    %6130 = vmatprep.subr.mxu0 0.0
    %6131 = vmatpush1.msra.mxu0 0.0
    %6132 = vmatprep.subr.mxu0 0.0
    %6133 = vmatpush1.msra.mxu0 0.0
    %6134 = vmatprep.subr.mxu0 0.0
    %6135 = vmatpush1.msra.mxu0 0.0
    %6136 = vmatprep.subr.mxu0 0.0
    %6137 = vmatpush1.msra.mxu0 0.0
    %6138 = vmatprep.subr.mxu0 0.0
    %6139 = vmatpush1.msra.mxu0 0.0
    %6140 = vmatprep.subr.mxu0 0.0
    %6141 = vmatpush1.msra.mxu0 0.0
    %6142 = vmatprep.subr.mxu0 0.0
    %6143 = vmatpush1.msra.mxu0 0.0
    %6144 = vmatprep.subr.mxu0 %v5948
    %6145 = vmatpush1.msra.mxu0 %v5947
    %6146 = vmatprep.subr.mxu0 0.0
    %6147 = vmatpush2.msra.mxu0 0.0
    %6148 = vmatprep.subr.mxu0 0.0
    %6149 = vmatpush2.msra.mxu0 0.0
    %6150 = vmatprep.subr.mxu0 0.0
    %6151 = vmatpush2.msra.mxu0 0.0
    %6152 = vmatprep.subr.mxu0 0.0
    %6153 = vmatpush2.msra.mxu0 0.0
    %6154 = vmatprep.subr.mxu0 0.0
    %6155 = vmatpush2.msra.mxu0 0.0
    %6156 = vmatprep.subr.mxu0 0.0
    %6157 = vmatpush2.msra.mxu0 0.0
    %6158 = vmatprep.subr.mxu0 0.0
    %6159 = vmatpush2.msra.mxu0 0.0
    %6160 = vmatprep.subr.mxu0 0.0
    %6161 = vmatpush2.msra.mxu0 0.0
    %6162 = vmatprep.subr.mxu0 0.0
    %6163 = vmatpush2.msra.mxu0 0.0
    %6164 = vmatprep.subr.mxu0 0.0
    %6165 = vmatpush2.msra.mxu0 0.0
    %6166 = vmatprep.subr.mxu0 0.0
    %6167 = vmatpush2.msra.mxu0 0.0
    %6168 = vmatprep.subr.mxu0 0.0
    %6169 = vmatpush2.msra.mxu0 0.0
    %6170 = vmatprep.subr.mxu0 0.0
    %6171 = vmatpush2.msra.mxu0 0.0
    %6172 = vmatprep.subr.mxu0 0.0
    %6173 = vmatpush2.msra.mxu0 0.0
    %6174 = vmatprep.subr.mxu0 0.0
    %6175 = vmatpush2.msra.mxu0 0.0
    %6176 = vmatprep.subr.mxu0 0.0
    %6177 = vmatpush2.msra.mxu0 0.0
    %6178 = vmatprep.mubr.f32.mxu0 0.0
    %6179 = vmatmul.mubr.f32.gmra.mxu0 %v5955
    %v6180 = vpop.f32.mrf.mxu0
    %v6181 = vadd.f32 0.0, %v6180
    %v6182 = vpop.f32.mrf.mxu0
    %v6183 = vadd.f32 0.0, %v6182
    %6184 = vmatprep.mubr.f32.mxu0 0.0
    %6185 = vmatmul.mubr.f32.gmra.mxu0 %v5958
    %v6186 = vpop.f32.mrf.mxu0
    %v6187 = vadd.f32 0.0, %v6186
    %v6188 = vpop.f32.mrf.mxu0
    %v6189 = vadd.f32 0.0, %v6188
    %6190 = vdwg.mxu0
    %6191 = vmatprep.subr.mxu0 0.0
    %6192 = vmatpush1.msra.mxu0 0.0
    %6193 = vmatprep.subr.mxu0 0.0
    %6194 = vmatpush1.msra.mxu0 0.0
    %6195 = vmatprep.subr.mxu0 0.0
    %6196 = vmatpush1.msra.mxu0 0.0
    %6197 = vmatprep.subr.mxu0 0.0
    %6198 = vmatpush1.msra.mxu0 0.0
    %6199 = vmatprep.subr.mxu0 0.0
    %6200 = vmatpush1.msra.mxu0 0.0
    %6201 = vmatprep.subr.mxu0 0.0
    %6202 = vmatpush1.msra.mxu0 0.0
    %6203 = vmatprep.subr.mxu0 0.0
    %6204 = vmatpush1.msra.mxu0 0.0
    %6205 = vmatprep.subr.mxu0 0.0
    %6206 = vmatpush1.msra.mxu0 0.0
    %6207 = vmatprep.subr.mxu0 0.0
    %6208 = vmatpush1.msra.mxu0 0.0
    %6209 = vmatprep.subr.mxu0 0.0
    %6210 = vmatpush1.msra.mxu0 0.0
    %6211 = vmatprep.subr.mxu0 0.0
    %6212 = vmatpush1.msra.mxu0 0.0
    %6213 = vmatprep.subr.mxu0 0.0
    %6214 = vmatpush1.msra.mxu0 0.0
    %6215 = vmatprep.subr.mxu0 0.0
    %6216 = vmatpush1.msra.mxu0 0.0
    %6217 = vmatprep.subr.mxu0 0.0
    %6218 = vmatpush1.msra.mxu0 0.0
    %6219 = vmatprep.subr.mxu0 0.0
    %6220 = vmatpush1.msra.mxu0 0.0
    %6221 = vmatprep.subr.mxu0 %v5950
    %6222 = vmatpush1.msra.mxu0 %v5949
    %6223 = vmatprep.subr.mxu0 0.0
    %6224 = vmatpush2.msra.mxu0 0.0
    %6225 = vmatprep.subr.mxu0 0.0
    %6226 = vmatpush2.msra.mxu0 0.0
    %6227 = vmatprep.subr.mxu0 0.0
    %6228 = vmatpush2.msra.mxu0 0.0
    %6229 = vmatprep.subr.mxu0 0.0
    %6230 = vmatpush2.msra.mxu0 0.0
    %6231 = vmatprep.subr.mxu0 0.0
    %6232 = vmatpush2.msra.mxu0 0.0
    %6233 = vmatprep.subr.mxu0 0.0
    %6234 = vmatpush2.msra.mxu0 0.0
    %6235 = vmatprep.subr.mxu0 0.0
    %6236 = vmatpush2.msra.mxu0 0.0
    %6237 = vmatprep.subr.mxu0 0.0
    %6238 = vmatpush2.msra.mxu0 0.0
    %6239 = vmatprep.subr.mxu0 0.0
    %6240 = vmatpush2.msra.mxu0 0.0
    %6241 = vmatprep.subr.mxu0 0.0
    %6242 = vmatpush2.msra.mxu0 0.0
    %6243 = vmatprep.subr.mxu0 0.0
    %6244 = vmatpush2.msra.mxu0 0.0
    %6245 = vmatprep.subr.mxu0 0.0
    %6246 = vmatpush2.msra.mxu0 0.0
    %6247 = vmatprep.subr.mxu0 0.0
    %6248 = vmatpush2.msra.mxu0 0.0
    %6249 = vmatprep.subr.mxu0 0.0
    %6250 = vmatpush2.msra.mxu0 0.0
    %6251 = vmatprep.subr.mxu0 0.0
    %6252 = vmatpush2.msra.mxu0 0.0
    %6253 = vmatprep.subr.mxu0 0.0
    %6254 = vmatpush2.msra.mxu0 0.0
    %6255 = vmatprep.mubr.f32.mxu0 0.0
    %6256 = vmatmul.mubr.f32.gmra.mxu0 %v5955
    %v6257 = vpop.f32.mrf.mxu0
    %v6258 = vadd.f32 0.0, %v6257
    %v6259 = vpop.f32.mrf.mxu0
    %v6260 = vadd.f32 0.0, %v6259
    %6261 = vmatprep.mubr.f32.mxu0 0.0
    %6262 = vmatmul.mubr.f32.gmra.mxu0 %v5958
    %v6263 = vpop.f32.mrf.mxu0
    %v6264 = vadd.f32 0.0, %v6263
    %v6265 = vpop.f32.mrf.mxu0
    %v6266 = vadd.f32 0.0, %v6265
    %6267 = vdwg.mxu0
    %v6268 = vadd.f32 %v5843, %v6027
    %v6269 = vadd.f32 %v5844, %v6029
    %v6270 = vadd.f32 %v5845, %v6104
    %v6271 = vadd.f32 %v5846, %v6106
    %v6272 = vadd.f32 %v5847, %v6181
    %v6273 = vadd.f32 %v5848, %v6183
    %v6274 = vadd.f32 %v5849, %v6258
    %v6275 = vadd.f32 %v5850, %v6260
    %v6276 = vadd.f32 %v5851, %v6033
    %v6277 = vadd.f32 %v5852, %v6035
    %v6278 = vadd.f32 %v5853, %v6110
    %v6279 = vadd.f32 %v5854, %v6112
    %v6280 = vadd.f32 %v5855, %v6187
    %v6281 = vadd.f32 %v5856, %v6189
    %v6282 = vadd.f32 %v5857, %v6264
    %v6283 = vadd.f32 %v5858, %v6266
    %v6284 = vadd.s32 %v3742, 1
    %v6285 = vadd.s32 %v3743, 1
    %v6286 = vadd.s32 %v3744, 1
    %v6287 = vadd.s32 %v3745, 1
    %v6288 = vadd.s32 %v3746, 1
    %v6289 = vadd.s32 %v3747, 1
    %v6290 = vadd.s32 %v3748, 1
    %v6291 = vadd.s32 %v3749, 1
    %vm6292 = vcmp.ge.s32.totalorder %v6284, 0
    %vm6293 = vcmp.ge.s32.totalorder %v6285, 0
    %vm6294 = vcmp.ge.s32.totalorder %v6286, 0
    %vm6295 = vcmp.ge.s32.totalorder %v6287, 0
    %vm6296 = vcmp.ge.s32.totalorder %v6288, 0
    %vm6297 = vcmp.ge.s32.totalorder %v6289, 0
    %vm6298 = vcmp.ge.s32.totalorder %v6290, 0
    %vm6299 = vcmp.ge.s32.totalorder %v6291, 0
    %vm6300 = vcmp.lt.s32.totalorder %v6284, 32
    %vm6301 = vcmp.lt.s32.totalorder %v6285, 32
    %vm6302 = vcmp.lt.s32.totalorder %v6286, 32
    %vm6303 = vcmp.lt.s32.totalorder %v6287, 32
    %vm6304 = vcmp.lt.s32.totalorder %v6288, 32
    %vm6305 = vcmp.lt.s32.totalorder %v6289, 32
    %vm6306 = vcmp.lt.s32.totalorder %v6290, 32
    %vm6307 = vcmp.lt.s32.totalorder %v6291, 32
    %vm6308 = vmand %vm6292, %vm6300
    %vm6309 = vmand %vm6293, %vm6301
    %vm6310 = vmand %vm6294, %vm6302
    %vm6311 = vmand %vm6295, %vm6303
    %vm6312 = vmand %vm6296, %vm6304
    %vm6313 = vmand %vm6297, %vm6305
    %vm6314 = vmand %vm6298, %vm6306
    %vm6315 = vmand %vm6299, %vm6307
    %vm6316 = vmand %vm6308, %vm3807
    %vm6317 = vmand %vm6309, %vm3808
    %vm6318 = vmand %vm6310, %vm3809
    %vm6319 = vmand %vm6311, %vm3810
    %vm6320 = vmand %vm6312, %vm3811
    %vm6321 = vmand %vm6313, %vm3812
    %vm6322 = vmand %vm6314, %vm3813
    %vm6323 = vmand %vm6315, %vm3814
    %vm6324 = vmand %vm6316, %vm3823
    %vm6325 = vmand %vm6317, %vm3824
    %vm6326 = vmand %vm6318, %vm3825
    %vm6327 = vmand %vm6319, %vm3826
    %vm6328 = vmand %vm6320, %vm3827
    %vm6329 = vmand %vm6321, %vm3828
    %vm6330 = vmand %vm6322, %vm3829
    %vm6331 = vmand %vm6323, %vm3830
    %v6332 = vsel %vm6324, 1, 0
    %v6333 = vsel %vm6325, 1, 0
    %v6334 = vsel %vm6326, 1, 0
    %v6335 = vsel %vm6327, 1, 0
    %v6336 = vsel %vm6328, 1, 0
    %v6337 = vsel %vm6329, 1, 0
    %v6338 = vsel %vm6330, 1, 0
    %v6339 = vsel %vm6331, 1, 0
    %vm6340 = vcmp.eq.s32.totalorder %v6332, 1
    %vm6341 = vcmp.eq.s32.totalorder %v6333, 1
    %vm6342 = vcmp.eq.s32.totalorder %v6334, 1
    %vm6343 = vcmp.eq.s32.totalorder %v6335, 1
    %vm6344 = vcmp.eq.s32.totalorder %v6336, 1
    %vm6345 = vcmp.eq.s32.totalorder %v6337, 1
    %vm6346 = vcmp.eq.s32.totalorder %v6338, 1
    %vm6347 = vcmp.eq.s32.totalorder %v6339, 1
    %6348 = vrot.lane.b32.xlu0 %v5859, 97
    %v6349 = vpop.permute.xlu0 %6348
    %6350 = vrot.lane.b32.xlu0 %v5860, 97
    %v6351 = vpop.permute.xlu0 %6350
    %6352 = vrot.lane.b32.xlu0 %v5861, 97
    %v6353 = vpop.permute.xlu0 %6352
    %6354 = vrot.lane.b32.xlu0 %v5862, 97
    %v6355 = vpop.permute.xlu0 %6354
    %6356 = vrot.lane.b32.xlu0 %v5863, 97
    %v6357 = vpop.permute.xlu0 %6356
    %6358 = vrot.lane.b32.xlu0 %v5864, 97
    %v6359 = vpop.permute.xlu0 %6358
    %6360 = vrot.lane.b32.xlu0 %v5865, 97
    %v6361 = vpop.permute.xlu0 %6360
    %6362 = vrot.lane.b32.xlu0 %v5866, 97
    %v6363 = vpop.permute.xlu0 %6362
    %6364 = vrot.lane.b32.xlu0 %v5867, 97
    %v6365 = vpop.permute.xlu0 %6364
    %vm6366 = vcmask 793600
    %v6367 = vsel %vm6366, %v6349, %v6351
    %v6368 = vsel %vm6366, %v6351, %v6353
    %v6369 = vsel %vm6366, %v6353, %v6355
    %v6370 = vsel %vm6366, %v6355, %v6357
    %v6371 = vsel %vm6366, %v6357, %v6359
    %v6372 = vsel %vm6366, %v6359, %v6361
    %v6373 = vsel %vm6366, %v6361, %v6363
    %v6374 = vsel %vm6366, %v6363, %v6365
    %v6383 = vsel %vm6340, %v6367, 0.0
    %v6384 = vsel %vm6341, %v6368, 0.0
    %v6385 = vsel %vm6342, %v6369, 0.0
    %v6386 = vsel %vm6343, %v6370, 0.0
    %v6387 = vsel %vm6344, %v6371, 0.0
    %v6388 = vsel %vm6345, %v6372, 0.0
    %v6389 = vsel %vm6346, %v6373, 0.0
    %v6390 = vsel %vm6347, %v6374, 0.0
    %s6391 = scalar_lea.vmem %s9, 96
    %v6392 = vld [vmem:[%s6391] sm:$0xff]
    %v6393 = vld [vmem:[%s6391 + $0x8] sm:$0x1]
    %v6395 = vsel %vm1370, %v6392, 0
    %v6398 = vsel %vm1370, %v6393, 0
    %6400 = vmatprep.subr.mxu0 0.0
    %6401 = vmatpush1.msra.mxu0 0.0
    %6402 = vmatprep.subr.mxu0 0.0
    %6403 = vmatpush1.msra.mxu0 0.0
    %6404 = vmatprep.subr.mxu0 0.0
    %6405 = vmatpush1.msra.mxu0 0.0
    %6406 = vmatprep.subr.mxu0 0.0
    %6407 = vmatpush1.msra.mxu0 0.0
    %6408 = vmatprep.subr.mxu0 0.0
    %6409 = vmatpush1.msra.mxu0 0.0
    %6410 = vmatprep.subr.mxu0 0.0
    %6411 = vmatpush1.msra.mxu0 0.0
    %6412 = vmatprep.subr.mxu0 0.0
    %6413 = vmatpush1.msra.mxu0 0.0
    %6414 = vmatprep.subr.mxu0 0.0
    %6415 = vmatpush1.msra.mxu0 0.0
    %6416 = vmatprep.subr.mxu0 0.0
    %6417 = vmatpush1.msra.mxu0 0.0
    %6418 = vmatprep.subr.mxu0 0.0
    %6419 = vmatpush1.msra.mxu0 0.0
    %6420 = vmatprep.subr.mxu0 0.0
    %6421 = vmatpush1.msra.mxu0 0.0
    %6422 = vmatprep.subr.mxu0 0.0
    %6423 = vmatpush1.msra.mxu0 0.0
    %6424 = vmatprep.subr.mxu0 0.0
    %6425 = vmatpush1.msra.mxu0 0.0
    %6426 = vmatprep.subr.mxu0 0.0
    %6427 = vmatpush1.msra.mxu0 0.0
    %6428 = vmatprep.subr.mxu0 0.0
    %6429 = vmatpush1.msra.mxu0 0.0
    %6430 = vmatprep.subr.mxu0 %v6384
    %6431 = vmatpush1.msra.mxu0 %v6383
    %6432 = vmatprep.subr.mxu0 0.0
    %6433 = vmatpush2.msra.mxu0 0.0
    %6434 = vmatprep.subr.mxu0 0.0
    %6435 = vmatpush2.msra.mxu0 0.0
    %6436 = vmatprep.subr.mxu0 0.0
    %6437 = vmatpush2.msra.mxu0 0.0
    %6438 = vmatprep.subr.mxu0 0.0
    %6439 = vmatpush2.msra.mxu0 0.0
    %6440 = vmatprep.subr.mxu0 0.0
    %6441 = vmatpush2.msra.mxu0 0.0
    %6442 = vmatprep.subr.mxu0 0.0
    %6443 = vmatpush2.msra.mxu0 0.0
    %6444 = vmatprep.subr.mxu0 0.0
    %6445 = vmatpush2.msra.mxu0 0.0
    %6446 = vmatprep.subr.mxu0 0.0
    %6447 = vmatpush2.msra.mxu0 0.0
    %6448 = vmatprep.subr.mxu0 0.0
    %6449 = vmatpush2.msra.mxu0 0.0
    %6450 = vmatprep.subr.mxu0 0.0
    %6451 = vmatpush2.msra.mxu0 0.0
    %6452 = vmatprep.subr.mxu0 0.0
    %6453 = vmatpush2.msra.mxu0 0.0
    %6454 = vmatprep.subr.mxu0 0.0
    %6455 = vmatpush2.msra.mxu0 0.0
    %6456 = vmatprep.subr.mxu0 0.0
    %6457 = vmatpush2.msra.mxu0 0.0
    %6458 = vmatprep.subr.mxu0 0.0
    %6459 = vmatpush2.msra.mxu0 0.0
    %6460 = vmatprep.subr.mxu0 0.0
    %6461 = vmatpush2.msra.mxu0 0.0
    %6462 = vmatprep.subr.mxu0 0.0
    %6463 = vmatpush2.msra.mxu0 0.0
    %6464 = vmatprep.mubr.f32.mxu0 0.0
    %6465 = vmatmul.mubr.f32.gmra.mxu0 %v6395
    %v6466 = vpop.f32.mrf.mxu0
    %v6467 = vadd.f32 0.0, %v6466
    %v6468 = vpop.f32.mrf.mxu0
    %v6469 = vadd.f32 0.0, %v6468
    %6470 = vmatprep.mubr.f32.mxu0 0.0
    %6471 = vmatmul.mubr.f32.gmra.mxu0 %v6398
    %v6472 = vpop.f32.mrf.mxu0
    %v6473 = vadd.f32 0.0, %v6472
    %v6474 = vpop.f32.mrf.mxu0
    %v6475 = vadd.f32 0.0, %v6474
    %6476 = vdwg.mxu0
    %6477 = vmatprep.subr.mxu0 0.0
    %6478 = vmatpush1.msra.mxu0 0.0
    %6479 = vmatprep.subr.mxu0 0.0
    %6480 = vmatpush1.msra.mxu0 0.0
    %6481 = vmatprep.subr.mxu0 0.0
    %6482 = vmatpush1.msra.mxu0 0.0
    %6483 = vmatprep.subr.mxu0 0.0
    %6484 = vmatpush1.msra.mxu0 0.0
    %6485 = vmatprep.subr.mxu0 0.0
    %6486 = vmatpush1.msra.mxu0 0.0
    %6487 = vmatprep.subr.mxu0 0.0
    %6488 = vmatpush1.msra.mxu0 0.0
    %6489 = vmatprep.subr.mxu0 0.0
    %6490 = vmatpush1.msra.mxu0 0.0
    %6491 = vmatprep.subr.mxu0 0.0
    %6492 = vmatpush1.msra.mxu0 0.0
    %6493 = vmatprep.subr.mxu0 0.0
    %6494 = vmatpush1.msra.mxu0 0.0
    %6495 = vmatprep.subr.mxu0 0.0
    %6496 = vmatpush1.msra.mxu0 0.0
    %6497 = vmatprep.subr.mxu0 0.0
    %6498 = vmatpush1.msra.mxu0 0.0
    %6499 = vmatprep.subr.mxu0 0.0
    %6500 = vmatpush1.msra.mxu0 0.0
    %6501 = vmatprep.subr.mxu0 0.0
    %6502 = vmatpush1.msra.mxu0 0.0
    %6503 = vmatprep.subr.mxu0 0.0
    %6504 = vmatpush1.msra.mxu0 0.0
    %6505 = vmatprep.subr.mxu0 0.0
    %6506 = vmatpush1.msra.mxu0 0.0
    %6507 = vmatprep.subr.mxu0 %v6386
    %6508 = vmatpush1.msra.mxu0 %v6385
    %6509 = vmatprep.subr.mxu0 0.0
    %6510 = vmatpush2.msra.mxu0 0.0
    %6511 = vmatprep.subr.mxu0 0.0
    %6512 = vmatpush2.msra.mxu0 0.0
    %6513 = vmatprep.subr.mxu0 0.0
    %6514 = vmatpush2.msra.mxu0 0.0
    %6515 = vmatprep.subr.mxu0 0.0
    %6516 = vmatpush2.msra.mxu0 0.0
    %6517 = vmatprep.subr.mxu0 0.0
    %6518 = vmatpush2.msra.mxu0 0.0
    %6519 = vmatprep.subr.mxu0 0.0
    %6520 = vmatpush2.msra.mxu0 0.0
    %6521 = vmatprep.subr.mxu0 0.0
    %6522 = vmatpush2.msra.mxu0 0.0
    %6523 = vmatprep.subr.mxu0 0.0
    %6524 = vmatpush2.msra.mxu0 0.0
    %6525 = vmatprep.subr.mxu0 0.0
    %6526 = vmatpush2.msra.mxu0 0.0
    %6527 = vmatprep.subr.mxu0 0.0
    %6528 = vmatpush2.msra.mxu0 0.0
    %6529 = vmatprep.subr.mxu0 0.0
    %6530 = vmatpush2.msra.mxu0 0.0
    %6531 = vmatprep.subr.mxu0 0.0
    %6532 = vmatpush2.msra.mxu0 0.0
    %6533 = vmatprep.subr.mxu0 0.0
    %6534 = vmatpush2.msra.mxu0 0.0
    %6535 = vmatprep.subr.mxu0 0.0
    %6536 = vmatpush2.msra.mxu0 0.0
    %6537 = vmatprep.subr.mxu0 0.0
    %6538 = vmatpush2.msra.mxu0 0.0
    %6539 = vmatprep.subr.mxu0 0.0
    %6540 = vmatpush2.msra.mxu0 0.0
    %6541 = vmatprep.mubr.f32.mxu0 0.0
    %6542 = vmatmul.mubr.f32.gmra.mxu0 %v6395
    %v6543 = vpop.f32.mrf.mxu0
    %v6544 = vadd.f32 0.0, %v6543
    %v6545 = vpop.f32.mrf.mxu0
    %v6546 = vadd.f32 0.0, %v6545
    %6547 = vmatprep.mubr.f32.mxu0 0.0
    %6548 = vmatmul.mubr.f32.gmra.mxu0 %v6398
    %v6549 = vpop.f32.mrf.mxu0
    %v6550 = vadd.f32 0.0, %v6549
    %v6551 = vpop.f32.mrf.mxu0
    %v6552 = vadd.f32 0.0, %v6551
    %6553 = vdwg.mxu0
    %6554 = vmatprep.subr.mxu0 0.0
    %6555 = vmatpush1.msra.mxu0 0.0
    %6556 = vmatprep.subr.mxu0 0.0
    %6557 = vmatpush1.msra.mxu0 0.0
    %6558 = vmatprep.subr.mxu0 0.0
    %6559 = vmatpush1.msra.mxu0 0.0
    %6560 = vmatprep.subr.mxu0 0.0
    %6561 = vmatpush1.msra.mxu0 0.0
    %6562 = vmatprep.subr.mxu0 0.0
    %6563 = vmatpush1.msra.mxu0 0.0
    %6564 = vmatprep.subr.mxu0 0.0
    %6565 = vmatpush1.msra.mxu0 0.0
    %6566 = vmatprep.subr.mxu0 0.0
    %6567 = vmatpush1.msra.mxu0 0.0
    %6568 = vmatprep.subr.mxu0 0.0
    %6569 = vmatpush1.msra.mxu0 0.0
    %6570 = vmatprep.subr.mxu0 0.0
    %6571 = vmatpush1.msra.mxu0 0.0
    %6572 = vmatprep.subr.mxu0 0.0
    %6573 = vmatpush1.msra.mxu0 0.0
    %6574 = vmatprep.subr.mxu0 0.0
    %6575 = vmatpush1.msra.mxu0 0.0
    %6576 = vmatprep.subr.mxu0 0.0
    %6577 = vmatpush1.msra.mxu0 0.0
    %6578 = vmatprep.subr.mxu0 0.0
    %6579 = vmatpush1.msra.mxu0 0.0
    %6580 = vmatprep.subr.mxu0 0.0
    %6581 = vmatpush1.msra.mxu0 0.0
    %6582 = vmatprep.subr.mxu0 0.0
    %6583 = vmatpush1.msra.mxu0 0.0
    %6584 = vmatprep.subr.mxu0 %v6388
    %6585 = vmatpush1.msra.mxu0 %v6387
    %6586 = vmatprep.subr.mxu0 0.0
    %6587 = vmatpush2.msra.mxu0 0.0
    %6588 = vmatprep.subr.mxu0 0.0
    %6589 = vmatpush2.msra.mxu0 0.0
    %6590 = vmatprep.subr.mxu0 0.0
    %6591 = vmatpush2.msra.mxu0 0.0
    %6592 = vmatprep.subr.mxu0 0.0
    %6593 = vmatpush2.msra.mxu0 0.0
    %6594 = vmatprep.subr.mxu0 0.0
    %6595 = vmatpush2.msra.mxu0 0.0
    %6596 = vmatprep.subr.mxu0 0.0
    %6597 = vmatpush2.msra.mxu0 0.0
    %6598 = vmatprep.subr.mxu0 0.0
    %6599 = vmatpush2.msra.mxu0 0.0
    %6600 = vmatprep.subr.mxu0 0.0
    %6601 = vmatpush2.msra.mxu0 0.0
    %6602 = vmatprep.subr.mxu0 0.0
    %6603 = vmatpush2.msra.mxu0 0.0
    %6604 = vmatprep.subr.mxu0 0.0
    %6605 = vmatpush2.msra.mxu0 0.0
    %6606 = vmatprep.subr.mxu0 0.0
    %6607 = vmatpush2.msra.mxu0 0.0
    %6608 = vmatprep.subr.mxu0 0.0
    %6609 = vmatpush2.msra.mxu0 0.0
    %6610 = vmatprep.subr.mxu0 0.0
    %6611 = vmatpush2.msra.mxu0 0.0
    %6612 = vmatprep.subr.mxu0 0.0
    %6613 = vmatpush2.msra.mxu0 0.0
    %6614 = vmatprep.subr.mxu0 0.0
    %6615 = vmatpush2.msra.mxu0 0.0
    %6616 = vmatprep.subr.mxu0 0.0
    %6617 = vmatpush2.msra.mxu0 0.0
    %6618 = vmatprep.mubr.f32.mxu0 0.0
    %6619 = vmatmul.mubr.f32.gmra.mxu0 %v6395
    %v6620 = vpop.f32.mrf.mxu0
    %v6621 = vadd.f32 0.0, %v6620
    %v6622 = vpop.f32.mrf.mxu0
    %v6623 = vadd.f32 0.0, %v6622
    %6624 = vmatprep.mubr.f32.mxu0 0.0
    %6625 = vmatmul.mubr.f32.gmra.mxu0 %v6398
    %v6626 = vpop.f32.mrf.mxu0
    %v6627 = vadd.f32 0.0, %v6626
    %v6628 = vpop.f32.mrf.mxu0
    %v6629 = vadd.f32 0.0, %v6628
    %6630 = vdwg.mxu0
    %6631 = vmatprep.subr.mxu0 0.0
    %6632 = vmatpush1.msra.mxu0 0.0
    %6633 = vmatprep.subr.mxu0 0.0
    %6634 = vmatpush1.msra.mxu0 0.0
    %6635 = vmatprep.subr.mxu0 0.0
    %6636 = vmatpush1.msra.mxu0 0.0
    %6637 = vmatprep.subr.mxu0 0.0
    %6638 = vmatpush1.msra.mxu0 0.0
    %6639 = vmatprep.subr.mxu0 0.0
    %6640 = vmatpush1.msra.mxu0 0.0
    %6641 = vmatprep.subr.mxu0 0.0
    %6642 = vmatpush1.msra.mxu0 0.0
    %6643 = vmatprep.subr.mxu0 0.0
    %6644 = vmatpush1.msra.mxu0 0.0
    %6645 = vmatprep.subr.mxu0 0.0
    %6646 = vmatpush1.msra.mxu0 0.0
    %6647 = vmatprep.subr.mxu0 0.0
    %6648 = vmatpush1.msra.mxu0 0.0
    %6649 = vmatprep.subr.mxu0 0.0
    %6650 = vmatpush1.msra.mxu0 0.0
    %6651 = vmatprep.subr.mxu0 0.0
    %6652 = vmatpush1.msra.mxu0 0.0
    %6653 = vmatprep.subr.mxu0 0.0
    %6654 = vmatpush1.msra.mxu0 0.0
    %6655 = vmatprep.subr.mxu0 0.0
    %6656 = vmatpush1.msra.mxu0 0.0
    %6657 = vmatprep.subr.mxu0 0.0
    %6658 = vmatpush1.msra.mxu0 0.0
    %6659 = vmatprep.subr.mxu0 0.0
    %6660 = vmatpush1.msra.mxu0 0.0
    %6661 = vmatprep.subr.mxu0 %v6390
    %6662 = vmatpush1.msra.mxu0 %v6389
    %6663 = vmatprep.subr.mxu0 0.0
    %6664 = vmatpush2.msra.mxu0 0.0
    %6665 = vmatprep.subr.mxu0 0.0
    %6666 = vmatpush2.msra.mxu0 0.0
    %6667 = vmatprep.subr.mxu0 0.0
    %6668 = vmatpush2.msra.mxu0 0.0
    %6669 = vmatprep.subr.mxu0 0.0
    %6670 = vmatpush2.msra.mxu0 0.0
    %6671 = vmatprep.subr.mxu0 0.0
    %6672 = vmatpush2.msra.mxu0 0.0
    %6673 = vmatprep.subr.mxu0 0.0
    %6674 = vmatpush2.msra.mxu0 0.0
    %6675 = vmatprep.subr.mxu0 0.0
    %6676 = vmatpush2.msra.mxu0 0.0
    %6677 = vmatprep.subr.mxu0 0.0
    %6678 = vmatpush2.msra.mxu0 0.0
    %6679 = vmatprep.subr.mxu0 0.0
    %6680 = vmatpush2.msra.mxu0 0.0
    %6681 = vmatprep.subr.mxu0 0.0
    %6682 = vmatpush2.msra.mxu0 0.0
    %6683 = vmatprep.subr.mxu0 0.0
    %6684 = vmatpush2.msra.mxu0 0.0
    %6685 = vmatprep.subr.mxu0 0.0
    %6686 = vmatpush2.msra.mxu0 0.0
    %6687 = vmatprep.subr.mxu0 0.0
    %6688 = vmatpush2.msra.mxu0 0.0
    %6689 = vmatprep.subr.mxu0 0.0
    %6690 = vmatpush2.msra.mxu0 0.0
    %6691 = vmatprep.subr.mxu0 0.0
    %6692 = vmatpush2.msra.mxu0 0.0
    %6693 = vmatprep.subr.mxu0 0.0
    %6694 = vmatpush2.msra.mxu0 0.0
    %6695 = vmatprep.mubr.f32.mxu0 0.0
    %6696 = vmatmul.mubr.f32.gmra.mxu0 %v6395
    %v6697 = vpop.f32.mrf.mxu0
    %v6698 = vadd.f32 0.0, %v6697
    %v6699 = vpop.f32.mrf.mxu0
    %v6700 = vadd.f32 0.0, %v6699
    %6701 = vmatprep.mubr.f32.mxu0 0.0
    %6702 = vmatmul.mubr.f32.gmra.mxu0 %v6398
    %v6703 = vpop.f32.mrf.mxu0
    %v6704 = vadd.f32 0.0, %v6703
    %v6705 = vpop.f32.mrf.mxu0
    %v6706 = vadd.f32 0.0, %v6705
    %6707 = vdwg.mxu0
    %v6708 = vadd.f32 %v6268, %v6467
    %v6709 = vadd.f32 %v6269, %v6469
    %v6710 = vadd.f32 %v6270, %v6544
    %v6711 = vadd.f32 %v6271, %v6546
    %v6712 = vadd.f32 %v6272, %v6621
    %v6713 = vadd.f32 %v6273, %v6623
    %v6714 = vadd.f32 %v6274, %v6698
    %v6715 = vadd.f32 %v6275, %v6700
    %v6716 = vadd.f32 %v6276, %v6473
    %v6717 = vadd.f32 %v6277, %v6475
    %v6718 = vadd.f32 %v6278, %v6550
    %v6719 = vadd.f32 %v6279, %v6552
    %v6720 = vadd.f32 %v6280, %v6627
    %v6721 = vadd.f32 %v6281, %v6629
    %v6722 = vadd.f32 %v6282, %v6704
    %v6723 = vadd.f32 %v6283, %v6706
    %vm6724 = vmand %vm6308, %vm4239
    %vm6725 = vmand %vm6309, %vm4240
    %vm6726 = vmand %vm6310, %vm4241
    %vm6727 = vmand %vm6311, %vm4242
    %vm6728 = vmand %vm6312, %vm4243
    %vm6729 = vmand %vm6313, %vm4244
    %vm6730 = vmand %vm6314, %vm4245
    %vm6731 = vmand %vm6315, %vm4246
    %vm6732 = vmand %vm6724, %vm4255
    %vm6733 = vmand %vm6725, %vm4256
    %vm6734 = vmand %vm6726, %vm4257
    %vm6735 = vmand %vm6727, %vm4258
    %vm6736 = vmand %vm6728, %vm4259
    %vm6737 = vmand %vm6729, %vm4260
    %vm6738 = vmand %vm6730, %vm4261
    %vm6739 = vmand %vm6731, %vm4262
    %v6740 = vsel %vm6732, 1, 0
    %v6741 = vsel %vm6733, 1, 0
    %v6742 = vsel %vm6734, 1, 0
    %v6743 = vsel %vm6735, 1, 0
    %v6744 = vsel %vm6736, 1, 0
    %v6745 = vsel %vm6737, 1, 0
    %v6746 = vsel %vm6738, 1, 0
    %v6747 = vsel %vm6739, 1, 0
    %vm6748 = vcmp.eq.s32.totalorder %v6740, 1
    %vm6749 = vcmp.eq.s32.totalorder %v6741, 1
    %vm6750 = vcmp.eq.s32.totalorder %v6742, 1
    %vm6751 = vcmp.eq.s32.totalorder %v6743, 1
    %vm6752 = vcmp.eq.s32.totalorder %v6744, 1
    %vm6753 = vcmp.eq.s32.totalorder %v6745, 1
    %vm6754 = vcmp.eq.s32.totalorder %v6746, 1
    %vm6755 = vcmp.eq.s32.totalorder %v6747, 1
    %6756 = vrot.lane.b32.xlu0 %v5859, 96
    %v6757 = vpop.permute.xlu0 %6756
    %6758 = vrot.lane.b32.xlu0 %v5860, 96
    %v6759 = vpop.permute.xlu0 %6758
    %6760 = vrot.lane.b32.xlu0 %v5861, 96
    %v6761 = vpop.permute.xlu0 %6760
    %6762 = vrot.lane.b32.xlu0 %v5862, 96
    %v6763 = vpop.permute.xlu0 %6762
    %6764 = vrot.lane.b32.xlu0 %v5863, 96
    %v6765 = vpop.permute.xlu0 %6764
    %6766 = vrot.lane.b32.xlu0 %v5864, 96
    %v6767 = vpop.permute.xlu0 %6766
    %6768 = vrot.lane.b32.xlu0 %v5865, 96
    %v6769 = vpop.permute.xlu0 %6768
    %6770 = vrot.lane.b32.xlu0 %v5866, 96
    %v6771 = vpop.permute.xlu0 %6770
    %6772 = vrot.lane.b32.xlu0 %v5867, 96
    %v6773 = vpop.permute.xlu0 %6772
    %vm6774 = vcmask 785408
    %v6775 = vsel %vm6774, %v6757, %v6759
    %v6776 = vsel %vm6774, %v6759, %v6761
    %v6777 = vsel %vm6774, %v6761, %v6763
    %v6778 = vsel %vm6774, %v6763, %v6765
    %v6779 = vsel %vm6774, %v6765, %v6767
    %v6780 = vsel %vm6774, %v6767, %v6769
    %v6781 = vsel %vm6774, %v6769, %v6771
    %v6782 = vsel %vm6774, %v6771, %v6773
    %v6791 = vsel %vm6748, %v6775, 0.0
    %v6792 = vsel %vm6749, %v6776, 0.0
    %v6793 = vsel %vm6750, %v6777, 0.0
    %v6794 = vsel %vm6751, %v6778, 0.0
    %v6795 = vsel %vm6752, %v6779, 0.0
    %v6796 = vsel %vm6753, %v6780, 0.0
    %v6797 = vsel %vm6754, %v6781, 0.0
    %v6798 = vsel %vm6755, %v6782, 0.0
    %s6799 = scalar_lea.vmem %s9, 112
    %v6800 = vld [vmem:[%s6799] sm:$0xff]
    %v6801 = vld [vmem:[%s6799 + $0x8] sm:$0x1]
    %v6803 = vsel %vm1370, %v6800, 0
    %v6806 = vsel %vm1370, %v6801, 0
    %6808 = vmatprep.subr.mxu0 0.0
    %6809 = vmatpush1.msra.mxu0 0.0
    %6810 = vmatprep.subr.mxu0 0.0
    %6811 = vmatpush1.msra.mxu0 0.0
    %6812 = vmatprep.subr.mxu0 0.0
    %6813 = vmatpush1.msra.mxu0 0.0
    %6814 = vmatprep.subr.mxu0 0.0
    %6815 = vmatpush1.msra.mxu0 0.0
    %6816 = vmatprep.subr.mxu0 0.0
    %6817 = vmatpush1.msra.mxu0 0.0
    %6818 = vmatprep.subr.mxu0 0.0
    %6819 = vmatpush1.msra.mxu0 0.0
    %6820 = vmatprep.subr.mxu0 0.0
    %6821 = vmatpush1.msra.mxu0 0.0
    %6822 = vmatprep.subr.mxu0 0.0
    %6823 = vmatpush1.msra.mxu0 0.0
    %6824 = vmatprep.subr.mxu0 0.0
    %6825 = vmatpush1.msra.mxu0 0.0
    %6826 = vmatprep.subr.mxu0 0.0
    %6827 = vmatpush1.msra.mxu0 0.0
    %6828 = vmatprep.subr.mxu0 0.0
    %6829 = vmatpush1.msra.mxu0 0.0
    %6830 = vmatprep.subr.mxu0 0.0
    %6831 = vmatpush1.msra.mxu0 0.0
    %6832 = vmatprep.subr.mxu0 0.0
    %6833 = vmatpush1.msra.mxu0 0.0
    %6834 = vmatprep.subr.mxu0 0.0
    %6835 = vmatpush1.msra.mxu0 0.0
    %6836 = vmatprep.subr.mxu0 0.0
    %6837 = vmatpush1.msra.mxu0 0.0
    %6838 = vmatprep.subr.mxu0 %v6792
    %6839 = vmatpush1.msra.mxu0 %v6791
    %6840 = vmatprep.subr.mxu0 0.0
    %6841 = vmatpush2.msra.mxu0 0.0
    %6842 = vmatprep.subr.mxu0 0.0
    %6843 = vmatpush2.msra.mxu0 0.0
    %6844 = vmatprep.subr.mxu0 0.0
    %6845 = vmatpush2.msra.mxu0 0.0
    %6846 = vmatprep.subr.mxu0 0.0
    %6847 = vmatpush2.msra.mxu0 0.0
    %6848 = vmatprep.subr.mxu0 0.0
    %6849 = vmatpush2.msra.mxu0 0.0
    %6850 = vmatprep.subr.mxu0 0.0
    %6851 = vmatpush2.msra.mxu0 0.0
    %6852 = vmatprep.subr.mxu0 0.0
    %6853 = vmatpush2.msra.mxu0 0.0
    %6854 = vmatprep.subr.mxu0 0.0
    %6855 = vmatpush2.msra.mxu0 0.0
    %6856 = vmatprep.subr.mxu0 0.0
    %6857 = vmatpush2.msra.mxu0 0.0
    %6858 = vmatprep.subr.mxu0 0.0
    %6859 = vmatpush2.msra.mxu0 0.0
    %6860 = vmatprep.subr.mxu0 0.0
    %6861 = vmatpush2.msra.mxu0 0.0
    %6862 = vmatprep.subr.mxu0 0.0
    %6863 = vmatpush2.msra.mxu0 0.0
    %6864 = vmatprep.subr.mxu0 0.0
    %6865 = vmatpush2.msra.mxu0 0.0
    %6866 = vmatprep.subr.mxu0 0.0
    %6867 = vmatpush2.msra.mxu0 0.0
    %6868 = vmatprep.subr.mxu0 0.0
    %6869 = vmatpush2.msra.mxu0 0.0
    %6870 = vmatprep.subr.mxu0 0.0
    %6871 = vmatpush2.msra.mxu0 0.0
    %6872 = vmatprep.mubr.f32.mxu0 0.0
    %6873 = vmatmul.mubr.f32.gmra.mxu0 %v6803
    %v6874 = vpop.f32.mrf.mxu0
    %v6875 = vadd.f32 0.0, %v6874
    %v6876 = vpop.f32.mrf.mxu0
    %v6877 = vadd.f32 0.0, %v6876
    %6878 = vmatprep.mubr.f32.mxu0 0.0
    %6879 = vmatmul.mubr.f32.gmra.mxu0 %v6806
    %v6880 = vpop.f32.mrf.mxu0
    %v6881 = vadd.f32 0.0, %v6880
    %v6882 = vpop.f32.mrf.mxu0
    %v6883 = vadd.f32 0.0, %v6882
    %6884 = vdwg.mxu0
    %6885 = vmatprep.subr.mxu0 0.0
    %6886 = vmatpush1.msra.mxu0 0.0
    %6887 = vmatprep.subr.mxu0 0.0
    %6888 = vmatpush1.msra.mxu0 0.0
    %6889 = vmatprep.subr.mxu0 0.0
    %6890 = vmatpush1.msra.mxu0 0.0
    %6891 = vmatprep.subr.mxu0 0.0
    %6892 = vmatpush1.msra.mxu0 0.0
    %6893 = vmatprep.subr.mxu0 0.0
    %6894 = vmatpush1.msra.mxu0 0.0
    %6895 = vmatprep.subr.mxu0 0.0
    %6896 = vmatpush1.msra.mxu0 0.0
    %6897 = vmatprep.subr.mxu0 0.0
    %6898 = vmatpush1.msra.mxu0 0.0
    %6899 = vmatprep.subr.mxu0 0.0
    %6900 = vmatpush1.msra.mxu0 0.0
    %6901 = vmatprep.subr.mxu0 0.0
    %6902 = vmatpush1.msra.mxu0 0.0
    %6903 = vmatprep.subr.mxu0 0.0
    %6904 = vmatpush1.msra.mxu0 0.0
    %6905 = vmatprep.subr.mxu0 0.0
    %6906 = vmatpush1.msra.mxu0 0.0
    %6907 = vmatprep.subr.mxu0 0.0
    %6908 = vmatpush1.msra.mxu0 0.0
    %6909 = vmatprep.subr.mxu0 0.0
    %6910 = vmatpush1.msra.mxu0 0.0
    %6911 = vmatprep.subr.mxu0 0.0
    %6912 = vmatpush1.msra.mxu0 0.0
    %6913 = vmatprep.subr.mxu0 0.0
    %6914 = vmatpush1.msra.mxu0 0.0
    %6915 = vmatprep.subr.mxu0 %v6794
    %6916 = vmatpush1.msra.mxu0 %v6793
    %6917 = vmatprep.subr.mxu0 0.0
    %6918 = vmatpush2.msra.mxu0 0.0
    %6919 = vmatprep.subr.mxu0 0.0
    %6920 = vmatpush2.msra.mxu0 0.0
    %6921 = vmatprep.subr.mxu0 0.0
    %6922 = vmatpush2.msra.mxu0 0.0
    %6923 = vmatprep.subr.mxu0 0.0
    %6924 = vmatpush2.msra.mxu0 0.0
    %6925 = vmatprep.subr.mxu0 0.0
    %6926 = vmatpush2.msra.mxu0 0.0
    %6927 = vmatprep.subr.mxu0 0.0
    %6928 = vmatpush2.msra.mxu0 0.0
    %6929 = vmatprep.subr.mxu0 0.0
    %6930 = vmatpush2.msra.mxu0 0.0
    %6931 = vmatprep.subr.mxu0 0.0
    %6932 = vmatpush2.msra.mxu0 0.0
    %6933 = vmatprep.subr.mxu0 0.0
    %6934 = vmatpush2.msra.mxu0 0.0
    %6935 = vmatprep.subr.mxu0 0.0
    %6936 = vmatpush2.msra.mxu0 0.0
    %6937 = vmatprep.subr.mxu0 0.0
    %6938 = vmatpush2.msra.mxu0 0.0
    %6939 = vmatprep.subr.mxu0 0.0
    %6940 = vmatpush2.msra.mxu0 0.0
    %6941 = vmatprep.subr.mxu0 0.0
    %6942 = vmatpush2.msra.mxu0 0.0
    %6943 = vmatprep.subr.mxu0 0.0
    %6944 = vmatpush2.msra.mxu0 0.0
    %6945 = vmatprep.subr.mxu0 0.0
    %6946 = vmatpush2.msra.mxu0 0.0
    %6947 = vmatprep.subr.mxu0 0.0
    %6948 = vmatpush2.msra.mxu0 0.0
    %6949 = vmatprep.mubr.f32.mxu0 0.0
    %6950 = vmatmul.mubr.f32.gmra.mxu0 %v6803
    %v6951 = vpop.f32.mrf.mxu0
    %v6952 = vadd.f32 0.0, %v6951
    %v6953 = vpop.f32.mrf.mxu0
    %v6954 = vadd.f32 0.0, %v6953
    %6955 = vmatprep.mubr.f32.mxu0 0.0
    %6956 = vmatmul.mubr.f32.gmra.mxu0 %v6806
    %v6957 = vpop.f32.mrf.mxu0
    %v6958 = vadd.f32 0.0, %v6957
    %v6959 = vpop.f32.mrf.mxu0
    %v6960 = vadd.f32 0.0, %v6959
    %6961 = vdwg.mxu0
    %6962 = vmatprep.subr.mxu0 0.0
    %6963 = vmatpush1.msra.mxu0 0.0
    %6964 = vmatprep.subr.mxu0 0.0
    %6965 = vmatpush1.msra.mxu0 0.0
    %6966 = vmatprep.subr.mxu0 0.0
    %6967 = vmatpush1.msra.mxu0 0.0
    %6968 = vmatprep.subr.mxu0 0.0
    %6969 = vmatpush1.msra.mxu0 0.0
    %6970 = vmatprep.subr.mxu0 0.0
    %6971 = vmatpush1.msra.mxu0 0.0
    %6972 = vmatprep.subr.mxu0 0.0
    %6973 = vmatpush1.msra.mxu0 0.0
    %6974 = vmatprep.subr.mxu0 0.0
    %6975 = vmatpush1.msra.mxu0 0.0
    %6976 = vmatprep.subr.mxu0 0.0
    %6977 = vmatpush1.msra.mxu0 0.0
    %6978 = vmatprep.subr.mxu0 0.0
    %6979 = vmatpush1.msra.mxu0 0.0
    %6980 = vmatprep.subr.mxu0 0.0
    %6981 = vmatpush1.msra.mxu0 0.0
    %6982 = vmatprep.subr.mxu0 0.0
    %6983 = vmatpush1.msra.mxu0 0.0
    %6984 = vmatprep.subr.mxu0 0.0
    %6985 = vmatpush1.msra.mxu0 0.0
    %6986 = vmatprep.subr.mxu0 0.0
    %6987 = vmatpush1.msra.mxu0 0.0
    %6988 = vmatprep.subr.mxu0 0.0
    %6989 = vmatpush1.msra.mxu0 0.0
    %6990 = vmatprep.subr.mxu0 0.0
    %6991 = vmatpush1.msra.mxu0 0.0
    %6992 = vmatprep.subr.mxu0 %v6796
    %6993 = vmatpush1.msra.mxu0 %v6795
    %6994 = vmatprep.subr.mxu0 0.0
    %6995 = vmatpush2.msra.mxu0 0.0
    %6996 = vmatprep.subr.mxu0 0.0
    %6997 = vmatpush2.msra.mxu0 0.0
    %6998 = vmatprep.subr.mxu0 0.0
    %6999 = vmatpush2.msra.mxu0 0.0
    %7000 = vmatprep.subr.mxu0 0.0
    %7001 = vmatpush2.msra.mxu0 0.0
    %7002 = vmatprep.subr.mxu0 0.0
    %7003 = vmatpush2.msra.mxu0 0.0
    %7004 = vmatprep.subr.mxu0 0.0
    %7005 = vmatpush2.msra.mxu0 0.0
    %7006 = vmatprep.subr.mxu0 0.0
    %7007 = vmatpush2.msra.mxu0 0.0
    %7008 = vmatprep.subr.mxu0 0.0
    %7009 = vmatpush2.msra.mxu0 0.0
    %7010 = vmatprep.subr.mxu0 0.0
    %7011 = vmatpush2.msra.mxu0 0.0
    %7012 = vmatprep.subr.mxu0 0.0
    %7013 = vmatpush2.msra.mxu0 0.0
    %7014 = vmatprep.subr.mxu0 0.0
    %7015 = vmatpush2.msra.mxu0 0.0
    %7016 = vmatprep.subr.mxu0 0.0
    %7017 = vmatpush2.msra.mxu0 0.0
    %7018 = vmatprep.subr.mxu0 0.0
    %7019 = vmatpush2.msra.mxu0 0.0
    %7020 = vmatprep.subr.mxu0 0.0
    %7021 = vmatpush2.msra.mxu0 0.0
    %7022 = vmatprep.subr.mxu0 0.0
    %7023 = vmatpush2.msra.mxu0 0.0
    %7024 = vmatprep.subr.mxu0 0.0
    %7025 = vmatpush2.msra.mxu0 0.0
    %7026 = vmatprep.mubr.f32.mxu0 0.0
    %7027 = vmatmul.mubr.f32.gmra.mxu0 %v6803
    %v7028 = vpop.f32.mrf.mxu0
    %v7029 = vadd.f32 0.0, %v7028
    %v7030 = vpop.f32.mrf.mxu0
    %v7031 = vadd.f32 0.0, %v7030
    %7032 = vmatprep.mubr.f32.mxu0 0.0
    %7033 = vmatmul.mubr.f32.gmra.mxu0 %v6806
    %v7034 = vpop.f32.mrf.mxu0
    %v7035 = vadd.f32 0.0, %v7034
    %v7036 = vpop.f32.mrf.mxu0
    %v7037 = vadd.f32 0.0, %v7036
    %7038 = vdwg.mxu0
    %7039 = vmatprep.subr.mxu0 0.0
    %7040 = vmatpush1.msra.mxu0 0.0
    %7041 = vmatprep.subr.mxu0 0.0
    %7042 = vmatpush1.msra.mxu0 0.0
    %7043 = vmatprep.subr.mxu0 0.0
    %7044 = vmatpush1.msra.mxu0 0.0
    %7045 = vmatprep.subr.mxu0 0.0
    %7046 = vmatpush1.msra.mxu0 0.0
    %7047 = vmatprep.subr.mxu0 0.0
    %7048 = vmatpush1.msra.mxu0 0.0
    %7049 = vmatprep.subr.mxu0 0.0
    %7050 = vmatpush1.msra.mxu0 0.0
    %7051 = vmatprep.subr.mxu0 0.0
    %7052 = vmatpush1.msra.mxu0 0.0
    %7053 = vmatprep.subr.mxu0 0.0
    %7054 = vmatpush1.msra.mxu0 0.0
    %7055 = vmatprep.subr.mxu0 0.0
    %7056 = vmatpush1.msra.mxu0 0.0
    %7057 = vmatprep.subr.mxu0 0.0
    %7058 = vmatpush1.msra.mxu0 0.0
    %7059 = vmatprep.subr.mxu0 0.0
    %7060 = vmatpush1.msra.mxu0 0.0
    %7061 = vmatprep.subr.mxu0 0.0
    %7062 = vmatpush1.msra.mxu0 0.0
    %7063 = vmatprep.subr.mxu0 0.0
    %7064 = vmatpush1.msra.mxu0 0.0
    %7065 = vmatprep.subr.mxu0 0.0
    %7066 = vmatpush1.msra.mxu0 0.0
    %7067 = vmatprep.subr.mxu0 0.0
    %7068 = vmatpush1.msra.mxu0 0.0
    %7069 = vmatprep.subr.mxu0 %v6798
    %7070 = vmatpush1.msra.mxu0 %v6797
    %7071 = vmatprep.subr.mxu0 0.0
    %7072 = vmatpush2.msra.mxu0 0.0
    %7073 = vmatprep.subr.mxu0 0.0
    %7074 = vmatpush2.msra.mxu0 0.0
    %7075 = vmatprep.subr.mxu0 0.0
    %7076 = vmatpush2.msra.mxu0 0.0
    %7077 = vmatprep.subr.mxu0 0.0
    %7078 = vmatpush2.msra.mxu0 0.0
    %7079 = vmatprep.subr.mxu0 0.0
    %7080 = vmatpush2.msra.mxu0 0.0
    %7081 = vmatprep.subr.mxu0 0.0
    %7082 = vmatpush2.msra.mxu0 0.0
    %7083 = vmatprep.subr.mxu0 0.0
    %7084 = vmatpush2.msra.mxu0 0.0
    %7085 = vmatprep.subr.mxu0 0.0
    %7086 = vmatpush2.msra.mxu0 0.0
    %7087 = vmatprep.subr.mxu0 0.0
    %7088 = vmatpush2.msra.mxu0 0.0
    %7089 = vmatprep.subr.mxu0 0.0
    %7090 = vmatpush2.msra.mxu0 0.0
    %7091 = vmatprep.subr.mxu0 0.0
    %7092 = vmatpush2.msra.mxu0 0.0
    %7093 = vmatprep.subr.mxu0 0.0
    %7094 = vmatpush2.msra.mxu0 0.0
    %7095 = vmatprep.subr.mxu0 0.0
    %7096 = vmatpush2.msra.mxu0 0.0
    %7097 = vmatprep.subr.mxu0 0.0
    %7098 = vmatpush2.msra.mxu0 0.0
    %7099 = vmatprep.subr.mxu0 0.0
    %7100 = vmatpush2.msra.mxu0 0.0
    %7101 = vmatprep.subr.mxu0 0.0
    %7102 = vmatpush2.msra.mxu0 0.0
    %7103 = vmatprep.mubr.f32.mxu0 0.0
    %7104 = vmatmul.mubr.f32.gmra.mxu0 %v6803
    %v7105 = vpop.f32.mrf.mxu0
    %v7106 = vadd.f32 0.0, %v7105
    %v7107 = vpop.f32.mrf.mxu0
    %v7108 = vadd.f32 0.0, %v7107
    %7109 = vmatprep.mubr.f32.mxu0 0.0
    %7110 = vmatmul.mubr.f32.gmra.mxu0 %v6806
    %v7111 = vpop.f32.mrf.mxu0
    %v7112 = vadd.f32 0.0, %v7111
    %v7113 = vpop.f32.mrf.mxu0
    %v7114 = vadd.f32 0.0, %v7113
    %7115 = vdwg.mxu0
    %v7116 = vadd.f32 %v6708, %v6875
    %v7117 = vadd.f32 %v6709, %v6877
    %v7118 = vadd.f32 %v6710, %v6952
    %v7119 = vadd.f32 %v6711, %v6954
    %v7120 = vadd.f32 %v6712, %v7029
    %v7121 = vadd.f32 %v6713, %v7031
    %v7122 = vadd.f32 %v6714, %v7106
    %v7123 = vadd.f32 %v6715, %v7108
    %v7124 = vadd.f32 %v6716, %v6881
    %v7125 = vadd.f32 %v6717, %v6883
    %v7126 = vadd.f32 %v6718, %v6958
    %v7127 = vadd.f32 %v6719, %v6960
    %v7128 = vadd.f32 %v6720, %v7035
    %v7129 = vadd.f32 %v6721, %v7037
    %v7130 = vadd.f32 %v6722, %v7112
    %v7131 = vadd.f32 %v6723, %v7114
    %vm7132 = vmand %vm6308, %vm4671
    %vm7133 = vmand %vm6309, %vm4672
    %vm7134 = vmand %vm6310, %vm4673
    %vm7135 = vmand %vm6311, %vm4674
    %vm7136 = vmand %vm6312, %vm4675
    %vm7137 = vmand %vm6313, %vm4676
    %vm7138 = vmand %vm6314, %vm4677
    %vm7139 = vmand %vm6315, %vm4678
    %vm7140 = vmand %vm7132, %vm4687
    %vm7141 = vmand %vm7133, %vm4688
    %vm7142 = vmand %vm7134, %vm4689
    %vm7143 = vmand %vm7135, %vm4690
    %vm7144 = vmand %vm7136, %vm4691
    %vm7145 = vmand %vm7137, %vm4692
    %vm7146 = vmand %vm7138, %vm4693
    %vm7147 = vmand %vm7139, %vm4694
    %v7148 = vsel %vm7140, 1, 0
    %v7149 = vsel %vm7141, 1, 0
    %v7150 = vsel %vm7142, 1, 0
    %v7151 = vsel %vm7143, 1, 0
    %v7152 = vsel %vm7144, 1, 0
    %v7153 = vsel %vm7145, 1, 0
    %v7154 = vsel %vm7146, 1, 0
    %v7155 = vsel %vm7147, 1, 0
    %vm7156 = vcmp.eq.s32.totalorder %v7148, 1
    %vm7157 = vcmp.eq.s32.totalorder %v7149, 1
    %vm7158 = vcmp.eq.s32.totalorder %v7150, 1
    %vm7159 = vcmp.eq.s32.totalorder %v7151, 1
    %vm7160 = vcmp.eq.s32.totalorder %v7152, 1
    %vm7161 = vcmp.eq.s32.totalorder %v7153, 1
    %vm7162 = vcmp.eq.s32.totalorder %v7154, 1
    %vm7163 = vcmp.eq.s32.totalorder %v7155, 1
    %7164 = vrot.lane.b32.xlu0 %v5859, 95
    %v7165 = vpop.permute.xlu0 %7164
    %7166 = vrot.lane.b32.xlu0 %v5860, 95
    %v7167 = vpop.permute.xlu0 %7166
    %7168 = vrot.lane.b32.xlu0 %v5861, 95
    %v7169 = vpop.permute.xlu0 %7168
    %7170 = vrot.lane.b32.xlu0 %v5862, 95
    %v7171 = vpop.permute.xlu0 %7170
    %7172 = vrot.lane.b32.xlu0 %v5863, 95
    %v7173 = vpop.permute.xlu0 %7172
    %7174 = vrot.lane.b32.xlu0 %v5864, 95
    %v7175 = vpop.permute.xlu0 %7174
    %7176 = vrot.lane.b32.xlu0 %v5865, 95
    %v7177 = vpop.permute.xlu0 %7176
    %7178 = vrot.lane.b32.xlu0 %v5866, 95
    %v7179 = vpop.permute.xlu0 %7178
    %7180 = vrot.lane.b32.xlu0 %v5867, 95
    %v7181 = vpop.permute.xlu0 %7180
    %vm7182 = vcmask 777216
    %v7183 = vsel %vm7182, %v7165, %v7167
    %v7184 = vsel %vm7182, %v7167, %v7169
    %v7185 = vsel %vm7182, %v7169, %v7171
    %v7186 = vsel %vm7182, %v7171, %v7173
    %v7187 = vsel %vm7182, %v7173, %v7175
    %v7188 = vsel %vm7182, %v7175, %v7177
    %v7189 = vsel %vm7182, %v7177, %v7179
    %v7190 = vsel %vm7182, %v7179, %v7181
    %v7199 = vsel %vm7156, %v7183, 0.0
    %v7200 = vsel %vm7157, %v7184, 0.0
    %v7201 = vsel %vm7158, %v7185, 0.0
    %v7202 = vsel %vm7159, %v7186, 0.0
    %v7203 = vsel %vm7160, %v7187, 0.0
    %v7204 = vsel %vm7161, %v7188, 0.0
    %v7205 = vsel %vm7162, %v7189, 0.0
    %v7206 = vsel %vm7163, %v7190, 0.0
    %s7207 = scalar_lea.vmem %s9, 128
    %v7208 = vld [vmem:[%s7207] sm:$0xff]
    %v7209 = vld [vmem:[%s7207 + $0x8] sm:$0x1]
    %v7211 = vsel %vm1370, %v7208, 0
    %v7214 = vsel %vm1370, %v7209, 0
    %7216 = vmatprep.subr.mxu0 0.0
    %7217 = vmatpush1.msra.mxu0 0.0
    %7218 = vmatprep.subr.mxu0 0.0
    %7219 = vmatpush1.msra.mxu0 0.0
    %7220 = vmatprep.subr.mxu0 0.0
    %7221 = vmatpush1.msra.mxu0 0.0
    %7222 = vmatprep.subr.mxu0 0.0
    %7223 = vmatpush1.msra.mxu0 0.0
    %7224 = vmatprep.subr.mxu0 0.0
    %7225 = vmatpush1.msra.mxu0 0.0
    %7226 = vmatprep.subr.mxu0 0.0
    %7227 = vmatpush1.msra.mxu0 0.0
    %7228 = vmatprep.subr.mxu0 0.0
    %7229 = vmatpush1.msra.mxu0 0.0
    %7230 = vmatprep.subr.mxu0 0.0
    %7231 = vmatpush1.msra.mxu0 0.0
    %7232 = vmatprep.subr.mxu0 0.0
    %7233 = vmatpush1.msra.mxu0 0.0
    %7234 = vmatprep.subr.mxu0 0.0
    %7235 = vmatpush1.msra.mxu0 0.0
    %7236 = vmatprep.subr.mxu0 0.0
    %7237 = vmatpush1.msra.mxu0 0.0
    %7238 = vmatprep.subr.mxu0 0.0
    %7239 = vmatpush1.msra.mxu0 0.0
    %7240 = vmatprep.subr.mxu0 0.0
    %7241 = vmatpush1.msra.mxu0 0.0
    %7242 = vmatprep.subr.mxu0 0.0
    %7243 = vmatpush1.msra.mxu0 0.0
    %7244 = vmatprep.subr.mxu0 0.0
    %7245 = vmatpush1.msra.mxu0 0.0
    %7246 = vmatprep.subr.mxu0 %v7200
    %7247 = vmatpush1.msra.mxu0 %v7199
    %7248 = vmatprep.subr.mxu0 0.0
    %7249 = vmatpush2.msra.mxu0 0.0
    %7250 = vmatprep.subr.mxu0 0.0
    %7251 = vmatpush2.msra.mxu0 0.0
    %7252 = vmatprep.subr.mxu0 0.0
    %7253 = vmatpush2.msra.mxu0 0.0
    %7254 = vmatprep.subr.mxu0 0.0
    %7255 = vmatpush2.msra.mxu0 0.0
    %7256 = vmatprep.subr.mxu0 0.0
    %7257 = vmatpush2.msra.mxu0 0.0
    %7258 = vmatprep.subr.mxu0 0.0
    %7259 = vmatpush2.msra.mxu0 0.0
    %7260 = vmatprep.subr.mxu0 0.0
    %7261 = vmatpush2.msra.mxu0 0.0
    %7262 = vmatprep.subr.mxu0 0.0
    %7263 = vmatpush2.msra.mxu0 0.0
    %7264 = vmatprep.subr.mxu0 0.0
    %7265 = vmatpush2.msra.mxu0 0.0
    %7266 = vmatprep.subr.mxu0 0.0
    %7267 = vmatpush2.msra.mxu0 0.0
    %7268 = vmatprep.subr.mxu0 0.0
    %7269 = vmatpush2.msra.mxu0 0.0
    %7270 = vmatprep.subr.mxu0 0.0
    %7271 = vmatpush2.msra.mxu0 0.0
    %7272 = vmatprep.subr.mxu0 0.0
    %7273 = vmatpush2.msra.mxu0 0.0
    %7274 = vmatprep.subr.mxu0 0.0
    %7275 = vmatpush2.msra.mxu0 0.0
    %7276 = vmatprep.subr.mxu0 0.0
    %7277 = vmatpush2.msra.mxu0 0.0
    %7278 = vmatprep.subr.mxu0 0.0
    %7279 = vmatpush2.msra.mxu0 0.0
    %7280 = vmatprep.mubr.f32.mxu0 0.0
    %7281 = vmatmul.mubr.f32.gmra.mxu0 %v7211
    %v7282 = vpop.f32.mrf.mxu0
    %v7283 = vadd.f32 0.0, %v7282
    %v7284 = vpop.f32.mrf.mxu0
    %v7285 = vadd.f32 0.0, %v7284
    %7286 = vmatprep.mubr.f32.mxu0 0.0
    %7287 = vmatmul.mubr.f32.gmra.mxu0 %v7214
    %v7288 = vpop.f32.mrf.mxu0
    %v7289 = vadd.f32 0.0, %v7288
    %v7290 = vpop.f32.mrf.mxu0
    %v7291 = vadd.f32 0.0, %v7290
    %7292 = vdwg.mxu0
    %7293 = vmatprep.subr.mxu0 0.0
    %7294 = vmatpush1.msra.mxu0 0.0
    %7295 = vmatprep.subr.mxu0 0.0
    %7296 = vmatpush1.msra.mxu0 0.0
    %7297 = vmatprep.subr.mxu0 0.0
    %7298 = vmatpush1.msra.mxu0 0.0
    %7299 = vmatprep.subr.mxu0 0.0
    %7300 = vmatpush1.msra.mxu0 0.0
    %7301 = vmatprep.subr.mxu0 0.0
    %7302 = vmatpush1.msra.mxu0 0.0
    %7303 = vmatprep.subr.mxu0 0.0
    %7304 = vmatpush1.msra.mxu0 0.0
    %7305 = vmatprep.subr.mxu0 0.0
    %7306 = vmatpush1.msra.mxu0 0.0
    %7307 = vmatprep.subr.mxu0 0.0
    %7308 = vmatpush1.msra.mxu0 0.0
    %7309 = vmatprep.subr.mxu0 0.0
    %7310 = vmatpush1.msra.mxu0 0.0
    %7311 = vmatprep.subr.mxu0 0.0
    %7312 = vmatpush1.msra.mxu0 0.0
    %7313 = vmatprep.subr.mxu0 0.0
    %7314 = vmatpush1.msra.mxu0 0.0
    %7315 = vmatprep.subr.mxu0 0.0
    %7316 = vmatpush1.msra.mxu0 0.0
    %7317 = vmatprep.subr.mxu0 0.0
    %7318 = vmatpush1.msra.mxu0 0.0
    %7319 = vmatprep.subr.mxu0 0.0
    %7320 = vmatpush1.msra.mxu0 0.0
    %7321 = vmatprep.subr.mxu0 0.0
    %7322 = vmatpush1.msra.mxu0 0.0
    %7323 = vmatprep.subr.mxu0 %v7202
    %7324 = vmatpush1.msra.mxu0 %v7201
    %7325 = vmatprep.subr.mxu0 0.0
    %7326 = vmatpush2.msra.mxu0 0.0
    %7327 = vmatprep.subr.mxu0 0.0
    %7328 = vmatpush2.msra.mxu0 0.0
    %7329 = vmatprep.subr.mxu0 0.0
    %7330 = vmatpush2.msra.mxu0 0.0
    %7331 = vmatprep.subr.mxu0 0.0
    %7332 = vmatpush2.msra.mxu0 0.0
    %7333 = vmatprep.subr.mxu0 0.0
    %7334 = vmatpush2.msra.mxu0 0.0
    %7335 = vmatprep.subr.mxu0 0.0
    %7336 = vmatpush2.msra.mxu0 0.0
    %7337 = vmatprep.subr.mxu0 0.0
    %7338 = vmatpush2.msra.mxu0 0.0
    %7339 = vmatprep.subr.mxu0 0.0
    %7340 = vmatpush2.msra.mxu0 0.0
    %7341 = vmatprep.subr.mxu0 0.0
    %7342 = vmatpush2.msra.mxu0 0.0
    %7343 = vmatprep.subr.mxu0 0.0
    %7344 = vmatpush2.msra.mxu0 0.0
    %7345 = vmatprep.subr.mxu0 0.0
    %7346 = vmatpush2.msra.mxu0 0.0
    %7347 = vmatprep.subr.mxu0 0.0
    %7348 = vmatpush2.msra.mxu0 0.0
    %7349 = vmatprep.subr.mxu0 0.0
    %7350 = vmatpush2.msra.mxu0 0.0
    %7351 = vmatprep.subr.mxu0 0.0
    %7352 = vmatpush2.msra.mxu0 0.0
    %7353 = vmatprep.subr.mxu0 0.0
    %7354 = vmatpush2.msra.mxu0 0.0
    %7355 = vmatprep.subr.mxu0 0.0
    %7356 = vmatpush2.msra.mxu0 0.0
    %7357 = vmatprep.mubr.f32.mxu0 0.0
    %7358 = vmatmul.mubr.f32.gmra.mxu0 %v7211
    %v7359 = vpop.f32.mrf.mxu0
    %v7360 = vadd.f32 0.0, %v7359
    %v7361 = vpop.f32.mrf.mxu0
    %v7362 = vadd.f32 0.0, %v7361
    %7363 = vmatprep.mubr.f32.mxu0 0.0
    %7364 = vmatmul.mubr.f32.gmra.mxu0 %v7214
    %v7365 = vpop.f32.mrf.mxu0
    %v7366 = vadd.f32 0.0, %v7365
    %v7367 = vpop.f32.mrf.mxu0
    %v7368 = vadd.f32 0.0, %v7367
    %7369 = vdwg.mxu0
    %7370 = vmatprep.subr.mxu0 0.0
    %7371 = vmatpush1.msra.mxu0 0.0
    %7372 = vmatprep.subr.mxu0 0.0
    %7373 = vmatpush1.msra.mxu0 0.0
    %7374 = vmatprep.subr.mxu0 0.0
    %7375 = vmatpush1.msra.mxu0 0.0
    %7376 = vmatprep.subr.mxu0 0.0
    %7377 = vmatpush1.msra.mxu0 0.0
    %7378 = vmatprep.subr.mxu0 0.0
    %7379 = vmatpush1.msra.mxu0 0.0
    %7380 = vmatprep.subr.mxu0 0.0
    %7381 = vmatpush1.msra.mxu0 0.0
    %7382 = vmatprep.subr.mxu0 0.0
    %7383 = vmatpush1.msra.mxu0 0.0
    %7384 = vmatprep.subr.mxu0 0.0
    %7385 = vmatpush1.msra.mxu0 0.0
    %7386 = vmatprep.subr.mxu0 0.0
    %7387 = vmatpush1.msra.mxu0 0.0
    %7388 = vmatprep.subr.mxu0 0.0
    %7389 = vmatpush1.msra.mxu0 0.0
    %7390 = vmatprep.subr.mxu0 0.0
    %7391 = vmatpush1.msra.mxu0 0.0
    %7392 = vmatprep.subr.mxu0 0.0
    %7393 = vmatpush1.msra.mxu0 0.0
    %7394 = vmatprep.subr.mxu0 0.0
    %7395 = vmatpush1.msra.mxu0 0.0
    %7396 = vmatprep.subr.mxu0 0.0
    %7397 = vmatpush1.msra.mxu0 0.0
    %7398 = vmatprep.subr.mxu0 0.0
    %7399 = vmatpush1.msra.mxu0 0.0
    %7400 = vmatprep.subr.mxu0 %v7204
    %7401 = vmatpush1.msra.mxu0 %v7203
    %7402 = vmatprep.subr.mxu0 0.0
    %7403 = vmatpush2.msra.mxu0 0.0
    %7404 = vmatprep.subr.mxu0 0.0
    %7405 = vmatpush2.msra.mxu0 0.0
    %7406 = vmatprep.subr.mxu0 0.0
    %7407 = vmatpush2.msra.mxu0 0.0
    %7408 = vmatprep.subr.mxu0 0.0
    %7409 = vmatpush2.msra.mxu0 0.0
    %7410 = vmatprep.subr.mxu0 0.0
    %7411 = vmatpush2.msra.mxu0 0.0
    %7412 = vmatprep.subr.mxu0 0.0
    %7413 = vmatpush2.msra.mxu0 0.0
    %7414 = vmatprep.subr.mxu0 0.0
    %7415 = vmatpush2.msra.mxu0 0.0
    %7416 = vmatprep.subr.mxu0 0.0
    %7417 = vmatpush2.msra.mxu0 0.0
    %7418 = vmatprep.subr.mxu0 0.0
    %7419 = vmatpush2.msra.mxu0 0.0
    %7420 = vmatprep.subr.mxu0 0.0
    %7421 = vmatpush2.msra.mxu0 0.0
    %7422 = vmatprep.subr.mxu0 0.0
    %7423 = vmatpush2.msra.mxu0 0.0
    %7424 = vmatprep.subr.mxu0 0.0
    %7425 = vmatpush2.msra.mxu0 0.0
    %7426 = vmatprep.subr.mxu0 0.0
    %7427 = vmatpush2.msra.mxu0 0.0
    %7428 = vmatprep.subr.mxu0 0.0
    %7429 = vmatpush2.msra.mxu0 0.0
    %7430 = vmatprep.subr.mxu0 0.0
    %7431 = vmatpush2.msra.mxu0 0.0
    %7432 = vmatprep.subr.mxu0 0.0
    %7433 = vmatpush2.msra.mxu0 0.0
    %7434 = vmatprep.mubr.f32.mxu0 0.0
    %7435 = vmatmul.mubr.f32.gmra.mxu0 %v7211
    %v7436 = vpop.f32.mrf.mxu0
    %v7437 = vadd.f32 0.0, %v7436
    %v7438 = vpop.f32.mrf.mxu0
    %v7439 = vadd.f32 0.0, %v7438
    %7440 = vmatprep.mubr.f32.mxu0 0.0
    %7441 = vmatmul.mubr.f32.gmra.mxu0 %v7214
    %v7442 = vpop.f32.mrf.mxu0
    %v7443 = vadd.f32 0.0, %v7442
    %v7444 = vpop.f32.mrf.mxu0
    %v7445 = vadd.f32 0.0, %v7444
    %7446 = vdwg.mxu0
    %7447 = vmatprep.subr.mxu0 0.0
    %7448 = vmatpush1.msra.mxu0 0.0
    %7449 = vmatprep.subr.mxu0 0.0
    %7450 = vmatpush1.msra.mxu0 0.0
    %7451 = vmatprep.subr.mxu0 0.0
    %7452 = vmatpush1.msra.mxu0 0.0
    %7453 = vmatprep.subr.mxu0 0.0
    %7454 = vmatpush1.msra.mxu0 0.0
    %7455 = vmatprep.subr.mxu0 0.0
    %7456 = vmatpush1.msra.mxu0 0.0
    %7457 = vmatprep.subr.mxu0 0.0
    %7458 = vmatpush1.msra.mxu0 0.0
    %7459 = vmatprep.subr.mxu0 0.0
    %7460 = vmatpush1.msra.mxu0 0.0
    %7461 = vmatprep.subr.mxu0 0.0
    %7462 = vmatpush1.msra.mxu0 0.0
    %7463 = vmatprep.subr.mxu0 0.0
    %7464 = vmatpush1.msra.mxu0 0.0
    %7465 = vmatprep.subr.mxu0 0.0
    %7466 = vmatpush1.msra.mxu0 0.0
    %7467 = vmatprep.subr.mxu0 0.0
    %7468 = vmatpush1.msra.mxu0 0.0
    %7469 = vmatprep.subr.mxu0 0.0
    %7470 = vmatpush1.msra.mxu0 0.0
    %7471 = vmatprep.subr.mxu0 0.0
    %7472 = vmatpush1.msra.mxu0 0.0
    %7473 = vmatprep.subr.mxu0 0.0
    %7474 = vmatpush1.msra.mxu0 0.0
    %7475 = vmatprep.subr.mxu0 0.0
    %7476 = vmatpush1.msra.mxu0 0.0
    %7477 = vmatprep.subr.mxu0 %v7206
    %7478 = vmatpush1.msra.mxu0 %v7205
    %7479 = vmatprep.subr.mxu0 0.0
    %7480 = vmatpush2.msra.mxu0 0.0
    %7481 = vmatprep.subr.mxu0 0.0
    %7482 = vmatpush2.msra.mxu0 0.0
    %7483 = vmatprep.subr.mxu0 0.0
    %7484 = vmatpush2.msra.mxu0 0.0
    %7485 = vmatprep.subr.mxu0 0.0
    %7486 = vmatpush2.msra.mxu0 0.0
    %7487 = vmatprep.subr.mxu0 0.0
    %7488 = vmatpush2.msra.mxu0 0.0
    %7489 = vmatprep.subr.mxu0 0.0
    %7490 = vmatpush2.msra.mxu0 0.0
    %7491 = vmatprep.subr.mxu0 0.0
    %7492 = vmatpush2.msra.mxu0 0.0
    %7493 = vmatprep.subr.mxu0 0.0
    %7494 = vmatpush2.msra.mxu0 0.0
    %7495 = vmatprep.subr.mxu0 0.0
    %7496 = vmatpush2.msra.mxu0 0.0
    %7497 = vmatprep.subr.mxu0 0.0
    %7498 = vmatpush2.msra.mxu0 0.0
    %7499 = vmatprep.subr.mxu0 0.0
    %7500 = vmatpush2.msra.mxu0 0.0
    %7501 = vmatprep.subr.mxu0 0.0
    %7502 = vmatpush2.msra.mxu0 0.0
    %7503 = vmatprep.subr.mxu0 0.0
    %7504 = vmatpush2.msra.mxu0 0.0
    %7505 = vmatprep.subr.mxu0 0.0
    %7506 = vmatpush2.msra.mxu0 0.0
    %7507 = vmatprep.subr.mxu0 0.0
    %7508 = vmatpush2.msra.mxu0 0.0
    %7509 = vmatprep.subr.mxu0 0.0
    %7510 = vmatpush2.msra.mxu0 0.0
    %7511 = vmatprep.mubr.f32.mxu0 0.0
    %7512 = vmatmul.mubr.f32.gmra.mxu0 %v7211
    %v7513 = vpop.f32.mrf.mxu0
    %v7514 = vadd.f32 0.0, %v7513
    %v7515 = vpop.f32.mrf.mxu0
    %v7516 = vadd.f32 0.0, %v7515
    %7517 = vmatprep.mubr.f32.mxu0 0.0
    %7518 = vmatmul.mubr.f32.gmra.mxu0 %v7214
    %v7519 = vpop.f32.mrf.mxu0
    %v7520 = vadd.f32 0.0, %v7519
    %v7521 = vpop.f32.mrf.mxu0
    %v7522 = vadd.f32 0.0, %v7521
    %7523 = vdwg.mxu0
    %v7524 = vadd.f32 %v7116, %v7283
    %v7525 = vadd.f32 %v7117, %v7285
    %v7526 = vadd.f32 %v7118, %v7360
    %v7527 = vadd.f32 %v7119, %v7362
    %v7528 = vadd.f32 %v7120, %v7437
    %v7529 = vadd.f32 %v7121, %v7439
    %v7530 = vadd.f32 %v7122, %v7514
    %v7531 = vadd.f32 %v7123, %v7516
    %v7532 = vadd.f32 %v7124, %v7289
    %v7533 = vadd.f32 %v7125, %v7291
    %v7534 = vadd.f32 %v7126, %v7366
    %v7535 = vadd.f32 %v7127, %v7368
    %v7536 = vadd.f32 %v7128, %v7443
    %v7537 = vadd.f32 %v7129, %v7445
    %v7538 = vadd.f32 %v7130, %v7520
    %v7539 = vadd.f32 %v7131, %v7522
    %v7540 = vtanh.pop %v7524
    %v7541 = vtanh.pop %v7525
    %v7542 = vtanh.pop %v7526
    %v7543 = vtanh.pop %v7527
    %v7544 = vtanh.pop %v7528
    %v7545 = vtanh.pop %v7529
    %v7546 = vtanh.pop %v7530
    %v7547 = vtanh.pop %v7531
    %v7548 = vtanh.pop %v7532
    %v7549 = vtanh.pop %v7533
    %v7550 = vtanh.pop %v7534
    %v7551 = vtanh.pop %v7535
    %v7552 = vtanh.pop %v7536
    %v7553 = vtanh.pop %v7537
    %v7554 = vtanh.pop %v7538
    %v7555 = vtanh.pop %v7539
    %v7556 = vmul.f32 %v7540, 0.8
    %v7557 = vmul.f32 %v7541, 0.8
    %v7558 = vmul.f32 %v7542, 0.8
    %v7559 = vmul.f32 %v7543, 0.8
    %v7560 = vmul.f32 %v7544, 0.8
    %v7561 = vmul.f32 %v7545, 0.8
    %v7562 = vmul.f32 %v7546, 0.8
    %v7563 = vmul.f32 %v7547, 0.8
    %v7564 = vmul.f32 %v7548, 0.8
    %v7565 = vmul.f32 %v7549, 0.8
    %v7566 = vmul.f32 %v7550, 0.8
    %v7567 = vmul.f32 %v7551, 0.8
    %v7568 = vmul.f32 %v7552, 0.8
    %v7569 = vmul.f32 %v7553, 0.8
    %v7570 = vmul.f32 %v7554, 0.8
    %v7571 = vmul.f32 %v7555, 0.8
    %7572 = vst [vmem:[%s14] sm:$0xff] %v7556
    %7573 = vst [vmem:[%s14 + $0x8] sm:$0xff] %v7557
    %7574 = vst [vmem:[%s14 + $0x10] sm:$0xff] %v7558
    %7575 = vst [vmem:[%s14 + $0x18] sm:$0xff] %v7559
    %7576 = vst [vmem:[%s14 + $0x20] sm:$0xff] %v7560
    %7577 = vst [vmem:[%s14 + $0x28] sm:$0xff] %v7561
    %7578 = vst [vmem:[%s14 + $0x30] sm:$0xff] %v7562
    %7579 = vst [vmem:[%s14 + $0x38] sm:$0xff] %v7563
    %7580 = vst [vmem:[%s14 + $0x40] sm:$0x1] %v7564
    %7581 = vst [vmem:[%s14 + $0x48] sm:$0x1] %v7565
    %7582 = vst [vmem:[%s14 + $0x50] sm:$0x1] %v7566
    %7583 = vst [vmem:[%s14 + $0x58] sm:$0x1] %v7567
    %7584 = vst [vmem:[%s14 + $0x60] sm:$0x1] %v7568
    %7585 = vst [vmem:[%s14 + $0x68] sm:$0x1] %v7569
    %7586 = vst [vmem:[%s14 + $0x70] sm:$0x1] %v7570
    %7587 = vst [vmem:[%s14 + $0x78] sm:$0x1] %v7571
    // Predicated region
    $region78: #{hypernet_forward.1} parent=1 // pred_check
      _
    $region79: #{hypernet_forward.1} parent=1 // pred_check_branch
      %7589 = sbr.rel (0) target = $region81
    $region80: #{hypernet_forward.1} parent=1 // pred_region
      _
    $region81: #{hypernet_forward.1} parent=1 // pred_fallthru
      _
    // Predicated region
    $region82: #{hypernet_forward.1} parent=1 // pred_check
      _
    $region83: #{hypernet_forward.1} parent=1 // pred_check_branch
      %7591 = sbr.rel (0) target = $region85
    $region84: #{hypernet_forward.1} parent=1 // pred_region
      _
    $region85: #{hypernet_forward.1} parent=1 // pred_fallthru
      _
    %7592 = vsyncpa [#allocation7], 1
    %7593 = vsyncpa [#allocation9], 1
    %7594 = vsyncpa [#allocation12], 1

</llo_original>
